<compile_context>
chip_gen: v7x
topology: tpu7x:2x2x1
jax: 0.10.0
libtpu: 0.0.40
codegen_flags: <defaults>
</compile_context>

<pallas_src>
import jax
import jax.numpy as jnp
from jax.experimental import pallas as pl
from jax.experimental.pallas import tpu as pltpu


# ---------------------------------------------------------------------------
# Model dimensions (hard-coded in NNModelNLP.__init__)
# ---------------------------------------------------------------------------
RESNET_FC_IN = 512          # resnet18 fc.in_features
RESNET_FC_OUT = 1024        # num_dim_out
IMG_FEAT = 512              # important_features_image
BERT_HIDDEN = 768           # bert-base hidden size
MAX_SENT_LEN = 32           # mxSentenceLength
BERT_FLAT = BERT_HIDDEN * MAX_SENT_LEN           # 24576
BERT_MID = BERT_FLAT // 100                      # 245
BERT_FIN = BERT_FLAT // 200                      # 122  (bertfinLength)
N_ACTIONS = 6
HEAD_HIDDEN = IMG_FEAT // 2                      # 256

# padded (lane-aligned) dims used inside the kernel
BM_PAD = 256                # 245 -> 256
BF_PAD = 128                # 122 -> 128
OUT_PAD = 128               # 6 logits + 1 value -> 128
TK = 8192                   # bertfc1 K tile (24576 / 8192 = 3 grid steps)


# ---------------------------------------------------------------------------
# Parameter init (deterministic synthetic, matching nn.Linear's layout
# transposed to [in_features, out_features])
# ---------------------------------------------------------------------------
def init_params(key):
    def dense(key, fan_in, fan_out):
        k1, k2 = jax.random.split(key)
        scale = 1.0 / jnp.sqrt(fan_in)
        w = jax.random.uniform(k1, (fan_in, fan_out), jnp.float32, -scale, scale)
        b = jax.random.uniform(k2, (fan_out,), jnp.float32, -scale, scale)
        return w, b

    keys = jax.random.split(key, 8)
    return {
        "resnet_fc": dense(keys[0], RESNET_FC_IN, RESNET_FC_OUT),
        "fcResNet1": dense(keys[1], RESNET_FC_OUT, IMG_FEAT),
        "bertfc1":   dense(keys[2], BERT_FLAT, BERT_MID),
        "bertfc2":   dense(keys[3], BERT_MID, BERT_FIN),
        "actor1":    dense(keys[4], BERT_FIN + IMG_FEAT, HEAD_HIDDEN),
        "actor2":    dense(keys[5], HEAD_HIDDEN, N_ACTIONS),
        "critic1":   dense(keys[6], BERT_FIN + IMG_FEAT, HEAD_HIDDEN),
        "critic2":   dense(keys[7], HEAD_HIDDEN, 1),
    }


def _quantize_per_col_int8(w):
    """Symmetric per-output-column int8 quantization. Returns (int8 w, f32 scale[1,N])."""
    amax = jnp.max(jnp.abs(w), axis=0, keepdims=True)                 # [1, N]
    scale = jnp.where(amax > 0.0, amax / 127.0, 1.0).astype(jnp.float32)
    w_i8 = jnp.round(w / scale).astype(jnp.int8)
    return w_i8, scale


def prepare_fused_params(params):
    """Pad / cast / fold / quantize the torch-like params into the fused-kernel layout."""
    def pad_to(a, shape):
        return jnp.pad(a, [(0, t - s) for s, t in zip(a.shape, shape)])

    bf16 = jnp.bfloat16
    rfc_w, rfc_b = params["resnet_fc"]       # [512, 1024], [1024]
    rfc1_w, rfc1_b = params["fcResNet1"]     # [1024, 512], [512]
    b1_w, b1_b = params["bertfc1"]           # [24576, 245], [245]
    b2_w, b2_b = params["bertfc2"]           # [245, 122],  [122]
    a1_w, a1_b = params["actor1"]            # [634, 256]
    a2_w, a2_b = params["actor2"]            # [256, 6]
    c1_w, c1_b = params["critic1"]           # [634, 256]
    c2_w, c2_b = params["critic2"]           # [256, 1]

    # --- fold resnet.fc -> fcResNet1 (no activation between them): exact in f32
    wimg = (rfc_w @ rfc1_w).astype(bf16)                               # [512, 512]
    bimg = (rfc_b @ rfc1_w + rfc1_b).reshape(1, IMG_FEAT)              # [1, 512] f32

    # --- bertfc1: pad to lane multiple, quantize to int8 with per-column scale
    b1_w_pad = pad_to(b1_w, (BERT_FLAT, BM_PAD))                       # [24576, 256]
    bfc1_w_i8, bfc1_scale = _quantize_per_col_int8(b1_w_pad)
    bfc1_b = pad_to(b1_b, (BM_PAD,)).reshape(1, BM_PAD)                # f32

    # --- bertfc2 padded
    bfc2_w = pad_to(b2_w, (BM_PAD, BF_PAD)).astype(bf16)
    bfc2_b = pad_to(b2_b, (BF_PAD,)).reshape(1, BF_PAD)                # f32

    # --- merged actor1 || critic1, split into text (opR2) / image (opR1) K-parts
    h1_w = jnp.concatenate([a1_w, c1_w], axis=1)                       # [634, 512]
    h1t_w = pad_to(h1_w[:BERT_FIN], (BF_PAD, 2 * HEAD_HIDDEN)).astype(bf16)
    h1i_w = h1_w[BERT_FIN:].astype(bf16)                               # [512, 512]
    h1_b = jnp.concatenate([a1_b, c1_b]).reshape(1, 2 * HEAD_HIDDEN)   # f32

    # --- merged actor2 / critic2 (block-structured): cols = [logits(6) | value(1) | 0...]
    h2_w = jnp.zeros((2 * HEAD_HIDDEN, OUT_PAD), jnp.float32)
    h2_w = h2_w.at[:HEAD_HIDDEN, :N_ACTIONS].set(a2_w)
    h2_w = h2_w.at[HEAD_HIDDEN:, N_ACTIONS:N_ACTIONS + 1].set(c2_w)
    h2_b = jnp.zeros((OUT_PAD,), jnp.float32)
    h2_b = h2_b.at[:N_ACTIONS].set(a2_b)
    h2_b = h2_b.at[N_ACTIONS:N_ACTIONS + 1].set(c2_b)

    return dict(
        bfc1_w=bfc1_w_i8, bfc1_s=bfc1_scale, bfc1_b=bfc1_b,
        bfc2_w=bfc2_w, bfc2_b=bfc2_b,
        wimg=wimg, bimg=bimg,
        h1t_w=h1t_w, h1i_w=h1i_w, h1_b=h1_b,
        h2_w=h2_w.astype(bf16), h2_b=h2_b.reshape(1, OUT_PAD),
    )


# ---------------------------------------------------------------------------
# Fused head kernel: grid = (BERT_FLAT // TK,)  (bertfc1 reduction axis only)
# ---------------------------------------------------------------------------
def _fused_head_kernel(
    bert_ref, img_ref,
    bfc1_w_ref, bfc1_s_ref, bfc1_b_ref,
    bfc2_w_ref, bfc2_b_ref,
    wimg_ref, bimg_ref,
    h1t_w_ref, h1i_w_ref, h1_b_ref,
    h2_w_ref, h2_b_ref,
    out_ref,
    acc_ref, img_sc,
):
    k = pl.program_id(0)
    f32 = jnp.float32
    bf16 = jnp.bfloat16

    @pl.when(k == 0)
    def _():
        acc_ref[...] = jnp.zeros_like(acc_ref)
        # Image branch (folded resnet.fc @ fcResNet1 + ReLU), computed up
        # front so it hides under the bertfc1 weight DMA of later steps.
        op = jnp.dot(img_ref[...], wimg_ref[...].astype(f32),
                     preferred_element_type=f32) + bimg_ref[...]
        img_sc[...] = jnp.maximum(op, 0.0)                               # [B, 512]

    # bertfc1: the only big matmul — K-tiled, int8 weights (values exact in
    # bf16), f32 accumulation in VMEM scratch.  Per-column dequant scale is
    # applied once at the end (it commutes with the K-reduction).
    acc_ref[...] += jnp.dot(bert_ref[...].astype(bf16),
                            bfc1_w_ref[...].astype(bf16),
                            preferred_element_type=f32)

    @pl.when(k == pl.num_programs(0) - 1)
    def _():
        # text branch tail: dequant + bias + ReLU, then bertfc2
        h1 = jnp.maximum(acc_ref[...] * bfc1_s_ref[...] + bfc1_b_ref[...], 0.0)  # [B,256]
        opR2 = jnp.dot(h1, bfc2_w_ref[...].astype(f32),
                       preferred_element_type=f32) + bfc2_b_ref[...]             # [B,128]

        opR1 = img_sc[...]                                                       # [B,512]

        # merged actor1/critic1 hidden layer; cat([opR2, opR1]) expressed as
        # two partial matmuls (text part + image part).
        hh = jnp.maximum(
            jnp.dot(opR2, h1t_w_ref[...].astype(f32), preferred_element_type=f32)
            + jnp.dot(opR1, h1i_w_ref[...].astype(f32), preferred_element_type=f32)
            + h1_b_ref[...],
            0.0)                                                                 # [B,512]

        # merged actor2/critic2: cols 0:6 = logits, col 6 = value, rest zero.
        out = jnp.dot(hh, h2_w_ref[...].astype(f32),
                      preferred_element_type=f32) + h2_b_ref[...]                # [B,128]
        out_ref[...] = out.astype(out_ref.dtype)


def fused_head_call(fp, img_feat_f32, bert_flat_f32):
    B = img_feat_f32.shape[0]
    grid = (BERT_FLAT // TK,)
    return pl.pallas_call(
        _fused_head_kernel,
        out_shape=jax.ShapeDtypeStruct((B, OUT_PAD), jnp.float32),
        grid_spec=pltpu.PrefetchScalarGridSpec(
            num_scalar_prefetch=0,
            grid=grid,
            in_specs=[
                pl.BlockSpec((B, TK), lambda k: (0, k)),                     # bert flat (f32)
                pl.BlockSpec((B, RESNET_FC_IN), lambda k: (0, 0)),           # img feat
                pl.BlockSpec((TK, BM_PAD), lambda k: (k, 0)),                # bertfc1 w (int8)
                pl.BlockSpec((1, BM_PAD), lambda k: (0, 0)),                 # bertfc1 scale
                pl.BlockSpec((1, BM_PAD), lambda k: (0, 0)),                 # bertfc1 b
                pl.BlockSpec((BM_PAD, BF_PAD), lambda k: (0, 0)),            # bertfc2 w
                pl.BlockSpec((1, BF_PAD), lambda k: (0, 0)),                 # bertfc2 b
                pl.BlockSpec((RESNET_FC_IN, IMG_FEAT), lambda k: (0, 0)),    # folded img w
                pl.BlockSpec((1, IMG_FEAT), lambda k: (0, 0)),               # folded img b
                pl.BlockSpec((BF_PAD, 2 * HEAD_HIDDEN), lambda k: (0, 0)),   # head1 w (text)
                pl.BlockSpec((IMG_FEAT, 2 * HEAD_HIDDEN), lambda k: (0, 0)), # head1 w (img)
                pl.BlockSpec((1, 2 * HEAD_HIDDEN), lambda k: (0, 0)),        # head1 b
                pl.BlockSpec((2 * HEAD_HIDDEN, OUT_PAD), lambda k: (0, 0)),  # head2 w
                pl.BlockSpec((1, OUT_PAD), lambda k: (0, 0)),                # head2 b
            ],
            out_specs=pl.BlockSpec((B, OUT_PAD), lambda k: (0, 0)),
            scratch_shapes=[
                pltpu.VMEM((B, BM_PAD), jnp.float32),    # bertfc1 f32 accumulator
                pltpu.VMEM((B, IMG_FEAT), jnp.float32),  # image-branch opR1
            ],
        ),
        compiler_params=pltpu.CompilerParams(
            dimension_semantics=("arbitrary",),
        ),
    )(
        bert_flat_f32, img_feat_f32,
        fp["bfc1_w"], fp["bfc1_s"], fp["bfc1_b"],
        fp["bfc2_w"], fp["bfc2_b"],
        fp["wimg"], fp["bimg"],
        fp["h1t_w"], fp["h1i_w"], fp["h1_b"],
        fp["h2_w"], fp["h2_b"],
    )


@jax.jit
def nn_model_nlp_head(fused_params, img_feat, bert_hidden):
    """
    Forward pass of NNModelNLP after the frozen backbones.

    img_feat:    [B, 512]      (resnet18 global-avg-pooled feature)
    bert_hidden: [B, 32, 768]  (BERT last hidden state)
    returns (actor_logits [B, 6], value [B, 1])
    """
    B = bert_hidden.shape[0]
    bert_flat = bert_hidden.reshape(B, BERT_FLAT)        # nn.Flatten
    out = fused_head_call(fused_params, img_feat, bert_flat)
    logits = out[:, :N_ACTIONS]
    value = out[:, N_ACTIONS:N_ACTIONS + 1]
    return logits, value


# ---------------------------------------------------------------------------
# Pure-JAX f32 reference of the same head (for a loose correctness check)
# ---------------------------------------------------------------------------
def reference_head(params, img_feat, bert_hidden):
    def lin(x, wb, relu=False):
        w, b = wb
        y = x @ w + b
        return jnp.maximum(y, 0.0) if relu else y

    op = lin(img_feat, params["resnet_fc"])
    opR1 = lin(op, params["fcResNet1"], relu=True)
    flat = bert_hidden.reshape(bert_hidden.shape[0], BERT_FLAT)
    h = lin(flat, params["bertfc1"], relu=True)
    opR2 = lin(h, params["bertfc2"])
    cat = jnp.concatenate([opR2, opR1], axis=1)
    logits = lin(lin(cat, params["actor1"], relu=True), params["actor2"])
    value = lin(lin(cat, params["critic1"], relu=True), params["critic2"])
    return logits, value


if __name__ == "__main__":
    key = jax.random.PRNGKey(0)
    kp, ki, kt = jax.random.split(key, 3)

    B = 2
    params = init_params(kp)
    fused_params = prepare_fused_params(params)

    # Stand-ins for the frozen backbone outputs (see TODOs above).
    img_feat = jax.random.normal(ki, (B, RESNET_FC_IN), jnp.float32)
    bert_hidden = jax.random.normal(kt, (B, MAX_SENT_LEN, BERT_HIDDEN), jnp.float32)

    logits, value = nn_model_nlp_head(fused_params, img_feat, bert_hidden)
    jax.block_until_ready((logits, value))

    assert logits.shape == (B, N_ACTIONS)
    assert value.shape == (B, 1)

    # Loose check vs f32 reference (kernel uses bf16/int8 weights).
    ref_logits, ref_value = reference_head(params, img_feat, bert_hidden)
    assert float(jnp.max(jnp.abs(logits - ref_logits))) < 0.15
    assert float(jnp.max(jnp.abs(value - ref_value))) < 0.15

    print("KERNEL_OK")
</pallas_src>

<mosaic_0001>
module attributes {stable_mosaic.version = 11 : i64} {
  func.func @_fused_head_kernel(%arg0: i32, %arg1: memref<2x8192xf32, #tpu.memory_space<vmem>>, %arg2: memref<2x512xf32, #tpu.memory_space<vmem>>, %arg3: memref<8192x256xi8, #tpu.memory_space<vmem>>, %arg4: memref<1x256xf32, #tpu.memory_space<vmem>>, %arg5: memref<1x256xf32, #tpu.memory_space<vmem>>, %arg6: memref<256x128xbf16, #tpu.memory_space<vmem>>, %arg7: memref<1x128xf32, #tpu.memory_space<vmem>>, %arg8: memref<512x512xbf16, #tpu.memory_space<vmem>>, %arg9: memref<1x512xf32, #tpu.memory_space<vmem>>, %arg10: memref<128x512xbf16, #tpu.memory_space<vmem>>, %arg11: memref<512x512xbf16, #tpu.memory_space<vmem>>, %arg12: memref<1x512xf32, #tpu.memory_space<vmem>>, %arg13: memref<512x128xbf16, #tpu.memory_space<vmem>>, %arg14: memref<1x128xf32, #tpu.memory_space<vmem>>, %arg15: memref<2x128xf32, #tpu.memory_space<vmem>>, %arg16: memref<2x256xf32, #tpu.memory_space<vmem>>, %arg17: memref<2x512xf32, #tpu.memory_space<vmem>>) attributes {dimension_semantics = [#tpu.dimension_semantics<arbitrary>], iteration_bounds = array<i64: 3>, scalar_prefetch = 0 : i64, scratch_operands = 2 : i64, tpu.core_type = #tpu.core_type<tc>, window_params = [{transform_indices = @transform_0, window_bounds = array<i64: 2, 8192>}, {pipeline_mode = #tpu.pipeline_mode<synchronous>, transform_indices = @transform_1, window_bounds = array<i64: 2, 512>}, {transform_indices = @transform_2, window_bounds = array<i64: 8192, 256>}, {pipeline_mode = #tpu.pipeline_mode<synchronous>, transform_indices = @transform_3, window_bounds = array<i64: 1, 256>}, {pipeline_mode = #tpu.pipeline_mode<synchronous>, transform_indices = @transform_4, window_bounds = array<i64: 1, 256>}, {pipeline_mode = #tpu.pipeline_mode<synchronous>, transform_indices = @transform_5, window_bounds = array<i64: 256, 128>}, {pipeline_mode = #tpu.pipeline_mode<synchronous>, transform_indices = @transform_6, window_bounds = array<i64: 1, 128>}, {pipeline_mode = #tpu.pipeline_mode<synchronous>, transform_indices = @transform_7, window_bounds = array<i64: 512, 512>}, {pipeline_mode = #tpu.pipeline_mode<synchronous>, transform_indices = @transform_8, window_bounds = array<i64: 1, 512>}, {pipeline_mode = #tpu.pipeline_mode<synchronous>, transform_indices = @transform_9, window_bounds = array<i64: 128, 512>}, {pipeline_mode = #tpu.pipeline_mode<synchronous>, transform_indices = @transform_10, window_bounds = array<i64: 512, 512>}, {pipeline_mode = #tpu.pipeline_mode<synchronous>, transform_indices = @transform_11, window_bounds = array<i64: 1, 512>}, {pipeline_mode = #tpu.pipeline_mode<synchronous>, transform_indices = @transform_12, window_bounds = array<i64: 512, 128>}, {pipeline_mode = #tpu.pipeline_mode<synchronous>, transform_indices = @transform_13, window_bounds = array<i64: 1, 128>}, {pipeline_mode = #tpu.pipeline_mode<synchronous>, transform_indices = @transform_14, window_bounds = array<i64: 2, 128>}]} {
    %c0_i32 = arith.constant 0 : i32
    %0 = arith.cmpi eq, %arg0, %c0_i32 : i32
    %1 = arith.extui %0 : i1 to i32
    %c0_i32_0 = arith.constant 0 : i32
    %2 = arith.cmpi ne, %1, %c0_i32_0 : i32
    scf.if %2 {
      %cst_9 = arith.constant 0.000000e+00 : f32
      %14 = vector.broadcast %cst_9 : f32 to vector<2x256xf32>
      %c0_10 = arith.constant 0 : index
      %c0_11 = arith.constant 0 : index
      %15 = vector.load %arg16[%c0_10, %c0_11] : memref<2x256xf32, #tpu.memory_space<vmem>>, vector<2x256xf32>
      tpu.vector_store %arg16[%c0_10, %c0_11], %14 {strides = array<i32>} : memref<2x256xf32, #tpu.memory_space<vmem>>, vector<2x256xf32>,
      %c0_12 = arith.constant 0 : index
      %c0_13 = arith.constant 0 : index
      %16 = vector.load %arg2[%c0_12, %c0_13] : memref<2x512xf32, #tpu.memory_space<vmem>>, vector<2x512xf32>
      %c0_14 = arith.constant 0 : index
      %c0_15 = arith.constant 0 : index
      %17 = vector.load %arg8[%c0_14, %c0_15] : memref<512x512xbf16, #tpu.memory_space<vmem>>, vector<512x512xbf16>
      %18 = arith.extf %17 : vector<512x512xbf16> to vector<512x512xf32>
      %cst_16 = arith.constant dense<0.000000e+00> : vector<2x512xf32>
      %19 = tpu.matmul %16, %18, %cst_16 {dimension_numbers = #tpu.dot_dimension_numbers<[1], [0], [0], [1], [0, 0, 1, 1], [], []>} : vector<2x512xf32>, vector<512x512xf32>, vector<2x512xf32> -> vector<2x512xf32>
      %c0_17 = arith.constant 0 : index
      %c0_18 = arith.constant 0 : index
      %20 = vector.load %arg9[%c0_17, %c0_18] : memref<1x512xf32, #tpu.memory_space<vmem>>, vector<1x512xf32>
      %21 = vector.broadcast %20 : vector<1x512xf32> to vector<2x512xf32>
      %22 = arith.addf %19, %21 : vector<2x512xf32>
      %cst_19 = arith.constant 0.000000e+00 : f32
      %23 = vector.broadcast %cst_19 : f32 to vector<2x512xf32>
      %24 = arith.maximumf %22, %23 : vector<2x512xf32>
      %c0_20 = arith.constant 0 : index
      %c0_21 = arith.constant 0 : index
      %25 = vector.load %arg17[%c0_20, %c0_21] : memref<2x512xf32, #tpu.memory_space<vmem>>, vector<2x512xf32>
      tpu.vector_store %arg17[%c0_20, %c0_21], %24 {strides = array<i32>} : memref<2x512xf32, #tpu.memory_space<vmem>>, vector<2x512xf32>,
    } else {
    }
    %c0 = arith.constant 0 : index
    %c0_1 = arith.constant 0 : index
    %3 = vector.load %arg16[%c0, %c0_1] : memref<2x256xf32, #tpu.memory_space<vmem>>, vector<2x256xf32>
    %c0_2 = arith.constant 0 : index
    %c0_3 = arith.constant 0 : index
    %4 = vector.load %arg1[%c0_2, %c0_3] : memref<2x8192xf32, #tpu.memory_space<vmem>>, vector<2x8192xf32>
    %5 = arith.truncf %4 : vector<2x8192xf32> to vector<2x8192xbf16>
    %c0_4 = arith.constant 0 : index
    %c0_5 = arith.constant 0 : index
    %6 = vector.load %arg3[%c0_4, %c0_5] : memref<8192x256xi8, #tpu.memory_space<vmem>>, vector<8192x256xi8>
    %7 = arith.sitofp %6 : vector<8192x256xi8> to vector<8192x256xbf16>
    %cst = arith.constant dense<0.000000e+00> : vector<2x256xf32>
    %8 = tpu.matmul %5, %7, %cst {dimension_numbers = #tpu.dot_dimension_numbers<[1], [0], [0], [1], [0, 0, 1, 1], [], []>} : vector<2x8192xbf16>, vector<8192x256xbf16>, vector<2x256xf32> -> vector<2x256xf32>
    %9 = arith.addf %3, %8 : vector<2x256xf32>
    %c0_6 = arith.constant 0 : index
    %c0_7 = arith.constant 0 : index
    %10 = vector.load %arg16[%c0_6, %c0_7] : memref<2x256xf32, #tpu.memory_space<vmem>>, vector<2x256xf32>
    tpu.vector_store %arg16[%c0_6, %c0_7], %9 {strides = array<i32>} : memref<2x256xf32, #tpu.memory_space<vmem>>, vector<2x256xf32>,
    %c2_i32 = arith.constant 2 : i32
    %11 = arith.cmpi eq, %arg0, %c2_i32 : i32
    %12 = arith.extui %11 : i1 to i32
    %c0_i32_8 = arith.constant 0 : i32
    %13 = arith.cmpi ne, %12, %c0_i32_8 : i32
    scf.if %13 {
      %c0_9 = arith.constant 0 : index
      %c0_10 = arith.constant 0 : index
      %14 = vector.load %arg16[%c0_9, %c0_10] : memref<2x256xf32, #tpu.memory_space<vmem>>, vector<2x256xf32>
      %c0_11 = arith.constant 0 : index
      %c0_12 = arith.constant 0 : index
      %15 = vector.load %arg4[%c0_11, %c0_12] : memref<1x256xf32, #tpu.memory_space<vmem>>, vector<1x256xf32>
      %16 = vector.broadcast %15 : vector<1x256xf32> to vector<2x256xf32>
      %17 = arith.mulf %14, %16 : vector<2x256xf32>
      %c0_13 = arith.constant 0 : index
      %c0_14 = arith.constant 0 : index
      %18 = vector.load %arg5[%c0_13, %c0_14] : memref<1x256xf32, #tpu.memory_space<vmem>>, vector<1x256xf32>
      %19 = vector.broadcast %18 : vector<1x256xf32> to vector<2x256xf32>
      %20 = arith.addf %17, %19 : vector<2x256xf32>
      %cst_15 = arith.constant 0.000000e+00 : f32
      %21 = vector.broadcast %cst_15 : f32 to vector<2x256xf32>
      %22 = arith.maximumf %20, %21 : vector<2x256xf32>
      %c0_16 = arith.constant 0 : index
      %c0_17 = arith.constant 0 : index
      %23 = vector.load %arg6[%c0_16, %c0_17] : memref<256x128xbf16, #tpu.memory_space<vmem>>, vector<256x128xbf16>
      %24 = arith.extf %23 : vector<256x128xbf16> to vector<256x128xf32>
      %cst_18 = arith.constant dense<0.000000e+00> : vector<2x128xf32>
      %25 = tpu.matmul %22, %24, %cst_18 {dimension_numbers = #tpu.dot_dimension_numbers<[1], [0], [0], [1], [0, 0, 1, 1], [], []>} : vector<2x256xf32>, vector<256x128xf32>, vector<2x128xf32> -> vector<2x128xf32>
      %c0_19 = arith.constant 0 : index
      %c0_20 = arith.constant 0 : index
      %26 = vector.load %arg7[%c0_19, %c0_20] : memref<1x128xf32, #tpu.memory_space<vmem>>, vector<1x128xf32>
      %27 = vector.broadcast %26 : vector<1x128xf32> to vector<2x128xf32>
      %28 = arith.addf %25, %27 : vector<2x128xf32>
      %c0_21 = arith.constant 0 : index
      %c0_22 = arith.constant 0 : index
      %29 = vector.load %arg17[%c0_21, %c0_22] : memref<2x512xf32, #tpu.memory_space<vmem>>, vector<2x512xf32>
      %c0_23 = arith.constant 0 : index
      %c0_24 = arith.constant 0 : index
      %30 = vector.load %arg10[%c0_23, %c0_24] : memref<128x512xbf16, #tpu.memory_space<vmem>>, vector<128x512xbf16>
      %31 = arith.extf %30 : vector<128x512xbf16> to vector<128x512xf32>
      %cst_25 = arith.constant dense<0.000000e+00> : vector<2x512xf32>
      %32 = tpu.matmul %28, %31, %cst_25 {dimension_numbers = #tpu.dot_dimension_numbers<[1], [0], [0], [1], [0, 0, 1, 1], [], []>} : vector<2x128xf32>, vector<128x512xf32>, vector<2x512xf32> -> vector<2x512xf32>
      %c0_26 = arith.constant 0 : index
      %c0_27 = arith.constant 0 : index
      %33 = vector.load %arg11[%c0_26, %c0_27] : memref<512x512xbf16, #tpu.memory_space<vmem>>, vector<512x512xbf16>
      %34 = arith.extf %33 : vector<512x512xbf16> to vector<512x512xf32>
      %cst_28 = arith.constant dense<0.000000e+00> : vector<2x512xf32>
      %35 = tpu.matmul %29, %34, %cst_28 {dimension_numbers = #tpu.dot_dimension_numbers<[1], [0], [0], [1], [0, 0, 1, 1], [], []>} : vector<2x512xf32>, vector<512x512xf32>, vector<2x512xf32> -> vector<2x512xf32>
      %36 = arith.addf %32, %35 : vector<2x512xf32>
      %c0_29 = arith.constant 0 : index
      %c0_30 = arith.constant 0 : index
      %37 = vector.load %arg12[%c0_29, %c0_30] : memref<1x512xf32, #tpu.memory_space<vmem>>, vector<1x512xf32>
      %38 = vector.broadcast %37 : vector<1x512xf32> to vector<2x512xf32>
      %39 = arith.addf %36, %38 : vector<2x512xf32>
      %cst_31 = arith.constant 0.000000e+00 : f32
      %40 = vector.broadcast %cst_31 : f32 to vector<2x512xf32>
      %41 = arith.maximumf %39, %40 : vector<2x512xf32>
      %c0_32 = arith.constant 0 : index
      %c0_33 = arith.constant 0 : index
      %42 = vector.load %arg13[%c0_32, %c0_33] : memref<512x128xbf16, #tpu.memory_space<vmem>>, vector<512x128xbf16>
      %43 = arith.extf %42 : vector<512x128xbf16> to vector<512x128xf32>
      %cst_34 = arith.constant dense<0.000000e+00> : vector<2x128xf32>
      %44 = tpu.matmul %41, %43, %cst_34 {dimension_numbers = #tpu.dot_dimension_numbers<[1], [0], [0], [1], [0, 0, 1, 1], [], []>} : vector<2x512xf32>, vector<512x128xf32>, vector<2x128xf32> -> vector<2x128xf32>
      %c0_35 = arith.constant 0 : index
      %c0_36 = arith.constant 0 : index
      %45 = vector.load %arg14[%c0_35, %c0_36] : memref<1x128xf32, #tpu.memory_space<vmem>>, vector<1x128xf32>
      %46 = vector.broadcast %45 : vector<1x128xf32> to vector<2x128xf32>
      %47 = arith.addf %44, %46 : vector<2x128xf32>
      %c0_37 = arith.constant 0 : index
      %c0_38 = arith.constant 0 : index
      %48 = vector.load %arg15[%c0_37, %c0_38] : memref<2x128xf32, #tpu.memory_space<vmem>>, vector<2x128xf32>
      tpu.vector_store %arg15[%c0_37, %c0_38], %47 {strides = array<i32>} : memref<2x128xf32, #tpu.memory_space<vmem>>, vector<2x128xf32>,
    } else {
    }
    return
  }
  func.func @transform_0(%arg0: i32) -> (i32, i32) {
    %c0_i32 = arith.constant 0 : i32
    %c0_i32_0 = arith.constant 0 : i32
    return %c0_i32, %arg0 : i32, i32
  }
  func.func @transform_1(%arg0: i32) -> (i32, i32) {
    %c0_i32 = arith.constant 0 : i32
    %c0_i32_0 = arith.constant 0 : i32
    %c0_i32_1 = arith.constant 0 : i32
    return %c0_i32, %c0_i32_0 : i32, i32
  }
  func.func @transform_2(%arg0: i32) -> (i32, i32) {
    %c0_i32 = arith.constant 0 : i32
    %c0_i32_0 = arith.constant 0 : i32
    return %arg0, %c0_i32 : i32, i32
  }
  func.func @transform_3(%arg0: i32) -> (i32, i32) {
    %c0_i32 = arith.constant 0 : i32
    %c0_i32_0 = arith.constant 0 : i32
    %c0_i32_1 = arith.constant 0 : i32
    return %c0_i32, %c0_i32_0 : i32, i32
  }
  func.func @transform_4(%arg0: i32) -> (i32, i32) {
    %c0_i32 = arith.constant 0 : i32
    %c0_i32_0 = arith.constant 0 : i32
    %c0_i32_1 = arith.constant 0 : i32
    return %c0_i32, %c0_i32_0 : i32, i32
  }
  func.func @transform_5(%arg0: i32) -> (i32, i32) {
    %c0_i32 = arith.constant 0 : i32
    %c0_i32_0 = arith.constant 0 : i32
    %c0_i32_1 = arith.constant 0 : i32
    return %c0_i32, %c0_i32_0 : i32, i32
  }
  func.func @transform_6(%arg0: i32) -> (i32, i32) {
    %c0_i32 = arith.constant 0 : i32
    %c0_i32_0 = arith.constant 0 : i32
    %c0_i32_1 = arith.constant 0 : i32
    return %c0_i32, %c0_i32_0 : i32, i32
  }
  func.func @transform_7(%arg0: i32) -> (i32, i32) {
    %c0_i32 = arith.constant 0 : i32
    %c0_i32_0 = arith.constant 0 : i32
    %c0_i32_1 = arith.constant 0 : i32
    return %c0_i32, %c0_i32_0 : i32, i32
  }
  func.func @transform_8(%arg0: i32) -> (i32, i32) {
    %c0_i32 = arith.constant 0 : i32
    %c0_i32_0 = arith.constant 0 : i32
    %c0_i32_1 = arith.constant 0 : i32
    return %c0_i32, %c0_i32_0 : i32, i32
  }
  func.func @transform_9(%arg0: i32) -> (i32, i32) {
    %c0_i32 = arith.constant 0 : i32
    %c0_i32_0 = arith.constant 0 : i32
    %c0_i32_1 = arith.constant 0 : i32
    return %c0_i32, %c0_i32_0 : i32, i32
  }
  func.func @transform_10(%arg0: i32) -> (i32, i32) {
    %c0_i32 = arith.constant 0 : i32
    %c0_i32_0 = arith.constant 0 : i32
    %c0_i32_1 = arith.constant 0 : i32
    return %c0_i32, %c0_i32_0 : i32, i32
  }
  func.func @transform_11(%arg0: i32) -> (i32, i32) {
    %c0_i32 = arith.constant 0 : i32
    %c0_i32_0 = arith.constant 0 : i32
    %c0_i32_1 = arith.constant 0 : i32
    return %c0_i32, %c0_i32_0 : i32, i32
  }
  func.func @transform_12(%arg0: i32) -> (i32, i32) {
    %c0_i32 = arith.constant 0 : i32
    %c0_i32_0 = arith.constant 0 : i32
    %c0_i32_1 = arith.constant 0 : i32
    return %c0_i32, %c0_i32_0 : i32, i32
  }
  func.func @transform_13(%arg0: i32) -> (i32, i32) {
    %c0_i32 = arith.constant 0 : i32
    %c0_i32_0 = arith.constant 0 : i32
    %c0_i32_1 = arith.constant 0 : i32
    return %c0_i32, %c0_i32_0 : i32, i32
  }
  func.func @transform_14(%arg0: i32) -> (i32, i32) {
    %c0_i32 = arith.constant 0 : i32
    %c0_i32_0 = arith.constant 0 : i32
    %c0_i32_1 = arith.constant 0 : i32
    return %c0_i32, %c0_i32_0 : i32, i32
  }
}

</mosaic_0001>

<llo_original>
// kernel: nn_model_nlp_head.1
$region0: #{nn_model_nlp_head.1}
  #allocation0 [shape = 'u32[]', space=smem, size = 0x4, offset = 0x4, fixed_abs, tag = 'smem constant byte address 0x4 - core index']
  #allocation1 [shape = 'u32[144,128]{1,0:T(1,128)}', space=vmem, size = 0x12000, scoped, tag = 'internal scratch']
  #allocation2 [shape = 'f32[2,256]{1,0:T(2,128)}', space=vmem, size = 0x800, scoped, tag = 'scratch operand']
  #allocation3 [shape = 'f32[2,512]{1,0:T(2,128)}', space=vmem, size = 0x1000, scoped, tag = 'scratch operand']
  %s0 = inlined_call_operand.vmem [shape: f32[2,24576], index: 0, kind: input, shape index: {}]
  %s1 = inlined_call_operand.hbm [shape: f32[2,512], index: 1, kind: input, shape index: {}]
  %s2 = inlined_call_operand.hbm [shape: s8[24576,256], index: 2, kind: input, shape index: {}]
  %s3 = inlined_call_operand.hbm [shape: f32[1,256], index: 3, kind: input, shape index: {}]
  %s4 = inlined_call_operand.hbm [shape: f32[1,256], index: 4, kind: input, shape index: {}]
  %s5 = inlined_call_operand.hbm [shape: bf16[256,128], index: 5, kind: input, shape index: {}]
  %s6 = inlined_call_operand.hbm [shape: f32[1,128], index: 6, kind: input, shape index: {}]
  %s7 = inlined_call_operand.hbm [shape: bf16[512,512], index: 7, kind: input, shape index: {}]
  %s8 = inlined_call_operand.hbm [shape: f32[1,512], index: 8, kind: input, shape index: {}]
  %s9 = inlined_call_operand.hbm [shape: bf16[128,512], index: 9, kind: input, shape index: {}]
  %s10 = inlined_call_operand.hbm [shape: bf16[512,512], index: 10, kind: input, shape index: {}]
  %s11 = inlined_call_operand.hbm [shape: f32[1,512], index: 11, kind: input, shape index: {}]
  %s12 = inlined_call_operand.hbm [shape: bf16[512,128], index: 12, kind: input, shape index: {}]
  %s13 = inlined_call_operand.hbm [shape: f32[1,128], index: 13, kind: input, shape index: {}]
  %s14 = inlined_call_operand.vmem [shape: f32[2,128], index: 14, kind: output, shape index: {}]
  %s15 = sld [smem:[#allocation0]]
  $region149: #{nn_model_nlp_head.1} parent=0
    _
  %s17 = ssub.s32 1, %s15
  %s18 = scalar_select 0, %s17, %s15
  $region1: #{nn_model_nlp_head.1} parent=0
    #allocation4 [shape = 'u8[4096]{0}', space=vmem, size = 0x1000, scoped, tag = 'input window, operand 1, single buffered']
    #allocation5 [shape = 's32[2]{0}', space=sflag, size = 0x8, scoped, tag = 'scoped memory for nn_model_nlp_head.1']
    #allocation6 [shape = 'u8[4194304]{0}', space=vmem, size = 0x400000, scoped, tag = 'input window, operand 2']
    #allocation7 [shape = 's32[2]{0}', space=sflag, size = 0x8, scoped, tag = 'scoped memory for nn_model_nlp_head.1']
    #allocation8 [shape = 'u8[1024]{0}', space=vmem, size = 0x400, scoped, tag = 'input window, operand 3, single buffered']
    #allocation9 [shape = 'u8[1024]{0}', space=vmem, size = 0x400, scoped, tag = 'input window, operand 4, single buffered']
    #allocation10 [shape = 's32[1]{0}', space=sflag, size = 0x4, scoped, tag = 'scoped memory for nn_model_nlp_head.1']
    #allocation11 [shape = 'u8[65536]{0}', space=vmem, size = 0x10000, scoped, tag = 'input window, operand 5, single buffered']
    #allocation12 [shape = 'u8[512]{0}', space=vmem, size = 0x400, scoped, tag = 'input window, operand 6, single buffered']
    #allocation13 [shape = 's32[1]{0}', space=sflag, size = 0x4, scoped, tag = 'scoped memory for nn_model_nlp_head.1']
    #allocation14 [shape = 'u8[524288]{0}', space=vmem, size = 0x80000, scoped, tag = 'input window, operand 7, single buffered']
    #allocation15 [shape = 'u8[2048]{0}', space=vmem, size = 0x800, scoped, tag = 'input window, operand 8, single buffered']
    #allocation16 [shape = 's32[1]{0}', space=sflag, size = 0x4, scoped, tag = 'scoped memory for nn_model_nlp_head.1']
    #allocation17 [shape = 'u8[131072]{0}', space=vmem, size = 0x20000, scoped, tag = 'input window, operand 9, single buffered']
    #allocation18 [shape = 'u8[524288]{0}', space=vmem, size = 0x80000, scoped, tag = 'input window, operand 10, single buffered']
    #allocation19 [shape = 's32[1]{0}', space=sflag, size = 0x4, scoped, tag = 'scoped memory for nn_model_nlp_head.1']
    #allocation20 [shape = 'u8[2048]{0}', space=vmem, size = 0x800, scoped, tag = 'input window, operand 11, single buffered']
    #allocation21 [shape = 'u8[131072]{0}', space=vmem, size = 0x20000, scoped, tag = 'input window, operand 12, single buffered']
    #allocation22 [shape = 's32[1]{0}', space=sflag, size = 0x4, scoped, tag = 'scoped memory for nn_model_nlp_head.1']
    #allocation23 [shape = 'u8[512]{0}', space=vmem, size = 0x400, scoped, tag = 'input window, operand 13, single buffered']
    %19 = vsyncpa [#allocation5], 0
    %20 = vsyncpa [#allocation7], 0
    %s21 = scalar_lea.sflag [#allocation7], 1
    %22 = vsyncpa %s21, 0
    %23 = vsyncpa [#allocation10], 0
    %24 = vsyncpa [#allocation13], 0
    %25 = vsyncpa [#allocation16], 0
    %26 = vsyncpa [#allocation19], 0
    %27 = vsyncpa [#allocation22], 0
    loop: start=0, step=1, limit=5
    $region2: #{nn_model_nlp_head.1} parent=1 // loop_pre_header
      _
    $region3: #{nn_model_nlp_head.1} parent=1 // loop_header
      %s29 = sphi 0, %s33
      %p30 = scmp.ge.s32.totalorder %s29, 5
      %s39 = sphi 0, %s41
      %s42 = sphi 0, %s39
      %s43 = sphi 0, %s42
      %s59 = sphi 0, %s43
      %s63 = sphi 0, %s63
      %s65 = sphi 0, %s63
      %s66 = sphi 0, %s65
      %s80 = sphi 0, %s66
      %s86 = sphi 0, %s88
      %s89 = sphi 0, %s86
      %s90 = sphi 0, %s89
      %s106 = sphi 0, %s90
      %s110 = sphi 0, %s110
      %s112 = sphi 0, %s110
      %s113 = sphi 0, %s112
      %s127 = sphi 0, %s113
      %s131 = sphi 0, %s131
      %s133 = sphi 0, %s131
      %s134 = sphi 0, %s133
      %s148 = sphi 0, %s134
      %s152 = sphi 0, %s152
      %s154 = sphi 0, %s152
      %s155 = sphi 0, %s154
      %s169 = sphi 0, %s155
      %s173 = sphi 0, %s173
      %s175 = sphi 0, %s173
      %s176 = sphi 0, %s175
      %s190 = sphi 0, %s176
      %s194 = sphi 0, %s194
      %s196 = sphi 0, %s194
      %s197 = sphi 0, %s196
      %s211 = sphi 0, %s197
      %s215 = sphi 0, %s215
      %s217 = sphi 0, %s215
      %s218 = sphi 0, %s217
      %s232 = sphi 0, %s218
      %s236 = sphi 0, %s236
      %s238 = sphi 0, %s236
      %s239 = sphi 0, %s238
      %s253 = sphi 0, %s239
      %s257 = sphi 0, %s257
      %s259 = sphi 0, %s257
      %s260 = sphi 0, %s259
      %s274 = sphi 0, %s260
      %s278 = sphi 0, %s278
      %s280 = sphi 0, %s278
      %s281 = sphi 0, %s280
      %s295 = sphi 0, %s281
      %s299 = sphi 0, %s299
      %s301 = sphi 0, %s299
      %s302 = sphi 0, %s301
      %s316 = sphi 0, %s302
      %s320 = sphi 0, %s320
      %s322 = sphi 0, %s320
      %s323 = sphi 0, %s322
      %s337 = sphi 0, %s323
      %s341 = sphi 0, %s341
      %s343 = sphi 0, %s341
      %s344 = sphi 0, %s343
      %s358 = sphi 0, %s344
    $region4: #{nn_model_nlp_head.1} parent=1 // loop_header_branch
      %32 = sbr.rel (%p30) target = $region8
    $region5: #{nn_model_nlp_head.1} parent=1 // loop_body
      %s34 = ssub.s32 %s29, 1
      %s35 = ssub.s32 %s29, 2
      %s36 = sadd.s32 %s29, 1
      %s37 = ssub.s32 %s29, %s36
      %p38 = scmp.eq.s32.totalorder %s37, 0
      %s40 = sadd.s32 %s39, 1
      %s41 = scalar_select %p38, %s39, %s40
      %p44 = pneg %p38
      %p45 = scmp.eq.s32.totalorder %s29, 2
      %p46 = por %p44, %p45
      %p47 = scmp.ne.s32.totalorder %s39, %s42
      %p48 = scmp.eq.s32.totalorder %s29, 0
      %p49 = por %p47, %p48
      %p50 = scmp.ne.s32.totalorder %s39, %s42
      %p51 = scmp.eq.s32.totalorder %s34, 2
      %p52 = por %p50, %p51
      %p53 = scmp.ne.s32.totalorder %s42, %s43
      %p54 = scmp.eq.s32.totalorder %s34, 0
      %p55 = por %p53, %p54
      %p56 = scmp.ne.s32.totalorder %s42, %s43
      %p57 = scmp.eq.s32.totalorder %s35, 2
      %p58 = por %p56, %p57
      %p60 = scmp.ne.s32.totalorder %s43, %s59
      %p61 = scmp.eq.s32.totalorder %s35, 0
      %p62 = por %p60, %p61
      %s64 = sadd.s32 %s63, 1
      %p67 = scmp.eq.s32.totalorder %s29, 2
      %p68 = scmp.ne.s32.totalorder %s63, %s65
      %p69 = scmp.eq.s32.totalorder %s29, 0
      %p70 = por %p68, %p69
      %p71 = scmp.ne.s32.totalorder %s63, %s65
      %p72 = scmp.eq.s32.totalorder %s34, 2
      %p73 = por %p71, %p72
      %p74 = scmp.ne.s32.totalorder %s65, %s66
      %p75 = scmp.eq.s32.totalorder %s34, 0
      %p76 = por %p74, %p75
      %p77 = scmp.ne.s32.totalorder %s65, %s66
      %p78 = scmp.eq.s32.totalorder %s35, 2
      %p79 = por %p77, %p78
      %p81 = scmp.ne.s32.totalorder %s66, %s80
      %p82 = scmp.eq.s32.totalorder %s35, 0
      %p83 = por %p81, %p82
      %s84 = ssub.s32 %s29, %s36
      %p85 = scmp.eq.s32.totalorder %s84, 0
      %s87 = sadd.s32 %s86, 1
      %s88 = scalar_select %p85, %s86, %s87
      %p91 = pneg %p85
      %p92 = scmp.eq.s32.totalorder %s29, 2
      %p93 = por %p91, %p92
      %p94 = scmp.ne.s32.totalorder %s86, %s89
      %p95 = scmp.eq.s32.totalorder %s29, 0
      %p96 = por %p94, %p95
      %p97 = scmp.ne.s32.totalorder %s86, %s89
      %p98 = scmp.eq.s32.totalorder %s34, 2
      %p99 = por %p97, %p98
      %p100 = scmp.ne.s32.totalorder %s89, %s90
      %p101 = scmp.eq.s32.totalorder %s34, 0
      %p102 = por %p100, %p101
      %p103 = scmp.ne.s32.totalorder %s89, %s90
      %p104 = scmp.eq.s32.totalorder %s35, 2
      %p105 = por %p103, %p104
      %p107 = scmp.ne.s32.totalorder %s90, %s106
      %p108 = scmp.eq.s32.totalorder %s35, 0
      %p109 = por %p107, %p108
      %s111 = sadd.s32 %s110, 1
      %p114 = scmp.eq.s32.totalorder %s29, 2
      %p115 = scmp.ne.s32.totalorder %s110, %s112
      %p116 = scmp.eq.s32.totalorder %s29, 0
      %p117 = por %p115, %p116
      %p118 = scmp.ne.s32.totalorder %s110, %s112
      %p119 = scmp.eq.s32.totalorder %s34, 2
      %p120 = por %p118, %p119
      %p121 = scmp.ne.s32.totalorder %s112, %s113
      %p122 = scmp.eq.s32.totalorder %s34, 0
      %p123 = por %p121, %p122
      %p124 = scmp.ne.s32.totalorder %s112, %s113
      %p125 = scmp.eq.s32.totalorder %s35, 2
      %p126 = por %p124, %p125
      %p128 = scmp.ne.s32.totalorder %s113, %s127
      %p129 = scmp.eq.s32.totalorder %s35, 0
      %p130 = por %p128, %p129
      %s132 = sadd.s32 %s131, 1
      %p135 = scmp.eq.s32.totalorder %s29, 2
      %p136 = scmp.ne.s32.totalorder %s131, %s133
      %p137 = scmp.eq.s32.totalorder %s29, 0
      %p138 = por %p136, %p137
      %p139 = scmp.ne.s32.totalorder %s131, %s133
      %p140 = scmp.eq.s32.totalorder %s34, 2
      %p141 = por %p139, %p140
      %p142 = scmp.ne.s32.totalorder %s133, %s134
      %p143 = scmp.eq.s32.totalorder %s34, 0
      %p144 = por %p142, %p143
      %p145 = scmp.ne.s32.totalorder %s133, %s134
      %p146 = scmp.eq.s32.totalorder %s35, 2
      %p147 = por %p145, %p146
      %p149 = scmp.ne.s32.totalorder %s134, %s148
      %p150 = scmp.eq.s32.totalorder %s35, 0
      %p151 = por %p149, %p150
      %s153 = sadd.s32 %s152, 1
      %p156 = scmp.eq.s32.totalorder %s29, 2
      %p157 = scmp.ne.s32.totalorder %s152, %s154
      %p158 = scmp.eq.s32.totalorder %s29, 0
      %p159 = por %p157, %p158
      %p160 = scmp.ne.s32.totalorder %s152, %s154
      %p161 = scmp.eq.s32.totalorder %s34, 2
      %p162 = por %p160, %p161
      %p163 = scmp.ne.s32.totalorder %s154, %s155
      %p164 = scmp.eq.s32.totalorder %s34, 0
      %p165 = por %p163, %p164
      %p166 = scmp.ne.s32.totalorder %s154, %s155
      %p167 = scmp.eq.s32.totalorder %s35, 2
      %p168 = por %p166, %p167
      %p170 = scmp.ne.s32.totalorder %s155, %s169
      %p171 = scmp.eq.s32.totalorder %s35, 0
      %p172 = por %p170, %p171
      %s174 = sadd.s32 %s173, 1
      %p177 = scmp.eq.s32.totalorder %s29, 2
      %p178 = scmp.ne.s32.totalorder %s173, %s175
      %p179 = scmp.eq.s32.totalorder %s29, 0
      %p180 = por %p178, %p179
      %p181 = scmp.ne.s32.totalorder %s173, %s175
      %p182 = scmp.eq.s32.totalorder %s34, 2
      %p183 = por %p181, %p182
      %p184 = scmp.ne.s32.totalorder %s175, %s176
      %p185 = scmp.eq.s32.totalorder %s34, 0
      %p186 = por %p184, %p185
      %p187 = scmp.ne.s32.totalorder %s175, %s176
      %p188 = scmp.eq.s32.totalorder %s35, 2
      %p189 = por %p187, %p188
      %p191 = scmp.ne.s32.totalorder %s176, %s190
      %p192 = scmp.eq.s32.totalorder %s35, 0
      %p193 = por %p191, %p192
      %s195 = sadd.s32 %s194, 1
      %p198 = scmp.eq.s32.totalorder %s29, 2
      %p199 = scmp.ne.s32.totalorder %s194, %s196
      %p200 = scmp.eq.s32.totalorder %s29, 0
      %p201 = por %p199, %p200
      %p202 = scmp.ne.s32.totalorder %s194, %s196
      %p203 = scmp.eq.s32.totalorder %s34, 2
      %p204 = por %p202, %p203
      %p205 = scmp.ne.s32.totalorder %s196, %s197
      %p206 = scmp.eq.s32.totalorder %s34, 0
      %p207 = por %p205, %p206
      %p208 = scmp.ne.s32.totalorder %s196, %s197
      %p209 = scmp.eq.s32.totalorder %s35, 2
      %p210 = por %p208, %p209
      %p212 = scmp.ne.s32.totalorder %s197, %s211
      %p213 = scmp.eq.s32.totalorder %s35, 0
      %p214 = por %p212, %p213
      %s216 = sadd.s32 %s215, 1
      %p219 = scmp.eq.s32.totalorder %s29, 2
      %p220 = scmp.ne.s32.totalorder %s215, %s217
      %p221 = scmp.eq.s32.totalorder %s29, 0
      %p222 = por %p220, %p221
      %p223 = scmp.ne.s32.totalorder %s215, %s217
      %p224 = scmp.eq.s32.totalorder %s34, 2
      %p225 = por %p223, %p224
      %p226 = scmp.ne.s32.totalorder %s217, %s218
      %p227 = scmp.eq.s32.totalorder %s34, 0
      %p228 = por %p226, %p227
      %p229 = scmp.ne.s32.totalorder %s217, %s218
      %p230 = scmp.eq.s32.totalorder %s35, 2
      %p231 = por %p229, %p230
      %p233 = scmp.ne.s32.totalorder %s218, %s232
      %p234 = scmp.eq.s32.totalorder %s35, 0
      %p235 = por %p233, %p234
      %s237 = sadd.s32 %s236, 1
      %p240 = scmp.eq.s32.totalorder %s29, 2
      %p241 = scmp.ne.s32.totalorder %s236, %s238
      %p242 = scmp.eq.s32.totalorder %s29, 0
      %p243 = por %p241, %p242
      %p244 = scmp.ne.s32.totalorder %s236, %s238
      %p245 = scmp.eq.s32.totalorder %s34, 2
      %p246 = por %p244, %p245
      %p247 = scmp.ne.s32.totalorder %s238, %s239
      %p248 = scmp.eq.s32.totalorder %s34, 0
      %p249 = por %p247, %p248
      %p250 = scmp.ne.s32.totalorder %s238, %s239
      %p251 = scmp.eq.s32.totalorder %s35, 2
      %p252 = por %p250, %p251
      %p254 = scmp.ne.s32.totalorder %s239, %s253
      %p255 = scmp.eq.s32.totalorder %s35, 0
      %p256 = por %p254, %p255
      %s258 = sadd.s32 %s257, 1
      %p261 = scmp.eq.s32.totalorder %s29, 2
      %p262 = scmp.ne.s32.totalorder %s257, %s259
      %p263 = scmp.eq.s32.totalorder %s29, 0
      %p264 = por %p262, %p263
      %p265 = scmp.ne.s32.totalorder %s257, %s259
      %p266 = scmp.eq.s32.totalorder %s34, 2
      %p267 = por %p265, %p266
      %p268 = scmp.ne.s32.totalorder %s259, %s260
      %p269 = scmp.eq.s32.totalorder %s34, 0
      %p270 = por %p268, %p269
      %p271 = scmp.ne.s32.totalorder %s259, %s260
      %p272 = scmp.eq.s32.totalorder %s35, 2
      %p273 = por %p271, %p272
      %p275 = scmp.ne.s32.totalorder %s260, %s274
      %p276 = scmp.eq.s32.totalorder %s35, 0
      %p277 = por %p275, %p276
      %s279 = sadd.s32 %s278, 1
      %p282 = scmp.eq.s32.totalorder %s29, 2
      %p283 = scmp.ne.s32.totalorder %s278, %s280
      %p284 = scmp.eq.s32.totalorder %s29, 0
      %p285 = por %p283, %p284
      %p286 = scmp.ne.s32.totalorder %s278, %s280
      %p287 = scmp.eq.s32.totalorder %s34, 2
      %p288 = por %p286, %p287
      %p289 = scmp.ne.s32.totalorder %s280, %s281
      %p290 = scmp.eq.s32.totalorder %s34, 0
      %p291 = por %p289, %p290
      %p292 = scmp.ne.s32.totalorder %s280, %s281
      %p293 = scmp.eq.s32.totalorder %s35, 2
      %p294 = por %p292, %p293
      %p296 = scmp.ne.s32.totalorder %s281, %s295
      %p297 = scmp.eq.s32.totalorder %s35, 0
      %p298 = por %p296, %p297
      %s300 = sadd.s32 %s299, 1
      %p303 = scmp.eq.s32.totalorder %s29, 2
      %p304 = scmp.ne.s32.totalorder %s299, %s301
      %p305 = scmp.eq.s32.totalorder %s29, 0
      %p306 = por %p304, %p305
      %p307 = scmp.ne.s32.totalorder %s299, %s301
      %p308 = scmp.eq.s32.totalorder %s34, 2
      %p309 = por %p307, %p308
      %p310 = scmp.ne.s32.totalorder %s301, %s302
      %p311 = scmp.eq.s32.totalorder %s34, 0
      %p312 = por %p310, %p311
      %p313 = scmp.ne.s32.totalorder %s301, %s302
      %p314 = scmp.eq.s32.totalorder %s35, 2
      %p315 = por %p313, %p314
      %p317 = scmp.ne.s32.totalorder %s302, %s316
      %p318 = scmp.eq.s32.totalorder %s35, 0
      %p319 = por %p317, %p318
      %s321 = sadd.s32 %s320, 1
      %p324 = scmp.eq.s32.totalorder %s29, 2
      %p325 = scmp.ne.s32.totalorder %s320, %s322
      %p326 = scmp.eq.s32.totalorder %s29, 0
      %p327 = por %p325, %p326
      %p328 = scmp.ne.s32.totalorder %s320, %s322
      %p329 = scmp.eq.s32.totalorder %s34, 2
      %p330 = por %p328, %p329
      %p331 = scmp.ne.s32.totalorder %s322, %s323
      %p332 = scmp.eq.s32.totalorder %s34, 0
      %p333 = por %p331, %p332
      %p334 = scmp.ne.s32.totalorder %s322, %s323
      %p335 = scmp.eq.s32.totalorder %s35, 2
      %p336 = por %p334, %p335
      %p338 = scmp.ne.s32.totalorder %s323, %s337
      %p339 = scmp.eq.s32.totalorder %s35, 0
      %p340 = por %p338, %p339
      %s342 = sadd.s32 %s341, 1
      %p345 = scmp.eq.s32.totalorder %s29, 2
      %p346 = scmp.ne.s32.totalorder %s341, %s343
      %p347 = scmp.eq.s32.totalorder %s29, 0
      %p348 = por %p346, %p347
      %p349 = scmp.ne.s32.totalorder %s341, %s343
      %p350 = scmp.eq.s32.totalorder %s34, 2
      %p351 = por %p349, %p350
      %p352 = scmp.ne.s32.totalorder %s343, %s344
      %p353 = scmp.eq.s32.totalorder %s34, 0
      %p354 = por %p352, %p353
      %p355 = scmp.ne.s32.totalorder %s343, %s344
      %p356 = scmp.eq.s32.totalorder %s35, 2
      %p357 = por %p355, %p356
      %p359 = scmp.ne.s32.totalorder %s344, %s358
      %p360 = scmp.eq.s32.totalorder %s35, 0
      %p361 = por %p359, %p360
      %p362 = scmp.le.s32.totalorder 1, %s29
      %p363 = scmp.lt.s32.totalorder %s29, 4
      %p364 = pnand %p362, %p363
      %p365 = pneg %p364
      // Predicated region
      $region9: #{nn_model_nlp_head.1} parent=5 // pred_check
        _
      $region10: #{nn_model_nlp_head.1} parent=5 // pred_check_branch
        %367 = sbr.rel (%p364) target = $region12
      $region11: #{nn_model_nlp_head.1} parent=5 // pred_region
        %s368 = ssub.s32 %s29, 1
        // Predicated region
        $region13: #{nn_model_nlp_head.1} parent=11 // pred_check
          %p369 = pneg %p76
        $region14: #{nn_model_nlp_head.1} parent=11 // pred_check_branch
          %371 = sbr.rel (%p369) target = $region16
        $region15: #{nn_model_nlp_head.1} parent=11 // pred_region
          %s373 = ssub.s32 128, 128
          %374 = vsyncadd [#allocation5], %s373
          %s376 = sshll.u32 [#allocation4], 4
          %s377 = int_to_ptr.vmem [resolvable:$true] %s376
          %379 = dma.hbm_to_vmem [thread:$0]  %s1, 128, %s377, [#allocation5]
        $region16: #{nn_model_nlp_head.1} parent=11 // pred_fallthru
          _
        // Predicated region
        $region17: #{nn_model_nlp_head.1} parent=11 // pred_check
          %p380 = pneg %p123
        $region18: #{nn_model_nlp_head.1} parent=11 // pred_check_branch
          %382 = sbr.rel (%p380) target = $region20
        $region19: #{nn_model_nlp_head.1} parent=11 // pred_region
          %s384 = ssub.s32 32, 32
          %385 = vsyncadd [#allocation7], %s384
          %s387 = sshll.u32 [#allocation8], 4
          %s388 = int_to_ptr.vmem [resolvable:$true] %s387
          %390 = dma.hbm_to_vmem [thread:$0]  %s3, 32, %s388, [#allocation7]
        $region20: #{nn_model_nlp_head.1} parent=11 // pred_fallthru
          _
        // Predicated region
        $region21: #{nn_model_nlp_head.1} parent=11 // pred_check
          %p391 = pneg %p144
        $region22: #{nn_model_nlp_head.1} parent=11 // pred_check_branch
          %393 = sbr.rel (%p391) target = $region24
        $region23: #{nn_model_nlp_head.1} parent=11 // pred_region
          %s395 = ssub.s32 32, 32
          %396 = vsyncadd [#allocation10], %s395
          %s398 = sshll.u32 [#allocation9], 4
          %s399 = int_to_ptr.vmem [resolvable:$true] %s398
          %401 = dma.hbm_to_vmem [thread:$0]  %s4, 32, %s399, [#allocation10]
        $region24: #{nn_model_nlp_head.1} parent=11 // pred_fallthru
          _
        // Predicated region
        $region25: #{nn_model_nlp_head.1} parent=11 // pred_check
          %p402 = pneg %p165
        $region26: #{nn_model_nlp_head.1} parent=11 // pred_check_branch
          %404 = sbr.rel (%p402) target = $region28
        $region27: #{nn_model_nlp_head.1} parent=11 // pred_region
          %s406 = ssub.s32 2048, 2048
          %407 = vsyncadd [#allocation10], %s406
          %s408 = sshll.u32 [#allocation11], 4
          %s409 = int_to_ptr.vmem [resolvable:$true] %s408
          %414 = dma.hbm_to_vmem [thread:$0]  %s5, 2048, %s409, [#allocation10], 64, 64, 4
        $region28: #{nn_model_nlp_head.1} parent=11 // pred_fallthru
          _
        // Predicated region
        $region29: #{nn_model_nlp_head.1} parent=11 // pred_check
          %p415 = pneg %p186
        $region30: #{nn_model_nlp_head.1} parent=11 // pred_check_branch
          %417 = sbr.rel (%p415) target = $region32
        $region31: #{nn_model_nlp_head.1} parent=11 // pred_region
          %s419 = ssub.s32 16, 16
          %420 = vsyncadd [#allocation13], %s419
          %s422 = sshll.u32 [#allocation12], 4
          %s423 = int_to_ptr.vmem [resolvable:$true] %s422
          %425 = dma.hbm_to_vmem [thread:$0]  %s6, 16, %s423, [#allocation13]
        $region32: #{nn_model_nlp_head.1} parent=11 // pred_fallthru
          _
        // Predicated region
        $region33: #{nn_model_nlp_head.1} parent=11 // pred_check
          %p426 = pneg %p207
        $region34: #{nn_model_nlp_head.1} parent=11 // pred_check_branch
          %428 = sbr.rel (%p426) target = $region36
        $region35: #{nn_model_nlp_head.1} parent=11 // pred_region
          %s430 = ssub.s32 16384, 16384
          %431 = vsyncadd [#allocation13], %s430
          %s432 = sshll.u32 [#allocation14], 4
          %s433 = int_to_ptr.vmem [resolvable:$true] %s432
          %438 = dma.hbm_to_vmem [thread:$0]  %s7, 16384, %s433, [#allocation13], 256, 256, 16
        $region36: #{nn_model_nlp_head.1} parent=11 // pred_fallthru
          _
        // Predicated region
        $region37: #{nn_model_nlp_head.1} parent=11 // pred_check
          %p439 = pneg %p228
        $region38: #{nn_model_nlp_head.1} parent=11 // pred_check_branch
          %441 = sbr.rel (%p439) target = $region40
        $region39: #{nn_model_nlp_head.1} parent=11 // pred_region
          %s443 = ssub.s32 64, 64
          %444 = vsyncadd [#allocation16], %s443
          %s446 = sshll.u32 [#allocation15], 4
          %s447 = int_to_ptr.vmem [resolvable:$true] %s446
          %449 = dma.hbm_to_vmem [thread:$0]  %s8, 64, %s447, [#allocation16]
        $region40: #{nn_model_nlp_head.1} parent=11 // pred_fallthru
          _
        // Predicated region
        $region41: #{nn_model_nlp_head.1} parent=11 // pred_check
          %p450 = pneg %p249
        $region42: #{nn_model_nlp_head.1} parent=11 // pred_check_branch
          %452 = sbr.rel (%p450) target = $region44
        $region43: #{nn_model_nlp_head.1} parent=11 // pred_region
          %s454 = ssub.s32 4096, 4096
          %455 = vsyncadd [#allocation16], %s454
          %s456 = sshll.u32 [#allocation17], 4
          %s457 = int_to_ptr.vmem [resolvable:$true] %s456
          %462 = dma.hbm_to_vmem [thread:$0]  %s9, 4096, %s457, [#allocation16], 256, 256, 16
        $region44: #{nn_model_nlp_head.1} parent=11 // pred_fallthru
          _
        // Predicated region
        $region45: #{nn_model_nlp_head.1} parent=11 // pred_check
          %p463 = pneg %p270
        $region46: #{nn_model_nlp_head.1} parent=11 // pred_check_branch
          %465 = sbr.rel (%p463) target = $region48
        $region47: #{nn_model_nlp_head.1} parent=11 // pred_region
          %s467 = ssub.s32 16384, 16384
          %468 = vsyncadd [#allocation19], %s467
          %s469 = sshll.u32 [#allocation18], 4
          %s470 = int_to_ptr.vmem [resolvable:$true] %s469
          %475 = dma.hbm_to_vmem [thread:$0]  %s10, 16384, %s470, [#allocation19], 256, 256, 16
        $region48: #{nn_model_nlp_head.1} parent=11 // pred_fallthru
          _
        // Predicated region
        $region49: #{nn_model_nlp_head.1} parent=11 // pred_check
          %p476 = pneg %p291
        $region50: #{nn_model_nlp_head.1} parent=11 // pred_check_branch
          %478 = sbr.rel (%p476) target = $region52
        $region51: #{nn_model_nlp_head.1} parent=11 // pred_region
          %s480 = ssub.s32 64, 64
          %481 = vsyncadd [#allocation19], %s480
          %s483 = sshll.u32 [#allocation20], 4
          %s484 = int_to_ptr.vmem [resolvable:$true] %s483
          %486 = dma.hbm_to_vmem [thread:$0]  %s11, 64, %s484, [#allocation19]
        $region52: #{nn_model_nlp_head.1} parent=11 // pred_fallthru
          _
        // Predicated region
        $region53: #{nn_model_nlp_head.1} parent=11 // pred_check
          %p487 = pneg %p312
        $region54: #{nn_model_nlp_head.1} parent=11 // pred_check_branch
          %489 = sbr.rel (%p487) target = $region56
        $region55: #{nn_model_nlp_head.1} parent=11 // pred_region
          %s491 = ssub.s32 4096, 4096
          %492 = vsyncadd [#allocation22], %s491
          %s493 = sshll.u32 [#allocation21], 4
          %s494 = int_to_ptr.vmem [resolvable:$true] %s493
          %499 = dma.hbm_to_vmem [thread:$0]  %s12, 4096, %s494, [#allocation22], 64, 64, 4
        $region56: #{nn_model_nlp_head.1} parent=11 // pred_fallthru
          _
        // Predicated region
        $region57: #{nn_model_nlp_head.1} parent=11 // pred_check
          %p500 = pneg %p333
        $region58: #{nn_model_nlp_head.1} parent=11 // pred_check_branch
          %502 = sbr.rel (%p500) target = $region60
        $region59: #{nn_model_nlp_head.1} parent=11 // pred_region
          %s504 = ssub.s32 16, 16
          %505 = vsyncadd [#allocation22], %s504
          %s507 = sshll.u32 [#allocation23], 4
          %s508 = int_to_ptr.vmem [resolvable:$true] %s507
          %510 = dma.hbm_to_vmem [thread:$0]  %s13, 16, %s508, [#allocation22]
        $region60: #{nn_model_nlp_head.1} parent=11 // pred_fallthru
          _
      $region12: #{nn_model_nlp_head.1} parent=5 // pred_fallthru
        _
      %p511 = scmp.lt.s32.totalorder %s29, 3
      // Predicated region
      $region61: #{nn_model_nlp_head.1} parent=5 // pred_check
        %p512 = pneg %p511
      $region62: #{nn_model_nlp_head.1} parent=5 // pred_check_branch
        %514 = sbr.rel (%p512) target = $region64
      $region63: #{nn_model_nlp_head.1} parent=5 // pred_region
        // Predicated region
        $region65: #{nn_model_nlp_head.1} parent=63 // pred_check
          %p515 = pneg %p49
        $region66: #{nn_model_nlp_head.1} parent=63 // pred_check_branch
          %517 = sbr.rel (%p515) target = $region68
        $region67: #{nn_model_nlp_head.1} parent=63 // pred_region
          %s518 = smul.u32 64, %s29
          %p519 = scmp.lt.s32.totalorder %s518, 191
          %s520 = scalar_select %p519, %s518, 191
          %s521 = smul.addr %s520, 2
          %s522 = scalar_lea.vmem %s0, %s521
          %s523 = smul.u32 64, %s29
        $region68: #{nn_model_nlp_head.1} parent=63 // pred_fallthru
          _
        // Predicated region
        $region69: #{nn_model_nlp_head.1} parent=63 // pred_check
          %p524 = pneg %p96
        $region70: #{nn_model_nlp_head.1} parent=63 // pred_check_branch
          %526 = sbr.rel (%p524) target = $region72
        $region71: #{nn_model_nlp_head.1} parent=63 // pred_region
          %s527 = sand.u32 %s29, 1
          %s528 = scalar_lea.sflag [#allocation7], %s527
          %s529 = sand.u32 %s86, 1
          %s530 = smul.addr %s529, 4096
          %s531 = scalar_lea.vmem [#allocation6], %s530
          %s532 = smul.u32 256, %s29
          %s534 = ssub.s32 65536, 65536
          %535 = vsyncadd %s528, %s534
          %s536 = smul.addr %s532, 2
          %s537 = smul.addr %s536, 128
          %s538 = scalar_lea.hbm %s2, %s537
          %s539 = sshll.u32 %s531, 4
          %s540 = int_to_ptr.vmem [resolvable:$true] %s539
          %545 = dma.hbm_to_vmem [thread:$0]  %s538, 65536, %s540, %s528, 256, 256, 16
        $region72: #{nn_model_nlp_head.1} parent=63 // pred_fallthru
          _
      $region64: #{nn_model_nlp_head.1} parent=5 // pred_fallthru
        _
      %p546 = scmp.le.s32.totalorder 1, %s29
      %p547 = scmp.lt.s32.totalorder %s29, 4
      %p548 = pnand %p546, %p547
      %p549 = pneg %p548
      // Predicated region
      $region73: #{nn_model_nlp_head.1} parent=5 // pred_check
        _
      $region74: #{nn_model_nlp_head.1} parent=5 // pred_check_branch
        %551 = sbr.rel (%p548) target = $region76
      $region75: #{nn_model_nlp_head.1} parent=5 // pred_region
        %s552 = ssub.s32 %s29, 1
        // Predicated region
        $region77: #{nn_model_nlp_head.1} parent=75 // pred_check
          %p553 = pneg %p76
        $region78: #{nn_model_nlp_head.1} parent=75 // pred_check_branch
          %555 = sbr.rel (%p553) target = $region80
        $region79: #{nn_model_nlp_head.1} parent=75 // pred_region
          %556 = dma.done [#allocation5], 128
        $region80: #{nn_model_nlp_head.1} parent=75 // pred_fallthru
          _
        %s557 = sand.u32 %s34, 1
        %s558 = scalar_lea.sflag [#allocation7], %s557
        %s559 = sand.u32 %s89, 1
        %s560 = smul.addr %s559, 4096
        %s561 = scalar_lea.vmem [#allocation6], %s560
        // Predicated region
        $region81: #{nn_model_nlp_head.1} parent=75 // pred_check
          %p562 = pneg %p102
        $region82: #{nn_model_nlp_head.1} parent=75 // pred_check_branch
          %564 = sbr.rel (%p562) target = $region84
        $region83: #{nn_model_nlp_head.1} parent=75 // pred_region
          %565 = dma.done %s558, 65536
        $region84: #{nn_model_nlp_head.1} parent=75 // pred_fallthru
          _
        // Predicated region
        $region85: #{nn_model_nlp_head.1} parent=75 // pred_check
          %p566 = pneg %p123
        $region86: #{nn_model_nlp_head.1} parent=75 // pred_check_branch
          %568 = sbr.rel (%p566) target = $region88
        $region87: #{nn_model_nlp_head.1} parent=75 // pred_region
          %569 = dma.done [#allocation7], 32
        $region88: #{nn_model_nlp_head.1} parent=75 // pred_fallthru
          _
        // Predicated region
        $region89: #{nn_model_nlp_head.1} parent=75 // pred_check
          %p570 = pneg %p144
        $region90: #{nn_model_nlp_head.1} parent=75 // pred_check_branch
          %572 = sbr.rel (%p570) target = $region92
        $region91: #{nn_model_nlp_head.1} parent=75 // pred_region
          %573 = dma.done [#allocation10], 32
        $region92: #{nn_model_nlp_head.1} parent=75 // pred_fallthru
          _
        // Predicated region
        $region93: #{nn_model_nlp_head.1} parent=75 // pred_check
          %p574 = pneg %p165
        $region94: #{nn_model_nlp_head.1} parent=75 // pred_check_branch
          %576 = sbr.rel (%p574) target = $region96
        $region95: #{nn_model_nlp_head.1} parent=75 // pred_region
          %577 = dma.done [#allocation10], 2048
        $region96: #{nn_model_nlp_head.1} parent=75 // pred_fallthru
          _
        // Predicated region
        $region97: #{nn_model_nlp_head.1} parent=75 // pred_check
          %p578 = pneg %p186
        $region98: #{nn_model_nlp_head.1} parent=75 // pred_check_branch
          %580 = sbr.rel (%p578) target = $region100
        $region99: #{nn_model_nlp_head.1} parent=75 // pred_region
          %581 = dma.done [#allocation13], 16
        $region100: #{nn_model_nlp_head.1} parent=75 // pred_fallthru
          _
        // Predicated region
        $region101: #{nn_model_nlp_head.1} parent=75 // pred_check
          %p582 = pneg %p207
        $region102: #{nn_model_nlp_head.1} parent=75 // pred_check_branch
          %584 = sbr.rel (%p582) target = $region104
        $region103: #{nn_model_nlp_head.1} parent=75 // pred_region
          %585 = dma.done [#allocation13], 16384
        $region104: #{nn_model_nlp_head.1} parent=75 // pred_fallthru
          _
        // Predicated region
        $region105: #{nn_model_nlp_head.1} parent=75 // pred_check
          %p586 = pneg %p228
        $region106: #{nn_model_nlp_head.1} parent=75 // pred_check_branch
          %588 = sbr.rel (%p586) target = $region108
        $region107: #{nn_model_nlp_head.1} parent=75 // pred_region
          %589 = dma.done [#allocation16], 64
        $region108: #{nn_model_nlp_head.1} parent=75 // pred_fallthru
          _
        // Predicated region
        $region109: #{nn_model_nlp_head.1} parent=75 // pred_check
          %p590 = pneg %p249
        $region110: #{nn_model_nlp_head.1} parent=75 // pred_check_branch
          %592 = sbr.rel (%p590) target = $region112
        $region111: #{nn_model_nlp_head.1} parent=75 // pred_region
          %593 = dma.done [#allocation16], 4096
        $region112: #{nn_model_nlp_head.1} parent=75 // pred_fallthru
          _
        // Predicated region
        $region113: #{nn_model_nlp_head.1} parent=75 // pred_check
          %p594 = pneg %p270
        $region114: #{nn_model_nlp_head.1} parent=75 // pred_check_branch
          %596 = sbr.rel (%p594) target = $region116
        $region115: #{nn_model_nlp_head.1} parent=75 // pred_region
          %597 = dma.done [#allocation19], 16384
        $region116: #{nn_model_nlp_head.1} parent=75 // pred_fallthru
          _
        // Predicated region
        $region117: #{nn_model_nlp_head.1} parent=75 // pred_check
          %p598 = pneg %p291
        $region118: #{nn_model_nlp_head.1} parent=75 // pred_check_branch
          %600 = sbr.rel (%p598) target = $region120
        $region119: #{nn_model_nlp_head.1} parent=75 // pred_region
          %601 = dma.done [#allocation19], 64
        $region120: #{nn_model_nlp_head.1} parent=75 // pred_fallthru
          _
        // Predicated region
        $region121: #{nn_model_nlp_head.1} parent=75 // pred_check
          %p602 = pneg %p312
        $region122: #{nn_model_nlp_head.1} parent=75 // pred_check_branch
          %604 = sbr.rel (%p602) target = $region124
        $region123: #{nn_model_nlp_head.1} parent=75 // pred_region
          %605 = dma.done [#allocation22], 4096
        $region124: #{nn_model_nlp_head.1} parent=75 // pred_fallthru
          _
        // Predicated region
        $region125: #{nn_model_nlp_head.1} parent=75 // pred_check
          %p606 = pneg %p333
        $region126: #{nn_model_nlp_head.1} parent=75 // pred_check_branch
          %608 = sbr.rel (%p606) target = $region128
        $region127: #{nn_model_nlp_head.1} parent=75 // pred_region
          %609 = dma.done [#allocation22], 16
        $region128: #{nn_model_nlp_head.1} parent=75 // pred_fallthru
          _
        %s610 = smul.u32 64, %s34
        %p611 = scmp.lt.s32.totalorder %s610, 191
        %s612 = scalar_select %p611, %s610, 191
        %s613 = smul.addr %s612, 2
        %s614 = scalar_lea.vmem %s0, %s613
        %p615 = pneg %p55
        %p616 = pneg %p52
        %p617 = pneg %p76
        %p618 = pneg %p73
        %s619 = sand.u32 %s34, 1
        %s620 = scalar_lea.sflag [#allocation7], %s619
        %s621 = sand.u32 %s89, 1
        %s622 = smul.addr %s621, 4096
        %s623 = scalar_lea.vmem [#allocation6], %s622
        %p624 = pneg %p102
        %p625 = pneg %p99
        %p626 = pneg %p123
        %p627 = pneg %p120
        %p628 = pneg %p144
        %p629 = pneg %p141
        %p630 = pneg %p165
        %p631 = pneg %p162
        %p632 = pneg %p186
        %p633 = pneg %p183
        %p634 = pneg %p207
        %p635 = pneg %p204
        %p636 = pneg %p228
        %p637 = pneg %p225
        %p638 = pneg %p249
        %p639 = pneg %p246
        %p640 = pneg %p270
        %p641 = pneg %p267
        %p642 = pneg %p291
        %p643 = pneg %p288
        %p644 = pneg %p312
        %p645 = pneg %p309
        %p646 = pneg %p333
        %p647 = pneg %p330
        %p648 = pneg %p354
        %p649 = pneg %p351
        %s650 = smul.u32 64, %s34
        %p651 = scmp.lt.s32.totalorder %s650, 191
        %s652 = scalar_select %p651, %s650, 191
        %s653 = smul.addr %s652, 2
        %s654 = scalar_lea.vmem %s0, %s653
        %s655 = smul.u32 64, %s34
        %s656 = smul.u32 256, %s34
        %p657 = scmp.eq.s32.totalorder %s34, 0
        // Predicated region
        $region129: #{nn_model_nlp_head.1} parent=75 // pred_check
          %p658 = pneg %p657
        $region130: #{nn_model_nlp_head.1} parent=75 // pred_check_branch
          %660 = sbr.rel (%p658) target = $region132
        $region131: #{nn_model_nlp_head.1} parent=75 // pred_region
          %661 = vst [vmem:[#allocation2] sm:$0xf] 0.0
          %v662 = vld [vmem:[#allocation4] sm:$0xff]
          %v663 = vld [vmem:[#allocation14] sm:$0xff]
          %v664 = vld [vmem:[#allocation14 + $0x8] sm:$0xff]
          %v665 = vld [vmem:[#allocation14 + $0x10] sm:$0xff]
          %v666 = vld [vmem:[#allocation14 + $0x18] sm:$0xff]
          %v667 = vld [vmem:[#allocation14 + $0x20] sm:$0xff]
          %v668 = vld [vmem:[#allocation14 + $0x28] sm:$0xff]
          %v669 = vld [vmem:[#allocation14 + $0x30] sm:$0xff]
          %v670 = vld [vmem:[#allocation14 + $0x38] sm:$0xff]
          %v671 = vld [vmem:[#allocation14 + $0x40] sm:$0xff]
          %v672 = vld [vmem:[#allocation14 + $0x48] sm:$0xff]
          %v673 = vld [vmem:[#allocation14 + $0x50] sm:$0xff]
          %v674 = vld [vmem:[#allocation14 + $0x58] sm:$0xff]
          %v675 = vld [vmem:[#allocation14 + $0x60] sm:$0xff]
          %v676 = vld [vmem:[#allocation14 + $0x68] sm:$0xff]
          %v677 = vld [vmem:[#allocation14 + $0x70] sm:$0xff]
          %v678 = vld [vmem:[#allocation14 + $0x78] sm:$0xff]
          %v679 = vld [vmem:[#allocation14 + $0x80] sm:$0xff]
          %v680 = vld [vmem:[#allocation14 + $0x88] sm:$0xff]
          %v681 = vld [vmem:[#allocation14 + $0x90] sm:$0xff]
          %v682 = vld [vmem:[#allocation14 + $0x98] sm:$0xff]
          %v683 = vld [vmem:[#allocation14 + $0xa0] sm:$0xff]
          %v684 = vld [vmem:[#allocation14 + $0xa8] sm:$0xff]
          %v685 = vld [vmem:[#allocation14 + $0xb0] sm:$0xff]
          %v686 = vld [vmem:[#allocation14 + $0xb8] sm:$0xff]
          %v687 = vld [vmem:[#allocation14 + $0xc0] sm:$0xff]
          %v688 = vld [vmem:[#allocation14 + $0xc8] sm:$0xff]
          %v689 = vld [vmem:[#allocation14 + $0xd0] sm:$0xff]
          %v690 = vld [vmem:[#allocation14 + $0xd8] sm:$0xff]
          %v691 = vld [vmem:[#allocation14 + $0xe0] sm:$0xff]
          %v692 = vld [vmem:[#allocation14 + $0xe8] sm:$0xff]
          %v693 = vld [vmem:[#allocation14 + $0xf0] sm:$0xff]
          %v694 = vld [vmem:[#allocation14 + $0xf8] sm:$0xff]
          %v695 = vld [vmem:[#allocation14 + $0x100] sm:$0xff]
          %v696 = vld [vmem:[#allocation14 + $0x108] sm:$0xff]
          %v697 = vld [vmem:[#allocation14 + $0x110] sm:$0xff]
          %v698 = vld [vmem:[#allocation14 + $0x118] sm:$0xff]
          %v699 = vld [vmem:[#allocation14 + $0x120] sm:$0xff]
          %v700 = vld [vmem:[#allocation14 + $0x128] sm:$0xff]
          %v701 = vld [vmem:[#allocation14 + $0x130] sm:$0xff]
          %v702 = vld [vmem:[#allocation14 + $0x138] sm:$0xff]
          %v703 = vld [vmem:[#allocation14 + $0x140] sm:$0xff]
          %v704 = vld [vmem:[#allocation14 + $0x148] sm:$0xff]
          %v705 = vld [vmem:[#allocation14 + $0x150] sm:$0xff]
          %v706 = vld [vmem:[#allocation14 + $0x158] sm:$0xff]
          %v707 = vld [vmem:[#allocation14 + $0x160] sm:$0xff]
          %v708 = vld [vmem:[#allocation14 + $0x168] sm:$0xff]
          %v709 = vld [vmem:[#allocation14 + $0x170] sm:$0xff]
          %v710 = vld [vmem:[#allocation14 + $0x178] sm:$0xff]
          %v711 = vld [vmem:[#allocation14 + $0x180] sm:$0xff]
          %v712 = vld [vmem:[#allocation14 + $0x188] sm:$0xff]
          %v713 = vld [vmem:[#allocation14 + $0x190] sm:$0xff]
          %v714 = vld [vmem:[#allocation14 + $0x198] sm:$0xff]
          %v715 = vld [vmem:[#allocation14 + $0x1a0] sm:$0xff]
          %v716 = vld [vmem:[#allocation14 + $0x1a8] sm:$0xff]
          %v717 = vld [vmem:[#allocation14 + $0x1b0] sm:$0xff]
          %v718 = vld [vmem:[#allocation14 + $0x1b8] sm:$0xff]
          %v719 = vld [vmem:[#allocation14 + $0x1c0] sm:$0xff]
          %v720 = vld [vmem:[#allocation14 + $0x1c8] sm:$0xff]
          %v721 = vld [vmem:[#allocation14 + $0x1d0] sm:$0xff]
          %v722 = vld [vmem:[#allocation14 + $0x1d8] sm:$0xff]
          %v723 = vld [vmem:[#allocation14 + $0x1e0] sm:$0xff]
          %v724 = vld [vmem:[#allocation14 + $0x1e8] sm:$0xff]
          %v725 = vld [vmem:[#allocation14 + $0x1f0] sm:$0xff]
          %v726 = vld [vmem:[#allocation14 + $0x1f8] sm:$0xff]
          %v727 = vld [vmem:[#allocation14 + $0x200] sm:$0xff]
          %v728 = vld [vmem:[#allocation14 + $0x208] sm:$0xff]
          %v729 = vld [vmem:[#allocation14 + $0x210] sm:$0xff]
          %v730 = vld [vmem:[#allocation14 + $0x218] sm:$0xff]
          %v731 = vld [vmem:[#allocation14 + $0x220] sm:$0xff]
          %v732 = vld [vmem:[#allocation14 + $0x228] sm:$0xff]
          %v733 = vld [vmem:[#allocation14 + $0x230] sm:$0xff]
          %v734 = vld [vmem:[#allocation14 + $0x238] sm:$0xff]
          %v735 = vld [vmem:[#allocation14 + $0x240] sm:$0xff]
          %v736 = vld [vmem:[#allocation14 + $0x248] sm:$0xff]
          %v737 = vld [vmem:[#allocation14 + $0x250] sm:$0xff]
          %v738 = vld [vmem:[#allocation14 + $0x258] sm:$0xff]
          %v739 = vld [vmem:[#allocation14 + $0x260] sm:$0xff]
          %v740 = vld [vmem:[#allocation14 + $0x268] sm:$0xff]
          %v741 = vld [vmem:[#allocation14 + $0x270] sm:$0xff]
          %v742 = vld [vmem:[#allocation14 + $0x278] sm:$0xff]
          %v743 = vld [vmem:[#allocation14 + $0x280] sm:$0xff]
          %v744 = vld [vmem:[#allocation14 + $0x288] sm:$0xff]
          %v745 = vld [vmem:[#allocation14 + $0x290] sm:$0xff]
          %v746 = vld [vmem:[#allocation14 + $0x298] sm:$0xff]
          %v747 = vld [vmem:[#allocation14 + $0x2a0] sm:$0xff]
          %v748 = vld [vmem:[#allocation14 + $0x2a8] sm:$0xff]
          %v749 = vld [vmem:[#allocation14 + $0x2b0] sm:$0xff]
          %v750 = vld [vmem:[#allocation14 + $0x2b8] sm:$0xff]
          %v751 = vld [vmem:[#allocation14 + $0x2c0] sm:$0xff]
          %v752 = vld [vmem:[#allocation14 + $0x2c8] sm:$0xff]
          %v753 = vld [vmem:[#allocation14 + $0x2d0] sm:$0xff]
          %v754 = vld [vmem:[#allocation14 + $0x2d8] sm:$0xff]
          %v755 = vld [vmem:[#allocation14 + $0x2e0] sm:$0xff]
          %v756 = vld [vmem:[#allocation14 + $0x2e8] sm:$0xff]
          %v757 = vld [vmem:[#allocation14 + $0x2f0] sm:$0xff]
          %v758 = vld [vmem:[#allocation14 + $0x2f8] sm:$0xff]
          %v759 = vld [vmem:[#allocation14 + $0x300] sm:$0xff]
          %v760 = vld [vmem:[#allocation14 + $0x308] sm:$0xff]
          %v761 = vld [vmem:[#allocation14 + $0x310] sm:$0xff]
          %v762 = vld [vmem:[#allocation14 + $0x318] sm:$0xff]
          %v763 = vld [vmem:[#allocation14 + $0x320] sm:$0xff]
          %v764 = vld [vmem:[#allocation14 + $0x328] sm:$0xff]
          %v765 = vld [vmem:[#allocation14 + $0x330] sm:$0xff]
          %v766 = vld [vmem:[#allocation14 + $0x338] sm:$0xff]
          %v767 = vld [vmem:[#allocation14 + $0x340] sm:$0xff]
          %v768 = vld [vmem:[#allocation14 + $0x348] sm:$0xff]
          %v769 = vld [vmem:[#allocation14 + $0x350] sm:$0xff]
          %v770 = vld [vmem:[#allocation14 + $0x358] sm:$0xff]
          %v771 = vld [vmem:[#allocation14 + $0x360] sm:$0xff]
          %v772 = vld [vmem:[#allocation14 + $0x368] sm:$0xff]
          %v773 = vld [vmem:[#allocation14 + $0x370] sm:$0xff]
          %v774 = vld [vmem:[#allocation14 + $0x378] sm:$0xff]
          %v775 = vld [vmem:[#allocation14 + $0x380] sm:$0xff]
          %v776 = vld [vmem:[#allocation14 + $0x388] sm:$0xff]
          %v777 = vld [vmem:[#allocation14 + $0x390] sm:$0xff]
          %v778 = vld [vmem:[#allocation14 + $0x398] sm:$0xff]
          %v779 = vld [vmem:[#allocation14 + $0x3a0] sm:$0xff]
          %v780 = vld [vmem:[#allocation14 + $0x3a8] sm:$0xff]
          %v781 = vld [vmem:[#allocation14 + $0x3b0] sm:$0xff]
          %v782 = vld [vmem:[#allocation14 + $0x3b8] sm:$0xff]
          %v783 = vld [vmem:[#allocation14 + $0x3c0] sm:$0xff]
          %v784 = vld [vmem:[#allocation14 + $0x3c8] sm:$0xff]
          %v785 = vld [vmem:[#allocation14 + $0x3d0] sm:$0xff]
          %v786 = vld [vmem:[#allocation14 + $0x3d8] sm:$0xff]
          %v787 = vld [vmem:[#allocation14 + $0x3e0] sm:$0xff]
          %v788 = vld [vmem:[#allocation14 + $0x3e8] sm:$0xff]
          %v789 = vld [vmem:[#allocation14 + $0x3f0] sm:$0xff]
          %v790 = vld [vmem:[#allocation14 + $0x3f8] sm:$0xff]
          %v791 = vunpack.c.l.bf16 %v663
          %v792 = vunpack.c.h.bf16 %v663
          %v793 = vunpack.c.l.bf16 %v664
          %v794 = vunpack.c.h.bf16 %v664
          %v795 = vunpack.c.l.bf16 %v665
          %v796 = vunpack.c.h.bf16 %v665
          %v797 = vunpack.c.l.bf16 %v666
          %v798 = vunpack.c.h.bf16 %v666
          %v799 = vunpack.c.l.bf16 %v667
          %v800 = vunpack.c.h.bf16 %v667
          %v801 = vunpack.c.l.bf16 %v668
          %v802 = vunpack.c.h.bf16 %v668
          %v803 = vunpack.c.l.bf16 %v669
          %v804 = vunpack.c.h.bf16 %v669
          %v805 = vunpack.c.l.bf16 %v670
          %v806 = vunpack.c.h.bf16 %v670
          %v807 = vunpack.c.l.bf16 %v671
          %v808 = vunpack.c.h.bf16 %v671
          %v809 = vunpack.c.l.bf16 %v672
          %v810 = vunpack.c.h.bf16 %v672
          %v811 = vunpack.c.l.bf16 %v673
          %v812 = vunpack.c.h.bf16 %v673
          %v813 = vunpack.c.l.bf16 %v674
          %v814 = vunpack.c.h.bf16 %v674
          %v815 = vunpack.c.l.bf16 %v675
          %v816 = vunpack.c.h.bf16 %v675
          %v817 = vunpack.c.l.bf16 %v676
          %v818 = vunpack.c.h.bf16 %v676
          %v819 = vunpack.c.l.bf16 %v677
          %v820 = vunpack.c.h.bf16 %v677
          %v821 = vunpack.c.l.bf16 %v678
          %v822 = vunpack.c.h.bf16 %v678
          %v823 = vunpack.c.l.bf16 %v679
          %v824 = vunpack.c.h.bf16 %v679
          %v825 = vunpack.c.l.bf16 %v680
          %v826 = vunpack.c.h.bf16 %v680
          %v827 = vunpack.c.l.bf16 %v681
          %v828 = vunpack.c.h.bf16 %v681
          %v829 = vunpack.c.l.bf16 %v682
          %v830 = vunpack.c.h.bf16 %v682
          %v831 = vunpack.c.l.bf16 %v683
          %v832 = vunpack.c.h.bf16 %v683
          %v833 = vunpack.c.l.bf16 %v684
          %v834 = vunpack.c.h.bf16 %v684
          %v835 = vunpack.c.l.bf16 %v685
          %v836 = vunpack.c.h.bf16 %v685
          %v837 = vunpack.c.l.bf16 %v686
          %v838 = vunpack.c.h.bf16 %v686
          %v839 = vunpack.c.l.bf16 %v687
          %v840 = vunpack.c.h.bf16 %v687
          %v841 = vunpack.c.l.bf16 %v688
          %v842 = vunpack.c.h.bf16 %v688
          %v843 = vunpack.c.l.bf16 %v689
          %v844 = vunpack.c.h.bf16 %v689
          %v845 = vunpack.c.l.bf16 %v690
          %v846 = vunpack.c.h.bf16 %v690
          %v847 = vunpack.c.l.bf16 %v691
          %v848 = vunpack.c.h.bf16 %v691
          %v849 = vunpack.c.l.bf16 %v692
          %v850 = vunpack.c.h.bf16 %v692
          %v851 = vunpack.c.l.bf16 %v693
          %v852 = vunpack.c.h.bf16 %v693
          %v853 = vunpack.c.l.bf16 %v694
          %v854 = vunpack.c.h.bf16 %v694
          %v855 = vunpack.c.l.bf16 %v695
          %v856 = vunpack.c.h.bf16 %v695
          %v857 = vunpack.c.l.bf16 %v696
          %v858 = vunpack.c.h.bf16 %v696
          %v859 = vunpack.c.l.bf16 %v697
          %v860 = vunpack.c.h.bf16 %v697
          %v861 = vunpack.c.l.bf16 %v698
          %v862 = vunpack.c.h.bf16 %v698
          %v863 = vunpack.c.l.bf16 %v699
          %v864 = vunpack.c.h.bf16 %v699
          %v865 = vunpack.c.l.bf16 %v700
          %v866 = vunpack.c.h.bf16 %v700
          %v867 = vunpack.c.l.bf16 %v701
          %v868 = vunpack.c.h.bf16 %v701
          %v869 = vunpack.c.l.bf16 %v702
          %v870 = vunpack.c.h.bf16 %v702
          %v871 = vunpack.c.l.bf16 %v703
          %v872 = vunpack.c.h.bf16 %v703
          %v873 = vunpack.c.l.bf16 %v704
          %v874 = vunpack.c.h.bf16 %v704
          %v875 = vunpack.c.l.bf16 %v705
          %v876 = vunpack.c.h.bf16 %v705
          %v877 = vunpack.c.l.bf16 %v706
          %v878 = vunpack.c.h.bf16 %v706
          %v879 = vunpack.c.l.bf16 %v707
          %v880 = vunpack.c.h.bf16 %v707
          %v881 = vunpack.c.l.bf16 %v708
          %v882 = vunpack.c.h.bf16 %v708
          %v883 = vunpack.c.l.bf16 %v709
          %v884 = vunpack.c.h.bf16 %v709
          %v885 = vunpack.c.l.bf16 %v710
          %v886 = vunpack.c.h.bf16 %v710
          %v887 = vunpack.c.l.bf16 %v711
          %v888 = vunpack.c.h.bf16 %v711
          %v889 = vunpack.c.l.bf16 %v712
          %v890 = vunpack.c.h.bf16 %v712
          %v891 = vunpack.c.l.bf16 %v713
          %v892 = vunpack.c.h.bf16 %v713
          %v893 = vunpack.c.l.bf16 %v714
          %v894 = vunpack.c.h.bf16 %v714
          %v895 = vunpack.c.l.bf16 %v715
          %v896 = vunpack.c.h.bf16 %v715
          %v897 = vunpack.c.l.bf16 %v716
          %v898 = vunpack.c.h.bf16 %v716
          %v899 = vunpack.c.l.bf16 %v717
          %v900 = vunpack.c.h.bf16 %v717
          %v901 = vunpack.c.l.bf16 %v718
          %v902 = vunpack.c.h.bf16 %v718
          %v903 = vunpack.c.l.bf16 %v719
          %v904 = vunpack.c.h.bf16 %v719
          %v905 = vunpack.c.l.bf16 %v720
          %v906 = vunpack.c.h.bf16 %v720
          %v907 = vunpack.c.l.bf16 %v721
          %v908 = vunpack.c.h.bf16 %v721
          %v909 = vunpack.c.l.bf16 %v722
          %v910 = vunpack.c.h.bf16 %v722
          %v911 = vunpack.c.l.bf16 %v723
          %v912 = vunpack.c.h.bf16 %v723
          %v913 = vunpack.c.l.bf16 %v724
          %v914 = vunpack.c.h.bf16 %v724
          %v915 = vunpack.c.l.bf16 %v725
          %v916 = vunpack.c.h.bf16 %v725
          %v917 = vunpack.c.l.bf16 %v726
          %v918 = vunpack.c.h.bf16 %v726
          %v919 = vunpack.c.l.bf16 %v727
          %v920 = vunpack.c.h.bf16 %v727
          %v921 = vunpack.c.l.bf16 %v728
          %v922 = vunpack.c.h.bf16 %v728
          %v923 = vunpack.c.l.bf16 %v729
          %v924 = vunpack.c.h.bf16 %v729
          %v925 = vunpack.c.l.bf16 %v730
          %v926 = vunpack.c.h.bf16 %v730
          %v927 = vunpack.c.l.bf16 %v731
          %v928 = vunpack.c.h.bf16 %v731
          %v929 = vunpack.c.l.bf16 %v732
          %v930 = vunpack.c.h.bf16 %v732
          %v931 = vunpack.c.l.bf16 %v733
          %v932 = vunpack.c.h.bf16 %v733
          %v933 = vunpack.c.l.bf16 %v734
          %v934 = vunpack.c.h.bf16 %v734
          %v935 = vunpack.c.l.bf16 %v735
          %v936 = vunpack.c.h.bf16 %v735
          %v937 = vunpack.c.l.bf16 %v736
          %v938 = vunpack.c.h.bf16 %v736
          %v939 = vunpack.c.l.bf16 %v737
          %v940 = vunpack.c.h.bf16 %v737
          %v941 = vunpack.c.l.bf16 %v738
          %v942 = vunpack.c.h.bf16 %v738
          %v943 = vunpack.c.l.bf16 %v739
          %v944 = vunpack.c.h.bf16 %v739
          %v945 = vunpack.c.l.bf16 %v740
          %v946 = vunpack.c.h.bf16 %v740
          %v947 = vunpack.c.l.bf16 %v741
          %v948 = vunpack.c.h.bf16 %v741
          %v949 = vunpack.c.l.bf16 %v742
          %v950 = vunpack.c.h.bf16 %v742
          %v951 = vunpack.c.l.bf16 %v743
          %v952 = vunpack.c.h.bf16 %v743
          %v953 = vunpack.c.l.bf16 %v744
          %v954 = vunpack.c.h.bf16 %v744
          %v955 = vunpack.c.l.bf16 %v745
          %v956 = vunpack.c.h.bf16 %v745
          %v957 = vunpack.c.l.bf16 %v746
          %v958 = vunpack.c.h.bf16 %v746
          %v959 = vunpack.c.l.bf16 %v747
          %v960 = vunpack.c.h.bf16 %v747
          %v961 = vunpack.c.l.bf16 %v748
          %v962 = vunpack.c.h.bf16 %v748
          %v963 = vunpack.c.l.bf16 %v749
          %v964 = vunpack.c.h.bf16 %v749
          %v965 = vunpack.c.l.bf16 %v750
          %v966 = vunpack.c.h.bf16 %v750
          %v967 = vunpack.c.l.bf16 %v751
          %v968 = vunpack.c.h.bf16 %v751
          %v969 = vunpack.c.l.bf16 %v752
          %v970 = vunpack.c.h.bf16 %v752
          %v971 = vunpack.c.l.bf16 %v753
          %v972 = vunpack.c.h.bf16 %v753
          %v973 = vunpack.c.l.bf16 %v754
          %v974 = vunpack.c.h.bf16 %v754
          %v975 = vunpack.c.l.bf16 %v755
          %v976 = vunpack.c.h.bf16 %v755
          %v977 = vunpack.c.l.bf16 %v756
          %v978 = vunpack.c.h.bf16 %v756
          %v979 = vunpack.c.l.bf16 %v757
          %v980 = vunpack.c.h.bf16 %v757
          %v981 = vunpack.c.l.bf16 %v758
          %v982 = vunpack.c.h.bf16 %v758
          %v983 = vunpack.c.l.bf16 %v759
          %v984 = vunpack.c.h.bf16 %v759
          %v985 = vunpack.c.l.bf16 %v760
          %v986 = vunpack.c.h.bf16 %v760
          %v987 = vunpack.c.l.bf16 %v761
          %v988 = vunpack.c.h.bf16 %v761
          %v989 = vunpack.c.l.bf16 %v762
          %v990 = vunpack.c.h.bf16 %v762
          %v991 = vunpack.c.l.bf16 %v763
          %v992 = vunpack.c.h.bf16 %v763
          %v993 = vunpack.c.l.bf16 %v764
          %v994 = vunpack.c.h.bf16 %v764
          %v995 = vunpack.c.l.bf16 %v765
          %v996 = vunpack.c.h.bf16 %v765
          %v997 = vunpack.c.l.bf16 %v766
          %v998 = vunpack.c.h.bf16 %v766
          %v999 = vunpack.c.l.bf16 %v767
          %v1000 = vunpack.c.h.bf16 %v767
          %v1001 = vunpack.c.l.bf16 %v768
          %v1002 = vunpack.c.h.bf16 %v768
          %v1003 = vunpack.c.l.bf16 %v769
          %v1004 = vunpack.c.h.bf16 %v769
          %v1005 = vunpack.c.l.bf16 %v770
          %v1006 = vunpack.c.h.bf16 %v770
          %v1007 = vunpack.c.l.bf16 %v771
          %v1008 = vunpack.c.h.bf16 %v771
          %v1009 = vunpack.c.l.bf16 %v772
          %v1010 = vunpack.c.h.bf16 %v772
          %v1011 = vunpack.c.l.bf16 %v773
          %v1012 = vunpack.c.h.bf16 %v773
          %v1013 = vunpack.c.l.bf16 %v774
          %v1014 = vunpack.c.h.bf16 %v774
          %v1015 = vunpack.c.l.bf16 %v775
          %v1016 = vunpack.c.h.bf16 %v775
          %v1017 = vunpack.c.l.bf16 %v776
          %v1018 = vunpack.c.h.bf16 %v776
          %v1019 = vunpack.c.l.bf16 %v777
          %v1020 = vunpack.c.h.bf16 %v777
          %v1021 = vunpack.c.l.bf16 %v778
          %v1022 = vunpack.c.h.bf16 %v778
          %v1023 = vunpack.c.l.bf16 %v779
          %v1024 = vunpack.c.h.bf16 %v779
          %v1025 = vunpack.c.l.bf16 %v780
          %v1026 = vunpack.c.h.bf16 %v780
          %v1027 = vunpack.c.l.bf16 %v781
          %v1028 = vunpack.c.h.bf16 %v781
          %v1029 = vunpack.c.l.bf16 %v782
          %v1030 = vunpack.c.h.bf16 %v782
          %v1031 = vunpack.c.l.bf16 %v783
          %v1032 = vunpack.c.h.bf16 %v783
          %v1033 = vunpack.c.l.bf16 %v784
          %v1034 = vunpack.c.h.bf16 %v784
          %v1035 = vunpack.c.l.bf16 %v785
          %v1036 = vunpack.c.h.bf16 %v785
          %v1037 = vunpack.c.l.bf16 %v786
          %v1038 = vunpack.c.h.bf16 %v786
          %v1039 = vunpack.c.l.bf16 %v787
          %v1040 = vunpack.c.h.bf16 %v787
          %v1041 = vunpack.c.l.bf16 %v788
          %v1042 = vunpack.c.h.bf16 %v788
          %v1043 = vunpack.c.l.bf16 %v789
          %v1044 = vunpack.c.h.bf16 %v789
          %v1045 = vunpack.c.l.bf16 %v790
          %v1046 = vunpack.c.h.bf16 %v790
          %v1047 = vld [vmem:[#allocation15] sm:$0xf]
          %v1049 = vlaneseq
          %v1050 = vshrl.u32 %v1049, 7
          %v1051 = vsub.s32 0, %v1050
          %v1052 = vrot.slane %v1047, %v1051
          %v1053 = vlaneseq
          %v1054 = vshrl.u32 %v1053, 7
          %v1055 = vsub.s32 1, %v1054
          %v1056 = vrot.slane %v1047, %v1055
          %v1057 = vlaneseq
          %v1058 = vshrl.u32 %v1057, 7
          %v1059 = vsub.s32 2, %v1058
          %v1060 = vrot.slane %v1047, %v1059
          %v1061 = vlaneseq
          %v1062 = vshrl.u32 %v1061, 7
          %v1063 = vsub.s32 3, %v1062
          %v1064 = vrot.slane %v1047, %v1063
          %v1070 = vcombine.high %v662, %v662
          %v1072 = vunpack.c.l.s4 1983009808
          %v1073 = vunpack.c.0.s8 %v1072
          %v1074 = vlaneseq
          %v1075 = vshrl.u32 %v1074, 7
          %v1076 = vsub.s32 %v1073, %v1075
          %v1077 = vrot.slane %v662, %v1076
          %v1079 = vunpack.c.l.s4 1983009808
          %v1080 = vunpack.c.0.s8 %v1079
          %v1081 = vlaneseq
          %v1082 = vshrl.u32 %v1081, 7
          %v1083 = vsub.s32 %v1080, %v1082
          %v1084 = vrot.slane %v1070, %v1083
          %v1085 = vcombine.high %v1077, %v1077
          %v1086 = vcombine.high %v1084, %v1084
          %1091 = vmatprep.subr.mxu0 %v792
          %1092 = vmatpush1.msra.mxu0 %v791
          %1093 = vmatprep.subr.mxu0 %v796
          %1094 = vmatpush1.msra.mxu0 %v795
          %1095 = vmatprep.subr.mxu0 %v800
          %1096 = vmatpush1.msra.mxu0 %v799
          %1097 = vmatprep.subr.mxu0 %v804
          %1098 = vmatpush1.msra.mxu0 %v803
          %1099 = vmatprep.subr.mxu0 %v808
          %1100 = vmatpush1.msra.mxu0 %v807
          %1101 = vmatprep.subr.mxu0 %v812
          %1102 = vmatpush1.msra.mxu0 %v811
          %1103 = vmatprep.subr.mxu0 %v816
          %1104 = vmatpush1.msra.mxu0 %v815
          %1105 = vmatprep.subr.mxu0 %v820
          %1106 = vmatpush1.msra.mxu0 %v819
          %1107 = vmatprep.subr.mxu0 %v824
          %1108 = vmatpush1.msra.mxu0 %v823
          %1109 = vmatprep.subr.mxu0 %v828
          %1110 = vmatpush1.msra.mxu0 %v827
          %1111 = vmatprep.subr.mxu0 %v832
          %1112 = vmatpush1.msra.mxu0 %v831
          %1113 = vmatprep.subr.mxu0 %v836
          %1114 = vmatpush1.msra.mxu0 %v835
          %1115 = vmatprep.subr.mxu0 %v840
          %1116 = vmatpush1.msra.mxu0 %v839
          %1117 = vmatprep.subr.mxu0 %v844
          %1118 = vmatpush1.msra.mxu0 %v843
          %1119 = vmatprep.subr.mxu0 %v848
          %1120 = vmatpush1.msra.mxu0 %v847
          %1121 = vmatprep.subr.mxu0 %v852
          %1122 = vmatpush1.msra.mxu0 %v851
          %1123 = vmatprep.subr.mxu0 %v856
          %1124 = vmatpush1.msra.mxu0 %v855
          %1125 = vmatprep.subr.mxu0 %v860
          %1126 = vmatpush1.msra.mxu0 %v859
          %1127 = vmatprep.subr.mxu0 %v864
          %1128 = vmatpush1.msra.mxu0 %v863
          %1129 = vmatprep.subr.mxu0 %v868
          %1130 = vmatpush1.msra.mxu0 %v867
          %1131 = vmatprep.subr.mxu0 %v872
          %1132 = vmatpush1.msra.mxu0 %v871
          %1133 = vmatprep.subr.mxu0 %v876
          %1134 = vmatpush1.msra.mxu0 %v875
          %1135 = vmatprep.subr.mxu0 %v880
          %1136 = vmatpush1.msra.mxu0 %v879
          %1137 = vmatprep.subr.mxu0 %v884
          %1138 = vmatpush1.msra.mxu0 %v883
          %1139 = vmatprep.subr.mxu0 %v888
          %1140 = vmatpush1.msra.mxu0 %v887
          %1141 = vmatprep.subr.mxu0 %v892
          %1142 = vmatpush1.msra.mxu0 %v891
          %1143 = vmatprep.subr.mxu0 %v896
          %1144 = vmatpush1.msra.mxu0 %v895
          %1145 = vmatprep.subr.mxu0 %v900
          %1146 = vmatpush1.msra.mxu0 %v899
          %1147 = vmatprep.subr.mxu0 %v904
          %1148 = vmatpush1.msra.mxu0 %v903
          %1149 = vmatprep.subr.mxu0 %v908
          %1150 = vmatpush1.msra.mxu0 %v907
          %1151 = vmatprep.subr.mxu0 %v912
          %1152 = vmatpush1.msra.mxu0 %v911
          %1153 = vmatprep.subr.mxu0 %v916
          %1154 = vmatpush1.msra.mxu0 %v915
          %1155 = vmatprep.mubr.f32.mxu0 %v1085
          %1156 = vmatmul.mubr.f32.gmra.mrb[0].mxu0 %v1077
          %v1157 = vpop.f32.mrb[0].mxu0
          %v1158 = vadd.f32 %v1052, %v1157
          %v1159 = vpop.f32.mrb[0].mxu0
          %v1160 = vadd.f32 %v1056, %v1159
          %1161 = vdwg.mxu0
          %1162 = vmatprep.subr.mxu0 %v920
          %1163 = vmatpush1.msra.mxu0 %v919
          %1164 = vmatprep.subr.mxu0 %v924
          %1165 = vmatpush1.msra.mxu0 %v923
          %1166 = vmatprep.subr.mxu0 %v928
          %1167 = vmatpush1.msra.mxu0 %v927
          %1168 = vmatprep.subr.mxu0 %v932
          %1169 = vmatpush1.msra.mxu0 %v931
          %1170 = vmatprep.subr.mxu0 %v936
          %1171 = vmatpush1.msra.mxu0 %v935
          %1172 = vmatprep.subr.mxu0 %v940
          %1173 = vmatpush1.msra.mxu0 %v939
          %1174 = vmatprep.subr.mxu0 %v944
          %1175 = vmatpush1.msra.mxu0 %v943
          %1176 = vmatprep.subr.mxu0 %v948
          %1177 = vmatpush1.msra.mxu0 %v947
          %1178 = vmatprep.subr.mxu0 %v952
          %1179 = vmatpush1.msra.mxu0 %v951
          %1180 = vmatprep.subr.mxu0 %v956
          %1181 = vmatpush1.msra.mxu0 %v955
          %1182 = vmatprep.subr.mxu0 %v960
          %1183 = vmatpush1.msra.mxu0 %v959
          %1184 = vmatprep.subr.mxu0 %v964
          %1185 = vmatpush1.msra.mxu0 %v963
          %1186 = vmatprep.subr.mxu0 %v968
          %1187 = vmatpush1.msra.mxu0 %v967
          %1188 = vmatprep.subr.mxu0 %v972
          %1189 = vmatpush1.msra.mxu0 %v971
          %1190 = vmatprep.subr.mxu0 %v976
          %1191 = vmatpush1.msra.mxu0 %v975
          %1192 = vmatprep.subr.mxu0 %v980
          %1193 = vmatpush1.msra.mxu0 %v979
          %1194 = vmatprep.subr.mxu0 %v984
          %1195 = vmatpush1.msra.mxu0 %v983
          %1196 = vmatprep.subr.mxu0 %v988
          %1197 = vmatpush1.msra.mxu0 %v987
          %1198 = vmatprep.subr.mxu0 %v992
          %1199 = vmatpush1.msra.mxu0 %v991
          %1200 = vmatprep.subr.mxu0 %v996
          %1201 = vmatpush1.msra.mxu0 %v995
          %1202 = vmatprep.subr.mxu0 %v1000
          %1203 = vmatpush1.msra.mxu0 %v999
          %1204 = vmatprep.subr.mxu0 %v1004
          %1205 = vmatpush1.msra.mxu0 %v1003
          %1206 = vmatprep.subr.mxu0 %v1008
          %1207 = vmatpush1.msra.mxu0 %v1007
          %1208 = vmatprep.subr.mxu0 %v1012
          %1209 = vmatpush1.msra.mxu0 %v1011
          %1210 = vmatprep.subr.mxu0 %v1016
          %1211 = vmatpush1.msra.mxu0 %v1015
          %1212 = vmatprep.subr.mxu0 %v1020
          %1213 = vmatpush1.msra.mxu0 %v1019
          %1214 = vmatprep.subr.mxu0 %v1024
          %1215 = vmatpush1.msra.mxu0 %v1023
          %1216 = vmatprep.subr.mxu0 %v1028
          %1217 = vmatpush1.msra.mxu0 %v1027
          %1218 = vmatprep.subr.mxu0 %v1032
          %1219 = vmatpush1.msra.mxu0 %v1031
          %1220 = vmatprep.subr.mxu0 %v1036
          %1221 = vmatpush1.msra.mxu0 %v1035
          %1222 = vmatprep.subr.mxu0 %v1040
          %1223 = vmatpush1.msra.mxu0 %v1039
          %1224 = vmatprep.subr.mxu0 %v1044
          %1225 = vmatpush1.msra.mxu0 %v1043
          %1226 = vmatprep.mubr.f32.mxu0 %v1086
          %1227 = vmatmul.mubr.f32.gmra.mrb[0].mxu0 %v1084
          %v1228 = vpop.f32.mrb[0].mxu0
          %v1229 = vadd.f32 %v1158, %v1228
          %v1230 = vpop.f32.mrb[0].mxu0
          %v1231 = vadd.f32 %v1160, %v1230
          %1232 = vdwg.mxu0
          %1233 = vmatprep.subr.mxu0 %v794
          %1234 = vmatpush1.msra.mxu0 %v793
          %1235 = vmatprep.subr.mxu0 %v798
          %1236 = vmatpush1.msra.mxu0 %v797
          %1237 = vmatprep.subr.mxu0 %v802
          %1238 = vmatpush1.msra.mxu0 %v801
          %1239 = vmatprep.subr.mxu0 %v806
          %1240 = vmatpush1.msra.mxu0 %v805
          %1241 = vmatprep.subr.mxu0 %v810
          %1242 = vmatpush1.msra.mxu0 %v809
          %1243 = vmatprep.subr.mxu0 %v814
          %1244 = vmatpush1.msra.mxu0 %v813
          %1245 = vmatprep.subr.mxu0 %v818
          %1246 = vmatpush1.msra.mxu0 %v817
          %1247 = vmatprep.subr.mxu0 %v822
          %1248 = vmatpush1.msra.mxu0 %v821
          %1249 = vmatprep.subr.mxu0 %v826
          %1250 = vmatpush1.msra.mxu0 %v825
          %1251 = vmatprep.subr.mxu0 %v830
          %1252 = vmatpush1.msra.mxu0 %v829
          %1253 = vmatprep.subr.mxu0 %v834
          %1254 = vmatpush1.msra.mxu0 %v833
          %1255 = vmatprep.subr.mxu0 %v838
          %1256 = vmatpush1.msra.mxu0 %v837
          %1257 = vmatprep.subr.mxu0 %v842
          %1258 = vmatpush1.msra.mxu0 %v841
          %1259 = vmatprep.subr.mxu0 %v846
          %1260 = vmatpush1.msra.mxu0 %v845
          %1261 = vmatprep.subr.mxu0 %v850
          %1262 = vmatpush1.msra.mxu0 %v849
          %1263 = vmatprep.subr.mxu0 %v854
          %1264 = vmatpush1.msra.mxu0 %v853
          %1265 = vmatprep.subr.mxu0 %v858
          %1266 = vmatpush1.msra.mxu0 %v857
          %1267 = vmatprep.subr.mxu0 %v862
          %1268 = vmatpush1.msra.mxu0 %v861
          %1269 = vmatprep.subr.mxu0 %v866
          %1270 = vmatpush1.msra.mxu0 %v865
          %1271 = vmatprep.subr.mxu0 %v870
          %1272 = vmatpush1.msra.mxu0 %v869
          %1273 = vmatprep.subr.mxu0 %v874
          %1274 = vmatpush1.msra.mxu0 %v873
          %1275 = vmatprep.subr.mxu0 %v878
          %1276 = vmatpush1.msra.mxu0 %v877
          %1277 = vmatprep.subr.mxu0 %v882
          %1278 = vmatpush1.msra.mxu0 %v881
          %1279 = vmatprep.subr.mxu0 %v886
          %1280 = vmatpush1.msra.mxu0 %v885
          %1281 = vmatprep.subr.mxu0 %v890
          %1282 = vmatpush1.msra.mxu0 %v889
          %1283 = vmatprep.subr.mxu0 %v894
          %1284 = vmatpush1.msra.mxu0 %v893
          %1285 = vmatprep.subr.mxu0 %v898
          %1286 = vmatpush1.msra.mxu0 %v897
          %1287 = vmatprep.subr.mxu0 %v902
          %1288 = vmatpush1.msra.mxu0 %v901
          %1289 = vmatprep.subr.mxu0 %v906
          %1290 = vmatpush1.msra.mxu0 %v905
          %1291 = vmatprep.subr.mxu0 %v910
          %1292 = vmatpush1.msra.mxu0 %v909
          %1293 = vmatprep.subr.mxu0 %v914
          %1294 = vmatpush1.msra.mxu0 %v913
          %1295 = vmatprep.subr.mxu0 %v918
          %1296 = vmatpush1.msra.mxu0 %v917
          %1297 = vmatprep.mubr.f32.mxu0 %v1085
          %1298 = vmatmul.mubr.f32.gmra.mrb[0].mxu0 %v1077
          %v1299 = vpop.f32.mrb[0].mxu0
          %v1300 = vadd.f32 %v1060, %v1299
          %v1301 = vpop.f32.mrb[0].mxu0
          %v1302 = vadd.f32 %v1064, %v1301
          %1303 = vdwg.mxu0
          %1304 = vmatprep.subr.mxu0 %v922
          %1305 = vmatpush1.msra.mxu0 %v921
          %1306 = vmatprep.subr.mxu0 %v926
          %1307 = vmatpush1.msra.mxu0 %v925
          %1308 = vmatprep.subr.mxu0 %v930
          %1309 = vmatpush1.msra.mxu0 %v929
          %1310 = vmatprep.subr.mxu0 %v934
          %1311 = vmatpush1.msra.mxu0 %v933
          %1312 = vmatprep.subr.mxu0 %v938
          %1313 = vmatpush1.msra.mxu0 %v937
          %1314 = vmatprep.subr.mxu0 %v942
          %1315 = vmatpush1.msra.mxu0 %v941
          %1316 = vmatprep.subr.mxu0 %v946
          %1317 = vmatpush1.msra.mxu0 %v945
          %1318 = vmatprep.subr.mxu0 %v950
          %1319 = vmatpush1.msra.mxu0 %v949
          %1320 = vmatprep.subr.mxu0 %v954
          %1321 = vmatpush1.msra.mxu0 %v953
          %1322 = vmatprep.subr.mxu0 %v958
          %1323 = vmatpush1.msra.mxu0 %v957
          %1324 = vmatprep.subr.mxu0 %v962
          %1325 = vmatpush1.msra.mxu0 %v961
          %1326 = vmatprep.subr.mxu0 %v966
          %1327 = vmatpush1.msra.mxu0 %v965
          %1328 = vmatprep.subr.mxu0 %v970
          %1329 = vmatpush1.msra.mxu0 %v969
          %1330 = vmatprep.subr.mxu0 %v974
          %1331 = vmatpush1.msra.mxu0 %v973
          %1332 = vmatprep.subr.mxu0 %v978
          %1333 = vmatpush1.msra.mxu0 %v977
          %1334 = vmatprep.subr.mxu0 %v982
          %1335 = vmatpush1.msra.mxu0 %v981
          %1336 = vmatprep.subr.mxu0 %v986
          %1337 = vmatpush1.msra.mxu0 %v985
          %1338 = vmatprep.subr.mxu0 %v990
          %1339 = vmatpush1.msra.mxu0 %v989
          %1340 = vmatprep.subr.mxu0 %v994
          %1341 = vmatpush1.msra.mxu0 %v993
          %1342 = vmatprep.subr.mxu0 %v998
          %1343 = vmatpush1.msra.mxu0 %v997
          %1344 = vmatprep.subr.mxu0 %v1002
          %1345 = vmatpush1.msra.mxu0 %v1001
          %1346 = vmatprep.subr.mxu0 %v1006
          %1347 = vmatpush1.msra.mxu0 %v1005
          %1348 = vmatprep.subr.mxu0 %v1010
          %1349 = vmatpush1.msra.mxu0 %v1009
          %1350 = vmatprep.subr.mxu0 %v1014
          %1351 = vmatpush1.msra.mxu0 %v1013
          %1352 = vmatprep.subr.mxu0 %v1018
          %1353 = vmatpush1.msra.mxu0 %v1017
          %1354 = vmatprep.subr.mxu0 %v1022
          %1355 = vmatpush1.msra.mxu0 %v1021
          %1356 = vmatprep.subr.mxu0 %v1026
          %1357 = vmatpush1.msra.mxu0 %v1025
          %1358 = vmatprep.subr.mxu0 %v1030
          %1359 = vmatpush1.msra.mxu0 %v1029
          %1360 = vmatprep.subr.mxu0 %v1034
          %1361 = vmatpush1.msra.mxu0 %v1033
          %1362 = vmatprep.subr.mxu0 %v1038
          %1363 = vmatpush1.msra.mxu0 %v1037
          %1364 = vmatprep.subr.mxu0 %v1042
          %1365 = vmatpush1.msra.mxu0 %v1041
          %1366 = vmatprep.subr.mxu0 %v1046
          %1367 = vmatpush1.msra.mxu0 %v1045
          %1368 = vmatprep.mubr.f32.mxu0 %v1086
          %1369 = vmatmul.mubr.f32.gmra.mrb[0].mxu0 %v1084
          %v1370 = vpop.f32.mrb[0].mxu0
          %v1371 = vadd.f32 %v1300, %v1370
          %v1372 = vpop.f32.mrb[0].mxu0
          %v1373 = vadd.f32 %v1302, %v1372
          %1374 = vdwg.mxu0
          %v1375 = vmax.f32 %v1229, 0.0
          %v1376 = vmax.f32 %v1231, 0.0
          %v1377 = vmax.f32 %v1371, 0.0
          %v1378 = vmax.f32 %v1373, 0.0
          %v1383 = vcombine.low %v1375, %v1376
          %v1384 = vcombine.low %v1377, %v1378
          %v1386 = vunpack.c.l.s4 1983009808
          %v1387 = vunpack.c.0.s8 %v1386
          %v1388 = vlaneseq
          %v1389 = vshrl.u32 %v1388, 7
          %v1390 = vsub.s32 %v1387, %v1389
          %v1391 = vrot.slane %v1383, %v1390
          %v1393 = vunpack.c.l.s4 1983009808
          %v1394 = vunpack.c.0.s8 %v1393
          %v1395 = vlaneseq
          %v1396 = vshrl.u32 %v1395, 7
          %v1397 = vsub.s32 %v1394, %v1396
          %v1398 = vrot.slane %v1384, %v1397
          %v1399 = vcombine.low %v1391, %v1398
          %1401 = vst [vmem:[#allocation3] sm:$0xff] %v1399
        $region132: #{nn_model_nlp_head.1} parent=75 // pred_fallthru
          _
        %v1402 = vld [vmem:[#allocation2] sm:$0xf]
        %v1403 = vld [vmem:[%s654] sm:$0xff]
        %v1404 = vld [vmem:[%s654 + $0x8] sm:$0xff]
        %v1405 = vld [vmem:[%s654 + $0x10] sm:$0xff]
        %v1406 = vld [vmem:[%s654 + $0x18] sm:$0xff]
        %v1407 = vld [vmem:[%s654 + $0x20] sm:$0xff]
        %v1408 = vld [vmem:[%s654 + $0x28] sm:$0xff]
        %v1409 = vld [vmem:[%s654 + $0x30] sm:$0xff]
        %v1410 = vld [vmem:[%s654 + $0x38] sm:$0xff]
        %v1411 = vld [vmem:[%s654 + $0x40] sm:$0xff]
        %v1412 = vld [vmem:[%s654 + $0x48] sm:$0xff]
        %v1413 = vld [vmem:[%s654 + $0x50] sm:$0xff]
        %v1414 = vld [vmem:[%s654 + $0x58] sm:$0xff]
        %v1415 = vld [vmem:[%s654 + $0x60] sm:$0xff]
        %v1416 = vld [vmem:[%s654 + $0x68] sm:$0xff]
        %v1417 = vld [vmem:[%s654 + $0x70] sm:$0xff]
        %v1418 = vld [vmem:[%s654 + $0x78] sm:$0xff]
        %v1435 = vcombine.high %v1403, %v1403
        %v1437 = vunpack.c.l.s4 1983009808
        %v1438 = vunpack.c.0.s8 %v1437
        %v1439 = vlaneseq
        %v1440 = vshrl.u32 %v1439, 7
        %v1441 = vsub.s32 %v1438, %v1440
        %v1442 = vrot.slane %v1403, %v1441
        %v1444 = vunpack.c.l.s4 1983009808
        %v1445 = vunpack.c.0.s8 %v1444
        %v1446 = vlaneseq
        %v1447 = vshrl.u32 %v1446, 7
        %v1448 = vsub.s32 %v1445, %v1447
        %v1449 = vrot.slane %v1435, %v1448
        %v1450 = vcombine.high %v1442, %v1442
        %v1451 = vcombine.high %v1449, %v1449
        %v1452 = vcombine.high %v1404, %v1404
        %v1454 = vunpack.c.l.s4 1983009808
        %v1455 = vunpack.c.0.s8 %v1454
        %v1456 = vlaneseq
        %v1457 = vshrl.u32 %v1456, 7
        %v1458 = vsub.s32 %v1455, %v1457
        %v1459 = vrot.slane %v1404, %v1458
        %v1461 = vunpack.c.l.s4 1983009808
        %v1462 = vunpack.c.0.s8 %v1461
        %v1463 = vlaneseq
        %v1464 = vshrl.u32 %v1463, 7
        %v1465 = vsub.s32 %v1462, %v1464
        %v1466 = vrot.slane %v1452, %v1465
        %v1467 = vcombine.high %v1459, %v1459
        %v1468 = vcombine.high %v1466, %v1466
        %v1469 = vcombine.high %v1405, %v1405
        %v1471 = vunpack.c.l.s4 1983009808
        %v1472 = vunpack.c.0.s8 %v1471
        %v1473 = vlaneseq
        %v1474 = vshrl.u32 %v1473, 7
        %v1475 = vsub.s32 %v1472, %v1474
        %v1476 = vrot.slane %v1405, %v1475
        %v1478 = vunpack.c.l.s4 1983009808
        %v1479 = vunpack.c.0.s8 %v1478
        %v1480 = vlaneseq
        %v1481 = vshrl.u32 %v1480, 7
        %v1482 = vsub.s32 %v1479, %v1481
        %v1483 = vrot.slane %v1469, %v1482
        %v1484 = vcombine.high %v1476, %v1476
        %v1485 = vcombine.high %v1483, %v1483
        %v1486 = vcombine.high %v1406, %v1406
        %v1488 = vunpack.c.l.s4 1983009808
        %v1489 = vunpack.c.0.s8 %v1488
        %v1490 = vlaneseq
        %v1491 = vshrl.u32 %v1490, 7
        %v1492 = vsub.s32 %v1489, %v1491
        %v1493 = vrot.slane %v1406, %v1492
        %v1495 = vunpack.c.l.s4 1983009808
        %v1496 = vunpack.c.0.s8 %v1495
        %v1497 = vlaneseq
        %v1498 = vshrl.u32 %v1497, 7
        %v1499 = vsub.s32 %v1496, %v1498
        %v1500 = vrot.slane %v1486, %v1499
        %v1501 = vcombine.high %v1493, %v1493
        %v1502 = vcombine.high %v1500, %v1500
        %v1503 = vcombine.high %v1407, %v1407
        %v1505 = vunpack.c.l.s4 1983009808
        %v1506 = vunpack.c.0.s8 %v1505
        %v1507 = vlaneseq
        %v1508 = vshrl.u32 %v1507, 7
        %v1509 = vsub.s32 %v1506, %v1508
        %v1510 = vrot.slane %v1407, %v1509
        %v1512 = vunpack.c.l.s4 1983009808
        %v1513 = vunpack.c.0.s8 %v1512
        %v1514 = vlaneseq
        %v1515 = vshrl.u32 %v1514, 7
        %v1516 = vsub.s32 %v1513, %v1515
        %v1517 = vrot.slane %v1503, %v1516
        %v1518 = vcombine.high %v1510, %v1510
        %v1519 = vcombine.high %v1517, %v1517
        %v1520 = vcombine.high %v1408, %v1408
        %v1522 = vunpack.c.l.s4 1983009808
        %v1523 = vunpack.c.0.s8 %v1522
        %v1524 = vlaneseq
        %v1525 = vshrl.u32 %v1524, 7
        %v1526 = vsub.s32 %v1523, %v1525
        %v1527 = vrot.slane %v1408, %v1526
        %v1529 = vunpack.c.l.s4 1983009808
        %v1530 = vunpack.c.0.s8 %v1529
        %v1531 = vlaneseq
        %v1532 = vshrl.u32 %v1531, 7
        %v1533 = vsub.s32 %v1530, %v1532
        %v1534 = vrot.slane %v1520, %v1533
        %v1535 = vcombine.high %v1527, %v1527
        %v1536 = vcombine.high %v1534, %v1534
        %v1537 = vcombine.high %v1409, %v1409
        %v1539 = vunpack.c.l.s4 1983009808
        %v1540 = vunpack.c.0.s8 %v1539
        %v1541 = vlaneseq
        %v1542 = vshrl.u32 %v1541, 7
        %v1543 = vsub.s32 %v1540, %v1542
        %v1544 = vrot.slane %v1409, %v1543
        %v1546 = vunpack.c.l.s4 1983009808
        %v1547 = vunpack.c.0.s8 %v1546
        %v1548 = vlaneseq
        %v1549 = vshrl.u32 %v1548, 7
        %v1550 = vsub.s32 %v1547, %v1549
        %v1551 = vrot.slane %v1537, %v1550
        %v1552 = vcombine.high %v1544, %v1544
        %v1553 = vcombine.high %v1551, %v1551
        %v1554 = vcombine.high %v1410, %v1410
        %v1556 = vunpack.c.l.s4 1983009808
        %v1557 = vunpack.c.0.s8 %v1556
        %v1558 = vlaneseq
        %v1559 = vshrl.u32 %v1558, 7
        %v1560 = vsub.s32 %v1557, %v1559
        %v1561 = vrot.slane %v1410, %v1560
        %v1563 = vunpack.c.l.s4 1983009808
        %v1564 = vunpack.c.0.s8 %v1563
        %v1565 = vlaneseq
        %v1566 = vshrl.u32 %v1565, 7
        %v1567 = vsub.s32 %v1564, %v1566
        %v1568 = vrot.slane %v1554, %v1567
        %v1569 = vcombine.high %v1561, %v1561
        %v1570 = vcombine.high %v1568, %v1568
        %v1571 = vcombine.high %v1411, %v1411
        %v1573 = vunpack.c.l.s4 1983009808
        %v1574 = vunpack.c.0.s8 %v1573
        %v1575 = vlaneseq
        %v1576 = vshrl.u32 %v1575, 7
        %v1577 = vsub.s32 %v1574, %v1576
        %v1578 = vrot.slane %v1411, %v1577
        %v1580 = vunpack.c.l.s4 1983009808
        %v1581 = vunpack.c.0.s8 %v1580
        %v1582 = vlaneseq
        %v1583 = vshrl.u32 %v1582, 7
        %v1584 = vsub.s32 %v1581, %v1583
        %v1585 = vrot.slane %v1571, %v1584
        %v1586 = vcombine.high %v1578, %v1578
        %v1587 = vcombine.high %v1585, %v1585
        %v1588 = vcombine.high %v1412, %v1412
        %v1590 = vunpack.c.l.s4 1983009808
        %v1591 = vunpack.c.0.s8 %v1590
        %v1592 = vlaneseq
        %v1593 = vshrl.u32 %v1592, 7
        %v1594 = vsub.s32 %v1591, %v1593
        %v1595 = vrot.slane %v1412, %v1594
        %v1597 = vunpack.c.l.s4 1983009808
        %v1598 = vunpack.c.0.s8 %v1597
        %v1599 = vlaneseq
        %v1600 = vshrl.u32 %v1599, 7
        %v1601 = vsub.s32 %v1598, %v1600
        %v1602 = vrot.slane %v1588, %v1601
        %v1603 = vcombine.high %v1595, %v1595
        %v1604 = vcombine.high %v1602, %v1602
        %v1605 = vcombine.high %v1413, %v1413
        %v1607 = vunpack.c.l.s4 1983009808
        %v1608 = vunpack.c.0.s8 %v1607
        %v1609 = vlaneseq
        %v1610 = vshrl.u32 %v1609, 7
        %v1611 = vsub.s32 %v1608, %v1610
        %v1612 = vrot.slane %v1413, %v1611
        %v1614 = vunpack.c.l.s4 1983009808
        %v1615 = vunpack.c.0.s8 %v1614
        %v1616 = vlaneseq
        %v1617 = vshrl.u32 %v1616, 7
        %v1618 = vsub.s32 %v1615, %v1617
        %v1619 = vrot.slane %v1605, %v1618
        %v1620 = vcombine.high %v1612, %v1612
        %v1621 = vcombine.high %v1619, %v1619
        %v1622 = vcombine.high %v1414, %v1414
        %v1624 = vunpack.c.l.s4 1983009808
        %v1625 = vunpack.c.0.s8 %v1624
        %v1626 = vlaneseq
        %v1627 = vshrl.u32 %v1626, 7
        %v1628 = vsub.s32 %v1625, %v1627
        %v1629 = vrot.slane %v1414, %v1628
        %v1631 = vunpack.c.l.s4 1983009808
        %v1632 = vunpack.c.0.s8 %v1631
        %v1633 = vlaneseq
        %v1634 = vshrl.u32 %v1633, 7
        %v1635 = vsub.s32 %v1632, %v1634
        %v1636 = vrot.slane %v1622, %v1635
        %v1637 = vcombine.high %v1629, %v1629
        %v1638 = vcombine.high %v1636, %v1636
        %v1639 = vcombine.high %v1415, %v1415
        %v1641 = vunpack.c.l.s4 1983009808
        %v1642 = vunpack.c.0.s8 %v1641
        %v1643 = vlaneseq
        %v1644 = vshrl.u32 %v1643, 7
        %v1645 = vsub.s32 %v1642, %v1644
        %v1646 = vrot.slane %v1415, %v1645
        %v1648 = vunpack.c.l.s4 1983009808
        %v1649 = vunpack.c.0.s8 %v1648
        %v1650 = vlaneseq
        %v1651 = vshrl.u32 %v1650, 7
        %v1652 = vsub.s32 %v1649, %v1651
        %v1653 = vrot.slane %v1639, %v1652
        %v1654 = vcombine.high %v1646, %v1646
        %v1655 = vcombine.high %v1653, %v1653
        %v1656 = vcombine.high %v1416, %v1416
        %v1658 = vunpack.c.l.s4 1983009808
        %v1659 = vunpack.c.0.s8 %v1658
        %v1660 = vlaneseq
        %v1661 = vshrl.u32 %v1660, 7
        %v1662 = vsub.s32 %v1659, %v1661
        %v1663 = vrot.slane %v1416, %v1662
        %v1665 = vunpack.c.l.s4 1983009808
        %v1666 = vunpack.c.0.s8 %v1665
        %v1667 = vlaneseq
        %v1668 = vshrl.u32 %v1667, 7
        %v1669 = vsub.s32 %v1666, %v1668
        %v1670 = vrot.slane %v1656, %v1669
        %v1671 = vcombine.high %v1663, %v1663
        %v1672 = vcombine.high %v1670, %v1670
        %v1673 = vcombine.high %v1417, %v1417
        %v1675 = vunpack.c.l.s4 1983009808
        %v1676 = vunpack.c.0.s8 %v1675
        %v1677 = vlaneseq
        %v1678 = vshrl.u32 %v1677, 7
        %v1679 = vsub.s32 %v1676, %v1678
        %v1680 = vrot.slane %v1417, %v1679
        %v1682 = vunpack.c.l.s4 1983009808
        %v1683 = vunpack.c.0.s8 %v1682
        %v1684 = vlaneseq
        %v1685 = vshrl.u32 %v1684, 7
        %v1686 = vsub.s32 %v1683, %v1685
        %v1687 = vrot.slane %v1673, %v1686
        %v1688 = vcombine.high %v1680, %v1680
        %v1689 = vcombine.high %v1687, %v1687
        %v1690 = vcombine.high %v1418, %v1418
        %v1692 = vunpack.c.l.s4 1983009808
        %v1693 = vunpack.c.0.s8 %v1692
        %v1694 = vlaneseq
        %v1695 = vshrl.u32 %v1694, 7
        %v1696 = vsub.s32 %v1693, %v1695
        %v1697 = vrot.slane %v1418, %v1696
        %v1699 = vunpack.c.l.s4 1983009808
        %v1700 = vunpack.c.0.s8 %v1699
        %v1701 = vlaneseq
        %v1702 = vshrl.u32 %v1701, 7
        %v1703 = vsub.s32 %v1700, %v1702
        %v1704 = vrot.slane %v1690, %v1703
        %v1705 = vcombine.high %v1697, %v1697
        %v1706 = vcombine.high %v1704, %v1704
        %v1771 = vpack.c.bf16 %v1442, %v1442
        %v1772 = vpack.c.bf16 %v1450, %v1450
        %v1773 = vpack.c.bf16 %v1449, %v1449
        %v1774 = vpack.c.bf16 %v1451, %v1451
        %v1775 = vpack.c.bf16 %v1459, %v1459
        %v1776 = vpack.c.bf16 %v1467, %v1467
        %v1777 = vpack.c.bf16 %v1466, %v1466
        %v1778 = vpack.c.bf16 %v1468, %v1468
        %v1779 = vpack.c.bf16 %v1476, %v1476
        %v1780 = vpack.c.bf16 %v1484, %v1484
        %v1781 = vpack.c.bf16 %v1483, %v1483
        %v1782 = vpack.c.bf16 %v1485, %v1485
        %v1783 = vpack.c.bf16 %v1493, %v1493
        %v1784 = vpack.c.bf16 %v1501, %v1501
        %v1785 = vpack.c.bf16 %v1500, %v1500
        %v1786 = vpack.c.bf16 %v1502, %v1502
        %v1787 = vpack.c.bf16 %v1510, %v1510
        %v1788 = vpack.c.bf16 %v1518, %v1518
        %v1789 = vpack.c.bf16 %v1517, %v1517
        %v1790 = vpack.c.bf16 %v1519, %v1519
        %v1791 = vpack.c.bf16 %v1527, %v1527
        %v1792 = vpack.c.bf16 %v1535, %v1535
        %v1793 = vpack.c.bf16 %v1534, %v1534
        %v1794 = vpack.c.bf16 %v1536, %v1536
        %v1795 = vpack.c.bf16 %v1544, %v1544
        %v1796 = vpack.c.bf16 %v1552, %v1552
        %v1797 = vpack.c.bf16 %v1551, %v1551
        %v1798 = vpack.c.bf16 %v1553, %v1553
        %v1799 = vpack.c.bf16 %v1561, %v1561
        %v1800 = vpack.c.bf16 %v1569, %v1569
        %v1801 = vpack.c.bf16 %v1568, %v1568
        %v1802 = vpack.c.bf16 %v1570, %v1570
        %v1803 = vpack.c.bf16 %v1578, %v1578
        %v1804 = vpack.c.bf16 %v1586, %v1586
        %v1805 = vpack.c.bf16 %v1585, %v1585
        %v1806 = vpack.c.bf16 %v1587, %v1587
        %v1807 = vpack.c.bf16 %v1595, %v1595
        %v1808 = vpack.c.bf16 %v1603, %v1603
        %v1809 = vpack.c.bf16 %v1602, %v1602
        %v1810 = vpack.c.bf16 %v1604, %v1604
        %v1811 = vpack.c.bf16 %v1612, %v1612
        %v1812 = vpack.c.bf16 %v1620, %v1620
        %v1813 = vpack.c.bf16 %v1619, %v1619
        %v1814 = vpack.c.bf16 %v1621, %v1621
        %v1815 = vpack.c.bf16 %v1629, %v1629
        %v1816 = vpack.c.bf16 %v1637, %v1637
        %v1817 = vpack.c.bf16 %v1636, %v1636
        %v1818 = vpack.c.bf16 %v1638, %v1638
        %v1819 = vpack.c.bf16 %v1646, %v1646
        %v1820 = vpack.c.bf16 %v1654, %v1654
        %v1821 = vpack.c.bf16 %v1653, %v1653
        %v1822 = vpack.c.bf16 %v1655, %v1655
        %v1823 = vpack.c.bf16 %v1663, %v1663
        %v1824 = vpack.c.bf16 %v1671, %v1671
        %v1825 = vpack.c.bf16 %v1670, %v1670
        %v1826 = vpack.c.bf16 %v1672, %v1672
        %v1827 = vpack.c.bf16 %v1680, %v1680
        %v1828 = vpack.c.bf16 %v1688, %v1688
        %v1829 = vpack.c.bf16 %v1687, %v1687
        %v1830 = vpack.c.bf16 %v1689, %v1689
        %v1831 = vpack.c.bf16 %v1697, %v1697
        %v1832 = vpack.c.bf16 %v1705, %v1705
        %v1833 = vpack.c.bf16 %v1704, %v1704
        %v1834 = vpack.c.bf16 %v1706, %v1706
        %v1835 = vld [vmem:[%s561] sm:$0xff]
        %v1836 = vld [vmem:[%s561 + $0x8] sm:$0xff]
        %v1837 = vld [vmem:[%s561 + $0x10] sm:$0xff]
        %v1838 = vld [vmem:[%s561 + $0x18] sm:$0xff]
        %v1839 = vld [vmem:[%s561 + $0x20] sm:$0xff]
        %v1840 = vld [vmem:[%s561 + $0x28] sm:$0xff]
        %v1841 = vld [vmem:[%s561 + $0x30] sm:$0xff]
        %v1842 = vld [vmem:[%s561 + $0x38] sm:$0xff]
        %v1843 = vld [vmem:[%s561 + $0x40] sm:$0xff]
        %v1844 = vld [vmem:[%s561 + $0x48] sm:$0xff]
        %v1845 = vld [vmem:[%s561 + $0x50] sm:$0xff]
        %v1846 = vld [vmem:[%s561 + $0x58] sm:$0xff]
        %v1847 = vld [vmem:[%s561 + $0x60] sm:$0xff]
        %v1848 = vld [vmem:[%s561 + $0x68] sm:$0xff]
        %v1849 = vld [vmem:[%s561 + $0x70] sm:$0xff]
        %v1850 = vld [vmem:[%s561 + $0x78] sm:$0xff]
        %v1851 = vld [vmem:[%s561 + $0x80] sm:$0xff]
        %v1852 = vld [vmem:[%s561 + $0x88] sm:$0xff]
        %v1853 = vld [vmem:[%s561 + $0x90] sm:$0xff]
        %v1854 = vld [vmem:[%s561 + $0x98] sm:$0xff]
        %v1855 = vld [vmem:[%s561 + $0xa0] sm:$0xff]
        %v1856 = vld [vmem:[%s561 + $0xa8] sm:$0xff]
        %v1857 = vld [vmem:[%s561 + $0xb0] sm:$0xff]
        %v1858 = vld [vmem:[%s561 + $0xb8] sm:$0xff]
        %v1859 = vld [vmem:[%s561 + $0xc0] sm:$0xff]
        %v1860 = vld [vmem:[%s561 + $0xc8] sm:$0xff]
        %v1861 = vld [vmem:[%s561 + $0xd0] sm:$0xff]
        %v1862 = vld [vmem:[%s561 + $0xd8] sm:$0xff]
        %v1863 = vld [vmem:[%s561 + $0xe0] sm:$0xff]
        %v1864 = vld [vmem:[%s561 + $0xe8] sm:$0xff]
        %v1865 = vld [vmem:[%s561 + $0xf0] sm:$0xff]
        %v1866 = vld [vmem:[%s561 + $0xf8] sm:$0xff]
        %v1867 = vld [vmem:[%s561 + $0x100] sm:$0xff]
        %v1868 = vld [vmem:[%s561 + $0x108] sm:$0xff]
        %v1869 = vld [vmem:[%s561 + $0x110] sm:$0xff]
        %v1870 = vld [vmem:[%s561 + $0x118] sm:$0xff]
        %v1871 = vld [vmem:[%s561 + $0x120] sm:$0xff]
        %v1872 = vld [vmem:[%s561 + $0x128] sm:$0xff]
        %v1873 = vld [vmem:[%s561 + $0x130] sm:$0xff]
        %v1874 = vld [vmem:[%s561 + $0x138] sm:$0xff]
        %v1875 = vld [vmem:[%s561 + $0x140] sm:$0xff]
        %v1876 = vld [vmem:[%s561 + $0x148] sm:$0xff]
        %v1877 = vld [vmem:[%s561 + $0x150] sm:$0xff]
        %v1878 = vld [vmem:[%s561 + $0x158] sm:$0xff]
        %v1879 = vld [vmem:[%s561 + $0x160] sm:$0xff]
        %v1880 = vld [vmem:[%s561 + $0x168] sm:$0xff]
        %v1881 = vld [vmem:[%s561 + $0x170] sm:$0xff]
        %v1882 = vld [vmem:[%s561 + $0x178] sm:$0xff]
        %v1883 = vld [vmem:[%s561 + $0x180] sm:$0xff]
        %v1884 = vld [vmem:[%s561 + $0x188] sm:$0xff]
        %v1885 = vld [vmem:[%s561 + $0x190] sm:$0xff]
        %v1886 = vld [vmem:[%s561 + $0x198] sm:$0xff]
        %v1887 = vld [vmem:[%s561 + $0x1a0] sm:$0xff]
        %v1888 = vld [vmem:[%s561 + $0x1a8] sm:$0xff]
        %v1889 = vld [vmem:[%s561 + $0x1b0] sm:$0xff]
        %v1890 = vld [vmem:[%s561 + $0x1b8] sm:$0xff]
        %v1891 = vld [vmem:[%s561 + $0x1c0] sm:$0xff]
        %v1892 = vld [vmem:[%s561 + $0x1c8] sm:$0xff]
        %v1893 = vld [vmem:[%s561 + $0x1d0] sm:$0xff]
        %v1894 = vld [vmem:[%s561 + $0x1d8] sm:$0xff]
        %v1895 = vld [vmem:[%s561 + $0x1e0] sm:$0xff]
        %v1896 = vld [vmem:[%s561 + $0x1e8] sm:$0xff]
        %v1897 = vld [vmem:[%s561 + $0x1f0] sm:$0xff]
        %v1898 = vld [vmem:[%s561 + $0x1f8] sm:$0xff]
        %v1899 = vld [vmem:[%s561 + $0x200] sm:$0xff]
        %v1900 = vld [vmem:[%s561 + $0x208] sm:$0xff]
        %v1901 = vld [vmem:[%s561 + $0x210] sm:$0xff]
        %v1902 = vld [vmem:[%s561 + $0x218] sm:$0xff]
        %v1903 = vld [vmem:[%s561 + $0x220] sm:$0xff]
        %v1904 = vld [vmem:[%s561 + $0x228] sm:$0xff]
        %v1905 = vld [vmem:[%s561 + $0x230] sm:$0xff]
        %v1906 = vld [vmem:[%s561 + $0x238] sm:$0xff]
        %v1907 = vld [vmem:[%s561 + $0x240] sm:$0xff]
        %v1908 = vld [vmem:[%s561 + $0x248] sm:$0xff]
        %v1909 = vld [vmem:[%s561 + $0x250] sm:$0xff]
        %v1910 = vld [vmem:[%s561 + $0x258] sm:$0xff]
        %v1911 = vld [vmem:[%s561 + $0x260] sm:$0xff]
        %v1912 = vld [vmem:[%s561 + $0x268] sm:$0xff]
        %v1913 = vld [vmem:[%s561 + $0x270] sm:$0xff]
        %v1914 = vld [vmem:[%s561 + $0x278] sm:$0xff]
        %v1915 = vld [vmem:[%s561 + $0x280] sm:$0xff]
        %v1916 = vld [vmem:[%s561 + $0x288] sm:$0xff]
        %v1917 = vld [vmem:[%s561 + $0x290] sm:$0xff]
        %v1918 = vld [vmem:[%s561 + $0x298] sm:$0xff]
        %v1919 = vld [vmem:[%s561 + $0x2a0] sm:$0xff]
        %v1920 = vld [vmem:[%s561 + $0x2a8] sm:$0xff]
        %v1921 = vld [vmem:[%s561 + $0x2b0] sm:$0xff]
        %v1922 = vld [vmem:[%s561 + $0x2b8] sm:$0xff]
        %v1923 = vld [vmem:[%s561 + $0x2c0] sm:$0xff]
        %v1924 = vld [vmem:[%s561 + $0x2c8] sm:$0xff]
        %v1925 = vld [vmem:[%s561 + $0x2d0] sm:$0xff]
        %v1926 = vld [vmem:[%s561 + $0x2d8] sm:$0xff]
        %v1927 = vld [vmem:[%s561 + $0x2e0] sm:$0xff]
        %v1928 = vld [vmem:[%s561 + $0x2e8] sm:$0xff]
        %v1929 = vld [vmem:[%s561 + $0x2f0] sm:$0xff]
        %v1930 = vld [vmem:[%s561 + $0x2f8] sm:$0xff]
        %v1931 = vld [vmem:[%s561 + $0x300] sm:$0xff]
        %v1932 = vld [vmem:[%s561 + $0x308] sm:$0xff]
        %v1933 = vld [vmem:[%s561 + $0x310] sm:$0xff]
        %v1934 = vld [vmem:[%s561 + $0x318] sm:$0xff]
        %v1935 = vld [vmem:[%s561 + $0x320] sm:$0xff]
        %v1936 = vld [vmem:[%s561 + $0x328] sm:$0xff]
        %v1937 = vld [vmem:[%s561 + $0x330] sm:$0xff]
        %v1938 = vld [vmem:[%s561 + $0x338] sm:$0xff]
        %v1939 = vld [vmem:[%s561 + $0x340] sm:$0xff]
        %v1940 = vld [vmem:[%s561 + $0x348] sm:$0xff]
        %v1941 = vld [vmem:[%s561 + $0x350] sm:$0xff]
        %v1942 = vld [vmem:[%s561 + $0x358] sm:$0xff]
        %v1943 = vld [vmem:[%s561 + $0x360] sm:$0xff]
        %v1944 = vld [vmem:[%s561 + $0x368] sm:$0xff]
        %v1945 = vld [vmem:[%s561 + $0x370] sm:$0xff]
        %v1946 = vld [vmem:[%s561 + $0x378] sm:$0xff]
        %v1947 = vld [vmem:[%s561 + $0x380] sm:$0xff]
        %v1948 = vld [vmem:[%s561 + $0x388] sm:$0xff]
        %v1949 = vld [vmem:[%s561 + $0x390] sm:$0xff]
        %v1950 = vld [vmem:[%s561 + $0x398] sm:$0xff]
        %v1951 = vld [vmem:[%s561 + $0x3a0] sm:$0xff]
        %v1952 = vld [vmem:[%s561 + $0x3a8] sm:$0xff]
        %v1953 = vld [vmem:[%s561 + $0x3b0] sm:$0xff]
        %v1954 = vld [vmem:[%s561 + $0x3b8] sm:$0xff]
        %v1955 = vld [vmem:[%s561 + $0x3c0] sm:$0xff]
        %v1956 = vld [vmem:[%s561 + $0x3c8] sm:$0xff]
        %v1957 = vld [vmem:[%s561 + $0x3d0] sm:$0xff]
        %v1958 = vld [vmem:[%s561 + $0x3d8] sm:$0xff]
        %v1959 = vld [vmem:[%s561 + $0x3e0] sm:$0xff]
        %v1960 = vld [vmem:[%s561 + $0x3e8] sm:$0xff]
        %v1961 = vld [vmem:[%s561 + $0x3f0] sm:$0xff]
        %v1962 = vld [vmem:[%s561 + $0x3f8] sm:$0xff]
        %v1963 = vld [vmem:[%s561 + $0x400] sm:$0xff]
        %v1964 = vld [vmem:[%s561 + $0x408] sm:$0xff]
        %v1965 = vld [vmem:[%s561 + $0x410] sm:$0xff]
        %v1966 = vld [vmem:[%s561 + $0x418] sm:$0xff]
        %v1967 = vld [vmem:[%s561 + $0x420] sm:$0xff]
        %v1968 = vld [vmem:[%s561 + $0x428] sm:$0xff]
        %v1969 = vld [vmem:[%s561 + $0x430] sm:$0xff]
        %v1970 = vld [vmem:[%s561 + $0x438] sm:$0xff]
        %v1971 = vld [vmem:[%s561 + $0x440] sm:$0xff]
        %v1972 = vld [vmem:[%s561 + $0x448] sm:$0xff]
        %v1973 = vld [vmem:[%s561 + $0x450] sm:$0xff]
        %v1974 = vld [vmem:[%s561 + $0x458] sm:$0xff]
        %v1975 = vld [vmem:[%s561 + $0x460] sm:$0xff]
        %v1976 = vld [vmem:[%s561 + $0x468] sm:$0xff]
        %v1977 = vld [vmem:[%s561 + $0x470] sm:$0xff]
        %v1978 = vld [vmem:[%s561 + $0x478] sm:$0xff]
        %v1979 = vld [vmem:[%s561 + $0x480] sm:$0xff]
        %v1980 = vld [vmem:[%s561 + $0x488] sm:$0xff]
        %v1981 = vld [vmem:[%s561 + $0x490] sm:$0xff]
        %v1982 = vld [vmem:[%s561 + $0x498] sm:$0xff]
        %v1983 = vld [vmem:[%s561 + $0x4a0] sm:$0xff]
        %v1984 = vld [vmem:[%s561 + $0x4a8] sm:$0xff]
        %v1985 = vld [vmem:[%s561 + $0x4b0] sm:$0xff]
        %v1986 = vld [vmem:[%s561 + $0x4b8] sm:$0xff]
        %v1987 = vld [vmem:[%s561 + $0x4c0] sm:$0xff]
        %v1988 = vld [vmem:[%s561 + $0x4c8] sm:$0xff]
        %v1989 = vld [vmem:[%s561 + $0x4d0] sm:$0xff]
        %v1990 = vld [vmem:[%s561 + $0x4d8] sm:$0xff]
        %v1991 = vld [vmem:[%s561 + $0x4e0] sm:$0xff]
        %v1992 = vld [vmem:[%s561 + $0x4e8] sm:$0xff]
        %v1993 = vld [vmem:[%s561 + $0x4f0] sm:$0xff]
        %v1994 = vld [vmem:[%s561 + $0x4f8] sm:$0xff]
        %v1995 = vld [vmem:[%s561 + $0x500] sm:$0xff]
        %v1996 = vld [vmem:[%s561 + $0x508] sm:$0xff]
        %v1997 = vld [vmem:[%s561 + $0x510] sm:$0xff]
        %v1998 = vld [vmem:[%s561 + $0x518] sm:$0xff]
        %v1999 = vld [vmem:[%s561 + $0x520] sm:$0xff]
        %v2000 = vld [vmem:[%s561 + $0x528] sm:$0xff]
        %v2001 = vld [vmem:[%s561 + $0x530] sm:$0xff]
        %v2002 = vld [vmem:[%s561 + $0x538] sm:$0xff]
        %v2003 = vld [vmem:[%s561 + $0x540] sm:$0xff]
        %v2004 = vld [vmem:[%s561 + $0x548] sm:$0xff]
        %v2005 = vld [vmem:[%s561 + $0x550] sm:$0xff]
        %v2006 = vld [vmem:[%s561 + $0x558] sm:$0xff]
        %v2007 = vld [vmem:[%s561 + $0x560] sm:$0xff]
        %v2008 = vld [vmem:[%s561 + $0x568] sm:$0xff]
        %v2009 = vld [vmem:[%s561 + $0x570] sm:$0xff]
        %v2010 = vld [vmem:[%s561 + $0x578] sm:$0xff]
        %v2011 = vld [vmem:[%s561 + $0x580] sm:$0xff]
        %v2012 = vld [vmem:[%s561 + $0x588] sm:$0xff]
        %v2013 = vld [vmem:[%s561 + $0x590] sm:$0xff]
        %v2014 = vld [vmem:[%s561 + $0x598] sm:$0xff]
        %v2015 = vld [vmem:[%s561 + $0x5a0] sm:$0xff]
        %v2016 = vld [vmem:[%s561 + $0x5a8] sm:$0xff]
        %v2017 = vld [vmem:[%s561 + $0x5b0] sm:$0xff]
        %v2018 = vld [vmem:[%s561 + $0x5b8] sm:$0xff]
        %v2019 = vld [vmem:[%s561 + $0x5c0] sm:$0xff]
        %v2020 = vld [vmem:[%s561 + $0x5c8] sm:$0xff]
        %v2021 = vld [vmem:[%s561 + $0x5d0] sm:$0xff]
        %v2022 = vld [vmem:[%s561 + $0x5d8] sm:$0xff]
        %v2023 = vld [vmem:[%s561 + $0x5e0] sm:$0xff]
        %v2024 = vld [vmem:[%s561 + $0x5e8] sm:$0xff]
        %v2025 = vld [vmem:[%s561 + $0x5f0] sm:$0xff]
        %v2026 = vld [vmem:[%s561 + $0x5f8] sm:$0xff]
        %v2027 = vld [vmem:[%s561 + $0x600] sm:$0xff]
        %v2028 = vld [vmem:[%s561 + $0x608] sm:$0xff]
        %v2029 = vld [vmem:[%s561 + $0x610] sm:$0xff]
        %v2030 = vld [vmem:[%s561 + $0x618] sm:$0xff]
        %v2031 = vld [vmem:[%s561 + $0x620] sm:$0xff]
        %v2032 = vld [vmem:[%s561 + $0x628] sm:$0xff]
        %v2033 = vld [vmem:[%s561 + $0x630] sm:$0xff]
        %v2034 = vld [vmem:[%s561 + $0x638] sm:$0xff]
        %v2035 = vld [vmem:[%s561 + $0x640] sm:$0xff]
        %v2036 = vld [vmem:[%s561 + $0x648] sm:$0xff]
        %v2037 = vld [vmem:[%s561 + $0x650] sm:$0xff]
        %v2038 = vld [vmem:[%s561 + $0x658] sm:$0xff]
        %v2039 = vld [vmem:[%s561 + $0x660] sm:$0xff]
        %v2040 = vld [vmem:[%s561 + $0x668] sm:$0xff]
        %v2041 = vld [vmem:[%s561 + $0x670] sm:$0xff]
        %v2042 = vld [vmem:[%s561 + $0x678] sm:$0xff]
        %v2043 = vld [vmem:[%s561 + $0x680] sm:$0xff]
        %v2044 = vld [vmem:[%s561 + $0x688] sm:$0xff]
        %v2045 = vld [vmem:[%s561 + $0x690] sm:$0xff]
        %v2046 = vld [vmem:[%s561 + $0x698] sm:$0xff]
        %v2047 = vld [vmem:[%s561 + $0x6a0] sm:$0xff]
        %v2048 = vld [vmem:[%s561 + $0x6a8] sm:$0xff]
        %v2049 = vld [vmem:[%s561 + $0x6b0] sm:$0xff]
        %v2050 = vld [vmem:[%s561 + $0x6b8] sm:$0xff]
        %v2051 = vld [vmem:[%s561 + $0x6c0] sm:$0xff]
        %v2052 = vld [vmem:[%s561 + $0x6c8] sm:$0xff]
        %v2053 = vld [vmem:[%s561 + $0x6d0] sm:$0xff]
        %v2054 = vld [vmem:[%s561 + $0x6d8] sm:$0xff]
        %v2055 = vld [vmem:[%s561 + $0x6e0] sm:$0xff]
        %v2056 = vld [vmem:[%s561 + $0x6e8] sm:$0xff]
        %v2057 = vld [vmem:[%s561 + $0x6f0] sm:$0xff]
        %v2058 = vld [vmem:[%s561 + $0x6f8] sm:$0xff]
        %v2059 = vld [vmem:[%s561 + $0x700] sm:$0xff]
        %v2060 = vld [vmem:[%s561 + $0x708] sm:$0xff]
        %v2061 = vld [vmem:[%s561 + $0x710] sm:$0xff]
        %v2062 = vld [vmem:[%s561 + $0x718] sm:$0xff]
        %v2063 = vld [vmem:[%s561 + $0x720] sm:$0xff]
        %v2064 = vld [vmem:[%s561 + $0x728] sm:$0xff]
        %v2065 = vld [vmem:[%s561 + $0x730] sm:$0xff]
        %v2066 = vld [vmem:[%s561 + $0x738] sm:$0xff]
        %v2067 = vld [vmem:[%s561 + $0x740] sm:$0xff]
        %v2068 = vld [vmem:[%s561 + $0x748] sm:$0xff]
        %v2069 = vld [vmem:[%s561 + $0x750] sm:$0xff]
        %v2070 = vld [vmem:[%s561 + $0x758] sm:$0xff]
        %v2071 = vld [vmem:[%s561 + $0x760] sm:$0xff]
        %v2072 = vld [vmem:[%s561 + $0x768] sm:$0xff]
        %v2073 = vld [vmem:[%s561 + $0x770] sm:$0xff]
        %v2074 = vld [vmem:[%s561 + $0x778] sm:$0xff]
        %v2075 = vld [vmem:[%s561 + $0x780] sm:$0xff]
        %v2076 = vld [vmem:[%s561 + $0x788] sm:$0xff]
        %v2077 = vld [vmem:[%s561 + $0x790] sm:$0xff]
        %v2078 = vld [vmem:[%s561 + $0x798] sm:$0xff]
        %v2079 = vld [vmem:[%s561 + $0x7a0] sm:$0xff]
        %v2080 = vld [vmem:[%s561 + $0x7a8] sm:$0xff]
        %v2081 = vld [vmem:[%s561 + $0x7b0] sm:$0xff]
        %v2082 = vld [vmem:[%s561 + $0x7b8] sm:$0xff]
        %v2083 = vld [vmem:[%s561 + $0x7c0] sm:$0xff]
        %v2084 = vld [vmem:[%s561 + $0x7c8] sm:$0xff]
        %v2085 = vld [vmem:[%s561 + $0x7d0] sm:$0xff]
        %v2086 = vld [vmem:[%s561 + $0x7d8] sm:$0xff]
        %v2087 = vld [vmem:[%s561 + $0x7e0] sm:$0xff]
        %v2088 = vld [vmem:[%s561 + $0x7e8] sm:$0xff]
        %v2089 = vld [vmem:[%s561 + $0x7f0] sm:$0xff]
        %v2090 = vld [vmem:[%s561 + $0x7f8] sm:$0xff]
        %v2091 = vld [vmem:[%s561 + $0x800] sm:$0xff]
        %v2092 = vld [vmem:[%s561 + $0x808] sm:$0xff]
        %v2093 = vld [vmem:[%s561 + $0x810] sm:$0xff]
        %v2094 = vld [vmem:[%s561 + $0x818] sm:$0xff]
        %v2095 = vld [vmem:[%s561 + $0x820] sm:$0xff]
        %v2096 = vld [vmem:[%s561 + $0x828] sm:$0xff]
        %v2097 = vld [vmem:[%s561 + $0x830] sm:$0xff]
        %v2098 = vld [vmem:[%s561 + $0x838] sm:$0xff]
        %v2099 = vld [vmem:[%s561 + $0x840] sm:$0xff]
        %v2100 = vld [vmem:[%s561 + $0x848] sm:$0xff]
        %v2101 = vld [vmem:[%s561 + $0x850] sm:$0xff]
        %v2102 = vld [vmem:[%s561 + $0x858] sm:$0xff]
        %v2103 = vld [vmem:[%s561 + $0x860] sm:$0xff]
        %v2104 = vld [vmem:[%s561 + $0x868] sm:$0xff]
        %v2105 = vld [vmem:[%s561 + $0x870] sm:$0xff]
        %v2106 = vld [vmem:[%s561 + $0x878] sm:$0xff]
        %v2107 = vld [vmem:[%s561 + $0x880] sm:$0xff]
        %v2108 = vld [vmem:[%s561 + $0x888] sm:$0xff]
        %v2109 = vld [vmem:[%s561 + $0x890] sm:$0xff]
        %v2110 = vld [vmem:[%s561 + $0x898] sm:$0xff]
        %v2111 = vld [vmem:[%s561 + $0x8a0] sm:$0xff]
        %v2112 = vld [vmem:[%s561 + $0x8a8] sm:$0xff]
        %v2113 = vld [vmem:[%s561 + $0x8b0] sm:$0xff]
        %v2114 = vld [vmem:[%s561 + $0x8b8] sm:$0xff]
        %v2115 = vld [vmem:[%s561 + $0x8c0] sm:$0xff]
        %v2116 = vld [vmem:[%s561 + $0x8c8] sm:$0xff]
        %v2117 = vld [vmem:[%s561 + $0x8d0] sm:$0xff]
        %v2118 = vld [vmem:[%s561 + $0x8d8] sm:$0xff]
        %v2119 = vld [vmem:[%s561 + $0x8e0] sm:$0xff]
        %v2120 = vld [vmem:[%s561 + $0x8e8] sm:$0xff]
        %v2121 = vld [vmem:[%s561 + $0x8f0] sm:$0xff]
        %v2122 = vld [vmem:[%s561 + $0x8f8] sm:$0xff]
        %v2123 = vld [vmem:[%s561 + $0x900] sm:$0xff]
        %v2124 = vld [vmem:[%s561 + $0x908] sm:$0xff]
        %v2125 = vld [vmem:[%s561 + $0x910] sm:$0xff]
        %v2126 = vld [vmem:[%s561 + $0x918] sm:$0xff]
        %v2127 = vld [vmem:[%s561 + $0x920] sm:$0xff]
        %v2128 = vld [vmem:[%s561 + $0x928] sm:$0xff]
        %v2129 = vld [vmem:[%s561 + $0x930] sm:$0xff]
        %v2130 = vld [vmem:[%s561 + $0x938] sm:$0xff]
        %v2131 = vld [vmem:[%s561 + $0x940] sm:$0xff]
        %v2132 = vld [vmem:[%s561 + $0x948] sm:$0xff]
        %v2133 = vld [vmem:[%s561 + $0x950] sm:$0xff]
        %v2134 = vld [vmem:[%s561 + $0x958] sm:$0xff]
        %v2135 = vld [vmem:[%s561 + $0x960] sm:$0xff]
        %v2136 = vld [vmem:[%s561 + $0x968] sm:$0xff]
        %v2137 = vld [vmem:[%s561 + $0x970] sm:$0xff]
        %v2138 = vld [vmem:[%s561 + $0x978] sm:$0xff]
        %v2139 = vld [vmem:[%s561 + $0x980] sm:$0xff]
        %v2140 = vld [vmem:[%s561 + $0x988] sm:$0xff]
        %v2141 = vld [vmem:[%s561 + $0x990] sm:$0xff]
        %v2142 = vld [vmem:[%s561 + $0x998] sm:$0xff]
        %v2143 = vld [vmem:[%s561 + $0x9a0] sm:$0xff]
        %v2144 = vld [vmem:[%s561 + $0x9a8] sm:$0xff]
        %v2145 = vld [vmem:[%s561 + $0x9b0] sm:$0xff]
        %v2146 = vld [vmem:[%s561 + $0x9b8] sm:$0xff]
        %v2147 = vld [vmem:[%s561 + $0x9c0] sm:$0xff]
        %v2148 = vld [vmem:[%s561 + $0x9c8] sm:$0xff]
        %v2149 = vld [vmem:[%s561 + $0x9d0] sm:$0xff]
        %v2150 = vld [vmem:[%s561 + $0x9d8] sm:$0xff]
        %v2151 = vld [vmem:[%s561 + $0x9e0] sm:$0xff]
        %v2152 = vld [vmem:[%s561 + $0x9e8] sm:$0xff]
        %v2153 = vld [vmem:[%s561 + $0x9f0] sm:$0xff]
        %v2154 = vld [vmem:[%s561 + $0x9f8] sm:$0xff]
        %v2155 = vld [vmem:[%s561 + $0xa00] sm:$0xff]
        %v2156 = vld [vmem:[%s561 + $0xa08] sm:$0xff]
        %v2157 = vld [vmem:[%s561 + $0xa10] sm:$0xff]
        %v2158 = vld [vmem:[%s561 + $0xa18] sm:$0xff]
        %v2159 = vld [vmem:[%s561 + $0xa20] sm:$0xff]
        %v2160 = vld [vmem:[%s561 + $0xa28] sm:$0xff]
        %v2161 = vld [vmem:[%s561 + $0xa30] sm:$0xff]
        %v2162 = vld [vmem:[%s561 + $0xa38] sm:$0xff]
        %v2163 = vld [vmem:[%s561 + $0xa40] sm:$0xff]
        %v2164 = vld [vmem:[%s561 + $0xa48] sm:$0xff]
        %v2165 = vld [vmem:[%s561 + $0xa50] sm:$0xff]
        %v2166 = vld [vmem:[%s561 + $0xa58] sm:$0xff]
        %v2167 = vld [vmem:[%s561 + $0xa60] sm:$0xff]
        %v2168 = vld [vmem:[%s561 + $0xa68] sm:$0xff]
        %v2169 = vld [vmem:[%s561 + $0xa70] sm:$0xff]
        %v2170 = vld [vmem:[%s561 + $0xa78] sm:$0xff]
        %v2171 = vld [vmem:[%s561 + $0xa80] sm:$0xff]
        %v2172 = vld [vmem:[%s561 + $0xa88] sm:$0xff]
        %v2173 = vld [vmem:[%s561 + $0xa90] sm:$0xff]
        %v2174 = vld [vmem:[%s561 + $0xa98] sm:$0xff]
        %v2175 = vld [vmem:[%s561 + $0xaa0] sm:$0xff]
        %v2176 = vld [vmem:[%s561 + $0xaa8] sm:$0xff]
        %v2177 = vld [vmem:[%s561 + $0xab0] sm:$0xff]
        %v2178 = vld [vmem:[%s561 + $0xab8] sm:$0xff]
        %v2179 = vld [vmem:[%s561 + $0xac0] sm:$0xff]
        %v2180 = vld [vmem:[%s561 + $0xac8] sm:$0xff]
        %v2181 = vld [vmem:[%s561 + $0xad0] sm:$0xff]
        %v2182 = vld [vmem:[%s561 + $0xad8] sm:$0xff]
        %v2183 = vld [vmem:[%s561 + $0xae0] sm:$0xff]
        %v2184 = vld [vmem:[%s561 + $0xae8] sm:$0xff]
        %v2185 = vld [vmem:[%s561 + $0xaf0] sm:$0xff]
        %v2186 = vld [vmem:[%s561 + $0xaf8] sm:$0xff]
        %v2187 = vld [vmem:[%s561 + $0xb00] sm:$0xff]
        %v2188 = vld [vmem:[%s561 + $0xb08] sm:$0xff]
        %v2189 = vld [vmem:[%s561 + $0xb10] sm:$0xff]
        %v2190 = vld [vmem:[%s561 + $0xb18] sm:$0xff]
        %v2191 = vld [vmem:[%s561 + $0xb20] sm:$0xff]
        %v2192 = vld [vmem:[%s561 + $0xb28] sm:$0xff]
        %v2193 = vld [vmem:[%s561 + $0xb30] sm:$0xff]
        %v2194 = vld [vmem:[%s561 + $0xb38] sm:$0xff]
        %v2195 = vld [vmem:[%s561 + $0xb40] sm:$0xff]
        %v2196 = vld [vmem:[%s561 + $0xb48] sm:$0xff]
        %v2197 = vld [vmem:[%s561 + $0xb50] sm:$0xff]
        %v2198 = vld [vmem:[%s561 + $0xb58] sm:$0xff]
        %v2199 = vld [vmem:[%s561 + $0xb60] sm:$0xff]
        %v2200 = vld [vmem:[%s561 + $0xb68] sm:$0xff]
        %v2201 = vld [vmem:[%s561 + $0xb70] sm:$0xff]
        %v2202 = vld [vmem:[%s561 + $0xb78] sm:$0xff]
        %v2203 = vld [vmem:[%s561 + $0xb80] sm:$0xff]
        %v2204 = vld [vmem:[%s561 + $0xb88] sm:$0xff]
        %v2205 = vld [vmem:[%s561 + $0xb90] sm:$0xff]
        %v2206 = vld [vmem:[%s561 + $0xb98] sm:$0xff]
        %v2207 = vld [vmem:[%s561 + $0xba0] sm:$0xff]
        %v2208 = vld [vmem:[%s561 + $0xba8] sm:$0xff]
        %v2209 = vld [vmem:[%s561 + $0xbb0] sm:$0xff]
        %v2210 = vld [vmem:[%s561 + $0xbb8] sm:$0xff]
        %v2211 = vld [vmem:[%s561 + $0xbc0] sm:$0xff]
        %v2212 = vld [vmem:[%s561 + $0xbc8] sm:$0xff]
        %v2213 = vld [vmem:[%s561 + $0xbd0] sm:$0xff]
        %v2214 = vld [vmem:[%s561 + $0xbd8] sm:$0xff]
        %v2215 = vld [vmem:[%s561 + $0xbe0] sm:$0xff]
        %v2216 = vld [vmem:[%s561 + $0xbe8] sm:$0xff]
        %v2217 = vld [vmem:[%s561 + $0xbf0] sm:$0xff]
        %v2218 = vld [vmem:[%s561 + $0xbf8] sm:$0xff]
        %v2219 = vld [vmem:[%s561 + $0xc00] sm:$0xff]
        %v2220 = vld [vmem:[%s561 + $0xc08] sm:$0xff]
        %v2221 = vld [vmem:[%s561 + $0xc10] sm:$0xff]
        %v2222 = vld [vmem:[%s561 + $0xc18] sm:$0xff]
        %v2223 = vld [vmem:[%s561 + $0xc20] sm:$0xff]
        %v2224 = vld [vmem:[%s561 + $0xc28] sm:$0xff]
        %v2225 = vld [vmem:[%s561 + $0xc30] sm:$0xff]
        %v2226 = vld [vmem:[%s561 + $0xc38] sm:$0xff]
        %v2227 = vld [vmem:[%s561 + $0xc40] sm:$0xff]
        %v2228 = vld [vmem:[%s561 + $0xc48] sm:$0xff]
        %v2229 = vld [vmem:[%s561 + $0xc50] sm:$0xff]
        %v2230 = vld [vmem:[%s561 + $0xc58] sm:$0xff]
        %v2231 = vld [vmem:[%s561 + $0xc60] sm:$0xff]
        %v2232 = vld [vmem:[%s561 + $0xc68] sm:$0xff]
        %v2233 = vld [vmem:[%s561 + $0xc70] sm:$0xff]
        %v2234 = vld [vmem:[%s561 + $0xc78] sm:$0xff]
        %v2235 = vld [vmem:[%s561 + $0xc80] sm:$0xff]
        %v2236 = vld [vmem:[%s561 + $0xc88] sm:$0xff]
        %v2237 = vld [vmem:[%s561 + $0xc90] sm:$0xff]
        %v2238 = vld [vmem:[%s561 + $0xc98] sm:$0xff]
        %v2239 = vld [vmem:[%s561 + $0xca0] sm:$0xff]
        %v2240 = vld [vmem:[%s561 + $0xca8] sm:$0xff]
        %v2241 = vld [vmem:[%s561 + $0xcb0] sm:$0xff]
        %v2242 = vld [vmem:[%s561 + $0xcb8] sm:$0xff]
        %v2243 = vld [vmem:[%s561 + $0xcc0] sm:$0xff]
        %v2244 = vld [vmem:[%s561 + $0xcc8] sm:$0xff]
        %v2245 = vld [vmem:[%s561 + $0xcd0] sm:$0xff]
        %v2246 = vld [vmem:[%s561 + $0xcd8] sm:$0xff]
        %v2247 = vld [vmem:[%s561 + $0xce0] sm:$0xff]
        %v2248 = vld [vmem:[%s561 + $0xce8] sm:$0xff]
        %v2249 = vld [vmem:[%s561 + $0xcf0] sm:$0xff]
        %v2250 = vld [vmem:[%s561 + $0xcf8] sm:$0xff]
        %v2251 = vld [vmem:[%s561 + $0xd00] sm:$0xff]
        %v2252 = vld [vmem:[%s561 + $0xd08] sm:$0xff]
        %v2253 = vld [vmem:[%s561 + $0xd10] sm:$0xff]
        %v2254 = vld [vmem:[%s561 + $0xd18] sm:$0xff]
        %v2255 = vld [vmem:[%s561 + $0xd20] sm:$0xff]
        %v2256 = vld [vmem:[%s561 + $0xd28] sm:$0xff]
        %v2257 = vld [vmem:[%s561 + $0xd30] sm:$0xff]
        %v2258 = vld [vmem:[%s561 + $0xd38] sm:$0xff]
        %v2259 = vld [vmem:[%s561 + $0xd40] sm:$0xff]
        %v2260 = vld [vmem:[%s561 + $0xd48] sm:$0xff]
        %v2261 = vld [vmem:[%s561 + $0xd50] sm:$0xff]
        %v2262 = vld [vmem:[%s561 + $0xd58] sm:$0xff]
        %v2263 = vld [vmem:[%s561 + $0xd60] sm:$0xff]
        %v2264 = vld [vmem:[%s561 + $0xd68] sm:$0xff]
        %v2265 = vld [vmem:[%s561 + $0xd70] sm:$0xff]
        %v2266 = vld [vmem:[%s561 + $0xd78] sm:$0xff]
        %v2267 = vld [vmem:[%s561 + $0xd80] sm:$0xff]
        %v2268 = vld [vmem:[%s561 + $0xd88] sm:$0xff]
        %v2269 = vld [vmem:[%s561 + $0xd90] sm:$0xff]
        %v2270 = vld [vmem:[%s561 + $0xd98] sm:$0xff]
        %v2271 = vld [vmem:[%s561 + $0xda0] sm:$0xff]
        %v2272 = vld [vmem:[%s561 + $0xda8] sm:$0xff]
        %v2273 = vld [vmem:[%s561 + $0xdb0] sm:$0xff]
        %v2274 = vld [vmem:[%s561 + $0xdb8] sm:$0xff]
        %v2275 = vld [vmem:[%s561 + $0xdc0] sm:$0xff]
        %v2276 = vld [vmem:[%s561 + $0xdc8] sm:$0xff]
        %v2277 = vld [vmem:[%s561 + $0xdd0] sm:$0xff]
        %v2278 = vld [vmem:[%s561 + $0xdd8] sm:$0xff]
        %v2279 = vld [vmem:[%s561 + $0xde0] sm:$0xff]
        %v2280 = vld [vmem:[%s561 + $0xde8] sm:$0xff]
        %v2281 = vld [vmem:[%s561 + $0xdf0] sm:$0xff]
        %v2282 = vld [vmem:[%s561 + $0xdf8] sm:$0xff]
        %v2283 = vld [vmem:[%s561 + $0xe00] sm:$0xff]
        %v2284 = vld [vmem:[%s561 + $0xe08] sm:$0xff]
        %v2285 = vld [vmem:[%s561 + $0xe10] sm:$0xff]
        %v2286 = vld [vmem:[%s561 + $0xe18] sm:$0xff]
        %v2287 = vld [vmem:[%s561 + $0xe20] sm:$0xff]
        %v2288 = vld [vmem:[%s561 + $0xe28] sm:$0xff]
        %v2289 = vld [vmem:[%s561 + $0xe30] sm:$0xff]
        %v2290 = vld [vmem:[%s561 + $0xe38] sm:$0xff]
        %v2291 = vld [vmem:[%s561 + $0xe40] sm:$0xff]
        %v2292 = vld [vmem:[%s561 + $0xe48] sm:$0xff]
        %v2293 = vld [vmem:[%s561 + $0xe50] sm:$0xff]
        %v2294 = vld [vmem:[%s561 + $0xe58] sm:$0xff]
        %v2295 = vld [vmem:[%s561 + $0xe60] sm:$0xff]
        %v2296 = vld [vmem:[%s561 + $0xe68] sm:$0xff]
        %v2297 = vld [vmem:[%s561 + $0xe70] sm:$0xff]
        %v2298 = vld [vmem:[%s561 + $0xe78] sm:$0xff]
        %v2299 = vld [vmem:[%s561 + $0xe80] sm:$0xff]
        %v2300 = vld [vmem:[%s561 + $0xe88] sm:$0xff]
        %v2301 = vld [vmem:[%s561 + $0xe90] sm:$0xff]
        %v2302 = vld [vmem:[%s561 + $0xe98] sm:$0xff]
        %v2303 = vld [vmem:[%s561 + $0xea0] sm:$0xff]
        %v2304 = vld [vmem:[%s561 + $0xea8] sm:$0xff]
        %v2305 = vld [vmem:[%s561 + $0xeb0] sm:$0xff]
        %v2306 = vld [vmem:[%s561 + $0xeb8] sm:$0xff]
        %v2307 = vld [vmem:[%s561 + $0xec0] sm:$0xff]
        %v2308 = vld [vmem:[%s561 + $0xec8] sm:$0xff]
        %v2309 = vld [vmem:[%s561 + $0xed0] sm:$0xff]
        %v2310 = vld [vmem:[%s561 + $0xed8] sm:$0xff]
        %v2311 = vld [vmem:[%s561 + $0xee0] sm:$0xff]
        %v2312 = vld [vmem:[%s561 + $0xee8] sm:$0xff]
        %v2313 = vld [vmem:[%s561 + $0xef0] sm:$0xff]
        %v2314 = vld [vmem:[%s561 + $0xef8] sm:$0xff]
        %v2315 = vld [vmem:[%s561 + $0xf00] sm:$0xff]
        %v2316 = vld [vmem:[%s561 + $0xf08] sm:$0xff]
        %v2317 = vld [vmem:[%s561 + $0xf10] sm:$0xff]
        %v2318 = vld [vmem:[%s561 + $0xf18] sm:$0xff]
        %v2319 = vld [vmem:[%s561 + $0xf20] sm:$0xff]
        %v2320 = vld [vmem:[%s561 + $0xf28] sm:$0xff]
        %v2321 = vld [vmem:[%s561 + $0xf30] sm:$0xff]
        %v2322 = vld [vmem:[%s561 + $0xf38] sm:$0xff]
        %v2323 = vld [vmem:[%s561 + $0xf40] sm:$0xff]
        %v2324 = vld [vmem:[%s561 + $0xf48] sm:$0xff]
        %v2325 = vld [vmem:[%s561 + $0xf50] sm:$0xff]
        %v2326 = vld [vmem:[%s561 + $0xf58] sm:$0xff]
        %v2327 = vld [vmem:[%s561 + $0xf60] sm:$0xff]
        %v2328 = vld [vmem:[%s561 + $0xf68] sm:$0xff]
        %v2329 = vld [vmem:[%s561 + $0xf70] sm:$0xff]
        %v2330 = vld [vmem:[%s561 + $0xf78] sm:$0xff]
        %v2331 = vld [vmem:[%s561 + $0xf80] sm:$0xff]
        %v2332 = vld [vmem:[%s561 + $0xf88] sm:$0xff]
        %v2333 = vld [vmem:[%s561 + $0xf90] sm:$0xff]
        %v2334 = vld [vmem:[%s561 + $0xf98] sm:$0xff]
        %v2335 = vld [vmem:[%s561 + $0xfa0] sm:$0xff]
        %v2336 = vld [vmem:[%s561 + $0xfa8] sm:$0xff]
        %v2337 = vld [vmem:[%s561 + $0xfb0] sm:$0xff]
        %v2338 = vld [vmem:[%s561 + $0xfb8] sm:$0xff]
        %v2339 = vld [vmem:[%s561 + $0xfc0] sm:$0xff]
        %v2340 = vld [vmem:[%s561 + $0xfc8] sm:$0xff]
        %v2341 = vld [vmem:[%s561 + $0xfd0] sm:$0xff]
        %v2342 = vld [vmem:[%s561 + $0xfd8] sm:$0xff]
        %v2343 = vld [vmem:[%s561 + $0xfe0] sm:$0xff]
        %v2344 = vld [vmem:[%s561 + $0xfe8] sm:$0xff]
        %v2345 = vld [vmem:[%s561 + $0xff0] sm:$0xff]
        %v2346 = vld [vmem:[%s561 + $0xff8] sm:$0xff]
        %v2347 = vunpack.c.l.s8.bf16 %v1835
        %v2348 = vunpack.c.l.s8.bf16 %v1836
        %v2349 = vunpack.c.h.s8.bf16 %v1835
        %v2350 = vunpack.c.h.s8.bf16 %v1836
        %v2351 = vunpack.c.l.s8.bf16 %v1837
        %v2352 = vunpack.c.l.s8.bf16 %v1838
        %v2353 = vunpack.c.h.s8.bf16 %v1837
        %v2354 = vunpack.c.h.s8.bf16 %v1838
        %v2355 = vunpack.c.l.s8.bf16 %v1839
        %v2356 = vunpack.c.l.s8.bf16 %v1840
        %v2357 = vunpack.c.h.s8.bf16 %v1839
        %v2358 = vunpack.c.h.s8.bf16 %v1840
        %v2359 = vunpack.c.l.s8.bf16 %v1841
        %v2360 = vunpack.c.l.s8.bf16 %v1842
        %v2361 = vunpack.c.h.s8.bf16 %v1841
        %v2362 = vunpack.c.h.s8.bf16 %v1842
        %v2363 = vunpack.c.l.s8.bf16 %v1843
        %v2364 = vunpack.c.l.s8.bf16 %v1844
        %v2365 = vunpack.c.h.s8.bf16 %v1843
        %v2366 = vunpack.c.h.s8.bf16 %v1844
        %v2367 = vunpack.c.l.s8.bf16 %v1845
        %v2368 = vunpack.c.l.s8.bf16 %v1846
        %v2369 = vunpack.c.h.s8.bf16 %v1845
        %v2370 = vunpack.c.h.s8.bf16 %v1846
        %v2371 = vunpack.c.l.s8.bf16 %v1847
        %v2372 = vunpack.c.l.s8.bf16 %v1848
        %v2373 = vunpack.c.h.s8.bf16 %v1847
        %v2374 = vunpack.c.h.s8.bf16 %v1848
        %v2375 = vunpack.c.l.s8.bf16 %v1849
        %v2376 = vunpack.c.l.s8.bf16 %v1850
        %v2377 = vunpack.c.h.s8.bf16 %v1849
        %v2378 = vunpack.c.h.s8.bf16 %v1850
        %v2379 = vunpack.c.l.s8.bf16 %v1851
        %v2380 = vunpack.c.l.s8.bf16 %v1852
        %v2381 = vunpack.c.h.s8.bf16 %v1851
        %v2382 = vunpack.c.h.s8.bf16 %v1852
        %v2383 = vunpack.c.l.s8.bf16 %v1853
        %v2384 = vunpack.c.l.s8.bf16 %v1854
        %v2385 = vunpack.c.h.s8.bf16 %v1853
        %v2386 = vunpack.c.h.s8.bf16 %v1854
        %v2387 = vunpack.c.l.s8.bf16 %v1855
        %v2388 = vunpack.c.l.s8.bf16 %v1856
        %v2389 = vunpack.c.h.s8.bf16 %v1855
        %v2390 = vunpack.c.h.s8.bf16 %v1856
        %v2391 = vunpack.c.l.s8.bf16 %v1857
        %v2392 = vunpack.c.l.s8.bf16 %v1858
        %v2393 = vunpack.c.h.s8.bf16 %v1857
        %v2394 = vunpack.c.h.s8.bf16 %v1858
        %v2395 = vunpack.c.l.s8.bf16 %v1859
        %v2396 = vunpack.c.l.s8.bf16 %v1860
        %v2397 = vunpack.c.h.s8.bf16 %v1859
        %v2398 = vunpack.c.h.s8.bf16 %v1860
        %v2399 = vunpack.c.l.s8.bf16 %v1861
        %v2400 = vunpack.c.l.s8.bf16 %v1862
        %v2401 = vunpack.c.h.s8.bf16 %v1861
        %v2402 = vunpack.c.h.s8.bf16 %v1862
        %v2403 = vunpack.c.l.s8.bf16 %v1863
        %v2404 = vunpack.c.l.s8.bf16 %v1864
        %v2405 = vunpack.c.h.s8.bf16 %v1863
        %v2406 = vunpack.c.h.s8.bf16 %v1864
        %v2407 = vunpack.c.l.s8.bf16 %v1865
        %v2408 = vunpack.c.l.s8.bf16 %v1866
        %v2409 = vunpack.c.h.s8.bf16 %v1865
        %v2410 = vunpack.c.h.s8.bf16 %v1866
        %v2411 = vunpack.c.l.s8.bf16 %v1867
        %v2412 = vunpack.c.l.s8.bf16 %v1868
        %v2413 = vunpack.c.h.s8.bf16 %v1867
        %v2414 = vunpack.c.h.s8.bf16 %v1868
        %v2415 = vunpack.c.l.s8.bf16 %v1869
        %v2416 = vunpack.c.l.s8.bf16 %v1870
        %v2417 = vunpack.c.h.s8.bf16 %v1869
        %v2418 = vunpack.c.h.s8.bf16 %v1870
        %v2419 = vunpack.c.l.s8.bf16 %v1871
        %v2420 = vunpack.c.l.s8.bf16 %v1872
        %v2421 = vunpack.c.h.s8.bf16 %v1871
        %v2422 = vunpack.c.h.s8.bf16 %v1872
        %v2423 = vunpack.c.l.s8.bf16 %v1873
        %v2424 = vunpack.c.l.s8.bf16 %v1874
        %v2425 = vunpack.c.h.s8.bf16 %v1873
        %v2426 = vunpack.c.h.s8.bf16 %v1874
        %v2427 = vunpack.c.l.s8.bf16 %v1875
        %v2428 = vunpack.c.l.s8.bf16 %v1876
        %v2429 = vunpack.c.h.s8.bf16 %v1875
        %v2430 = vunpack.c.h.s8.bf16 %v1876
        %v2431 = vunpack.c.l.s8.bf16 %v1877
        %v2432 = vunpack.c.l.s8.bf16 %v1878
        %v2433 = vunpack.c.h.s8.bf16 %v1877
        %v2434 = vunpack.c.h.s8.bf16 %v1878
        %v2435 = vunpack.c.l.s8.bf16 %v1879
        %v2436 = vunpack.c.l.s8.bf16 %v1880
        %v2437 = vunpack.c.h.s8.bf16 %v1879
        %v2438 = vunpack.c.h.s8.bf16 %v1880
        %v2439 = vunpack.c.l.s8.bf16 %v1881
        %v2440 = vunpack.c.l.s8.bf16 %v1882
        %v2441 = vunpack.c.h.s8.bf16 %v1881
        %v2442 = vunpack.c.h.s8.bf16 %v1882
        %v2443 = vunpack.c.l.s8.bf16 %v1883
        %v2444 = vunpack.c.l.s8.bf16 %v1884
        %v2445 = vunpack.c.h.s8.bf16 %v1883
        %v2446 = vunpack.c.h.s8.bf16 %v1884
        %v2447 = vunpack.c.l.s8.bf16 %v1885
        %v2448 = vunpack.c.l.s8.bf16 %v1886
        %v2449 = vunpack.c.h.s8.bf16 %v1885
        %v2450 = vunpack.c.h.s8.bf16 %v1886
        %v2451 = vunpack.c.l.s8.bf16 %v1887
        %v2452 = vunpack.c.l.s8.bf16 %v1888
        %v2453 = vunpack.c.h.s8.bf16 %v1887
        %v2454 = vunpack.c.h.s8.bf16 %v1888
        %v2455 = vunpack.c.l.s8.bf16 %v1889
        %v2456 = vunpack.c.l.s8.bf16 %v1890
        %v2457 = vunpack.c.h.s8.bf16 %v1889
        %v2458 = vunpack.c.h.s8.bf16 %v1890
        %v2459 = vunpack.c.l.s8.bf16 %v1891
        %v2460 = vunpack.c.l.s8.bf16 %v1892
        %v2461 = vunpack.c.h.s8.bf16 %v1891
        %v2462 = vunpack.c.h.s8.bf16 %v1892
        %v2463 = vunpack.c.l.s8.bf16 %v1893
        %v2464 = vunpack.c.l.s8.bf16 %v1894
        %v2465 = vunpack.c.h.s8.bf16 %v1893
        %v2466 = vunpack.c.h.s8.bf16 %v1894
        %v2467 = vunpack.c.l.s8.bf16 %v1895
        %v2468 = vunpack.c.l.s8.bf16 %v1896
        %v2469 = vunpack.c.h.s8.bf16 %v1895
        %v2470 = vunpack.c.h.s8.bf16 %v1896
        %v2471 = vunpack.c.l.s8.bf16 %v1897
        %v2472 = vunpack.c.l.s8.bf16 %v1898
        %v2473 = vunpack.c.h.s8.bf16 %v1897
        %v2474 = vunpack.c.h.s8.bf16 %v1898
        %v2475 = vunpack.c.l.s8.bf16 %v1899
        %v2476 = vunpack.c.l.s8.bf16 %v1900
        %v2477 = vunpack.c.h.s8.bf16 %v1899
        %v2478 = vunpack.c.h.s8.bf16 %v1900
        %v2479 = vunpack.c.l.s8.bf16 %v1901
        %v2480 = vunpack.c.l.s8.bf16 %v1902
        %v2481 = vunpack.c.h.s8.bf16 %v1901
        %v2482 = vunpack.c.h.s8.bf16 %v1902
        %v2483 = vunpack.c.l.s8.bf16 %v1903
        %v2484 = vunpack.c.l.s8.bf16 %v1904
        %v2485 = vunpack.c.h.s8.bf16 %v1903
        %v2486 = vunpack.c.h.s8.bf16 %v1904
        %v2487 = vunpack.c.l.s8.bf16 %v1905
        %v2488 = vunpack.c.l.s8.bf16 %v1906
        %v2489 = vunpack.c.h.s8.bf16 %v1905
        %v2490 = vunpack.c.h.s8.bf16 %v1906
        %v2491 = vunpack.c.l.s8.bf16 %v1907
        %v2492 = vunpack.c.l.s8.bf16 %v1908
        %v2493 = vunpack.c.h.s8.bf16 %v1907
        %v2494 = vunpack.c.h.s8.bf16 %v1908
        %v2495 = vunpack.c.l.s8.bf16 %v1909
        %v2496 = vunpack.c.l.s8.bf16 %v1910
        %v2497 = vunpack.c.h.s8.bf16 %v1909
        %v2498 = vunpack.c.h.s8.bf16 %v1910
        %v2499 = vunpack.c.l.s8.bf16 %v1911
        %v2500 = vunpack.c.l.s8.bf16 %v1912
        %v2501 = vunpack.c.h.s8.bf16 %v1911
        %v2502 = vunpack.c.h.s8.bf16 %v1912
        %v2503 = vunpack.c.l.s8.bf16 %v1913
        %v2504 = vunpack.c.l.s8.bf16 %v1914
        %v2505 = vunpack.c.h.s8.bf16 %v1913
        %v2506 = vunpack.c.h.s8.bf16 %v1914
        %v2507 = vunpack.c.l.s8.bf16 %v1915
        %v2508 = vunpack.c.l.s8.bf16 %v1916
        %v2509 = vunpack.c.h.s8.bf16 %v1915
        %v2510 = vunpack.c.h.s8.bf16 %v1916
        %v2511 = vunpack.c.l.s8.bf16 %v1917
        %v2512 = vunpack.c.l.s8.bf16 %v1918
        %v2513 = vunpack.c.h.s8.bf16 %v1917
        %v2514 = vunpack.c.h.s8.bf16 %v1918
        %v2515 = vunpack.c.l.s8.bf16 %v1919
        %v2516 = vunpack.c.l.s8.bf16 %v1920
        %v2517 = vunpack.c.h.s8.bf16 %v1919
        %v2518 = vunpack.c.h.s8.bf16 %v1920
        %v2519 = vunpack.c.l.s8.bf16 %v1921
        %v2520 = vunpack.c.l.s8.bf16 %v1922
        %v2521 = vunpack.c.h.s8.bf16 %v1921
        %v2522 = vunpack.c.h.s8.bf16 %v1922
        %v2523 = vunpack.c.l.s8.bf16 %v1923
        %v2524 = vunpack.c.l.s8.bf16 %v1924
        %v2525 = vunpack.c.h.s8.bf16 %v1923
        %v2526 = vunpack.c.h.s8.bf16 %v1924
        %v2527 = vunpack.c.l.s8.bf16 %v1925
        %v2528 = vunpack.c.l.s8.bf16 %v1926
        %v2529 = vunpack.c.h.s8.bf16 %v1925
        %v2530 = vunpack.c.h.s8.bf16 %v1926
        %v2531 = vunpack.c.l.s8.bf16 %v1927
        %v2532 = vunpack.c.l.s8.bf16 %v1928
        %v2533 = vunpack.c.h.s8.bf16 %v1927
        %v2534 = vunpack.c.h.s8.bf16 %v1928
        %v2535 = vunpack.c.l.s8.bf16 %v1929
        %v2536 = vunpack.c.l.s8.bf16 %v1930
        %v2537 = vunpack.c.h.s8.bf16 %v1929
        %v2538 = vunpack.c.h.s8.bf16 %v1930
        %v2539 = vunpack.c.l.s8.bf16 %v1931
        %v2540 = vunpack.c.l.s8.bf16 %v1932
        %v2541 = vunpack.c.h.s8.bf16 %v1931
        %v2542 = vunpack.c.h.s8.bf16 %v1932
        %v2543 = vunpack.c.l.s8.bf16 %v1933
        %v2544 = vunpack.c.l.s8.bf16 %v1934
        %v2545 = vunpack.c.h.s8.bf16 %v1933
        %v2546 = vunpack.c.h.s8.bf16 %v1934
        %v2547 = vunpack.c.l.s8.bf16 %v1935
        %v2548 = vunpack.c.l.s8.bf16 %v1936
        %v2549 = vunpack.c.h.s8.bf16 %v1935
        %v2550 = vunpack.c.h.s8.bf16 %v1936
        %v2551 = vunpack.c.l.s8.bf16 %v1937
        %v2552 = vunpack.c.l.s8.bf16 %v1938
        %v2553 = vunpack.c.h.s8.bf16 %v1937
        %v2554 = vunpack.c.h.s8.bf16 %v1938
        %v2555 = vunpack.c.l.s8.bf16 %v1939
        %v2556 = vunpack.c.l.s8.bf16 %v1940
        %v2557 = vunpack.c.h.s8.bf16 %v1939
        %v2558 = vunpack.c.h.s8.bf16 %v1940
        %v2559 = vunpack.c.l.s8.bf16 %v1941
        %v2560 = vunpack.c.l.s8.bf16 %v1942
        %v2561 = vunpack.c.h.s8.bf16 %v1941
        %v2562 = vunpack.c.h.s8.bf16 %v1942
        %v2563 = vunpack.c.l.s8.bf16 %v1943
        %v2564 = vunpack.c.l.s8.bf16 %v1944
        %v2565 = vunpack.c.h.s8.bf16 %v1943
        %v2566 = vunpack.c.h.s8.bf16 %v1944
        %v2567 = vunpack.c.l.s8.bf16 %v1945
        %v2568 = vunpack.c.l.s8.bf16 %v1946
        %v2569 = vunpack.c.h.s8.bf16 %v1945
        %v2570 = vunpack.c.h.s8.bf16 %v1946
        %v2571 = vunpack.c.l.s8.bf16 %v1947
        %v2572 = vunpack.c.l.s8.bf16 %v1948
        %v2573 = vunpack.c.h.s8.bf16 %v1947
        %v2574 = vunpack.c.h.s8.bf16 %v1948
        %v2575 = vunpack.c.l.s8.bf16 %v1949
        %v2576 = vunpack.c.l.s8.bf16 %v1950
        %v2577 = vunpack.c.h.s8.bf16 %v1949
        %v2578 = vunpack.c.h.s8.bf16 %v1950
        %v2579 = vunpack.c.l.s8.bf16 %v1951
        %v2580 = vunpack.c.l.s8.bf16 %v1952
        %v2581 = vunpack.c.h.s8.bf16 %v1951
        %v2582 = vunpack.c.h.s8.bf16 %v1952
        %v2583 = vunpack.c.l.s8.bf16 %v1953
        %v2584 = vunpack.c.l.s8.bf16 %v1954
        %v2585 = vunpack.c.h.s8.bf16 %v1953
        %v2586 = vunpack.c.h.s8.bf16 %v1954
        %v2587 = vunpack.c.l.s8.bf16 %v1955
        %v2588 = vunpack.c.l.s8.bf16 %v1956
        %v2589 = vunpack.c.h.s8.bf16 %v1955
        %v2590 = vunpack.c.h.s8.bf16 %v1956
        %v2591 = vunpack.c.l.s8.bf16 %v1957
        %v2592 = vunpack.c.l.s8.bf16 %v1958
        %v2593 = vunpack.c.h.s8.bf16 %v1957
        %v2594 = vunpack.c.h.s8.bf16 %v1958
        %v2595 = vunpack.c.l.s8.bf16 %v1959
        %v2596 = vunpack.c.l.s8.bf16 %v1960
        %v2597 = vunpack.c.h.s8.bf16 %v1959
        %v2598 = vunpack.c.h.s8.bf16 %v1960
        %v2599 = vunpack.c.l.s8.bf16 %v1961
        %v2600 = vunpack.c.l.s8.bf16 %v1962
        %v2601 = vunpack.c.h.s8.bf16 %v1961
        %v2602 = vunpack.c.h.s8.bf16 %v1962
        %v2603 = vunpack.c.l.s8.bf16 %v1963
        %v2604 = vunpack.c.l.s8.bf16 %v1964
        %v2605 = vunpack.c.h.s8.bf16 %v1963
        %v2606 = vunpack.c.h.s8.bf16 %v1964
        %v2607 = vunpack.c.l.s8.bf16 %v1965
        %v2608 = vunpack.c.l.s8.bf16 %v1966
        %v2609 = vunpack.c.h.s8.bf16 %v1965
        %v2610 = vunpack.c.h.s8.bf16 %v1966
        %v2611 = vunpack.c.l.s8.bf16 %v1967
        %v2612 = vunpack.c.l.s8.bf16 %v1968
        %v2613 = vunpack.c.h.s8.bf16 %v1967
        %v2614 = vunpack.c.h.s8.bf16 %v1968
        %v2615 = vunpack.c.l.s8.bf16 %v1969
        %v2616 = vunpack.c.l.s8.bf16 %v1970
        %v2617 = vunpack.c.h.s8.bf16 %v1969
        %v2618 = vunpack.c.h.s8.bf16 %v1970
        %v2619 = vunpack.c.l.s8.bf16 %v1971
        %v2620 = vunpack.c.l.s8.bf16 %v1972
        %v2621 = vunpack.c.h.s8.bf16 %v1971
        %v2622 = vunpack.c.h.s8.bf16 %v1972
        %v2623 = vunpack.c.l.s8.bf16 %v1973
        %v2624 = vunpack.c.l.s8.bf16 %v1974
        %v2625 = vunpack.c.h.s8.bf16 %v1973
        %v2626 = vunpack.c.h.s8.bf16 %v1974
        %v2627 = vunpack.c.l.s8.bf16 %v1975
        %v2628 = vunpack.c.l.s8.bf16 %v1976
        %v2629 = vunpack.c.h.s8.bf16 %v1975
        %v2630 = vunpack.c.h.s8.bf16 %v1976
        %v2631 = vunpack.c.l.s8.bf16 %v1977
        %v2632 = vunpack.c.l.s8.bf16 %v1978
        %v2633 = vunpack.c.h.s8.bf16 %v1977
        %v2634 = vunpack.c.h.s8.bf16 %v1978
        %v2635 = vunpack.c.l.s8.bf16 %v1979
        %v2636 = vunpack.c.l.s8.bf16 %v1980
        %v2637 = vunpack.c.h.s8.bf16 %v1979
        %v2638 = vunpack.c.h.s8.bf16 %v1980
        %v2639 = vunpack.c.l.s8.bf16 %v1981
        %v2640 = vunpack.c.l.s8.bf16 %v1982
        %v2641 = vunpack.c.h.s8.bf16 %v1981
        %v2642 = vunpack.c.h.s8.bf16 %v1982
        %v2643 = vunpack.c.l.s8.bf16 %v1983
        %v2644 = vunpack.c.l.s8.bf16 %v1984
        %v2645 = vunpack.c.h.s8.bf16 %v1983
        %v2646 = vunpack.c.h.s8.bf16 %v1984
        %v2647 = vunpack.c.l.s8.bf16 %v1985
        %v2648 = vunpack.c.l.s8.bf16 %v1986
        %v2649 = vunpack.c.h.s8.bf16 %v1985
        %v2650 = vunpack.c.h.s8.bf16 %v1986
        %v2651 = vunpack.c.l.s8.bf16 %v1987
        %v2652 = vunpack.c.l.s8.bf16 %v1988
        %v2653 = vunpack.c.h.s8.bf16 %v1987
        %v2654 = vunpack.c.h.s8.bf16 %v1988
        %v2655 = vunpack.c.l.s8.bf16 %v1989
        %v2656 = vunpack.c.l.s8.bf16 %v1990
        %v2657 = vunpack.c.h.s8.bf16 %v1989
        %v2658 = vunpack.c.h.s8.bf16 %v1990
        %v2659 = vunpack.c.l.s8.bf16 %v1991
        %v2660 = vunpack.c.l.s8.bf16 %v1992
        %v2661 = vunpack.c.h.s8.bf16 %v1991
        %v2662 = vunpack.c.h.s8.bf16 %v1992
        %v2663 = vunpack.c.l.s8.bf16 %v1993
        %v2664 = vunpack.c.l.s8.bf16 %v1994
        %v2665 = vunpack.c.h.s8.bf16 %v1993
        %v2666 = vunpack.c.h.s8.bf16 %v1994
        %v2667 = vunpack.c.l.s8.bf16 %v1995
        %v2668 = vunpack.c.l.s8.bf16 %v1996
        %v2669 = vunpack.c.h.s8.bf16 %v1995
        %v2670 = vunpack.c.h.s8.bf16 %v1996
        %v2671 = vunpack.c.l.s8.bf16 %v1997
        %v2672 = vunpack.c.l.s8.bf16 %v1998
        %v2673 = vunpack.c.h.s8.bf16 %v1997
        %v2674 = vunpack.c.h.s8.bf16 %v1998
        %v2675 = vunpack.c.l.s8.bf16 %v1999
        %v2676 = vunpack.c.l.s8.bf16 %v2000
        %v2677 = vunpack.c.h.s8.bf16 %v1999
        %v2678 = vunpack.c.h.s8.bf16 %v2000
        %v2679 = vunpack.c.l.s8.bf16 %v2001
        %v2680 = vunpack.c.l.s8.bf16 %v2002
        %v2681 = vunpack.c.h.s8.bf16 %v2001
        %v2682 = vunpack.c.h.s8.bf16 %v2002
        %v2683 = vunpack.c.l.s8.bf16 %v2003
        %v2684 = vunpack.c.l.s8.bf16 %v2004
        %v2685 = vunpack.c.h.s8.bf16 %v2003
        %v2686 = vunpack.c.h.s8.bf16 %v2004
        %v2687 = vunpack.c.l.s8.bf16 %v2005
        %v2688 = vunpack.c.l.s8.bf16 %v2006
        %v2689 = vunpack.c.h.s8.bf16 %v2005
        %v2690 = vunpack.c.h.s8.bf16 %v2006
        %v2691 = vunpack.c.l.s8.bf16 %v2007
        %v2692 = vunpack.c.l.s8.bf16 %v2008
        %v2693 = vunpack.c.h.s8.bf16 %v2007
        %v2694 = vunpack.c.h.s8.bf16 %v2008
        %v2695 = vunpack.c.l.s8.bf16 %v2009
        %v2696 = vunpack.c.l.s8.bf16 %v2010
        %v2697 = vunpack.c.h.s8.bf16 %v2009
        %v2698 = vunpack.c.h.s8.bf16 %v2010
        %v2699 = vunpack.c.l.s8.bf16 %v2011
        %v2700 = vunpack.c.l.s8.bf16 %v2012
        %v2701 = vunpack.c.h.s8.bf16 %v2011
        %v2702 = vunpack.c.h.s8.bf16 %v2012
        %v2703 = vunpack.c.l.s8.bf16 %v2013
        %v2704 = vunpack.c.l.s8.bf16 %v2014
        %v2705 = vunpack.c.h.s8.bf16 %v2013
        %v2706 = vunpack.c.h.s8.bf16 %v2014
        %v2707 = vunpack.c.l.s8.bf16 %v2015
        %v2708 = vunpack.c.l.s8.bf16 %v2016
        %v2709 = vunpack.c.h.s8.bf16 %v2015
        %v2710 = vunpack.c.h.s8.bf16 %v2016
        %v2711 = vunpack.c.l.s8.bf16 %v2017
        %v2712 = vunpack.c.l.s8.bf16 %v2018
        %v2713 = vunpack.c.h.s8.bf16 %v2017
        %v2714 = vunpack.c.h.s8.bf16 %v2018
        %v2715 = vunpack.c.l.s8.bf16 %v2019
        %v2716 = vunpack.c.l.s8.bf16 %v2020
        %v2717 = vunpack.c.h.s8.bf16 %v2019
        %v2718 = vunpack.c.h.s8.bf16 %v2020
        %v2719 = vunpack.c.l.s8.bf16 %v2021
        %v2720 = vunpack.c.l.s8.bf16 %v2022
        %v2721 = vunpack.c.h.s8.bf16 %v2021
        %v2722 = vunpack.c.h.s8.bf16 %v2022
        %v2723 = vunpack.c.l.s8.bf16 %v2023
        %v2724 = vunpack.c.l.s8.bf16 %v2024
        %v2725 = vunpack.c.h.s8.bf16 %v2023
        %v2726 = vunpack.c.h.s8.bf16 %v2024
        %v2727 = vunpack.c.l.s8.bf16 %v2025
        %v2728 = vunpack.c.l.s8.bf16 %v2026
        %v2729 = vunpack.c.h.s8.bf16 %v2025
        %v2730 = vunpack.c.h.s8.bf16 %v2026
        %v2731 = vunpack.c.l.s8.bf16 %v2027
        %v2732 = vunpack.c.l.s8.bf16 %v2028
        %v2733 = vunpack.c.h.s8.bf16 %v2027
        %v2734 = vunpack.c.h.s8.bf16 %v2028
        %v2735 = vunpack.c.l.s8.bf16 %v2029
        %v2736 = vunpack.c.l.s8.bf16 %v2030
        %v2737 = vunpack.c.h.s8.bf16 %v2029
        %v2738 = vunpack.c.h.s8.bf16 %v2030
        %v2739 = vunpack.c.l.s8.bf16 %v2031
        %v2740 = vunpack.c.l.s8.bf16 %v2032
        %v2741 = vunpack.c.h.s8.bf16 %v2031
        %v2742 = vunpack.c.h.s8.bf16 %v2032
        %v2743 = vunpack.c.l.s8.bf16 %v2033
        %v2744 = vunpack.c.l.s8.bf16 %v2034
        %v2745 = vunpack.c.h.s8.bf16 %v2033
        %v2746 = vunpack.c.h.s8.bf16 %v2034
        %v2747 = vunpack.c.l.s8.bf16 %v2035
        %v2748 = vunpack.c.l.s8.bf16 %v2036
        %v2749 = vunpack.c.h.s8.bf16 %v2035
        %v2750 = vunpack.c.h.s8.bf16 %v2036
        %v2751 = vunpack.c.l.s8.bf16 %v2037
        %v2752 = vunpack.c.l.s8.bf16 %v2038
        %v2753 = vunpack.c.h.s8.bf16 %v2037
        %v2754 = vunpack.c.h.s8.bf16 %v2038
        %v2755 = vunpack.c.l.s8.bf16 %v2039
        %v2756 = vunpack.c.l.s8.bf16 %v2040
        %v2757 = vunpack.c.h.s8.bf16 %v2039
        %v2758 = vunpack.c.h.s8.bf16 %v2040
        %v2759 = vunpack.c.l.s8.bf16 %v2041
        %v2760 = vunpack.c.l.s8.bf16 %v2042
        %v2761 = vunpack.c.h.s8.bf16 %v2041
        %v2762 = vunpack.c.h.s8.bf16 %v2042
        %v2763 = vunpack.c.l.s8.bf16 %v2043
        %v2764 = vunpack.c.l.s8.bf16 %v2044
        %v2765 = vunpack.c.h.s8.bf16 %v2043
        %v2766 = vunpack.c.h.s8.bf16 %v2044
        %v2767 = vunpack.c.l.s8.bf16 %v2045
        %v2768 = vunpack.c.l.s8.bf16 %v2046
        %v2769 = vunpack.c.h.s8.bf16 %v2045
        %v2770 = vunpack.c.h.s8.bf16 %v2046
        %v2771 = vunpack.c.l.s8.bf16 %v2047
        %v2772 = vunpack.c.l.s8.bf16 %v2048
        %v2773 = vunpack.c.h.s8.bf16 %v2047
        %v2774 = vunpack.c.h.s8.bf16 %v2048
        %v2775 = vunpack.c.l.s8.bf16 %v2049
        %v2776 = vunpack.c.l.s8.bf16 %v2050
        %v2777 = vunpack.c.h.s8.bf16 %v2049
        %v2778 = vunpack.c.h.s8.bf16 %v2050
        %v2779 = vunpack.c.l.s8.bf16 %v2051
        %v2780 = vunpack.c.l.s8.bf16 %v2052
        %v2781 = vunpack.c.h.s8.bf16 %v2051
        %v2782 = vunpack.c.h.s8.bf16 %v2052
        %v2783 = vunpack.c.l.s8.bf16 %v2053
        %v2784 = vunpack.c.l.s8.bf16 %v2054
        %v2785 = vunpack.c.h.s8.bf16 %v2053
        %v2786 = vunpack.c.h.s8.bf16 %v2054
        %v2787 = vunpack.c.l.s8.bf16 %v2055
        %v2788 = vunpack.c.l.s8.bf16 %v2056
        %v2789 = vunpack.c.h.s8.bf16 %v2055
        %v2790 = vunpack.c.h.s8.bf16 %v2056
        %v2791 = vunpack.c.l.s8.bf16 %v2057
        %v2792 = vunpack.c.l.s8.bf16 %v2058
        %v2793 = vunpack.c.h.s8.bf16 %v2057
        %v2794 = vunpack.c.h.s8.bf16 %v2058
        %v2795 = vunpack.c.l.s8.bf16 %v2059
        %v2796 = vunpack.c.l.s8.bf16 %v2060
        %v2797 = vunpack.c.h.s8.bf16 %v2059
        %v2798 = vunpack.c.h.s8.bf16 %v2060
        %v2799 = vunpack.c.l.s8.bf16 %v2061
        %v2800 = vunpack.c.l.s8.bf16 %v2062
        %v2801 = vunpack.c.h.s8.bf16 %v2061
        %v2802 = vunpack.c.h.s8.bf16 %v2062
        %v2803 = vunpack.c.l.s8.bf16 %v2063
        %v2804 = vunpack.c.l.s8.bf16 %v2064
        %v2805 = vunpack.c.h.s8.bf16 %v2063
        %v2806 = vunpack.c.h.s8.bf16 %v2064
        %v2807 = vunpack.c.l.s8.bf16 %v2065
        %v2808 = vunpack.c.l.s8.bf16 %v2066
        %v2809 = vunpack.c.h.s8.bf16 %v2065
        %v2810 = vunpack.c.h.s8.bf16 %v2066
        %v2811 = vunpack.c.l.s8.bf16 %v2067
        %v2812 = vunpack.c.l.s8.bf16 %v2068
        %v2813 = vunpack.c.h.s8.bf16 %v2067
        %v2814 = vunpack.c.h.s8.bf16 %v2068
        %v2815 = vunpack.c.l.s8.bf16 %v2069
        %v2816 = vunpack.c.l.s8.bf16 %v2070
        %v2817 = vunpack.c.h.s8.bf16 %v2069
        %v2818 = vunpack.c.h.s8.bf16 %v2070
        %v2819 = vunpack.c.l.s8.bf16 %v2071
        %v2820 = vunpack.c.l.s8.bf16 %v2072
        %v2821 = vunpack.c.h.s8.bf16 %v2071
        %v2822 = vunpack.c.h.s8.bf16 %v2072
        %v2823 = vunpack.c.l.s8.bf16 %v2073
        %v2824 = vunpack.c.l.s8.bf16 %v2074
        %v2825 = vunpack.c.h.s8.bf16 %v2073
        %v2826 = vunpack.c.h.s8.bf16 %v2074
        %v2827 = vunpack.c.l.s8.bf16 %v2075
        %v2828 = vunpack.c.l.s8.bf16 %v2076
        %v2829 = vunpack.c.h.s8.bf16 %v2075
        %v2830 = vunpack.c.h.s8.bf16 %v2076
        %v2831 = vunpack.c.l.s8.bf16 %v2077
        %v2832 = vunpack.c.l.s8.bf16 %v2078
        %v2833 = vunpack.c.h.s8.bf16 %v2077
        %v2834 = vunpack.c.h.s8.bf16 %v2078
        %v2835 = vunpack.c.l.s8.bf16 %v2079
        %v2836 = vunpack.c.l.s8.bf16 %v2080
        %v2837 = vunpack.c.h.s8.bf16 %v2079
        %v2838 = vunpack.c.h.s8.bf16 %v2080
        %v2839 = vunpack.c.l.s8.bf16 %v2081
        %v2840 = vunpack.c.l.s8.bf16 %v2082
        %v2841 = vunpack.c.h.s8.bf16 %v2081
        %v2842 = vunpack.c.h.s8.bf16 %v2082
        %v2843 = vunpack.c.l.s8.bf16 %v2083
        %v2844 = vunpack.c.l.s8.bf16 %v2084
        %v2845 = vunpack.c.h.s8.bf16 %v2083
        %v2846 = vunpack.c.h.s8.bf16 %v2084
        %v2847 = vunpack.c.l.s8.bf16 %v2085
        %v2848 = vunpack.c.l.s8.bf16 %v2086
        %v2849 = vunpack.c.h.s8.bf16 %v2085
        %v2850 = vunpack.c.h.s8.bf16 %v2086
        %v2851 = vunpack.c.l.s8.bf16 %v2087
        %v2852 = vunpack.c.l.s8.bf16 %v2088
        %v2853 = vunpack.c.h.s8.bf16 %v2087
        %v2854 = vunpack.c.h.s8.bf16 %v2088
        %v2855 = vunpack.c.l.s8.bf16 %v2089
        %v2856 = vunpack.c.l.s8.bf16 %v2090
        %v2857 = vunpack.c.h.s8.bf16 %v2089
        %v2858 = vunpack.c.h.s8.bf16 %v2090
        %v2859 = vunpack.c.l.s8.bf16 %v2091
        %v2860 = vunpack.c.l.s8.bf16 %v2092
        %v2861 = vunpack.c.h.s8.bf16 %v2091
        %v2862 = vunpack.c.h.s8.bf16 %v2092
        %v2863 = vunpack.c.l.s8.bf16 %v2093
        %v2864 = vunpack.c.l.s8.bf16 %v2094
        %v2865 = vunpack.c.h.s8.bf16 %v2093
        %v2866 = vunpack.c.h.s8.bf16 %v2094
        %v2867 = vunpack.c.l.s8.bf16 %v2095
        %v2868 = vunpack.c.l.s8.bf16 %v2096
        %v2869 = vunpack.c.h.s8.bf16 %v2095
        %v2870 = vunpack.c.h.s8.bf16 %v2096
        %v2871 = vunpack.c.l.s8.bf16 %v2097
        %v2872 = vunpack.c.l.s8.bf16 %v2098
        %v2873 = vunpack.c.h.s8.bf16 %v2097
        %v2874 = vunpack.c.h.s8.bf16 %v2098
        %v2875 = vunpack.c.l.s8.bf16 %v2099
        %v2876 = vunpack.c.l.s8.bf16 %v2100
        %v2877 = vunpack.c.h.s8.bf16 %v2099
        %v2878 = vunpack.c.h.s8.bf16 %v2100
        %v2879 = vunpack.c.l.s8.bf16 %v2101
        %v2880 = vunpack.c.l.s8.bf16 %v2102
        %v2881 = vunpack.c.h.s8.bf16 %v2101
        %v2882 = vunpack.c.h.s8.bf16 %v2102
        %v2883 = vunpack.c.l.s8.bf16 %v2103
        %v2884 = vunpack.c.l.s8.bf16 %v2104
        %v2885 = vunpack.c.h.s8.bf16 %v2103
        %v2886 = vunpack.c.h.s8.bf16 %v2104
        %v2887 = vunpack.c.l.s8.bf16 %v2105
        %v2888 = vunpack.c.l.s8.bf16 %v2106
        %v2889 = vunpack.c.h.s8.bf16 %v2105
        %v2890 = vunpack.c.h.s8.bf16 %v2106
        %v2891 = vunpack.c.l.s8.bf16 %v2107
        %v2892 = vunpack.c.l.s8.bf16 %v2108
        %v2893 = vunpack.c.h.s8.bf16 %v2107
        %v2894 = vunpack.c.h.s8.bf16 %v2108
        %v2895 = vunpack.c.l.s8.bf16 %v2109
        %v2896 = vunpack.c.l.s8.bf16 %v2110
        %v2897 = vunpack.c.h.s8.bf16 %v2109
        %v2898 = vunpack.c.h.s8.bf16 %v2110
        %v2899 = vunpack.c.l.s8.bf16 %v2111
        %v2900 = vunpack.c.l.s8.bf16 %v2112
        %v2901 = vunpack.c.h.s8.bf16 %v2111
        %v2902 = vunpack.c.h.s8.bf16 %v2112
        %v2903 = vunpack.c.l.s8.bf16 %v2113
        %v2904 = vunpack.c.l.s8.bf16 %v2114
        %v2905 = vunpack.c.h.s8.bf16 %v2113
        %v2906 = vunpack.c.h.s8.bf16 %v2114
        %v2907 = vunpack.c.l.s8.bf16 %v2115
        %v2908 = vunpack.c.l.s8.bf16 %v2116
        %v2909 = vunpack.c.h.s8.bf16 %v2115
        %v2910 = vunpack.c.h.s8.bf16 %v2116
        %v2911 = vunpack.c.l.s8.bf16 %v2117
        %v2912 = vunpack.c.l.s8.bf16 %v2118
        %v2913 = vunpack.c.h.s8.bf16 %v2117
        %v2914 = vunpack.c.h.s8.bf16 %v2118
        %v2915 = vunpack.c.l.s8.bf16 %v2119
        %v2916 = vunpack.c.l.s8.bf16 %v2120
        %v2917 = vunpack.c.h.s8.bf16 %v2119
        %v2918 = vunpack.c.h.s8.bf16 %v2120
        %v2919 = vunpack.c.l.s8.bf16 %v2121
        %v2920 = vunpack.c.l.s8.bf16 %v2122
        %v2921 = vunpack.c.h.s8.bf16 %v2121
        %v2922 = vunpack.c.h.s8.bf16 %v2122
        %v2923 = vunpack.c.l.s8.bf16 %v2123
        %v2924 = vunpack.c.l.s8.bf16 %v2124
        %v2925 = vunpack.c.h.s8.bf16 %v2123
        %v2926 = vunpack.c.h.s8.bf16 %v2124
        %v2927 = vunpack.c.l.s8.bf16 %v2125
        %v2928 = vunpack.c.l.s8.bf16 %v2126
        %v2929 = vunpack.c.h.s8.bf16 %v2125
        %v2930 = vunpack.c.h.s8.bf16 %v2126
        %v2931 = vunpack.c.l.s8.bf16 %v2127
        %v2932 = vunpack.c.l.s8.bf16 %v2128
        %v2933 = vunpack.c.h.s8.bf16 %v2127
        %v2934 = vunpack.c.h.s8.bf16 %v2128
        %v2935 = vunpack.c.l.s8.bf16 %v2129
        %v2936 = vunpack.c.l.s8.bf16 %v2130
        %v2937 = vunpack.c.h.s8.bf16 %v2129
        %v2938 = vunpack.c.h.s8.bf16 %v2130
        %v2939 = vunpack.c.l.s8.bf16 %v2131
        %v2940 = vunpack.c.l.s8.bf16 %v2132
        %v2941 = vunpack.c.h.s8.bf16 %v2131
        %v2942 = vunpack.c.h.s8.bf16 %v2132
        %v2943 = vunpack.c.l.s8.bf16 %v2133
        %v2944 = vunpack.c.l.s8.bf16 %v2134
        %v2945 = vunpack.c.h.s8.bf16 %v2133
        %v2946 = vunpack.c.h.s8.bf16 %v2134
        %v2947 = vunpack.c.l.s8.bf16 %v2135
        %v2948 = vunpack.c.l.s8.bf16 %v2136
        %v2949 = vunpack.c.h.s8.bf16 %v2135
        %v2950 = vunpack.c.h.s8.bf16 %v2136
        %v2951 = vunpack.c.l.s8.bf16 %v2137
        %v2952 = vunpack.c.l.s8.bf16 %v2138
        %v2953 = vunpack.c.h.s8.bf16 %v2137
        %v2954 = vunpack.c.h.s8.bf16 %v2138
        %v2955 = vunpack.c.l.s8.bf16 %v2139
        %v2956 = vunpack.c.l.s8.bf16 %v2140
        %v2957 = vunpack.c.h.s8.bf16 %v2139
        %v2958 = vunpack.c.h.s8.bf16 %v2140
        %v2959 = vunpack.c.l.s8.bf16 %v2141
        %v2960 = vunpack.c.l.s8.bf16 %v2142
        %v2961 = vunpack.c.h.s8.bf16 %v2141
        %v2962 = vunpack.c.h.s8.bf16 %v2142
        %v2963 = vunpack.c.l.s8.bf16 %v2143
        %v2964 = vunpack.c.l.s8.bf16 %v2144
        %v2965 = vunpack.c.h.s8.bf16 %v2143
        %v2966 = vunpack.c.h.s8.bf16 %v2144
        %v2967 = vunpack.c.l.s8.bf16 %v2145
        %v2968 = vunpack.c.l.s8.bf16 %v2146
        %v2969 = vunpack.c.h.s8.bf16 %v2145
        %v2970 = vunpack.c.h.s8.bf16 %v2146
        %v2971 = vunpack.c.l.s8.bf16 %v2147
        %v2972 = vunpack.c.l.s8.bf16 %v2148
        %v2973 = vunpack.c.h.s8.bf16 %v2147
        %v2974 = vunpack.c.h.s8.bf16 %v2148
        %v2975 = vunpack.c.l.s8.bf16 %v2149
        %v2976 = vunpack.c.l.s8.bf16 %v2150
        %v2977 = vunpack.c.h.s8.bf16 %v2149
        %v2978 = vunpack.c.h.s8.bf16 %v2150
        %v2979 = vunpack.c.l.s8.bf16 %v2151
        %v2980 = vunpack.c.l.s8.bf16 %v2152
        %v2981 = vunpack.c.h.s8.bf16 %v2151
        %v2982 = vunpack.c.h.s8.bf16 %v2152
        %v2983 = vunpack.c.l.s8.bf16 %v2153
        %v2984 = vunpack.c.l.s8.bf16 %v2154
        %v2985 = vunpack.c.h.s8.bf16 %v2153
        %v2986 = vunpack.c.h.s8.bf16 %v2154
        %v2987 = vunpack.c.l.s8.bf16 %v2155
        %v2988 = vunpack.c.l.s8.bf16 %v2156
        %v2989 = vunpack.c.h.s8.bf16 %v2155
        %v2990 = vunpack.c.h.s8.bf16 %v2156
        %v2991 = vunpack.c.l.s8.bf16 %v2157
        %v2992 = vunpack.c.l.s8.bf16 %v2158
        %v2993 = vunpack.c.h.s8.bf16 %v2157
        %v2994 = vunpack.c.h.s8.bf16 %v2158
        %v2995 = vunpack.c.l.s8.bf16 %v2159
        %v2996 = vunpack.c.l.s8.bf16 %v2160
        %v2997 = vunpack.c.h.s8.bf16 %v2159
        %v2998 = vunpack.c.h.s8.bf16 %v2160
        %v2999 = vunpack.c.l.s8.bf16 %v2161
        %v3000 = vunpack.c.l.s8.bf16 %v2162
        %v3001 = vunpack.c.h.s8.bf16 %v2161
        %v3002 = vunpack.c.h.s8.bf16 %v2162
        %v3003 = vunpack.c.l.s8.bf16 %v2163
        %v3004 = vunpack.c.l.s8.bf16 %v2164
        %v3005 = vunpack.c.h.s8.bf16 %v2163
        %v3006 = vunpack.c.h.s8.bf16 %v2164
        %v3007 = vunpack.c.l.s8.bf16 %v2165
        %v3008 = vunpack.c.l.s8.bf16 %v2166
        %v3009 = vunpack.c.h.s8.bf16 %v2165
        %v3010 = vunpack.c.h.s8.bf16 %v2166
        %v3011 = vunpack.c.l.s8.bf16 %v2167
        %v3012 = vunpack.c.l.s8.bf16 %v2168
        %v3013 = vunpack.c.h.s8.bf16 %v2167
        %v3014 = vunpack.c.h.s8.bf16 %v2168
        %v3015 = vunpack.c.l.s8.bf16 %v2169
        %v3016 = vunpack.c.l.s8.bf16 %v2170
        %v3017 = vunpack.c.h.s8.bf16 %v2169
        %v3018 = vunpack.c.h.s8.bf16 %v2170
        %v3019 = vunpack.c.l.s8.bf16 %v2171
        %v3020 = vunpack.c.l.s8.bf16 %v2172
        %v3021 = vunpack.c.h.s8.bf16 %v2171
        %v3022 = vunpack.c.h.s8.bf16 %v2172
        %v3023 = vunpack.c.l.s8.bf16 %v2173
        %v3024 = vunpack.c.l.s8.bf16 %v2174
        %v3025 = vunpack.c.h.s8.bf16 %v2173
        %v3026 = vunpack.c.h.s8.bf16 %v2174
        %v3027 = vunpack.c.l.s8.bf16 %v2175
        %v3028 = vunpack.c.l.s8.bf16 %v2176
        %v3029 = vunpack.c.h.s8.bf16 %v2175
        %v3030 = vunpack.c.h.s8.bf16 %v2176
        %v3031 = vunpack.c.l.s8.bf16 %v2177
        %v3032 = vunpack.c.l.s8.bf16 %v2178
        %v3033 = vunpack.c.h.s8.bf16 %v2177
        %v3034 = vunpack.c.h.s8.bf16 %v2178
        %v3035 = vunpack.c.l.s8.bf16 %v2179
        %v3036 = vunpack.c.l.s8.bf16 %v2180
        %v3037 = vunpack.c.h.s8.bf16 %v2179
        %v3038 = vunpack.c.h.s8.bf16 %v2180
        %v3039 = vunpack.c.l.s8.bf16 %v2181
        %v3040 = vunpack.c.l.s8.bf16 %v2182
        %v3041 = vunpack.c.h.s8.bf16 %v2181
        %v3042 = vunpack.c.h.s8.bf16 %v2182
        %v3043 = vunpack.c.l.s8.bf16 %v2183
        %v3044 = vunpack.c.l.s8.bf16 %v2184
        %v3045 = vunpack.c.h.s8.bf16 %v2183
        %v3046 = vunpack.c.h.s8.bf16 %v2184
        %v3047 = vunpack.c.l.s8.bf16 %v2185
        %v3048 = vunpack.c.l.s8.bf16 %v2186
        %v3049 = vunpack.c.h.s8.bf16 %v2185
        %v3050 = vunpack.c.h.s8.bf16 %v2186
        %v3051 = vunpack.c.l.s8.bf16 %v2187
        %v3052 = vunpack.c.l.s8.bf16 %v2188
        %v3053 = vunpack.c.h.s8.bf16 %v2187
        %v3054 = vunpack.c.h.s8.bf16 %v2188
        %v3055 = vunpack.c.l.s8.bf16 %v2189
        %v3056 = vunpack.c.l.s8.bf16 %v2190
        %v3057 = vunpack.c.h.s8.bf16 %v2189
        %v3058 = vunpack.c.h.s8.bf16 %v2190
        %v3059 = vunpack.c.l.s8.bf16 %v2191
        %v3060 = vunpack.c.l.s8.bf16 %v2192
        %v3061 = vunpack.c.h.s8.bf16 %v2191
        %v3062 = vunpack.c.h.s8.bf16 %v2192
        %v3063 = vunpack.c.l.s8.bf16 %v2193
        %v3064 = vunpack.c.l.s8.bf16 %v2194
        %v3065 = vunpack.c.h.s8.bf16 %v2193
        %v3066 = vunpack.c.h.s8.bf16 %v2194
        %v3067 = vunpack.c.l.s8.bf16 %v2195
        %v3068 = vunpack.c.l.s8.bf16 %v2196
        %v3069 = vunpack.c.h.s8.bf16 %v2195
        %v3070 = vunpack.c.h.s8.bf16 %v2196
        %v3071 = vunpack.c.l.s8.bf16 %v2197
        %v3072 = vunpack.c.l.s8.bf16 %v2198
        %v3073 = vunpack.c.h.s8.bf16 %v2197
        %v3074 = vunpack.c.h.s8.bf16 %v2198
        %v3075 = vunpack.c.l.s8.bf16 %v2199
        %v3076 = vunpack.c.l.s8.bf16 %v2200
        %v3077 = vunpack.c.h.s8.bf16 %v2199
        %v3078 = vunpack.c.h.s8.bf16 %v2200
        %v3079 = vunpack.c.l.s8.bf16 %v2201
        %v3080 = vunpack.c.l.s8.bf16 %v2202
        %v3081 = vunpack.c.h.s8.bf16 %v2201
        %v3082 = vunpack.c.h.s8.bf16 %v2202
        %v3083 = vunpack.c.l.s8.bf16 %v2203
        %v3084 = vunpack.c.l.s8.bf16 %v2204
        %v3085 = vunpack.c.h.s8.bf16 %v2203
        %v3086 = vunpack.c.h.s8.bf16 %v2204
        %v3087 = vunpack.c.l.s8.bf16 %v2205
        %v3088 = vunpack.c.l.s8.bf16 %v2206
        %v3089 = vunpack.c.h.s8.bf16 %v2205
        %v3090 = vunpack.c.h.s8.bf16 %v2206
        %v3091 = vunpack.c.l.s8.bf16 %v2207
        %v3092 = vunpack.c.l.s8.bf16 %v2208
        %v3093 = vunpack.c.h.s8.bf16 %v2207
        %v3094 = vunpack.c.h.s8.bf16 %v2208
        %v3095 = vunpack.c.l.s8.bf16 %v2209
        %v3096 = vunpack.c.l.s8.bf16 %v2210
        %v3097 = vunpack.c.h.s8.bf16 %v2209
        %v3098 = vunpack.c.h.s8.bf16 %v2210
        %v3099 = vunpack.c.l.s8.bf16 %v2211
        %v3100 = vunpack.c.l.s8.bf16 %v2212
        %v3101 = vunpack.c.h.s8.bf16 %v2211
        %v3102 = vunpack.c.h.s8.bf16 %v2212
        %v3103 = vunpack.c.l.s8.bf16 %v2213
        %v3104 = vunpack.c.l.s8.bf16 %v2214
        %v3105 = vunpack.c.h.s8.bf16 %v2213
        %v3106 = vunpack.c.h.s8.bf16 %v2214
        %v3107 = vunpack.c.l.s8.bf16 %v2215
        %v3108 = vunpack.c.l.s8.bf16 %v2216
        %v3109 = vunpack.c.h.s8.bf16 %v2215
        %v3110 = vunpack.c.h.s8.bf16 %v2216
        %v3111 = vunpack.c.l.s8.bf16 %v2217
        %v3112 = vunpack.c.l.s8.bf16 %v2218
        %v3113 = vunpack.c.h.s8.bf16 %v2217
        %v3114 = vunpack.c.h.s8.bf16 %v2218
        %v3115 = vunpack.c.l.s8.bf16 %v2219
        %v3116 = vunpack.c.l.s8.bf16 %v2220
        %v3117 = vunpack.c.h.s8.bf16 %v2219
        %v3118 = vunpack.c.h.s8.bf16 %v2220
        %v3119 = vunpack.c.l.s8.bf16 %v2221
        %v3120 = vunpack.c.l.s8.bf16 %v2222
        %v3121 = vunpack.c.h.s8.bf16 %v2221
        %v3122 = vunpack.c.h.s8.bf16 %v2222
        %v3123 = vunpack.c.l.s8.bf16 %v2223
        %v3124 = vunpack.c.l.s8.bf16 %v2224
        %v3125 = vunpack.c.h.s8.bf16 %v2223
        %v3126 = vunpack.c.h.s8.bf16 %v2224
        %v3127 = vunpack.c.l.s8.bf16 %v2225
        %v3128 = vunpack.c.l.s8.bf16 %v2226
        %v3129 = vunpack.c.h.s8.bf16 %v2225
        %v3130 = vunpack.c.h.s8.bf16 %v2226
        %v3131 = vunpack.c.l.s8.bf16 %v2227
        %v3132 = vunpack.c.l.s8.bf16 %v2228
        %v3133 = vunpack.c.h.s8.bf16 %v2227
        %v3134 = vunpack.c.h.s8.bf16 %v2228
        %v3135 = vunpack.c.l.s8.bf16 %v2229
        %v3136 = vunpack.c.l.s8.bf16 %v2230
        %v3137 = vunpack.c.h.s8.bf16 %v2229
        %v3138 = vunpack.c.h.s8.bf16 %v2230
        %v3139 = vunpack.c.l.s8.bf16 %v2231
        %v3140 = vunpack.c.l.s8.bf16 %v2232
        %v3141 = vunpack.c.h.s8.bf16 %v2231
        %v3142 = vunpack.c.h.s8.bf16 %v2232
        %v3143 = vunpack.c.l.s8.bf16 %v2233
        %v3144 = vunpack.c.l.s8.bf16 %v2234
        %v3145 = vunpack.c.h.s8.bf16 %v2233
        %v3146 = vunpack.c.h.s8.bf16 %v2234
        %v3147 = vunpack.c.l.s8.bf16 %v2235
        %v3148 = vunpack.c.l.s8.bf16 %v2236
        %v3149 = vunpack.c.h.s8.bf16 %v2235
        %v3150 = vunpack.c.h.s8.bf16 %v2236
        %v3151 = vunpack.c.l.s8.bf16 %v2237
        %v3152 = vunpack.c.l.s8.bf16 %v2238
        %v3153 = vunpack.c.h.s8.bf16 %v2237
        %v3154 = vunpack.c.h.s8.bf16 %v2238
        %v3155 = vunpack.c.l.s8.bf16 %v2239
        %v3156 = vunpack.c.l.s8.bf16 %v2240
        %v3157 = vunpack.c.h.s8.bf16 %v2239
        %v3158 = vunpack.c.h.s8.bf16 %v2240
        %v3159 = vunpack.c.l.s8.bf16 %v2241
        %v3160 = vunpack.c.l.s8.bf16 %v2242
        %v3161 = vunpack.c.h.s8.bf16 %v2241
        %v3162 = vunpack.c.h.s8.bf16 %v2242
        %v3163 = vunpack.c.l.s8.bf16 %v2243
        %v3164 = vunpack.c.l.s8.bf16 %v2244
        %v3165 = vunpack.c.h.s8.bf16 %v2243
        %v3166 = vunpack.c.h.s8.bf16 %v2244
        %v3167 = vunpack.c.l.s8.bf16 %v2245
        %v3168 = vunpack.c.l.s8.bf16 %v2246
        %v3169 = vunpack.c.h.s8.bf16 %v2245
        %v3170 = vunpack.c.h.s8.bf16 %v2246
        %v3171 = vunpack.c.l.s8.bf16 %v2247
        %v3172 = vunpack.c.l.s8.bf16 %v2248
        %v3173 = vunpack.c.h.s8.bf16 %v2247
        %v3174 = vunpack.c.h.s8.bf16 %v2248
        %v3175 = vunpack.c.l.s8.bf16 %v2249
        %v3176 = vunpack.c.l.s8.bf16 %v2250
        %v3177 = vunpack.c.h.s8.bf16 %v2249
        %v3178 = vunpack.c.h.s8.bf16 %v2250
        %v3179 = vunpack.c.l.s8.bf16 %v2251
        %v3180 = vunpack.c.l.s8.bf16 %v2252
        %v3181 = vunpack.c.h.s8.bf16 %v2251
        %v3182 = vunpack.c.h.s8.bf16 %v2252
        %v3183 = vunpack.c.l.s8.bf16 %v2253
        %v3184 = vunpack.c.l.s8.bf16 %v2254
        %v3185 = vunpack.c.h.s8.bf16 %v2253
        %v3186 = vunpack.c.h.s8.bf16 %v2254
        %v3187 = vunpack.c.l.s8.bf16 %v2255
        %v3188 = vunpack.c.l.s8.bf16 %v2256
        %v3189 = vunpack.c.h.s8.bf16 %v2255
        %v3190 = vunpack.c.h.s8.bf16 %v2256
        %v3191 = vunpack.c.l.s8.bf16 %v2257
        %v3192 = vunpack.c.l.s8.bf16 %v2258
        %v3193 = vunpack.c.h.s8.bf16 %v2257
        %v3194 = vunpack.c.h.s8.bf16 %v2258
        %v3195 = vunpack.c.l.s8.bf16 %v2259
        %v3196 = vunpack.c.l.s8.bf16 %v2260
        %v3197 = vunpack.c.h.s8.bf16 %v2259
        %v3198 = vunpack.c.h.s8.bf16 %v2260
        %v3199 = vunpack.c.l.s8.bf16 %v2261
        %v3200 = vunpack.c.l.s8.bf16 %v2262
        %v3201 = vunpack.c.h.s8.bf16 %v2261
        %v3202 = vunpack.c.h.s8.bf16 %v2262
        %v3203 = vunpack.c.l.s8.bf16 %v2263
        %v3204 = vunpack.c.l.s8.bf16 %v2264
        %v3205 = vunpack.c.h.s8.bf16 %v2263
        %v3206 = vunpack.c.h.s8.bf16 %v2264
        %v3207 = vunpack.c.l.s8.bf16 %v2265
        %v3208 = vunpack.c.l.s8.bf16 %v2266
        %v3209 = vunpack.c.h.s8.bf16 %v2265
        %v3210 = vunpack.c.h.s8.bf16 %v2266
        %v3211 = vunpack.c.l.s8.bf16 %v2267
        %v3212 = vunpack.c.l.s8.bf16 %v2268
        %v3213 = vunpack.c.h.s8.bf16 %v2267
        %v3214 = vunpack.c.h.s8.bf16 %v2268
        %v3215 = vunpack.c.l.s8.bf16 %v2269
        %v3216 = vunpack.c.l.s8.bf16 %v2270
        %v3217 = vunpack.c.h.s8.bf16 %v2269
        %v3218 = vunpack.c.h.s8.bf16 %v2270
        %v3219 = vunpack.c.l.s8.bf16 %v2271
        %v3220 = vunpack.c.l.s8.bf16 %v2272
        %v3221 = vunpack.c.h.s8.bf16 %v2271
        %v3222 = vunpack.c.h.s8.bf16 %v2272
        %v3223 = vunpack.c.l.s8.bf16 %v2273
        %v3224 = vunpack.c.l.s8.bf16 %v2274
        %v3225 = vunpack.c.h.s8.bf16 %v2273
        %v3226 = vunpack.c.h.s8.bf16 %v2274
        %v3227 = vunpack.c.l.s8.bf16 %v2275
        %v3228 = vunpack.c.l.s8.bf16 %v2276
        %v3229 = vunpack.c.h.s8.bf16 %v2275
        %v3230 = vunpack.c.h.s8.bf16 %v2276
        %v3231 = vunpack.c.l.s8.bf16 %v2277
        %v3232 = vunpack.c.l.s8.bf16 %v2278
        %v3233 = vunpack.c.h.s8.bf16 %v2277
        %v3234 = vunpack.c.h.s8.bf16 %v2278
        %v3235 = vunpack.c.l.s8.bf16 %v2279
        %v3236 = vunpack.c.l.s8.bf16 %v2280
        %v3237 = vunpack.c.h.s8.bf16 %v2279
        %v3238 = vunpack.c.h.s8.bf16 %v2280
        %v3239 = vunpack.c.l.s8.bf16 %v2281
        %v3240 = vunpack.c.l.s8.bf16 %v2282
        %v3241 = vunpack.c.h.s8.bf16 %v2281
        %v3242 = vunpack.c.h.s8.bf16 %v2282
        %v3243 = vunpack.c.l.s8.bf16 %v2283
        %v3244 = vunpack.c.l.s8.bf16 %v2284
        %v3245 = vunpack.c.h.s8.bf16 %v2283
        %v3246 = vunpack.c.h.s8.bf16 %v2284
        %v3247 = vunpack.c.l.s8.bf16 %v2285
        %v3248 = vunpack.c.l.s8.bf16 %v2286
        %v3249 = vunpack.c.h.s8.bf16 %v2285
        %v3250 = vunpack.c.h.s8.bf16 %v2286
        %v3251 = vunpack.c.l.s8.bf16 %v2287
        %v3252 = vunpack.c.l.s8.bf16 %v2288
        %v3253 = vunpack.c.h.s8.bf16 %v2287
        %v3254 = vunpack.c.h.s8.bf16 %v2288
        %v3255 = vunpack.c.l.s8.bf16 %v2289
        %v3256 = vunpack.c.l.s8.bf16 %v2290
        %v3257 = vunpack.c.h.s8.bf16 %v2289
        %v3258 = vunpack.c.h.s8.bf16 %v2290
        %v3259 = vunpack.c.l.s8.bf16 %v2291
        %v3260 = vunpack.c.l.s8.bf16 %v2292
        %v3261 = vunpack.c.h.s8.bf16 %v2291
        %v3262 = vunpack.c.h.s8.bf16 %v2292
        %v3263 = vunpack.c.l.s8.bf16 %v2293
        %v3264 = vunpack.c.l.s8.bf16 %v2294
        %v3265 = vunpack.c.h.s8.bf16 %v2293
        %v3266 = vunpack.c.h.s8.bf16 %v2294
        %v3267 = vunpack.c.l.s8.bf16 %v2295
        %v3268 = vunpack.c.l.s8.bf16 %v2296
        %v3269 = vunpack.c.h.s8.bf16 %v2295
        %v3270 = vunpack.c.h.s8.bf16 %v2296
        %v3271 = vunpack.c.l.s8.bf16 %v2297
        %v3272 = vunpack.c.l.s8.bf16 %v2298
        %v3273 = vunpack.c.h.s8.bf16 %v2297
        %v3274 = vunpack.c.h.s8.bf16 %v2298
        %v3275 = vunpack.c.l.s8.bf16 %v2299
        %v3276 = vunpack.c.l.s8.bf16 %v2300
        %v3277 = vunpack.c.h.s8.bf16 %v2299
        %v3278 = vunpack.c.h.s8.bf16 %v2300
        %v3279 = vunpack.c.l.s8.bf16 %v2301
        %v3280 = vunpack.c.l.s8.bf16 %v2302
        %v3281 = vunpack.c.h.s8.bf16 %v2301
        %v3282 = vunpack.c.h.s8.bf16 %v2302
        %v3283 = vunpack.c.l.s8.bf16 %v2303
        %v3284 = vunpack.c.l.s8.bf16 %v2304
        %v3285 = vunpack.c.h.s8.bf16 %v2303
        %v3286 = vunpack.c.h.s8.bf16 %v2304
        %v3287 = vunpack.c.l.s8.bf16 %v2305
        %v3288 = vunpack.c.l.s8.bf16 %v2306
        %v3289 = vunpack.c.h.s8.bf16 %v2305
        %v3290 = vunpack.c.h.s8.bf16 %v2306
        %v3291 = vunpack.c.l.s8.bf16 %v2307
        %v3292 = vunpack.c.l.s8.bf16 %v2308
        %v3293 = vunpack.c.h.s8.bf16 %v2307
        %v3294 = vunpack.c.h.s8.bf16 %v2308
        %v3295 = vunpack.c.l.s8.bf16 %v2309
        %v3296 = vunpack.c.l.s8.bf16 %v2310
        %v3297 = vunpack.c.h.s8.bf16 %v2309
        %v3298 = vunpack.c.h.s8.bf16 %v2310
        %v3299 = vunpack.c.l.s8.bf16 %v2311
        %v3300 = vunpack.c.l.s8.bf16 %v2312
        %v3301 = vunpack.c.h.s8.bf16 %v2311
        %v3302 = vunpack.c.h.s8.bf16 %v2312
        %v3303 = vunpack.c.l.s8.bf16 %v2313
        %v3304 = vunpack.c.l.s8.bf16 %v2314
        %v3305 = vunpack.c.h.s8.bf16 %v2313
        %v3306 = vunpack.c.h.s8.bf16 %v2314
        %v3307 = vunpack.c.l.s8.bf16 %v2315
        %v3308 = vunpack.c.l.s8.bf16 %v2316
        %v3309 = vunpack.c.h.s8.bf16 %v2315
        %v3310 = vunpack.c.h.s8.bf16 %v2316
        %v3311 = vunpack.c.l.s8.bf16 %v2317
        %v3312 = vunpack.c.l.s8.bf16 %v2318
        %v3313 = vunpack.c.h.s8.bf16 %v2317
        %v3314 = vunpack.c.h.s8.bf16 %v2318
        %v3315 = vunpack.c.l.s8.bf16 %v2319
        %v3316 = vunpack.c.l.s8.bf16 %v2320
        %v3317 = vunpack.c.h.s8.bf16 %v2319
        %v3318 = vunpack.c.h.s8.bf16 %v2320
        %v3319 = vunpack.c.l.s8.bf16 %v2321
        %v3320 = vunpack.c.l.s8.bf16 %v2322
        %v3321 = vunpack.c.h.s8.bf16 %v2321
        %v3322 = vunpack.c.h.s8.bf16 %v2322
        %v3323 = vunpack.c.l.s8.bf16 %v2323
        %v3324 = vunpack.c.l.s8.bf16 %v2324
        %v3325 = vunpack.c.h.s8.bf16 %v2323
        %v3326 = vunpack.c.h.s8.bf16 %v2324
        %v3327 = vunpack.c.l.s8.bf16 %v2325
        %v3328 = vunpack.c.l.s8.bf16 %v2326
        %v3329 = vunpack.c.h.s8.bf16 %v2325
        %v3330 = vunpack.c.h.s8.bf16 %v2326
        %v3331 = vunpack.c.l.s8.bf16 %v2327
        %v3332 = vunpack.c.l.s8.bf16 %v2328
        %v3333 = vunpack.c.h.s8.bf16 %v2327
        %v3334 = vunpack.c.h.s8.bf16 %v2328
        %v3335 = vunpack.c.l.s8.bf16 %v2329
        %v3336 = vunpack.c.l.s8.bf16 %v2330
        %v3337 = vunpack.c.h.s8.bf16 %v2329
        %v3338 = vunpack.c.h.s8.bf16 %v2330
        %v3339 = vunpack.c.l.s8.bf16 %v2331
        %v3340 = vunpack.c.l.s8.bf16 %v2332
        %v3341 = vunpack.c.h.s8.bf16 %v2331
        %v3342 = vunpack.c.h.s8.bf16 %v2332
        %v3343 = vunpack.c.l.s8.bf16 %v2333
        %v3344 = vunpack.c.l.s8.bf16 %v2334
        %v3345 = vunpack.c.h.s8.bf16 %v2333
        %v3346 = vunpack.c.h.s8.bf16 %v2334
        %v3347 = vunpack.c.l.s8.bf16 %v2335
        %v3348 = vunpack.c.l.s8.bf16 %v2336
        %v3349 = vunpack.c.h.s8.bf16 %v2335
        %v3350 = vunpack.c.h.s8.bf16 %v2336
        %v3351 = vunpack.c.l.s8.bf16 %v2337
        %v3352 = vunpack.c.l.s8.bf16 %v2338
        %v3353 = vunpack.c.h.s8.bf16 %v2337
        %v3354 = vunpack.c.h.s8.bf16 %v2338
        %v3355 = vunpack.c.l.s8.bf16 %v2339
        %v3356 = vunpack.c.l.s8.bf16 %v2340
        %v3357 = vunpack.c.h.s8.bf16 %v2339
        %v3358 = vunpack.c.h.s8.bf16 %v2340
        %v3359 = vunpack.c.l.s8.bf16 %v2341
        %v3360 = vunpack.c.l.s8.bf16 %v2342
        %v3361 = vunpack.c.h.s8.bf16 %v2341
        %v3362 = vunpack.c.h.s8.bf16 %v2342
        %v3363 = vunpack.c.l.s8.bf16 %v2343
        %v3364 = vunpack.c.l.s8.bf16 %v2344
        %v3365 = vunpack.c.h.s8.bf16 %v2343
        %v3366 = vunpack.c.h.s8.bf16 %v2344
        %v3367 = vunpack.c.l.s8.bf16 %v2345
        %v3368 = vunpack.c.l.s8.bf16 %v2346
        %v3369 = vunpack.c.h.s8.bf16 %v2345
        %v3370 = vunpack.c.h.s8.bf16 %v2346
        %3371 = vmatprep.subr.bf16.mxu0 %v2348
        %3372 = vmatpush1.bf16.msra.mxu0 %v2347
        %3373 = vmatprep.subr.bf16.mxu0 %v2350
        %3374 = vmatpush1.bf16.msra.mxu0 %v2349
        %3375 = vmatprep.subr.bf16.mxu0 %v2352
        %3376 = vmatpush1.bf16.msra.mxu0 %v2351
        %3377 = vmatprep.subr.bf16.mxu0 %v2354
        %3378 = vmatpush1.bf16.msra.mxu0 %v2353
        %3379 = vmatprep.subr.bf16.mxu0 %v2356
        %3380 = vmatpush1.bf16.msra.mxu0 %v2355
        %3381 = vmatprep.subr.bf16.mxu0 %v2358
        %3382 = vmatpush1.bf16.msra.mxu0 %v2357
        %3383 = vmatprep.subr.bf16.mxu0 %v2360
        %3384 = vmatpush1.bf16.msra.mxu0 %v2359
        %3385 = vmatprep.subr.bf16.mxu0 %v2362
        %3386 = vmatpush1.bf16.msra.mxu0 %v2361
        %3387 = vmatprep.subr.bf16.mxu0 %v2364
        %3388 = vmatpush1.bf16.msra.mxu0 %v2363
        %3389 = vmatprep.subr.bf16.mxu0 %v2366
        %3390 = vmatpush1.bf16.msra.mxu0 %v2365
        %3391 = vmatprep.subr.bf16.mxu0 %v2368
        %3392 = vmatpush1.bf16.msra.mxu0 %v2367
        %3393 = vmatprep.subr.bf16.mxu0 %v2370
        %3394 = vmatpush1.bf16.msra.mxu0 %v2369
        %3395 = vmatprep.subr.bf16.mxu0 %v2372
        %3396 = vmatpush1.bf16.msra.mxu0 %v2371
        %3397 = vmatprep.subr.bf16.mxu0 %v2374
        %3398 = vmatpush1.bf16.msra.mxu0 %v2373
        %3399 = vmatprep.subr.bf16.mxu0 %v2376
        %3400 = vmatpush1.bf16.msra.mxu0 %v2375
        %3401 = vmatprep.subr.bf16.mxu0 %v2378
        %3402 = vmatpush1.bf16.msra.mxu0 %v2377
        %3403 = vmatprep.mubr.bf16.mxu0 %v1772
        %3404 = vmatmul.mubr.bf16.gmra.mrb[0].mxu0 %v1771
        %v3405 = vpop.f32.mrb[0].mxu0
        %v3406 = vadd.f32 0.0, %v3405
        %v3407 = vpop.f32.mrb[0].mxu0
        %v3408 = vadd.f32 0.0, %v3407
        %v3409 = vpop.f32.mrb[0].mxu0
        %v3410 = vpop.f32.mrb[0].mxu0
        %3411 = vdwg.mxu0
        %3412 = vmatprep.subr.bf16.mxu0 %v2380
        %3413 = vmatpush1.bf16.msra.mxu0 %v2379
        %3414 = vmatprep.subr.bf16.mxu0 %v2382
        %3415 = vmatpush1.bf16.msra.mxu0 %v2381
        %3416 = vmatprep.subr.bf16.mxu0 %v2384
        %3417 = vmatpush1.bf16.msra.mxu0 %v2383
        %3418 = vmatprep.subr.bf16.mxu0 %v2386
        %3419 = vmatpush1.bf16.msra.mxu0 %v2385
        %3420 = vmatprep.subr.bf16.mxu0 %v2388
        %3421 = vmatpush1.bf16.msra.mxu0 %v2387
        %3422 = vmatprep.subr.bf16.mxu0 %v2390
        %3423 = vmatpush1.bf16.msra.mxu0 %v2389
        %3424 = vmatprep.subr.bf16.mxu0 %v2392
        %3425 = vmatpush1.bf16.msra.mxu0 %v2391
        %3426 = vmatprep.subr.bf16.mxu0 %v2394
        %3427 = vmatpush1.bf16.msra.mxu0 %v2393
        %3428 = vmatprep.subr.bf16.mxu0 %v2396
        %3429 = vmatpush1.bf16.msra.mxu0 %v2395
        %3430 = vmatprep.subr.bf16.mxu0 %v2398
        %3431 = vmatpush1.bf16.msra.mxu0 %v2397
        %3432 = vmatprep.subr.bf16.mxu0 %v2400
        %3433 = vmatpush1.bf16.msra.mxu0 %v2399
        %3434 = vmatprep.subr.bf16.mxu0 %v2402
        %3435 = vmatpush1.bf16.msra.mxu0 %v2401
        %3436 = vmatprep.subr.bf16.mxu0 %v2404
        %3437 = vmatpush1.bf16.msra.mxu0 %v2403
        %3438 = vmatprep.subr.bf16.mxu0 %v2406
        %3439 = vmatpush1.bf16.msra.mxu0 %v2405
        %3440 = vmatprep.subr.bf16.mxu0 %v2408
        %3441 = vmatpush1.bf16.msra.mxu0 %v2407
        %3442 = vmatprep.subr.bf16.mxu0 %v2410
        %3443 = vmatpush1.bf16.msra.mxu0 %v2409
        %3444 = vmatprep.mubr.bf16.mxu0 %v1774
        %3445 = vmatmul.mubr.bf16.gmra.mrb[0].mxu0 %v1773
        %v3446 = vpop.f32.mrb[0].mxu0
        %v3447 = vadd.f32 %v3406, %v3446
        %v3448 = vpop.f32.mrb[0].mxu0
        %v3449 = vadd.f32 %v3408, %v3448
        %v3450 = vpop.f32.mrb[0].mxu0
        %v3451 = vpop.f32.mrb[0].mxu0
        %3452 = vdwg.mxu0
        %3453 = vmatprep.subr.bf16.mxu0 %v2412
        %3454 = vmatpush1.bf16.msra.mxu0 %v2411
        %3455 = vmatprep.subr.bf16.mxu0 %v2414
        %3456 = vmatpush1.bf16.msra.mxu0 %v2413
        %3457 = vmatprep.subr.bf16.mxu0 %v2416
        %3458 = vmatpush1.bf16.msra.mxu0 %v2415
        %3459 = vmatprep.subr.bf16.mxu0 %v2418
        %3460 = vmatpush1.bf16.msra.mxu0 %v2417
        %3461 = vmatprep.subr.bf16.mxu0 %v2420
        %3462 = vmatpush1.bf16.msra.mxu0 %v2419
        %3463 = vmatprep.subr.bf16.mxu0 %v2422
        %3464 = vmatpush1.bf16.msra.mxu0 %v2421
        %3465 = vmatprep.subr.bf16.mxu0 %v2424
        %3466 = vmatpush1.bf16.msra.mxu0 %v2423
        %3467 = vmatprep.subr.bf16.mxu0 %v2426
        %3468 = vmatpush1.bf16.msra.mxu0 %v2425
        %3469 = vmatprep.subr.bf16.mxu0 %v2428
        %3470 = vmatpush1.bf16.msra.mxu0 %v2427
        %3471 = vmatprep.subr.bf16.mxu0 %v2430
        %3472 = vmatpush1.bf16.msra.mxu0 %v2429
        %3473 = vmatprep.subr.bf16.mxu0 %v2432
        %3474 = vmatpush1.bf16.msra.mxu0 %v2431
        %3475 = vmatprep.subr.bf16.mxu0 %v2434
        %3476 = vmatpush1.bf16.msra.mxu0 %v2433
        %3477 = vmatprep.subr.bf16.mxu0 %v2436
        %3478 = vmatpush1.bf16.msra.mxu0 %v2435
        %3479 = vmatprep.subr.bf16.mxu0 %v2438
        %3480 = vmatpush1.bf16.msra.mxu0 %v2437
        %3481 = vmatprep.subr.bf16.mxu0 %v2440
        %3482 = vmatpush1.bf16.msra.mxu0 %v2439
        %3483 = vmatprep.subr.bf16.mxu0 %v2442
        %3484 = vmatpush1.bf16.msra.mxu0 %v2441
        %3485 = vmatprep.mubr.bf16.mxu0 %v1776
        %3486 = vmatmul.mubr.bf16.gmra.mrb[0].mxu0 %v1775
        %v3487 = vpop.f32.mrb[0].mxu0
        %v3488 = vadd.f32 %v3447, %v3487
        %v3489 = vpop.f32.mrb[0].mxu0
        %v3490 = vadd.f32 %v3449, %v3489
        %v3491 = vpop.f32.mrb[0].mxu0
        %v3492 = vpop.f32.mrb[0].mxu0
        %3493 = vdwg.mxu0
        %3494 = vmatprep.subr.bf16.mxu0 %v2444
        %3495 = vmatpush1.bf16.msra.mxu0 %v2443
        %3496 = vmatprep.subr.bf16.mxu0 %v2446
        %3497 = vmatpush1.bf16.msra.mxu0 %v2445
        %3498 = vmatprep.subr.bf16.mxu0 %v2448
        %3499 = vmatpush1.bf16.msra.mxu0 %v2447
        %3500 = vmatprep.subr.bf16.mxu0 %v2450
        %3501 = vmatpush1.bf16.msra.mxu0 %v2449
        %3502 = vmatprep.subr.bf16.mxu0 %v2452
        %3503 = vmatpush1.bf16.msra.mxu0 %v2451
        %3504 = vmatprep.subr.bf16.mxu0 %v2454
        %3505 = vmatpush1.bf16.msra.mxu0 %v2453
        %3506 = vmatprep.subr.bf16.mxu0 %v2456
        %3507 = vmatpush1.bf16.msra.mxu0 %v2455
        %3508 = vmatprep.subr.bf16.mxu0 %v2458
        %3509 = vmatpush1.bf16.msra.mxu0 %v2457
        %3510 = vmatprep.subr.bf16.mxu0 %v2460
        %3511 = vmatpush1.bf16.msra.mxu0 %v2459
        %3512 = vmatprep.subr.bf16.mxu0 %v2462
        %3513 = vmatpush1.bf16.msra.mxu0 %v2461
        %3514 = vmatprep.subr.bf16.mxu0 %v2464
        %3515 = vmatpush1.bf16.msra.mxu0 %v2463
        %3516 = vmatprep.subr.bf16.mxu0 %v2466
        %3517 = vmatpush1.bf16.msra.mxu0 %v2465
        %3518 = vmatprep.subr.bf16.mxu0 %v2468
        %3519 = vmatpush1.bf16.msra.mxu0 %v2467
        %3520 = vmatprep.subr.bf16.mxu0 %v2470
        %3521 = vmatpush1.bf16.msra.mxu0 %v2469
        %3522 = vmatprep.subr.bf16.mxu0 %v2472
        %3523 = vmatpush1.bf16.msra.mxu0 %v2471
        %3524 = vmatprep.subr.bf16.mxu0 %v2474
        %3525 = vmatpush1.bf16.msra.mxu0 %v2473
        %3526 = vmatprep.mubr.bf16.mxu0 %v1778
        %3527 = vmatmul.mubr.bf16.gmra.mrb[0].mxu0 %v1777
        %v3528 = vpop.f32.mrb[0].mxu0
        %v3529 = vadd.f32 %v3488, %v3528
        %v3530 = vpop.f32.mrb[0].mxu0
        %v3531 = vadd.f32 %v3490, %v3530
        %v3532 = vpop.f32.mrb[0].mxu0
        %v3533 = vpop.f32.mrb[0].mxu0
        %3534 = vdwg.mxu0
        %3535 = vmatprep.subr.bf16.mxu0 %v2476
        %3536 = vmatpush1.bf16.msra.mxu0 %v2475
        %3537 = vmatprep.subr.bf16.mxu0 %v2478
        %3538 = vmatpush1.bf16.msra.mxu0 %v2477
        %3539 = vmatprep.subr.bf16.mxu0 %v2480
        %3540 = vmatpush1.bf16.msra.mxu0 %v2479
        %3541 = vmatprep.subr.bf16.mxu0 %v2482
        %3542 = vmatpush1.bf16.msra.mxu0 %v2481
        %3543 = vmatprep.subr.bf16.mxu0 %v2484
        %3544 = vmatpush1.bf16.msra.mxu0 %v2483
        %3545 = vmatprep.subr.bf16.mxu0 %v2486
        %3546 = vmatpush1.bf16.msra.mxu0 %v2485
        %3547 = vmatprep.subr.bf16.mxu0 %v2488
        %3548 = vmatpush1.bf16.msra.mxu0 %v2487
        %3549 = vmatprep.subr.bf16.mxu0 %v2490
        %3550 = vmatpush1.bf16.msra.mxu0 %v2489
        %3551 = vmatprep.subr.bf16.mxu0 %v2492
        %3552 = vmatpush1.bf16.msra.mxu0 %v2491
        %3553 = vmatprep.subr.bf16.mxu0 %v2494
        %3554 = vmatpush1.bf16.msra.mxu0 %v2493
        %3555 = vmatprep.subr.bf16.mxu0 %v2496
        %3556 = vmatpush1.bf16.msra.mxu0 %v2495
        %3557 = vmatprep.subr.bf16.mxu0 %v2498
        %3558 = vmatpush1.bf16.msra.mxu0 %v2497
        %3559 = vmatprep.subr.bf16.mxu0 %v2500
        %3560 = vmatpush1.bf16.msra.mxu0 %v2499
        %3561 = vmatprep.subr.bf16.mxu0 %v2502
        %3562 = vmatpush1.bf16.msra.mxu0 %v2501
        %3563 = vmatprep.subr.bf16.mxu0 %v2504
        %3564 = vmatpush1.bf16.msra.mxu0 %v2503
        %3565 = vmatprep.subr.bf16.mxu0 %v2506
        %3566 = vmatpush1.bf16.msra.mxu0 %v2505
        %3567 = vmatprep.mubr.bf16.mxu0 %v1780
        %3568 = vmatmul.mubr.bf16.gmra.mrb[0].mxu0 %v1779
        %v3569 = vpop.f32.mrb[0].mxu0
        %v3570 = vadd.f32 %v3529, %v3569
        %v3571 = vpop.f32.mrb[0].mxu0
        %v3572 = vadd.f32 %v3531, %v3571
        %v3573 = vpop.f32.mrb[0].mxu0
        %v3574 = vpop.f32.mrb[0].mxu0
        %3575 = vdwg.mxu0
        %3576 = vmatprep.subr.bf16.mxu0 %v2508
        %3577 = vmatpush1.bf16.msra.mxu0 %v2507
        %3578 = vmatprep.subr.bf16.mxu0 %v2510
        %3579 = vmatpush1.bf16.msra.mxu0 %v2509
        %3580 = vmatprep.subr.bf16.mxu0 %v2512
        %3581 = vmatpush1.bf16.msra.mxu0 %v2511
        %3582 = vmatprep.subr.bf16.mxu0 %v2514
        %3583 = vmatpush1.bf16.msra.mxu0 %v2513
        %3584 = vmatprep.subr.bf16.mxu0 %v2516
        %3585 = vmatpush1.bf16.msra.mxu0 %v2515
        %3586 = vmatprep.subr.bf16.mxu0 %v2518
        %3587 = vmatpush1.bf16.msra.mxu0 %v2517
        %3588 = vmatprep.subr.bf16.mxu0 %v2520
        %3589 = vmatpush1.bf16.msra.mxu0 %v2519
        %3590 = vmatprep.subr.bf16.mxu0 %v2522
        %3591 = vmatpush1.bf16.msra.mxu0 %v2521
        %3592 = vmatprep.subr.bf16.mxu0 %v2524
        %3593 = vmatpush1.bf16.msra.mxu0 %v2523
        %3594 = vmatprep.subr.bf16.mxu0 %v2526
        %3595 = vmatpush1.bf16.msra.mxu0 %v2525
        %3596 = vmatprep.subr.bf16.mxu0 %v2528
        %3597 = vmatpush1.bf16.msra.mxu0 %v2527
        %3598 = vmatprep.subr.bf16.mxu0 %v2530
        %3599 = vmatpush1.bf16.msra.mxu0 %v2529
        %3600 = vmatprep.subr.bf16.mxu0 %v2532
        %3601 = vmatpush1.bf16.msra.mxu0 %v2531
        %3602 = vmatprep.subr.bf16.mxu0 %v2534
        %3603 = vmatpush1.bf16.msra.mxu0 %v2533
        %3604 = vmatprep.subr.bf16.mxu0 %v2536
        %3605 = vmatpush1.bf16.msra.mxu0 %v2535
        %3606 = vmatprep.subr.bf16.mxu0 %v2538
        %3607 = vmatpush1.bf16.msra.mxu0 %v2537
        %3608 = vmatprep.mubr.bf16.mxu0 %v1782
        %3609 = vmatmul.mubr.bf16.gmra.mrb[0].mxu0 %v1781
        %v3610 = vpop.f32.mrb[0].mxu0
        %v3611 = vadd.f32 %v3570, %v3610
        %v3612 = vpop.f32.mrb[0].mxu0
        %v3613 = vadd.f32 %v3572, %v3612
        %v3614 = vpop.f32.mrb[0].mxu0
        %v3615 = vpop.f32.mrb[0].mxu0
        %3616 = vdwg.mxu0
        %3617 = vmatprep.subr.bf16.mxu0 %v2540
        %3618 = vmatpush1.bf16.msra.mxu0 %v2539
        %3619 = vmatprep.subr.bf16.mxu0 %v2542
        %3620 = vmatpush1.bf16.msra.mxu0 %v2541
        %3621 = vmatprep.subr.bf16.mxu0 %v2544
        %3622 = vmatpush1.bf16.msra.mxu0 %v2543
        %3623 = vmatprep.subr.bf16.mxu0 %v2546
        %3624 = vmatpush1.bf16.msra.mxu0 %v2545
        %3625 = vmatprep.subr.bf16.mxu0 %v2548
        %3626 = vmatpush1.bf16.msra.mxu0 %v2547
        %3627 = vmatprep.subr.bf16.mxu0 %v2550
        %3628 = vmatpush1.bf16.msra.mxu0 %v2549
        %3629 = vmatprep.subr.bf16.mxu0 %v2552
        %3630 = vmatpush1.bf16.msra.mxu0 %v2551
        %3631 = vmatprep.subr.bf16.mxu0 %v2554
        %3632 = vmatpush1.bf16.msra.mxu0 %v2553
        %3633 = vmatprep.subr.bf16.mxu0 %v2556
        %3634 = vmatpush1.bf16.msra.mxu0 %v2555
        %3635 = vmatprep.subr.bf16.mxu0 %v2558
        %3636 = vmatpush1.bf16.msra.mxu0 %v2557
        %3637 = vmatprep.subr.bf16.mxu0 %v2560
        %3638 = vmatpush1.bf16.msra.mxu0 %v2559
        %3639 = vmatprep.subr.bf16.mxu0 %v2562
        %3640 = vmatpush1.bf16.msra.mxu0 %v2561
        %3641 = vmatprep.subr.bf16.mxu0 %v2564
        %3642 = vmatpush1.bf16.msra.mxu0 %v2563
        %3643 = vmatprep.subr.bf16.mxu0 %v2566
        %3644 = vmatpush1.bf16.msra.mxu0 %v2565
        %3645 = vmatprep.subr.bf16.mxu0 %v2568
        %3646 = vmatpush1.bf16.msra.mxu0 %v2567
        %3647 = vmatprep.subr.bf16.mxu0 %v2570
        %3648 = vmatpush1.bf16.msra.mxu0 %v2569
        %3649 = vmatprep.mubr.bf16.mxu0 %v1784
        %3650 = vmatmul.mubr.bf16.gmra.mrb[0].mxu0 %v1783
        %v3651 = vpop.f32.mrb[0].mxu0
        %v3652 = vadd.f32 %v3611, %v3651
        %v3653 = vpop.f32.mrb[0].mxu0
        %v3654 = vadd.f32 %v3613, %v3653
        %v3655 = vpop.f32.mrb[0].mxu0
        %v3656 = vpop.f32.mrb[0].mxu0
        %3657 = vdwg.mxu0
        %3658 = vmatprep.subr.bf16.mxu0 %v2572
        %3659 = vmatpush1.bf16.msra.mxu0 %v2571
        %3660 = vmatprep.subr.bf16.mxu0 %v2574
        %3661 = vmatpush1.bf16.msra.mxu0 %v2573
        %3662 = vmatprep.subr.bf16.mxu0 %v2576
        %3663 = vmatpush1.bf16.msra.mxu0 %v2575
        %3664 = vmatprep.subr.bf16.mxu0 %v2578
        %3665 = vmatpush1.bf16.msra.mxu0 %v2577
        %3666 = vmatprep.subr.bf16.mxu0 %v2580
        %3667 = vmatpush1.bf16.msra.mxu0 %v2579
        %3668 = vmatprep.subr.bf16.mxu0 %v2582
        %3669 = vmatpush1.bf16.msra.mxu0 %v2581
        %3670 = vmatprep.subr.bf16.mxu0 %v2584
        %3671 = vmatpush1.bf16.msra.mxu0 %v2583
        %3672 = vmatprep.subr.bf16.mxu0 %v2586
        %3673 = vmatpush1.bf16.msra.mxu0 %v2585
        %3674 = vmatprep.subr.bf16.mxu0 %v2588
        %3675 = vmatpush1.bf16.msra.mxu0 %v2587
        %3676 = vmatprep.subr.bf16.mxu0 %v2590
        %3677 = vmatpush1.bf16.msra.mxu0 %v2589
        %3678 = vmatprep.subr.bf16.mxu0 %v2592
        %3679 = vmatpush1.bf16.msra.mxu0 %v2591
        %3680 = vmatprep.subr.bf16.mxu0 %v2594
        %3681 = vmatpush1.bf16.msra.mxu0 %v2593
        %3682 = vmatprep.subr.bf16.mxu0 %v2596
        %3683 = vmatpush1.bf16.msra.mxu0 %v2595
        %3684 = vmatprep.subr.bf16.mxu0 %v2598
        %3685 = vmatpush1.bf16.msra.mxu0 %v2597
        %3686 = vmatprep.subr.bf16.mxu0 %v2600
        %3687 = vmatpush1.bf16.msra.mxu0 %v2599
        %3688 = vmatprep.subr.bf16.mxu0 %v2602
        %3689 = vmatpush1.bf16.msra.mxu0 %v2601
        %3690 = vmatprep.mubr.bf16.mxu0 %v1786
        %3691 = vmatmul.mubr.bf16.gmra.mrb[0].mxu0 %v1785
        %v3692 = vpop.f32.mrb[0].mxu0
        %v3693 = vadd.f32 %v3652, %v3692
        %v3694 = vpop.f32.mrb[0].mxu0
        %v3695 = vadd.f32 %v3654, %v3694
        %v3696 = vpop.f32.mrb[0].mxu0
        %v3697 = vpop.f32.mrb[0].mxu0
        %3698 = vdwg.mxu0
        %3699 = vmatprep.subr.bf16.mxu0 %v2604
        %3700 = vmatpush1.bf16.msra.mxu0 %v2603
        %3701 = vmatprep.subr.bf16.mxu0 %v2606
        %3702 = vmatpush1.bf16.msra.mxu0 %v2605
        %3703 = vmatprep.subr.bf16.mxu0 %v2608
        %3704 = vmatpush1.bf16.msra.mxu0 %v2607
        %3705 = vmatprep.subr.bf16.mxu0 %v2610
        %3706 = vmatpush1.bf16.msra.mxu0 %v2609
        %3707 = vmatprep.subr.bf16.mxu0 %v2612
        %3708 = vmatpush1.bf16.msra.mxu0 %v2611
        %3709 = vmatprep.subr.bf16.mxu0 %v2614
        %3710 = vmatpush1.bf16.msra.mxu0 %v2613
        %3711 = vmatprep.subr.bf16.mxu0 %v2616
        %3712 = vmatpush1.bf16.msra.mxu0 %v2615
        %3713 = vmatprep.subr.bf16.mxu0 %v2618
        %3714 = vmatpush1.bf16.msra.mxu0 %v2617
        %3715 = vmatprep.subr.bf16.mxu0 %v2620
        %3716 = vmatpush1.bf16.msra.mxu0 %v2619
        %3717 = vmatprep.subr.bf16.mxu0 %v2622
        %3718 = vmatpush1.bf16.msra.mxu0 %v2621
        %3719 = vmatprep.subr.bf16.mxu0 %v2624
        %3720 = vmatpush1.bf16.msra.mxu0 %v2623
        %3721 = vmatprep.subr.bf16.mxu0 %v2626
        %3722 = vmatpush1.bf16.msra.mxu0 %v2625
        %3723 = vmatprep.subr.bf16.mxu0 %v2628
        %3724 = vmatpush1.bf16.msra.mxu0 %v2627
        %3725 = vmatprep.subr.bf16.mxu0 %v2630
        %3726 = vmatpush1.bf16.msra.mxu0 %v2629
        %3727 = vmatprep.subr.bf16.mxu0 %v2632
        %3728 = vmatpush1.bf16.msra.mxu0 %v2631
        %3729 = vmatprep.subr.bf16.mxu0 %v2634
        %3730 = vmatpush1.bf16.msra.mxu0 %v2633
        %3731 = vmatprep.mubr.bf16.mxu0 %v1788
        %3732 = vmatmul.mubr.bf16.gmra.mrb[0].mxu0 %v1787
        %v3733 = vpop.f32.mrb[0].mxu0
        %v3734 = vadd.f32 %v3693, %v3733
        %v3735 = vpop.f32.mrb[0].mxu0
        %v3736 = vadd.f32 %v3695, %v3735
        %v3737 = vpop.f32.mrb[0].mxu0
        %v3738 = vpop.f32.mrb[0].mxu0
        %3739 = vdwg.mxu0
        %3740 = vmatprep.subr.bf16.mxu0 %v2636
        %3741 = vmatpush1.bf16.msra.mxu0 %v2635
        %3742 = vmatprep.subr.bf16.mxu0 %v2638
        %3743 = vmatpush1.bf16.msra.mxu0 %v2637
        %3744 = vmatprep.subr.bf16.mxu0 %v2640
        %3745 = vmatpush1.bf16.msra.mxu0 %v2639
        %3746 = vmatprep.subr.bf16.mxu0 %v2642
        %3747 = vmatpush1.bf16.msra.mxu0 %v2641
        %3748 = vmatprep.subr.bf16.mxu0 %v2644
        %3749 = vmatpush1.bf16.msra.mxu0 %v2643
        %3750 = vmatprep.subr.bf16.mxu0 %v2646
        %3751 = vmatpush1.bf16.msra.mxu0 %v2645
        %3752 = vmatprep.subr.bf16.mxu0 %v2648
        %3753 = vmatpush1.bf16.msra.mxu0 %v2647
        %3754 = vmatprep.subr.bf16.mxu0 %v2650
        %3755 = vmatpush1.bf16.msra.mxu0 %v2649
        %3756 = vmatprep.subr.bf16.mxu0 %v2652
        %3757 = vmatpush1.bf16.msra.mxu0 %v2651
        %3758 = vmatprep.subr.bf16.mxu0 %v2654
        %3759 = vmatpush1.bf16.msra.mxu0 %v2653
        %3760 = vmatprep.subr.bf16.mxu0 %v2656
        %3761 = vmatpush1.bf16.msra.mxu0 %v2655
        %3762 = vmatprep.subr.bf16.mxu0 %v2658
        %3763 = vmatpush1.bf16.msra.mxu0 %v2657
        %3764 = vmatprep.subr.bf16.mxu0 %v2660
        %3765 = vmatpush1.bf16.msra.mxu0 %v2659
        %3766 = vmatprep.subr.bf16.mxu0 %v2662
        %3767 = vmatpush1.bf16.msra.mxu0 %v2661
        %3768 = vmatprep.subr.bf16.mxu0 %v2664
        %3769 = vmatpush1.bf16.msra.mxu0 %v2663
        %3770 = vmatprep.subr.bf16.mxu0 %v2666
        %3771 = vmatpush1.bf16.msra.mxu0 %v2665
        %3772 = vmatprep.mubr.bf16.mxu0 %v1790
        %3773 = vmatmul.mubr.bf16.gmra.mrb[0].mxu0 %v1789
        %v3774 = vpop.f32.mrb[0].mxu0
        %v3775 = vadd.f32 %v3734, %v3774
        %v3776 = vpop.f32.mrb[0].mxu0
        %v3777 = vadd.f32 %v3736, %v3776
        %v3778 = vpop.f32.mrb[0].mxu0
        %v3779 = vpop.f32.mrb[0].mxu0
        %3780 = vdwg.mxu0
        %3781 = vmatprep.subr.bf16.mxu0 %v2668
        %3782 = vmatpush1.bf16.msra.mxu0 %v2667
        %3783 = vmatprep.subr.bf16.mxu0 %v2670
        %3784 = vmatpush1.bf16.msra.mxu0 %v2669
        %3785 = vmatprep.subr.bf16.mxu0 %v2672
        %3786 = vmatpush1.bf16.msra.mxu0 %v2671
        %3787 = vmatprep.subr.bf16.mxu0 %v2674
        %3788 = vmatpush1.bf16.msra.mxu0 %v2673
        %3789 = vmatprep.subr.bf16.mxu0 %v2676
        %3790 = vmatpush1.bf16.msra.mxu0 %v2675
        %3791 = vmatprep.subr.bf16.mxu0 %v2678
        %3792 = vmatpush1.bf16.msra.mxu0 %v2677
        %3793 = vmatprep.subr.bf16.mxu0 %v2680
        %3794 = vmatpush1.bf16.msra.mxu0 %v2679
        %3795 = vmatprep.subr.bf16.mxu0 %v2682
        %3796 = vmatpush1.bf16.msra.mxu0 %v2681
        %3797 = vmatprep.subr.bf16.mxu0 %v2684
        %3798 = vmatpush1.bf16.msra.mxu0 %v2683
        %3799 = vmatprep.subr.bf16.mxu0 %v2686
        %3800 = vmatpush1.bf16.msra.mxu0 %v2685
        %3801 = vmatprep.subr.bf16.mxu0 %v2688
        %3802 = vmatpush1.bf16.msra.mxu0 %v2687
        %3803 = vmatprep.subr.bf16.mxu0 %v2690
        %3804 = vmatpush1.bf16.msra.mxu0 %v2689
        %3805 = vmatprep.subr.bf16.mxu0 %v2692
        %3806 = vmatpush1.bf16.msra.mxu0 %v2691
        %3807 = vmatprep.subr.bf16.mxu0 %v2694
        %3808 = vmatpush1.bf16.msra.mxu0 %v2693
        %3809 = vmatprep.subr.bf16.mxu0 %v2696
        %3810 = vmatpush1.bf16.msra.mxu0 %v2695
        %3811 = vmatprep.subr.bf16.mxu0 %v2698
        %3812 = vmatpush1.bf16.msra.mxu0 %v2697
        %3813 = vmatprep.mubr.bf16.mxu0 %v1792
        %3814 = vmatmul.mubr.bf16.gmra.mrb[0].mxu0 %v1791
        %v3815 = vpop.f32.mrb[0].mxu0
        %v3816 = vadd.f32 %v3775, %v3815
        %v3817 = vpop.f32.mrb[0].mxu0
        %v3818 = vadd.f32 %v3777, %v3817
        %v3819 = vpop.f32.mrb[0].mxu0
        %v3820 = vpop.f32.mrb[0].mxu0
        %3821 = vdwg.mxu0
        %3822 = vmatprep.subr.bf16.mxu0 %v2700
        %3823 = vmatpush1.bf16.msra.mxu0 %v2699
        %3824 = vmatprep.subr.bf16.mxu0 %v2702
        %3825 = vmatpush1.bf16.msra.mxu0 %v2701
        %3826 = vmatprep.subr.bf16.mxu0 %v2704
        %3827 = vmatpush1.bf16.msra.mxu0 %v2703
        %3828 = vmatprep.subr.bf16.mxu0 %v2706
        %3829 = vmatpush1.bf16.msra.mxu0 %v2705
        %3830 = vmatprep.subr.bf16.mxu0 %v2708
        %3831 = vmatpush1.bf16.msra.mxu0 %v2707
        %3832 = vmatprep.subr.bf16.mxu0 %v2710
        %3833 = vmatpush1.bf16.msra.mxu0 %v2709
        %3834 = vmatprep.subr.bf16.mxu0 %v2712
        %3835 = vmatpush1.bf16.msra.mxu0 %v2711
        %3836 = vmatprep.subr.bf16.mxu0 %v2714
        %3837 = vmatpush1.bf16.msra.mxu0 %v2713
        %3838 = vmatprep.subr.bf16.mxu0 %v2716
        %3839 = vmatpush1.bf16.msra.mxu0 %v2715
        %3840 = vmatprep.subr.bf16.mxu0 %v2718
        %3841 = vmatpush1.bf16.msra.mxu0 %v2717
        %3842 = vmatprep.subr.bf16.mxu0 %v2720
        %3843 = vmatpush1.bf16.msra.mxu0 %v2719
        %3844 = vmatprep.subr.bf16.mxu0 %v2722
        %3845 = vmatpush1.bf16.msra.mxu0 %v2721
        %3846 = vmatprep.subr.bf16.mxu0 %v2724
        %3847 = vmatpush1.bf16.msra.mxu0 %v2723
        %3848 = vmatprep.subr.bf16.mxu0 %v2726
        %3849 = vmatpush1.bf16.msra.mxu0 %v2725
        %3850 = vmatprep.subr.bf16.mxu0 %v2728
        %3851 = vmatpush1.bf16.msra.mxu0 %v2727
        %3852 = vmatprep.subr.bf16.mxu0 %v2730
        %3853 = vmatpush1.bf16.msra.mxu0 %v2729
        %3854 = vmatprep.mubr.bf16.mxu0 %v1794
        %3855 = vmatmul.mubr.bf16.gmra.mrb[0].mxu0 %v1793
        %v3856 = vpop.f32.mrb[0].mxu0
        %v3857 = vadd.f32 %v3816, %v3856
        %v3858 = vpop.f32.mrb[0].mxu0
        %v3859 = vadd.f32 %v3818, %v3858
        %v3860 = vpop.f32.mrb[0].mxu0
        %v3861 = vpop.f32.mrb[0].mxu0
        %3862 = vdwg.mxu0
        %3863 = vmatprep.subr.bf16.mxu0 %v2732
        %3864 = vmatpush1.bf16.msra.mxu0 %v2731
        %3865 = vmatprep.subr.bf16.mxu0 %v2734
        %3866 = vmatpush1.bf16.msra.mxu0 %v2733
        %3867 = vmatprep.subr.bf16.mxu0 %v2736
        %3868 = vmatpush1.bf16.msra.mxu0 %v2735
        %3869 = vmatprep.subr.bf16.mxu0 %v2738
        %3870 = vmatpush1.bf16.msra.mxu0 %v2737
        %3871 = vmatprep.subr.bf16.mxu0 %v2740
        %3872 = vmatpush1.bf16.msra.mxu0 %v2739
        %3873 = vmatprep.subr.bf16.mxu0 %v2742
        %3874 = vmatpush1.bf16.msra.mxu0 %v2741
        %3875 = vmatprep.subr.bf16.mxu0 %v2744
        %3876 = vmatpush1.bf16.msra.mxu0 %v2743
        %3877 = vmatprep.subr.bf16.mxu0 %v2746
        %3878 = vmatpush1.bf16.msra.mxu0 %v2745
        %3879 = vmatprep.subr.bf16.mxu0 %v2748
        %3880 = vmatpush1.bf16.msra.mxu0 %v2747
        %3881 = vmatprep.subr.bf16.mxu0 %v2750
        %3882 = vmatpush1.bf16.msra.mxu0 %v2749
        %3883 = vmatprep.subr.bf16.mxu0 %v2752
        %3884 = vmatpush1.bf16.msra.mxu0 %v2751
        %3885 = vmatprep.subr.bf16.mxu0 %v2754
        %3886 = vmatpush1.bf16.msra.mxu0 %v2753
        %3887 = vmatprep.subr.bf16.mxu0 %v2756
        %3888 = vmatpush1.bf16.msra.mxu0 %v2755
        %3889 = vmatprep.subr.bf16.mxu0 %v2758
        %3890 = vmatpush1.bf16.msra.mxu0 %v2757
        %3891 = vmatprep.subr.bf16.mxu0 %v2760
        %3892 = vmatpush1.bf16.msra.mxu0 %v2759
        %3893 = vmatprep.subr.bf16.mxu0 %v2762
        %3894 = vmatpush1.bf16.msra.mxu0 %v2761
        %3895 = vmatprep.mubr.bf16.mxu0 %v1796
        %3896 = vmatmul.mubr.bf16.gmra.mrb[0].mxu0 %v1795
        %v3897 = vpop.f32.mrb[0].mxu0
        %v3898 = vadd.f32 %v3857, %v3897
        %v3899 = vpop.f32.mrb[0].mxu0
        %v3900 = vadd.f32 %v3859, %v3899
        %v3901 = vpop.f32.mrb[0].mxu0
        %v3902 = vpop.f32.mrb[0].mxu0
        %3903 = vdwg.mxu0
        %3904 = vmatprep.subr.bf16.mxu0 %v2764
        %3905 = vmatpush1.bf16.msra.mxu0 %v2763
        %3906 = vmatprep.subr.bf16.mxu0 %v2766
        %3907 = vmatpush1.bf16.msra.mxu0 %v2765
        %3908 = vmatprep.subr.bf16.mxu0 %v2768
        %3909 = vmatpush1.bf16.msra.mxu0 %v2767
        %3910 = vmatprep.subr.bf16.mxu0 %v2770
        %3911 = vmatpush1.bf16.msra.mxu0 %v2769
        %3912 = vmatprep.subr.bf16.mxu0 %v2772
        %3913 = vmatpush1.bf16.msra.mxu0 %v2771
        %3914 = vmatprep.subr.bf16.mxu0 %v2774
        %3915 = vmatpush1.bf16.msra.mxu0 %v2773
        %3916 = vmatprep.subr.bf16.mxu0 %v2776
        %3917 = vmatpush1.bf16.msra.mxu0 %v2775
        %3918 = vmatprep.subr.bf16.mxu0 %v2778
        %3919 = vmatpush1.bf16.msra.mxu0 %v2777
        %3920 = vmatprep.subr.bf16.mxu0 %v2780
        %3921 = vmatpush1.bf16.msra.mxu0 %v2779
        %3922 = vmatprep.subr.bf16.mxu0 %v2782
        %3923 = vmatpush1.bf16.msra.mxu0 %v2781
        %3924 = vmatprep.subr.bf16.mxu0 %v2784
        %3925 = vmatpush1.bf16.msra.mxu0 %v2783
        %3926 = vmatprep.subr.bf16.mxu0 %v2786
        %3927 = vmatpush1.bf16.msra.mxu0 %v2785
        %3928 = vmatprep.subr.bf16.mxu0 %v2788
        %3929 = vmatpush1.bf16.msra.mxu0 %v2787
        %3930 = vmatprep.subr.bf16.mxu0 %v2790
        %3931 = vmatpush1.bf16.msra.mxu0 %v2789
        %3932 = vmatprep.subr.bf16.mxu0 %v2792
        %3933 = vmatpush1.bf16.msra.mxu0 %v2791
        %3934 = vmatprep.subr.bf16.mxu0 %v2794
        %3935 = vmatpush1.bf16.msra.mxu0 %v2793
        %3936 = vmatprep.mubr.bf16.mxu0 %v1798
        %3937 = vmatmul.mubr.bf16.gmra.mrb[0].mxu0 %v1797
        %v3938 = vpop.f32.mrb[0].mxu0
        %v3939 = vadd.f32 %v3898, %v3938
        %v3940 = vpop.f32.mrb[0].mxu0
        %v3941 = vadd.f32 %v3900, %v3940
        %v3942 = vpop.f32.mrb[0].mxu0
        %v3943 = vpop.f32.mrb[0].mxu0
        %3944 = vdwg.mxu0
        %3945 = vmatprep.subr.bf16.mxu0 %v2796
        %3946 = vmatpush1.bf16.msra.mxu0 %v2795
        %3947 = vmatprep.subr.bf16.mxu0 %v2798
        %3948 = vmatpush1.bf16.msra.mxu0 %v2797
        %3949 = vmatprep.subr.bf16.mxu0 %v2800
        %3950 = vmatpush1.bf16.msra.mxu0 %v2799
        %3951 = vmatprep.subr.bf16.mxu0 %v2802
        %3952 = vmatpush1.bf16.msra.mxu0 %v2801
        %3953 = vmatprep.subr.bf16.mxu0 %v2804
        %3954 = vmatpush1.bf16.msra.mxu0 %v2803
        %3955 = vmatprep.subr.bf16.mxu0 %v2806
        %3956 = vmatpush1.bf16.msra.mxu0 %v2805
        %3957 = vmatprep.subr.bf16.mxu0 %v2808
        %3958 = vmatpush1.bf16.msra.mxu0 %v2807
        %3959 = vmatprep.subr.bf16.mxu0 %v2810
        %3960 = vmatpush1.bf16.msra.mxu0 %v2809
        %3961 = vmatprep.subr.bf16.mxu0 %v2812
        %3962 = vmatpush1.bf16.msra.mxu0 %v2811
        %3963 = vmatprep.subr.bf16.mxu0 %v2814
        %3964 = vmatpush1.bf16.msra.mxu0 %v2813
        %3965 = vmatprep.subr.bf16.mxu0 %v2816
        %3966 = vmatpush1.bf16.msra.mxu0 %v2815
        %3967 = vmatprep.subr.bf16.mxu0 %v2818
        %3968 = vmatpush1.bf16.msra.mxu0 %v2817
        %3969 = vmatprep.subr.bf16.mxu0 %v2820
        %3970 = vmatpush1.bf16.msra.mxu0 %v2819
        %3971 = vmatprep.subr.bf16.mxu0 %v2822
        %3972 = vmatpush1.bf16.msra.mxu0 %v2821
        %3973 = vmatprep.subr.bf16.mxu0 %v2824
        %3974 = vmatpush1.bf16.msra.mxu0 %v2823
        %3975 = vmatprep.subr.bf16.mxu0 %v2826
        %3976 = vmatpush1.bf16.msra.mxu0 %v2825
        %3977 = vmatprep.mubr.bf16.mxu0 %v1800
        %3978 = vmatmul.mubr.bf16.gmra.mrb[0].mxu0 %v1799
        %v3979 = vpop.f32.mrb[0].mxu0
        %v3980 = vadd.f32 %v3939, %v3979
        %v3981 = vpop.f32.mrb[0].mxu0
        %v3982 = vadd.f32 %v3941, %v3981
        %v3983 = vpop.f32.mrb[0].mxu0
        %v3984 = vpop.f32.mrb[0].mxu0
        %3985 = vdwg.mxu0
        %3986 = vmatprep.subr.bf16.mxu0 %v2828
        %3987 = vmatpush1.bf16.msra.mxu0 %v2827
        %3988 = vmatprep.subr.bf16.mxu0 %v2830
        %3989 = vmatpush1.bf16.msra.mxu0 %v2829
        %3990 = vmatprep.subr.bf16.mxu0 %v2832
        %3991 = vmatpush1.bf16.msra.mxu0 %v2831
        %3992 = vmatprep.subr.bf16.mxu0 %v2834
        %3993 = vmatpush1.bf16.msra.mxu0 %v2833
        %3994 = vmatprep.subr.bf16.mxu0 %v2836
        %3995 = vmatpush1.bf16.msra.mxu0 %v2835
        %3996 = vmatprep.subr.bf16.mxu0 %v2838
        %3997 = vmatpush1.bf16.msra.mxu0 %v2837
        %3998 = vmatprep.subr.bf16.mxu0 %v2840
        %3999 = vmatpush1.bf16.msra.mxu0 %v2839
        %4000 = vmatprep.subr.bf16.mxu0 %v2842
        %4001 = vmatpush1.bf16.msra.mxu0 %v2841
        %4002 = vmatprep.subr.bf16.mxu0 %v2844
        %4003 = vmatpush1.bf16.msra.mxu0 %v2843
        %4004 = vmatprep.subr.bf16.mxu0 %v2846
        %4005 = vmatpush1.bf16.msra.mxu0 %v2845
        %4006 = vmatprep.subr.bf16.mxu0 %v2848
        %4007 = vmatpush1.bf16.msra.mxu0 %v2847
        %4008 = vmatprep.subr.bf16.mxu0 %v2850
        %4009 = vmatpush1.bf16.msra.mxu0 %v2849
        %4010 = vmatprep.subr.bf16.mxu0 %v2852
        %4011 = vmatpush1.bf16.msra.mxu0 %v2851
        %4012 = vmatprep.subr.bf16.mxu0 %v2854
        %4013 = vmatpush1.bf16.msra.mxu0 %v2853
        %4014 = vmatprep.subr.bf16.mxu0 %v2856
        %4015 = vmatpush1.bf16.msra.mxu0 %v2855
        %4016 = vmatprep.subr.bf16.mxu0 %v2858
        %4017 = vmatpush1.bf16.msra.mxu0 %v2857
        %4018 = vmatprep.mubr.bf16.mxu0 %v1802
        %4019 = vmatmul.mubr.bf16.gmra.mrb[0].mxu0 %v1801
        %v4020 = vpop.f32.mrb[0].mxu0
        %v4021 = vadd.f32 %v3980, %v4020
        %v4022 = vpop.f32.mrb[0].mxu0
        %v4023 = vadd.f32 %v3982, %v4022
        %v4024 = vpop.f32.mrb[0].mxu0
        %v4025 = vpop.f32.mrb[0].mxu0
        %4026 = vdwg.mxu0
        %4027 = vmatprep.subr.bf16.mxu0 %v2860
        %4028 = vmatpush1.bf16.msra.mxu0 %v2859
        %4029 = vmatprep.subr.bf16.mxu0 %v2862
        %4030 = vmatpush1.bf16.msra.mxu0 %v2861
        %4031 = vmatprep.subr.bf16.mxu0 %v2864
        %4032 = vmatpush1.bf16.msra.mxu0 %v2863
        %4033 = vmatprep.subr.bf16.mxu0 %v2866
        %4034 = vmatpush1.bf16.msra.mxu0 %v2865
        %4035 = vmatprep.subr.bf16.mxu0 %v2868
        %4036 = vmatpush1.bf16.msra.mxu0 %v2867
        %4037 = vmatprep.subr.bf16.mxu0 %v2870
        %4038 = vmatpush1.bf16.msra.mxu0 %v2869
        %4039 = vmatprep.subr.bf16.mxu0 %v2872
        %4040 = vmatpush1.bf16.msra.mxu0 %v2871
        %4041 = vmatprep.subr.bf16.mxu0 %v2874
        %4042 = vmatpush1.bf16.msra.mxu0 %v2873
        %4043 = vmatprep.subr.bf16.mxu0 %v2876
        %4044 = vmatpush1.bf16.msra.mxu0 %v2875
        %4045 = vmatprep.subr.bf16.mxu0 %v2878
        %4046 = vmatpush1.bf16.msra.mxu0 %v2877
        %4047 = vmatprep.subr.bf16.mxu0 %v2880
        %4048 = vmatpush1.bf16.msra.mxu0 %v2879
        %4049 = vmatprep.subr.bf16.mxu0 %v2882
        %4050 = vmatpush1.bf16.msra.mxu0 %v2881
        %4051 = vmatprep.subr.bf16.mxu0 %v2884
        %4052 = vmatpush1.bf16.msra.mxu0 %v2883
        %4053 = vmatprep.subr.bf16.mxu0 %v2886
        %4054 = vmatpush1.bf16.msra.mxu0 %v2885
        %4055 = vmatprep.subr.bf16.mxu0 %v2888
        %4056 = vmatpush1.bf16.msra.mxu0 %v2887
        %4057 = vmatprep.subr.bf16.mxu0 %v2890
        %4058 = vmatpush1.bf16.msra.mxu0 %v2889
        %4059 = vmatprep.mubr.bf16.mxu0 %v1804
        %4060 = vmatmul.mubr.bf16.gmra.mrb[0].mxu0 %v1803
        %v4061 = vpop.f32.mrb[0].mxu0
        %v4062 = vadd.f32 %v4021, %v4061
        %v4063 = vpop.f32.mrb[0].mxu0
        %v4064 = vadd.f32 %v4023, %v4063
        %v4065 = vpop.f32.mrb[0].mxu0
        %v4066 = vpop.f32.mrb[0].mxu0
        %4067 = vdwg.mxu0
        %4068 = vmatprep.subr.bf16.mxu0 %v2892
        %4069 = vmatpush1.bf16.msra.mxu0 %v2891
        %4070 = vmatprep.subr.bf16.mxu0 %v2894
        %4071 = vmatpush1.bf16.msra.mxu0 %v2893
        %4072 = vmatprep.subr.bf16.mxu0 %v2896
        %4073 = vmatpush1.bf16.msra.mxu0 %v2895
        %4074 = vmatprep.subr.bf16.mxu0 %v2898
        %4075 = vmatpush1.bf16.msra.mxu0 %v2897
        %4076 = vmatprep.subr.bf16.mxu0 %v2900
        %4077 = vmatpush1.bf16.msra.mxu0 %v2899
        %4078 = vmatprep.subr.bf16.mxu0 %v2902
        %4079 = vmatpush1.bf16.msra.mxu0 %v2901
        %4080 = vmatprep.subr.bf16.mxu0 %v2904
        %4081 = vmatpush1.bf16.msra.mxu0 %v2903
        %4082 = vmatprep.subr.bf16.mxu0 %v2906
        %4083 = vmatpush1.bf16.msra.mxu0 %v2905
        %4084 = vmatprep.subr.bf16.mxu0 %v2908
        %4085 = vmatpush1.bf16.msra.mxu0 %v2907
        %4086 = vmatprep.subr.bf16.mxu0 %v2910
        %4087 = vmatpush1.bf16.msra.mxu0 %v2909
        %4088 = vmatprep.subr.bf16.mxu0 %v2912
        %4089 = vmatpush1.bf16.msra.mxu0 %v2911
        %4090 = vmatprep.subr.bf16.mxu0 %v2914
        %4091 = vmatpush1.bf16.msra.mxu0 %v2913
        %4092 = vmatprep.subr.bf16.mxu0 %v2916
        %4093 = vmatpush1.bf16.msra.mxu0 %v2915
        %4094 = vmatprep.subr.bf16.mxu0 %v2918
        %4095 = vmatpush1.bf16.msra.mxu0 %v2917
        %4096 = vmatprep.subr.bf16.mxu0 %v2920
        %4097 = vmatpush1.bf16.msra.mxu0 %v2919
        %4098 = vmatprep.subr.bf16.mxu0 %v2922
        %4099 = vmatpush1.bf16.msra.mxu0 %v2921
        %4100 = vmatprep.mubr.bf16.mxu0 %v1806
        %4101 = vmatmul.mubr.bf16.gmra.mrb[0].mxu0 %v1805
        %v4102 = vpop.f32.mrb[0].mxu0
        %v4103 = vadd.f32 %v4062, %v4102
        %v4104 = vpop.f32.mrb[0].mxu0
        %v4105 = vadd.f32 %v4064, %v4104
        %v4106 = vpop.f32.mrb[0].mxu0
        %v4107 = vpop.f32.mrb[0].mxu0
        %4108 = vdwg.mxu0
        %4109 = vmatprep.subr.bf16.mxu0 %v2924
        %4110 = vmatpush1.bf16.msra.mxu0 %v2923
        %4111 = vmatprep.subr.bf16.mxu0 %v2926
        %4112 = vmatpush1.bf16.msra.mxu0 %v2925
        %4113 = vmatprep.subr.bf16.mxu0 %v2928
        %4114 = vmatpush1.bf16.msra.mxu0 %v2927
        %4115 = vmatprep.subr.bf16.mxu0 %v2930
        %4116 = vmatpush1.bf16.msra.mxu0 %v2929
        %4117 = vmatprep.subr.bf16.mxu0 %v2932
        %4118 = vmatpush1.bf16.msra.mxu0 %v2931
        %4119 = vmatprep.subr.bf16.mxu0 %v2934
        %4120 = vmatpush1.bf16.msra.mxu0 %v2933
        %4121 = vmatprep.subr.bf16.mxu0 %v2936
        %4122 = vmatpush1.bf16.msra.mxu0 %v2935
        %4123 = vmatprep.subr.bf16.mxu0 %v2938
        %4124 = vmatpush1.bf16.msra.mxu0 %v2937
        %4125 = vmatprep.subr.bf16.mxu0 %v2940
        %4126 = vmatpush1.bf16.msra.mxu0 %v2939
        %4127 = vmatprep.subr.bf16.mxu0 %v2942
        %4128 = vmatpush1.bf16.msra.mxu0 %v2941
        %4129 = vmatprep.subr.bf16.mxu0 %v2944
        %4130 = vmatpush1.bf16.msra.mxu0 %v2943
        %4131 = vmatprep.subr.bf16.mxu0 %v2946
        %4132 = vmatpush1.bf16.msra.mxu0 %v2945
        %4133 = vmatprep.subr.bf16.mxu0 %v2948
        %4134 = vmatpush1.bf16.msra.mxu0 %v2947
        %4135 = vmatprep.subr.bf16.mxu0 %v2950
        %4136 = vmatpush1.bf16.msra.mxu0 %v2949
        %4137 = vmatprep.subr.bf16.mxu0 %v2952
        %4138 = vmatpush1.bf16.msra.mxu0 %v2951
        %4139 = vmatprep.subr.bf16.mxu0 %v2954
        %4140 = vmatpush1.bf16.msra.mxu0 %v2953
        %4141 = vmatprep.mubr.bf16.mxu0 %v1808
        %4142 = vmatmul.mubr.bf16.gmra.mrb[0].mxu0 %v1807
        %v4143 = vpop.f32.mrb[0].mxu0
        %v4144 = vadd.f32 %v4103, %v4143
        %v4145 = vpop.f32.mrb[0].mxu0
        %v4146 = vadd.f32 %v4105, %v4145
        %v4147 = vpop.f32.mrb[0].mxu0
        %v4148 = vpop.f32.mrb[0].mxu0
        %4149 = vdwg.mxu0
        %4150 = vmatprep.subr.bf16.mxu0 %v2956
        %4151 = vmatpush1.bf16.msra.mxu0 %v2955
        %4152 = vmatprep.subr.bf16.mxu0 %v2958
        %4153 = vmatpush1.bf16.msra.mxu0 %v2957
        %4154 = vmatprep.subr.bf16.mxu0 %v2960
        %4155 = vmatpush1.bf16.msra.mxu0 %v2959
        %4156 = vmatprep.subr.bf16.mxu0 %v2962
        %4157 = vmatpush1.bf16.msra.mxu0 %v2961
        %4158 = vmatprep.subr.bf16.mxu0 %v2964
        %4159 = vmatpush1.bf16.msra.mxu0 %v2963
        %4160 = vmatprep.subr.bf16.mxu0 %v2966
        %4161 = vmatpush1.bf16.msra.mxu0 %v2965
        %4162 = vmatprep.subr.bf16.mxu0 %v2968
        %4163 = vmatpush1.bf16.msra.mxu0 %v2967
        %4164 = vmatprep.subr.bf16.mxu0 %v2970
        %4165 = vmatpush1.bf16.msra.mxu0 %v2969
        %4166 = vmatprep.subr.bf16.mxu0 %v2972
        %4167 = vmatpush1.bf16.msra.mxu0 %v2971
        %4168 = vmatprep.subr.bf16.mxu0 %v2974
        %4169 = vmatpush1.bf16.msra.mxu0 %v2973
        %4170 = vmatprep.subr.bf16.mxu0 %v2976
        %4171 = vmatpush1.bf16.msra.mxu0 %v2975
        %4172 = vmatprep.subr.bf16.mxu0 %v2978
        %4173 = vmatpush1.bf16.msra.mxu0 %v2977
        %4174 = vmatprep.subr.bf16.mxu0 %v2980
        %4175 = vmatpush1.bf16.msra.mxu0 %v2979
        %4176 = vmatprep.subr.bf16.mxu0 %v2982
        %4177 = vmatpush1.bf16.msra.mxu0 %v2981
        %4178 = vmatprep.subr.bf16.mxu0 %v2984
        %4179 = vmatpush1.bf16.msra.mxu0 %v2983
        %4180 = vmatprep.subr.bf16.mxu0 %v2986
        %4181 = vmatpush1.bf16.msra.mxu0 %v2985
        %4182 = vmatprep.mubr.bf16.mxu0 %v1810
        %4183 = vmatmul.mubr.bf16.gmra.mrb[0].mxu0 %v1809
        %v4184 = vpop.f32.mrb[0].mxu0
        %v4185 = vadd.f32 %v4144, %v4184
        %v4186 = vpop.f32.mrb[0].mxu0
        %v4187 = vadd.f32 %v4146, %v4186
        %v4188 = vpop.f32.mrb[0].mxu0
        %v4189 = vpop.f32.mrb[0].mxu0
        %4190 = vdwg.mxu0
        %4191 = vmatprep.subr.bf16.mxu0 %v2988
        %4192 = vmatpush1.bf16.msra.mxu0 %v2987
        %4193 = vmatprep.subr.bf16.mxu0 %v2990
        %4194 = vmatpush1.bf16.msra.mxu0 %v2989
        %4195 = vmatprep.subr.bf16.mxu0 %v2992
        %4196 = vmatpush1.bf16.msra.mxu0 %v2991
        %4197 = vmatprep.subr.bf16.mxu0 %v2994
        %4198 = vmatpush1.bf16.msra.mxu0 %v2993
        %4199 = vmatprep.subr.bf16.mxu0 %v2996
        %4200 = vmatpush1.bf16.msra.mxu0 %v2995
        %4201 = vmatprep.subr.bf16.mxu0 %v2998
        %4202 = vmatpush1.bf16.msra.mxu0 %v2997
        %4203 = vmatprep.subr.bf16.mxu0 %v3000
        %4204 = vmatpush1.bf16.msra.mxu0 %v2999
        %4205 = vmatprep.subr.bf16.mxu0 %v3002
        %4206 = vmatpush1.bf16.msra.mxu0 %v3001
        %4207 = vmatprep.subr.bf16.mxu0 %v3004
        %4208 = vmatpush1.bf16.msra.mxu0 %v3003
        %4209 = vmatprep.subr.bf16.mxu0 %v3006
        %4210 = vmatpush1.bf16.msra.mxu0 %v3005
        %4211 = vmatprep.subr.bf16.mxu0 %v3008
        %4212 = vmatpush1.bf16.msra.mxu0 %v3007
        %4213 = vmatprep.subr.bf16.mxu0 %v3010
        %4214 = vmatpush1.bf16.msra.mxu0 %v3009
        %4215 = vmatprep.subr.bf16.mxu0 %v3012
        %4216 = vmatpush1.bf16.msra.mxu0 %v3011
        %4217 = vmatprep.subr.bf16.mxu0 %v3014
        %4218 = vmatpush1.bf16.msra.mxu0 %v3013
        %4219 = vmatprep.subr.bf16.mxu0 %v3016
        %4220 = vmatpush1.bf16.msra.mxu0 %v3015
        %4221 = vmatprep.subr.bf16.mxu0 %v3018
        %4222 = vmatpush1.bf16.msra.mxu0 %v3017
        %4223 = vmatprep.mubr.bf16.mxu0 %v1812
        %4224 = vmatmul.mubr.bf16.gmra.mrb[0].mxu0 %v1811
        %v4225 = vpop.f32.mrb[0].mxu0
        %v4226 = vadd.f32 %v4185, %v4225
        %v4227 = vpop.f32.mrb[0].mxu0
        %v4228 = vadd.f32 %v4187, %v4227
        %v4229 = vpop.f32.mrb[0].mxu0
        %v4230 = vpop.f32.mrb[0].mxu0
        %4231 = vdwg.mxu0
        %4232 = vmatprep.subr.bf16.mxu0 %v3020
        %4233 = vmatpush1.bf16.msra.mxu0 %v3019
        %4234 = vmatprep.subr.bf16.mxu0 %v3022
        %4235 = vmatpush1.bf16.msra.mxu0 %v3021
        %4236 = vmatprep.subr.bf16.mxu0 %v3024
        %4237 = vmatpush1.bf16.msra.mxu0 %v3023
        %4238 = vmatprep.subr.bf16.mxu0 %v3026
        %4239 = vmatpush1.bf16.msra.mxu0 %v3025
        %4240 = vmatprep.subr.bf16.mxu0 %v3028
        %4241 = vmatpush1.bf16.msra.mxu0 %v3027
        %4242 = vmatprep.subr.bf16.mxu0 %v3030
        %4243 = vmatpush1.bf16.msra.mxu0 %v3029
        %4244 = vmatprep.subr.bf16.mxu0 %v3032
        %4245 = vmatpush1.bf16.msra.mxu0 %v3031
        %4246 = vmatprep.subr.bf16.mxu0 %v3034
        %4247 = vmatpush1.bf16.msra.mxu0 %v3033
        %4248 = vmatprep.subr.bf16.mxu0 %v3036
        %4249 = vmatpush1.bf16.msra.mxu0 %v3035
        %4250 = vmatprep.subr.bf16.mxu0 %v3038
        %4251 = vmatpush1.bf16.msra.mxu0 %v3037
        %4252 = vmatprep.subr.bf16.mxu0 %v3040
        %4253 = vmatpush1.bf16.msra.mxu0 %v3039
        %4254 = vmatprep.subr.bf16.mxu0 %v3042
        %4255 = vmatpush1.bf16.msra.mxu0 %v3041
        %4256 = vmatprep.subr.bf16.mxu0 %v3044
        %4257 = vmatpush1.bf16.msra.mxu0 %v3043
        %4258 = vmatprep.subr.bf16.mxu0 %v3046
        %4259 = vmatpush1.bf16.msra.mxu0 %v3045
        %4260 = vmatprep.subr.bf16.mxu0 %v3048
        %4261 = vmatpush1.bf16.msra.mxu0 %v3047
        %4262 = vmatprep.subr.bf16.mxu0 %v3050
        %4263 = vmatpush1.bf16.msra.mxu0 %v3049
        %4264 = vmatprep.mubr.bf16.mxu0 %v1814
        %4265 = vmatmul.mubr.bf16.gmra.mrb[0].mxu0 %v1813
        %v4266 = vpop.f32.mrb[0].mxu0
        %v4267 = vadd.f32 %v4226, %v4266
        %v4268 = vpop.f32.mrb[0].mxu0
        %v4269 = vadd.f32 %v4228, %v4268
        %v4270 = vpop.f32.mrb[0].mxu0
        %v4271 = vpop.f32.mrb[0].mxu0
        %4272 = vdwg.mxu0
        %4273 = vmatprep.subr.bf16.mxu0 %v3052
        %4274 = vmatpush1.bf16.msra.mxu0 %v3051
        %4275 = vmatprep.subr.bf16.mxu0 %v3054
        %4276 = vmatpush1.bf16.msra.mxu0 %v3053
        %4277 = vmatprep.subr.bf16.mxu0 %v3056
        %4278 = vmatpush1.bf16.msra.mxu0 %v3055
        %4279 = vmatprep.subr.bf16.mxu0 %v3058
        %4280 = vmatpush1.bf16.msra.mxu0 %v3057
        %4281 = vmatprep.subr.bf16.mxu0 %v3060
        %4282 = vmatpush1.bf16.msra.mxu0 %v3059
        %4283 = vmatprep.subr.bf16.mxu0 %v3062
        %4284 = vmatpush1.bf16.msra.mxu0 %v3061
        %4285 = vmatprep.subr.bf16.mxu0 %v3064
        %4286 = vmatpush1.bf16.msra.mxu0 %v3063
        %4287 = vmatprep.subr.bf16.mxu0 %v3066
        %4288 = vmatpush1.bf16.msra.mxu0 %v3065
        %4289 = vmatprep.subr.bf16.mxu0 %v3068
        %4290 = vmatpush1.bf16.msra.mxu0 %v3067
        %4291 = vmatprep.subr.bf16.mxu0 %v3070
        %4292 = vmatpush1.bf16.msra.mxu0 %v3069
        %4293 = vmatprep.subr.bf16.mxu0 %v3072
        %4294 = vmatpush1.bf16.msra.mxu0 %v3071
        %4295 = vmatprep.subr.bf16.mxu0 %v3074
        %4296 = vmatpush1.bf16.msra.mxu0 %v3073
        %4297 = vmatprep.subr.bf16.mxu0 %v3076
        %4298 = vmatpush1.bf16.msra.mxu0 %v3075
        %4299 = vmatprep.subr.bf16.mxu0 %v3078
        %4300 = vmatpush1.bf16.msra.mxu0 %v3077
        %4301 = vmatprep.subr.bf16.mxu0 %v3080
        %4302 = vmatpush1.bf16.msra.mxu0 %v3079
        %4303 = vmatprep.subr.bf16.mxu0 %v3082
        %4304 = vmatpush1.bf16.msra.mxu0 %v3081
        %4305 = vmatprep.mubr.bf16.mxu0 %v1816
        %4306 = vmatmul.mubr.bf16.gmra.mrb[0].mxu0 %v1815
        %v4307 = vpop.f32.mrb[0].mxu0
        %v4308 = vadd.f32 %v4267, %v4307
        %v4309 = vpop.f32.mrb[0].mxu0
        %v4310 = vadd.f32 %v4269, %v4309
        %v4311 = vpop.f32.mrb[0].mxu0
        %v4312 = vpop.f32.mrb[0].mxu0
        %4313 = vdwg.mxu0
        %4314 = vmatprep.subr.bf16.mxu0 %v3084
        %4315 = vmatpush1.bf16.msra.mxu0 %v3083
        %4316 = vmatprep.subr.bf16.mxu0 %v3086
        %4317 = vmatpush1.bf16.msra.mxu0 %v3085
        %4318 = vmatprep.subr.bf16.mxu0 %v3088
        %4319 = vmatpush1.bf16.msra.mxu0 %v3087
        %4320 = vmatprep.subr.bf16.mxu0 %v3090
        %4321 = vmatpush1.bf16.msra.mxu0 %v3089
        %4322 = vmatprep.subr.bf16.mxu0 %v3092
        %4323 = vmatpush1.bf16.msra.mxu0 %v3091
        %4324 = vmatprep.subr.bf16.mxu0 %v3094
        %4325 = vmatpush1.bf16.msra.mxu0 %v3093
        %4326 = vmatprep.subr.bf16.mxu0 %v3096
        %4327 = vmatpush1.bf16.msra.mxu0 %v3095
        %4328 = vmatprep.subr.bf16.mxu0 %v3098
        %4329 = vmatpush1.bf16.msra.mxu0 %v3097
        %4330 = vmatprep.subr.bf16.mxu0 %v3100
        %4331 = vmatpush1.bf16.msra.mxu0 %v3099
        %4332 = vmatprep.subr.bf16.mxu0 %v3102
        %4333 = vmatpush1.bf16.msra.mxu0 %v3101
        %4334 = vmatprep.subr.bf16.mxu0 %v3104
        %4335 = vmatpush1.bf16.msra.mxu0 %v3103
        %4336 = vmatprep.subr.bf16.mxu0 %v3106
        %4337 = vmatpush1.bf16.msra.mxu0 %v3105
        %4338 = vmatprep.subr.bf16.mxu0 %v3108
        %4339 = vmatpush1.bf16.msra.mxu0 %v3107
        %4340 = vmatprep.subr.bf16.mxu0 %v3110
        %4341 = vmatpush1.bf16.msra.mxu0 %v3109
        %4342 = vmatprep.subr.bf16.mxu0 %v3112
        %4343 = vmatpush1.bf16.msra.mxu0 %v3111
        %4344 = vmatprep.subr.bf16.mxu0 %v3114
        %4345 = vmatpush1.bf16.msra.mxu0 %v3113
        %4346 = vmatprep.mubr.bf16.mxu0 %v1818
        %4347 = vmatmul.mubr.bf16.gmra.mrb[0].mxu0 %v1817
        %v4348 = vpop.f32.mrb[0].mxu0
        %v4349 = vadd.f32 %v4308, %v4348
        %v4350 = vpop.f32.mrb[0].mxu0
        %v4351 = vadd.f32 %v4310, %v4350
        %v4352 = vpop.f32.mrb[0].mxu0
        %v4353 = vpop.f32.mrb[0].mxu0
        %4354 = vdwg.mxu0
        %4355 = vmatprep.subr.bf16.mxu0 %v3116
        %4356 = vmatpush1.bf16.msra.mxu0 %v3115
        %4357 = vmatprep.subr.bf16.mxu0 %v3118
        %4358 = vmatpush1.bf16.msra.mxu0 %v3117
        %4359 = vmatprep.subr.bf16.mxu0 %v3120
        %4360 = vmatpush1.bf16.msra.mxu0 %v3119
        %4361 = vmatprep.subr.bf16.mxu0 %v3122
        %4362 = vmatpush1.bf16.msra.mxu0 %v3121
        %4363 = vmatprep.subr.bf16.mxu0 %v3124
        %4364 = vmatpush1.bf16.msra.mxu0 %v3123
        %4365 = vmatprep.subr.bf16.mxu0 %v3126
        %4366 = vmatpush1.bf16.msra.mxu0 %v3125
        %4367 = vmatprep.subr.bf16.mxu0 %v3128
        %4368 = vmatpush1.bf16.msra.mxu0 %v3127
        %4369 = vmatprep.subr.bf16.mxu0 %v3130
        %4370 = vmatpush1.bf16.msra.mxu0 %v3129
        %4371 = vmatprep.subr.bf16.mxu0 %v3132
        %4372 = vmatpush1.bf16.msra.mxu0 %v3131
        %4373 = vmatprep.subr.bf16.mxu0 %v3134
        %4374 = vmatpush1.bf16.msra.mxu0 %v3133
        %4375 = vmatprep.subr.bf16.mxu0 %v3136
        %4376 = vmatpush1.bf16.msra.mxu0 %v3135
        %4377 = vmatprep.subr.bf16.mxu0 %v3138
        %4378 = vmatpush1.bf16.msra.mxu0 %v3137
        %4379 = vmatprep.subr.bf16.mxu0 %v3140
        %4380 = vmatpush1.bf16.msra.mxu0 %v3139
        %4381 = vmatprep.subr.bf16.mxu0 %v3142
        %4382 = vmatpush1.bf16.msra.mxu0 %v3141
        %4383 = vmatprep.subr.bf16.mxu0 %v3144
        %4384 = vmatpush1.bf16.msra.mxu0 %v3143
        %4385 = vmatprep.subr.bf16.mxu0 %v3146
        %4386 = vmatpush1.bf16.msra.mxu0 %v3145
        %4387 = vmatprep.mubr.bf16.mxu0 %v1820
        %4388 = vmatmul.mubr.bf16.gmra.mrb[0].mxu0 %v1819
        %v4389 = vpop.f32.mrb[0].mxu0
        %v4390 = vadd.f32 %v4349, %v4389
        %v4391 = vpop.f32.mrb[0].mxu0
        %v4392 = vadd.f32 %v4351, %v4391
        %v4393 = vpop.f32.mrb[0].mxu0
        %v4394 = vpop.f32.mrb[0].mxu0
        %4395 = vdwg.mxu0
        %4396 = vmatprep.subr.bf16.mxu0 %v3148
        %4397 = vmatpush1.bf16.msra.mxu0 %v3147
        %4398 = vmatprep.subr.bf16.mxu0 %v3150
        %4399 = vmatpush1.bf16.msra.mxu0 %v3149
        %4400 = vmatprep.subr.bf16.mxu0 %v3152
        %4401 = vmatpush1.bf16.msra.mxu0 %v3151
        %4402 = vmatprep.subr.bf16.mxu0 %v3154
        %4403 = vmatpush1.bf16.msra.mxu0 %v3153
        %4404 = vmatprep.subr.bf16.mxu0 %v3156
        %4405 = vmatpush1.bf16.msra.mxu0 %v3155
        %4406 = vmatprep.subr.bf16.mxu0 %v3158
        %4407 = vmatpush1.bf16.msra.mxu0 %v3157
        %4408 = vmatprep.subr.bf16.mxu0 %v3160
        %4409 = vmatpush1.bf16.msra.mxu0 %v3159
        %4410 = vmatprep.subr.bf16.mxu0 %v3162
        %4411 = vmatpush1.bf16.msra.mxu0 %v3161
        %4412 = vmatprep.subr.bf16.mxu0 %v3164
        %4413 = vmatpush1.bf16.msra.mxu0 %v3163
        %4414 = vmatprep.subr.bf16.mxu0 %v3166
        %4415 = vmatpush1.bf16.msra.mxu0 %v3165
        %4416 = vmatprep.subr.bf16.mxu0 %v3168
        %4417 = vmatpush1.bf16.msra.mxu0 %v3167
        %4418 = vmatprep.subr.bf16.mxu0 %v3170
        %4419 = vmatpush1.bf16.msra.mxu0 %v3169
        %4420 = vmatprep.subr.bf16.mxu0 %v3172
        %4421 = vmatpush1.bf16.msra.mxu0 %v3171
        %4422 = vmatprep.subr.bf16.mxu0 %v3174
        %4423 = vmatpush1.bf16.msra.mxu0 %v3173
        %4424 = vmatprep.subr.bf16.mxu0 %v3176
        %4425 = vmatpush1.bf16.msra.mxu0 %v3175
        %4426 = vmatprep.subr.bf16.mxu0 %v3178
        %4427 = vmatpush1.bf16.msra.mxu0 %v3177
        %4428 = vmatprep.mubr.bf16.mxu0 %v1822
        %4429 = vmatmul.mubr.bf16.gmra.mrb[0].mxu0 %v1821
        %v4430 = vpop.f32.mrb[0].mxu0
        %v4431 = vadd.f32 %v4390, %v4430
        %v4432 = vpop.f32.mrb[0].mxu0
        %v4433 = vadd.f32 %v4392, %v4432
        %v4434 = vpop.f32.mrb[0].mxu0
        %v4435 = vpop.f32.mrb[0].mxu0
        %4436 = vdwg.mxu0
        %4437 = vmatprep.subr.bf16.mxu0 %v3180
        %4438 = vmatpush1.bf16.msra.mxu0 %v3179
        %4439 = vmatprep.subr.bf16.mxu0 %v3182
        %4440 = vmatpush1.bf16.msra.mxu0 %v3181
        %4441 = vmatprep.subr.bf16.mxu0 %v3184
        %4442 = vmatpush1.bf16.msra.mxu0 %v3183
        %4443 = vmatprep.subr.bf16.mxu0 %v3186
        %4444 = vmatpush1.bf16.msra.mxu0 %v3185
        %4445 = vmatprep.subr.bf16.mxu0 %v3188
        %4446 = vmatpush1.bf16.msra.mxu0 %v3187
        %4447 = vmatprep.subr.bf16.mxu0 %v3190
        %4448 = vmatpush1.bf16.msra.mxu0 %v3189
        %4449 = vmatprep.subr.bf16.mxu0 %v3192
        %4450 = vmatpush1.bf16.msra.mxu0 %v3191
        %4451 = vmatprep.subr.bf16.mxu0 %v3194
        %4452 = vmatpush1.bf16.msra.mxu0 %v3193
        %4453 = vmatprep.subr.bf16.mxu0 %v3196
        %4454 = vmatpush1.bf16.msra.mxu0 %v3195
        %4455 = vmatprep.subr.bf16.mxu0 %v3198
        %4456 = vmatpush1.bf16.msra.mxu0 %v3197
        %4457 = vmatprep.subr.bf16.mxu0 %v3200
        %4458 = vmatpush1.bf16.msra.mxu0 %v3199
        %4459 = vmatprep.subr.bf16.mxu0 %v3202
        %4460 = vmatpush1.bf16.msra.mxu0 %v3201
        %4461 = vmatprep.subr.bf16.mxu0 %v3204
        %4462 = vmatpush1.bf16.msra.mxu0 %v3203
        %4463 = vmatprep.subr.bf16.mxu0 %v3206
        %4464 = vmatpush1.bf16.msra.mxu0 %v3205
        %4465 = vmatprep.subr.bf16.mxu0 %v3208
        %4466 = vmatpush1.bf16.msra.mxu0 %v3207
        %4467 = vmatprep.subr.bf16.mxu0 %v3210
        %4468 = vmatpush1.bf16.msra.mxu0 %v3209
        %4469 = vmatprep.mubr.bf16.mxu0 %v1824
        %4470 = vmatmul.mubr.bf16.gmra.mrb[0].mxu0 %v1823
        %v4471 = vpop.f32.mrb[0].mxu0
        %v4472 = vadd.f32 %v4431, %v4471
        %v4473 = vpop.f32.mrb[0].mxu0
        %v4474 = vadd.f32 %v4433, %v4473
        %v4475 = vpop.f32.mrb[0].mxu0
        %v4476 = vpop.f32.mrb[0].mxu0
        %4477 = vdwg.mxu0
        %4478 = vmatprep.subr.bf16.mxu0 %v3212
        %4479 = vmatpush1.bf16.msra.mxu0 %v3211
        %4480 = vmatprep.subr.bf16.mxu0 %v3214
        %4481 = vmatpush1.bf16.msra.mxu0 %v3213
        %4482 = vmatprep.subr.bf16.mxu0 %v3216
        %4483 = vmatpush1.bf16.msra.mxu0 %v3215
        %4484 = vmatprep.subr.bf16.mxu0 %v3218
        %4485 = vmatpush1.bf16.msra.mxu0 %v3217
        %4486 = vmatprep.subr.bf16.mxu0 %v3220
        %4487 = vmatpush1.bf16.msra.mxu0 %v3219
        %4488 = vmatprep.subr.bf16.mxu0 %v3222
        %4489 = vmatpush1.bf16.msra.mxu0 %v3221
        %4490 = vmatprep.subr.bf16.mxu0 %v3224
        %4491 = vmatpush1.bf16.msra.mxu0 %v3223
        %4492 = vmatprep.subr.bf16.mxu0 %v3226
        %4493 = vmatpush1.bf16.msra.mxu0 %v3225
        %4494 = vmatprep.subr.bf16.mxu0 %v3228
        %4495 = vmatpush1.bf16.msra.mxu0 %v3227
        %4496 = vmatprep.subr.bf16.mxu0 %v3230
        %4497 = vmatpush1.bf16.msra.mxu0 %v3229
        %4498 = vmatprep.subr.bf16.mxu0 %v3232
        %4499 = vmatpush1.bf16.msra.mxu0 %v3231
        %4500 = vmatprep.subr.bf16.mxu0 %v3234
        %4501 = vmatpush1.bf16.msra.mxu0 %v3233
        %4502 = vmatprep.subr.bf16.mxu0 %v3236
        %4503 = vmatpush1.bf16.msra.mxu0 %v3235
        %4504 = vmatprep.subr.bf16.mxu0 %v3238
        %4505 = vmatpush1.bf16.msra.mxu0 %v3237
        %4506 = vmatprep.subr.bf16.mxu0 %v3240
        %4507 = vmatpush1.bf16.msra.mxu0 %v3239
        %4508 = vmatprep.subr.bf16.mxu0 %v3242
        %4509 = vmatpush1.bf16.msra.mxu0 %v3241
        %4510 = vmatprep.mubr.bf16.mxu0 %v1826
        %4511 = vmatmul.mubr.bf16.gmra.mrb[0].mxu0 %v1825
        %v4512 = vpop.f32.mrb[0].mxu0
        %v4513 = vadd.f32 %v4472, %v4512
        %v4514 = vpop.f32.mrb[0].mxu0
        %v4515 = vadd.f32 %v4474, %v4514
        %v4516 = vpop.f32.mrb[0].mxu0
        %v4517 = vpop.f32.mrb[0].mxu0
        %4518 = vdwg.mxu0
        %4519 = vmatprep.subr.bf16.mxu0 %v3244
        %4520 = vmatpush1.bf16.msra.mxu0 %v3243
        %4521 = vmatprep.subr.bf16.mxu0 %v3246
        %4522 = vmatpush1.bf16.msra.mxu0 %v3245
        %4523 = vmatprep.subr.bf16.mxu0 %v3248
        %4524 = vmatpush1.bf16.msra.mxu0 %v3247
        %4525 = vmatprep.subr.bf16.mxu0 %v3250
        %4526 = vmatpush1.bf16.msra.mxu0 %v3249
        %4527 = vmatprep.subr.bf16.mxu0 %v3252
        %4528 = vmatpush1.bf16.msra.mxu0 %v3251
        %4529 = vmatprep.subr.bf16.mxu0 %v3254
        %4530 = vmatpush1.bf16.msra.mxu0 %v3253
        %4531 = vmatprep.subr.bf16.mxu0 %v3256
        %4532 = vmatpush1.bf16.msra.mxu0 %v3255
        %4533 = vmatprep.subr.bf16.mxu0 %v3258
        %4534 = vmatpush1.bf16.msra.mxu0 %v3257
        %4535 = vmatprep.subr.bf16.mxu0 %v3260
        %4536 = vmatpush1.bf16.msra.mxu0 %v3259
        %4537 = vmatprep.subr.bf16.mxu0 %v3262
        %4538 = vmatpush1.bf16.msra.mxu0 %v3261
        %4539 = vmatprep.subr.bf16.mxu0 %v3264
        %4540 = vmatpush1.bf16.msra.mxu0 %v3263
        %4541 = vmatprep.subr.bf16.mxu0 %v3266
        %4542 = vmatpush1.bf16.msra.mxu0 %v3265
        %4543 = vmatprep.subr.bf16.mxu0 %v3268
        %4544 = vmatpush1.bf16.msra.mxu0 %v3267
        %4545 = vmatprep.subr.bf16.mxu0 %v3270
        %4546 = vmatpush1.bf16.msra.mxu0 %v3269
        %4547 = vmatprep.subr.bf16.mxu0 %v3272
        %4548 = vmatpush1.bf16.msra.mxu0 %v3271
        %4549 = vmatprep.subr.bf16.mxu0 %v3274
        %4550 = vmatpush1.bf16.msra.mxu0 %v3273
        %4551 = vmatprep.mubr.bf16.mxu0 %v1828
        %4552 = vmatmul.mubr.bf16.gmra.mrb[0].mxu0 %v1827
        %v4553 = vpop.f32.mrb[0].mxu0
        %v4554 = vadd.f32 %v4513, %v4553
        %v4555 = vpop.f32.mrb[0].mxu0
        %v4556 = vadd.f32 %v4515, %v4555
        %v4557 = vpop.f32.mrb[0].mxu0
        %v4558 = vpop.f32.mrb[0].mxu0
        %4559 = vdwg.mxu0
        %4560 = vmatprep.subr.bf16.mxu0 %v3276
        %4561 = vmatpush1.bf16.msra.mxu0 %v3275
        %4562 = vmatprep.subr.bf16.mxu0 %v3278
        %4563 = vmatpush1.bf16.msra.mxu0 %v3277
        %4564 = vmatprep.subr.bf16.mxu0 %v3280
        %4565 = vmatpush1.bf16.msra.mxu0 %v3279
        %4566 = vmatprep.subr.bf16.mxu0 %v3282
        %4567 = vmatpush1.bf16.msra.mxu0 %v3281
        %4568 = vmatprep.subr.bf16.mxu0 %v3284
        %4569 = vmatpush1.bf16.msra.mxu0 %v3283
        %4570 = vmatprep.subr.bf16.mxu0 %v3286
        %4571 = vmatpush1.bf16.msra.mxu0 %v3285
        %4572 = vmatprep.subr.bf16.mxu0 %v3288
        %4573 = vmatpush1.bf16.msra.mxu0 %v3287
        %4574 = vmatprep.subr.bf16.mxu0 %v3290
        %4575 = vmatpush1.bf16.msra.mxu0 %v3289
        %4576 = vmatprep.subr.bf16.mxu0 %v3292
        %4577 = vmatpush1.bf16.msra.mxu0 %v3291
        %4578 = vmatprep.subr.bf16.mxu0 %v3294
        %4579 = vmatpush1.bf16.msra.mxu0 %v3293
        %4580 = vmatprep.subr.bf16.mxu0 %v3296
        %4581 = vmatpush1.bf16.msra.mxu0 %v3295
        %4582 = vmatprep.subr.bf16.mxu0 %v3298
        %4583 = vmatpush1.bf16.msra.mxu0 %v3297
        %4584 = vmatprep.subr.bf16.mxu0 %v3300
        %4585 = vmatpush1.bf16.msra.mxu0 %v3299
        %4586 = vmatprep.subr.bf16.mxu0 %v3302
        %4587 = vmatpush1.bf16.msra.mxu0 %v3301
        %4588 = vmatprep.subr.bf16.mxu0 %v3304
        %4589 = vmatpush1.bf16.msra.mxu0 %v3303
        %4590 = vmatprep.subr.bf16.mxu0 %v3306
        %4591 = vmatpush1.bf16.msra.mxu0 %v3305
        %4592 = vmatprep.mubr.bf16.mxu0 %v1830
        %4593 = vmatmul.mubr.bf16.gmra.mrb[0].mxu0 %v1829
        %v4594 = vpop.f32.mrb[0].mxu0
        %v4595 = vadd.f32 %v4554, %v4594
        %v4596 = vpop.f32.mrb[0].mxu0
        %v4597 = vadd.f32 %v4556, %v4596
        %v4598 = vpop.f32.mrb[0].mxu0
        %v4599 = vpop.f32.mrb[0].mxu0
        %4600 = vdwg.mxu0
        %4601 = vmatprep.subr.bf16.mxu0 %v3308
        %4602 = vmatpush1.bf16.msra.mxu0 %v3307
        %4603 = vmatprep.subr.bf16.mxu0 %v3310
        %4604 = vmatpush1.bf16.msra.mxu0 %v3309
        %4605 = vmatprep.subr.bf16.mxu0 %v3312
        %4606 = vmatpush1.bf16.msra.mxu0 %v3311
        %4607 = vmatprep.subr.bf16.mxu0 %v3314
        %4608 = vmatpush1.bf16.msra.mxu0 %v3313
        %4609 = vmatprep.subr.bf16.mxu0 %v3316
        %4610 = vmatpush1.bf16.msra.mxu0 %v3315
        %4611 = vmatprep.subr.bf16.mxu0 %v3318
        %4612 = vmatpush1.bf16.msra.mxu0 %v3317
        %4613 = vmatprep.subr.bf16.mxu0 %v3320
        %4614 = vmatpush1.bf16.msra.mxu0 %v3319
        %4615 = vmatprep.subr.bf16.mxu0 %v3322
        %4616 = vmatpush1.bf16.msra.mxu0 %v3321
        %4617 = vmatprep.subr.bf16.mxu0 %v3324
        %4618 = vmatpush1.bf16.msra.mxu0 %v3323
        %4619 = vmatprep.subr.bf16.mxu0 %v3326
        %4620 = vmatpush1.bf16.msra.mxu0 %v3325
        %4621 = vmatprep.subr.bf16.mxu0 %v3328
        %4622 = vmatpush1.bf16.msra.mxu0 %v3327
        %4623 = vmatprep.subr.bf16.mxu0 %v3330
        %4624 = vmatpush1.bf16.msra.mxu0 %v3329
        %4625 = vmatprep.subr.bf16.mxu0 %v3332
        %4626 = vmatpush1.bf16.msra.mxu0 %v3331
        %4627 = vmatprep.subr.bf16.mxu0 %v3334
        %4628 = vmatpush1.bf16.msra.mxu0 %v3333
        %4629 = vmatprep.subr.bf16.mxu0 %v3336
        %4630 = vmatpush1.bf16.msra.mxu0 %v3335
        %4631 = vmatprep.subr.bf16.mxu0 %v3338
        %4632 = vmatpush1.bf16.msra.mxu0 %v3337
        %4633 = vmatprep.mubr.bf16.mxu0 %v1832
        %4634 = vmatmul.mubr.bf16.gmra.mrb[0].mxu0 %v1831
        %v4635 = vpop.f32.mrb[0].mxu0
        %v4636 = vadd.f32 %v4595, %v4635
        %v4637 = vpop.f32.mrb[0].mxu0
        %v4638 = vadd.f32 %v4597, %v4637
        %v4639 = vpop.f32.mrb[0].mxu0
        %v4640 = vpop.f32.mrb[0].mxu0
        %4641 = vdwg.mxu0
        %4642 = vmatprep.subr.bf16.mxu0 %v3340
        %4643 = vmatpush1.bf16.msra.mxu0 %v3339
        %4644 = vmatprep.subr.bf16.mxu0 %v3342
        %4645 = vmatpush1.bf16.msra.mxu0 %v3341
        %4646 = vmatprep.subr.bf16.mxu0 %v3344
        %4647 = vmatpush1.bf16.msra.mxu0 %v3343
        %4648 = vmatprep.subr.bf16.mxu0 %v3346
        %4649 = vmatpush1.bf16.msra.mxu0 %v3345
        %4650 = vmatprep.subr.bf16.mxu0 %v3348
        %4651 = vmatpush1.bf16.msra.mxu0 %v3347
        %4652 = vmatprep.subr.bf16.mxu0 %v3350
        %4653 = vmatpush1.bf16.msra.mxu0 %v3349
        %4654 = vmatprep.subr.bf16.mxu0 %v3352
        %4655 = vmatpush1.bf16.msra.mxu0 %v3351
        %4656 = vmatprep.subr.bf16.mxu0 %v3354
        %4657 = vmatpush1.bf16.msra.mxu0 %v3353
        %4658 = vmatprep.subr.bf16.mxu0 %v3356
        %4659 = vmatpush1.bf16.msra.mxu0 %v3355
        %4660 = vmatprep.subr.bf16.mxu0 %v3358
        %4661 = vmatpush1.bf16.msra.mxu0 %v3357
        %4662 = vmatprep.subr.bf16.mxu0 %v3360
        %4663 = vmatpush1.bf16.msra.mxu0 %v3359
        %4664 = vmatprep.subr.bf16.mxu0 %v3362
        %4665 = vmatpush1.bf16.msra.mxu0 %v3361
        %4666 = vmatprep.subr.bf16.mxu0 %v3364
        %4667 = vmatpush1.bf16.msra.mxu0 %v3363
        %4668 = vmatprep.subr.bf16.mxu0 %v3366
        %4669 = vmatpush1.bf16.msra.mxu0 %v3365
        %4670 = vmatprep.subr.bf16.mxu0 %v3368
        %4671 = vmatpush1.bf16.msra.mxu0 %v3367
        %4672 = vmatprep.subr.bf16.mxu0 %v3370
        %4673 = vmatpush1.bf16.msra.mxu0 %v3369
        %4674 = vmatprep.mubr.bf16.mxu0 %v1834
        %4675 = vmatmul.mubr.bf16.gmra.mrb[0].mxu0 %v1833
        %v4676 = vpop.f32.mrb[0].mxu0
        %v4677 = vadd.f32 %v4636, %v4676
        %v4678 = vpop.f32.mrb[0].mxu0
        %v4679 = vadd.f32 %v4638, %v4678
        %v4680 = vpop.f32.mrb[0].mxu0
        %v4681 = vpop.f32.mrb[0].mxu0
        %4682 = vdwg.mxu0
        %v4685 = vcombine.low %v4677, %v4679
        %v4687 = vunpack.c.l.s4 1983009808
        %v4688 = vunpack.c.0.s8 %v4687
        %v4689 = vlaneseq
        %v4690 = vshrl.u32 %v4689, 7
        %v4691 = vsub.s32 %v4688, %v4690
        %v4692 = vrot.slane %v4685, %v4691
        %v4694 = vadd.f32 %v1402, %v4692
        %4695 = vst [vmem:[#allocation2] sm:$0xf] %v4694
        %p4696 = scmp.eq.s32.totalorder %s34, 2
        // Predicated region
        $region133: #{nn_model_nlp_head.1} parent=75 // pred_check
          %p4697 = pneg %p4696
        $region134: #{nn_model_nlp_head.1} parent=75 // pred_check_branch
          %4699 = sbr.rel (%p4697) target = $region136
        $region135: #{nn_model_nlp_head.1} parent=75 // pred_region
          %v4700 = vld [vmem:[#allocation2] sm:$0xf]
          %v4701 = vld [vmem:[#allocation8] sm:$0x3]
          %v4703 = vlaneseq
          %v4704 = vshrl.u32 %v4703, 7
          %v4705 = vsub.s32 0, %v4704
          %v4706 = vrot.slane %v4701, %v4705
          %v4707 = vlaneseq
          %v4708 = vshrl.u32 %v4707, 7
          %v4709 = vsub.s32 1, %v4708
          %v4710 = vrot.slane %v4701, %v4709
          %v4711 = vcombine.low %v4706, %v4710
          %v4713 = vunpack.c.l.s4 1983009808
          %v4714 = vunpack.c.0.s8 %v4713
          %v4715 = vlaneseq
          %v4716 = vshrl.u32 %v4715, 7
          %v4717 = vsub.s32 %v4714, %v4716
          %v4718 = vrot.slane %v4711, %v4717
          %v4720 = vmul.f32 %v4700, %v4718
          %v4721 = vld [vmem:[#allocation9] sm:$0x3]
          %v4723 = vlaneseq
          %v4724 = vshrl.u32 %v4723, 7
          %v4725 = vsub.s32 0, %v4724
          %v4726 = vrot.slane %v4721, %v4725
          %v4727 = vlaneseq
          %v4728 = vshrl.u32 %v4727, 7
          %v4729 = vsub.s32 1, %v4728
          %v4730 = vrot.slane %v4721, %v4729
          %v4731 = vcombine.low %v4726, %v4730
          %v4733 = vunpack.c.l.s4 1983009808
          %v4734 = vunpack.c.0.s8 %v4733
          %v4735 = vlaneseq
          %v4736 = vshrl.u32 %v4735, 7
          %v4737 = vsub.s32 %v4734, %v4736
          %v4738 = vrot.slane %v4731, %v4737
          %v4740 = vadd.f32 %v4720, %v4738
          %v4741 = vmax.f32 %v4740, 0.0
          %v4742 = vld [vmem:[#allocation11] sm:$0xf]
          %v4743 = vld [vmem:[#allocation11 + $0x4] sm:$0xf]
          %v4744 = vld [vmem:[#allocation11 + $0x8] sm:$0xf]
          %v4745 = vld [vmem:[#allocation11 + $0xc] sm:$0xf]
          %v4746 = vld [vmem:[#allocation11 + $0x10] sm:$0xf]
          %v4747 = vld [vmem:[#allocation11 + $0x14] sm:$0xf]
          %v4748 = vld [vmem:[#allocation11 + $0x18] sm:$0xf]
          %v4749 = vld [vmem:[#allocation11 + $0x1c] sm:$0xf]
          %v4750 = vld [vmem:[#allocation11 + $0x20] sm:$0xf]
          %v4751 = vld [vmem:[#allocation11 + $0x24] sm:$0xf]
          %v4752 = vld [vmem:[#allocation11 + $0x28] sm:$0xf]
          %v4753 = vld [vmem:[#allocation11 + $0x2c] sm:$0xf]
          %v4754 = vld [vmem:[#allocation11 + $0x30] sm:$0xf]
          %v4755 = vld [vmem:[#allocation11 + $0x34] sm:$0xf]
          %v4756 = vld [vmem:[#allocation11 + $0x38] sm:$0xf]
          %v4757 = vld [vmem:[#allocation11 + $0x3c] sm:$0xf]
          %v4758 = vld [vmem:[#allocation11 + $0x40] sm:$0xf]
          %v4759 = vld [vmem:[#allocation11 + $0x44] sm:$0xf]
          %v4760 = vld [vmem:[#allocation11 + $0x48] sm:$0xf]
          %v4761 = vld [vmem:[#allocation11 + $0x4c] sm:$0xf]
          %v4762 = vld [vmem:[#allocation11 + $0x50] sm:$0xf]
          %v4763 = vld [vmem:[#allocation11 + $0x54] sm:$0xf]
          %v4764 = vld [vmem:[#allocation11 + $0x58] sm:$0xf]
          %v4765 = vld [vmem:[#allocation11 + $0x5c] sm:$0xf]
          %v4766 = vld [vmem:[#allocation11 + $0x60] sm:$0xf]
          %v4767 = vld [vmem:[#allocation11 + $0x64] sm:$0xf]
          %v4768 = vld [vmem:[#allocation11 + $0x68] sm:$0xf]
          %v4769 = vld [vmem:[#allocation11 + $0x6c] sm:$0xf]
          %v4770 = vld [vmem:[#allocation11 + $0x70] sm:$0xf]
          %v4771 = vld [vmem:[#allocation11 + $0x74] sm:$0xf]
          %v4772 = vld [vmem:[#allocation11 + $0x78] sm:$0xf]
          %v4773 = vld [vmem:[#allocation11 + $0x7c] sm:$0xf]
          %v4774 = vunpack.c.l.bf16 %v4742
          %v4775 = vunpack.c.l.bf16 %v4743
          %v4776 = vunpack.c.l.bf16 %v4744
          %v4777 = vunpack.c.l.bf16 %v4745
          %v4778 = vunpack.c.l.bf16 %v4746
          %v4779 = vunpack.c.l.bf16 %v4747
          %v4780 = vunpack.c.l.bf16 %v4748
          %v4781 = vunpack.c.l.bf16 %v4749
          %v4782 = vunpack.c.l.bf16 %v4750
          %v4783 = vunpack.c.l.bf16 %v4751
          %v4784 = vunpack.c.l.bf16 %v4752
          %v4785 = vunpack.c.l.bf16 %v4753
          %v4786 = vunpack.c.l.bf16 %v4754
          %v4787 = vunpack.c.l.bf16 %v4755
          %v4788 = vunpack.c.l.bf16 %v4756
          %v4789 = vunpack.c.l.bf16 %v4757
          %v4790 = vunpack.c.l.bf16 %v4758
          %v4791 = vunpack.c.l.bf16 %v4759
          %v4792 = vunpack.c.l.bf16 %v4760
          %v4793 = vunpack.c.l.bf16 %v4761
          %v4794 = vunpack.c.l.bf16 %v4762
          %v4795 = vunpack.c.l.bf16 %v4763
          %v4796 = vunpack.c.l.bf16 %v4764
          %v4797 = vunpack.c.l.bf16 %v4765
          %v4798 = vunpack.c.l.bf16 %v4766
          %v4799 = vunpack.c.l.bf16 %v4767
          %v4800 = vunpack.c.l.bf16 %v4768
          %v4801 = vunpack.c.l.bf16 %v4769
          %v4802 = vunpack.c.l.bf16 %v4770
          %v4803 = vunpack.c.l.bf16 %v4771
          %v4804 = vunpack.c.l.bf16 %v4772
          %v4805 = vunpack.c.l.bf16 %v4773
          %v4806 = vld [vmem:[#allocation12] sm:$0x1]
          %v4808 = vlaneseq
          %v4809 = vshrl.u32 %v4808, 7
          %v4810 = vsub.s32 0, %v4809
          %v4811 = vrot.slane %v4806, %v4810
          %v4815 = vunpack.c.l.s4 1983009808
          %v4816 = vunpack.c.0.s8 %v4815
          %v4817 = vlaneseq
          %v4818 = vshrl.u32 %v4817, 7
          %v4819 = vsub.s32 %v4816, %v4818
          %v4820 = vrot.slane %v4741, %v4819
          %v4821 = vcombine.high %v4820, %v4820
          %4824 = vmatprep.subr.mxu0 0.0
          %4825 = vmatpush1.msra.mxu0 %v4774
          %4826 = vmatprep.subr.mxu0 0.0
          %4827 = vmatpush1.msra.mxu0 %v4775
          %4828 = vmatprep.subr.mxu0 0.0
          %4829 = vmatpush1.msra.mxu0 %v4776
          %4830 = vmatprep.subr.mxu0 0.0
          %4831 = vmatpush1.msra.mxu0 %v4777
          %4832 = vmatprep.subr.mxu0 0.0
          %4833 = vmatpush1.msra.mxu0 %v4778
          %4834 = vmatprep.subr.mxu0 0.0
          %4835 = vmatpush1.msra.mxu0 %v4779
          %4836 = vmatprep.subr.mxu0 0.0
          %4837 = vmatpush1.msra.mxu0 %v4780
          %4838 = vmatprep.subr.mxu0 0.0
          %4839 = vmatpush1.msra.mxu0 %v4781
          %4840 = vmatprep.subr.mxu0 0.0
          %4841 = vmatpush1.msra.mxu0 %v4782
          %4842 = vmatprep.subr.mxu0 0.0
          %4843 = vmatpush1.msra.mxu0 %v4783
          %4844 = vmatprep.subr.mxu0 0.0
          %4845 = vmatpush1.msra.mxu0 %v4784
          %4846 = vmatprep.subr.mxu0 0.0
          %4847 = vmatpush1.msra.mxu0 %v4785
          %4848 = vmatprep.subr.mxu0 0.0
          %4849 = vmatpush1.msra.mxu0 %v4786
          %4850 = vmatprep.subr.mxu0 0.0
          %4851 = vmatpush1.msra.mxu0 %v4787
          %4852 = vmatprep.subr.mxu0 0.0
          %4853 = vmatpush1.msra.mxu0 %v4788
          %4854 = vmatprep.subr.mxu0 0.0
          %4855 = vmatpush1.msra.mxu0 %v4789
          %4856 = vmatprep.subr.mxu0 0.0
          %4857 = vmatpush1.msra.mxu0 %v4790
          %4858 = vmatprep.subr.mxu0 0.0
          %4859 = vmatpush1.msra.mxu0 %v4791
          %4860 = vmatprep.subr.mxu0 0.0
          %4861 = vmatpush1.msra.mxu0 %v4792
          %4862 = vmatprep.subr.mxu0 0.0
          %4863 = vmatpush1.msra.mxu0 %v4793
          %4864 = vmatprep.subr.mxu0 0.0
          %4865 = vmatpush1.msra.mxu0 %v4794
          %4866 = vmatprep.subr.mxu0 0.0
          %4867 = vmatpush1.msra.mxu0 %v4795
          %4868 = vmatprep.subr.mxu0 0.0
          %4869 = vmatpush1.msra.mxu0 %v4796
          %4870 = vmatprep.subr.mxu0 0.0
          %4871 = vmatpush1.msra.mxu0 %v4797
          %4872 = vmatprep.subr.mxu0 0.0
          %4873 = vmatpush1.msra.mxu0 %v4798
          %4874 = vmatprep.subr.mxu0 0.0
          %4875 = vmatpush1.msra.mxu0 %v4799
          %4876 = vmatprep.subr.mxu0 0.0
          %4877 = vmatpush1.msra.mxu0 %v4800
          %4878 = vmatprep.subr.mxu0 0.0
          %4879 = vmatpush1.msra.mxu0 %v4801
          %4880 = vmatprep.subr.mxu0 0.0
          %4881 = vmatpush1.msra.mxu0 %v4802
          %4882 = vmatprep.subr.mxu0 0.0
          %4883 = vmatpush1.msra.mxu0 %v4803
          %4884 = vmatprep.subr.mxu0 0.0
          %4885 = vmatpush1.msra.mxu0 %v4804
          %4886 = vmatprep.subr.mxu0 0.0
          %4887 = vmatpush1.msra.mxu0 %v4805
          %4888 = vmatprep.mubr.f32.mxu0 %v4821
          %4889 = vmatmul.mubr.f32.gmra.mrb[0].mxu0 %v4820
          %v4890 = vpop.f32.mrb[0].mxu0
          %v4891 = vadd.f32 %v4811, %v4890
          %v4892 = vpop.f32.mrb[0].mxu0
          %4893 = vdwg.mxu0
          %v4894 = vld [vmem:[#allocation3] sm:$0xff]
          %v4895 = vld [vmem:[#allocation17] sm:$0xff]
          %v4896 = vld [vmem:[#allocation17 + $0x8] sm:$0xff]
          %v4897 = vld [vmem:[#allocation17 + $0x10] sm:$0xff]
          %v4898 = vld [vmem:[#allocation17 + $0x18] sm:$0xff]
          %v4899 = vld [vmem:[#allocation17 + $0x20] sm:$0xff]
          %v4900 = vld [vmem:[#allocation17 + $0x28] sm:$0xff]
          %v4901 = vld [vmem:[#allocation17 + $0x30] sm:$0xff]
          %v4902 = vld [vmem:[#allocation17 + $0x38] sm:$0xff]
          %v4903 = vld [vmem:[#allocation17 + $0x40] sm:$0xff]
          %v4904 = vld [vmem:[#allocation17 + $0x48] sm:$0xff]
          %v4905 = vld [vmem:[#allocation17 + $0x50] sm:$0xff]
          %v4906 = vld [vmem:[#allocation17 + $0x58] sm:$0xff]
          %v4907 = vld [vmem:[#allocation17 + $0x60] sm:$0xff]
          %v4908 = vld [vmem:[#allocation17 + $0x68] sm:$0xff]
          %v4909 = vld [vmem:[#allocation17 + $0x70] sm:$0xff]
          %v4910 = vld [vmem:[#allocation17 + $0x78] sm:$0xff]
          %v4911 = vld [vmem:[#allocation17 + $0x80] sm:$0xff]
          %v4912 = vld [vmem:[#allocation17 + $0x88] sm:$0xff]
          %v4913 = vld [vmem:[#allocation17 + $0x90] sm:$0xff]
          %v4914 = vld [vmem:[#allocation17 + $0x98] sm:$0xff]
          %v4915 = vld [vmem:[#allocation17 + $0xa0] sm:$0xff]
          %v4916 = vld [vmem:[#allocation17 + $0xa8] sm:$0xff]
          %v4917 = vld [vmem:[#allocation17 + $0xb0] sm:$0xff]
          %v4918 = vld [vmem:[#allocation17 + $0xb8] sm:$0xff]
          %v4919 = vld [vmem:[#allocation17 + $0xc0] sm:$0xff]
          %v4920 = vld [vmem:[#allocation17 + $0xc8] sm:$0xff]
          %v4921 = vld [vmem:[#allocation17 + $0xd0] sm:$0xff]
          %v4922 = vld [vmem:[#allocation17 + $0xd8] sm:$0xff]
          %v4923 = vld [vmem:[#allocation17 + $0xe0] sm:$0xff]
          %v4924 = vld [vmem:[#allocation17 + $0xe8] sm:$0xff]
          %v4925 = vld [vmem:[#allocation17 + $0xf0] sm:$0xff]
          %v4926 = vld [vmem:[#allocation17 + $0xf8] sm:$0xff]
          %v4927 = vunpack.c.l.bf16 %v4895
          %v4928 = vunpack.c.h.bf16 %v4895
          %v4929 = vunpack.c.l.bf16 %v4896
          %v4930 = vunpack.c.h.bf16 %v4896
          %v4931 = vunpack.c.l.bf16 %v4897
          %v4932 = vunpack.c.h.bf16 %v4897
          %v4933 = vunpack.c.l.bf16 %v4898
          %v4934 = vunpack.c.h.bf16 %v4898
          %v4935 = vunpack.c.l.bf16 %v4899
          %v4936 = vunpack.c.h.bf16 %v4899
          %v4937 = vunpack.c.l.bf16 %v4900
          %v4938 = vunpack.c.h.bf16 %v4900
          %v4939 = vunpack.c.l.bf16 %v4901
          %v4940 = vunpack.c.h.bf16 %v4901
          %v4941 = vunpack.c.l.bf16 %v4902
          %v4942 = vunpack.c.h.bf16 %v4902
          %v4943 = vunpack.c.l.bf16 %v4903
          %v4944 = vunpack.c.h.bf16 %v4903
          %v4945 = vunpack.c.l.bf16 %v4904
          %v4946 = vunpack.c.h.bf16 %v4904
          %v4947 = vunpack.c.l.bf16 %v4905
          %v4948 = vunpack.c.h.bf16 %v4905
          %v4949 = vunpack.c.l.bf16 %v4906
          %v4950 = vunpack.c.h.bf16 %v4906
          %v4951 = vunpack.c.l.bf16 %v4907
          %v4952 = vunpack.c.h.bf16 %v4907
          %v4953 = vunpack.c.l.bf16 %v4908
          %v4954 = vunpack.c.h.bf16 %v4908
          %v4955 = vunpack.c.l.bf16 %v4909
          %v4956 = vunpack.c.h.bf16 %v4909
          %v4957 = vunpack.c.l.bf16 %v4910
          %v4958 = vunpack.c.h.bf16 %v4910
          %v4959 = vunpack.c.l.bf16 %v4911
          %v4960 = vunpack.c.h.bf16 %v4911
          %v4961 = vunpack.c.l.bf16 %v4912
          %v4962 = vunpack.c.h.bf16 %v4912
          %v4963 = vunpack.c.l.bf16 %v4913
          %v4964 = vunpack.c.h.bf16 %v4913
          %v4965 = vunpack.c.l.bf16 %v4914
          %v4966 = vunpack.c.h.bf16 %v4914
          %v4967 = vunpack.c.l.bf16 %v4915
          %v4968 = vunpack.c.h.bf16 %v4915
          %v4969 = vunpack.c.l.bf16 %v4916
          %v4970 = vunpack.c.h.bf16 %v4916
          %v4971 = vunpack.c.l.bf16 %v4917
          %v4972 = vunpack.c.h.bf16 %v4917
          %v4973 = vunpack.c.l.bf16 %v4918
          %v4974 = vunpack.c.h.bf16 %v4918
          %v4975 = vunpack.c.l.bf16 %v4919
          %v4976 = vunpack.c.h.bf16 %v4919
          %v4977 = vunpack.c.l.bf16 %v4920
          %v4978 = vunpack.c.h.bf16 %v4920
          %v4979 = vunpack.c.l.bf16 %v4921
          %v4980 = vunpack.c.h.bf16 %v4921
          %v4981 = vunpack.c.l.bf16 %v4922
          %v4982 = vunpack.c.h.bf16 %v4922
          %v4983 = vunpack.c.l.bf16 %v4923
          %v4984 = vunpack.c.h.bf16 %v4923
          %v4985 = vunpack.c.l.bf16 %v4924
          %v4986 = vunpack.c.h.bf16 %v4924
          %v4987 = vunpack.c.l.bf16 %v4925
          %v4988 = vunpack.c.h.bf16 %v4925
          %v4989 = vunpack.c.l.bf16 %v4926
          %v4990 = vunpack.c.h.bf16 %v4926
          %v4991 = vld [vmem:[#allocation18] sm:$0xff]
          %v4992 = vld [vmem:[#allocation18 + $0x8] sm:$0xff]
          %v4993 = vld [vmem:[#allocation18 + $0x10] sm:$0xff]
          %v4994 = vld [vmem:[#allocation18 + $0x18] sm:$0xff]
          %v4995 = vld [vmem:[#allocation18 + $0x20] sm:$0xff]
          %v4996 = vld [vmem:[#allocation18 + $0x28] sm:$0xff]
          %v4997 = vld [vmem:[#allocation18 + $0x30] sm:$0xff]
          %v4998 = vld [vmem:[#allocation18 + $0x38] sm:$0xff]
          %v4999 = vld [vmem:[#allocation18 + $0x40] sm:$0xff]
          %v5000 = vld [vmem:[#allocation18 + $0x48] sm:$0xff]
          %v5001 = vld [vmem:[#allocation18 + $0x50] sm:$0xff]
          %v5002 = vld [vmem:[#allocation18 + $0x58] sm:$0xff]
          %v5003 = vld [vmem:[#allocation18 + $0x60] sm:$0xff]
          %v5004 = vld [vmem:[#allocation18 + $0x68] sm:$0xff]
          %v5005 = vld [vmem:[#allocation18 + $0x70] sm:$0xff]
          %v5006 = vld [vmem:[#allocation18 + $0x78] sm:$0xff]
          %v5007 = vld [vmem:[#allocation18 + $0x80] sm:$0xff]
          %v5008 = vld [vmem:[#allocation18 + $0x88] sm:$0xff]
          %v5009 = vld [vmem:[#allocation18 + $0x90] sm:$0xff]
          %v5010 = vld [vmem:[#allocation18 + $0x98] sm:$0xff]
          %v5011 = vld [vmem:[#allocation18 + $0xa0] sm:$0xff]
          %v5012 = vld [vmem:[#allocation18 + $0xa8] sm:$0xff]
          %v5013 = vld [vmem:[#allocation18 + $0xb0] sm:$0xff]
          %v5014 = vld [vmem:[#allocation18 + $0xb8] sm:$0xff]
          %v5015 = vld [vmem:[#allocation18 + $0xc0] sm:$0xff]
          %v5016 = vld [vmem:[#allocation18 + $0xc8] sm:$0xff]
          %v5017 = vld [vmem:[#allocation18 + $0xd0] sm:$0xff]
          %v5018 = vld [vmem:[#allocation18 + $0xd8] sm:$0xff]
          %v5019 = vld [vmem:[#allocation18 + $0xe0] sm:$0xff]
          %v5020 = vld [vmem:[#allocation18 + $0xe8] sm:$0xff]
          %v5021 = vld [vmem:[#allocation18 + $0xf0] sm:$0xff]
          %v5022 = vld [vmem:[#allocation18 + $0xf8] sm:$0xff]
          %v5023 = vld [vmem:[#allocation18 + $0x100] sm:$0xff]
          %v5024 = vld [vmem:[#allocation18 + $0x108] sm:$0xff]
          %v5025 = vld [vmem:[#allocation18 + $0x110] sm:$0xff]
          %v5026 = vld [vmem:[#allocation18 + $0x118] sm:$0xff]
          %v5027 = vld [vmem:[#allocation18 + $0x120] sm:$0xff]
          %v5028 = vld [vmem:[#allocation18 + $0x128] sm:$0xff]
          %v5029 = vld [vmem:[#allocation18 + $0x130] sm:$0xff]
          %v5030 = vld [vmem:[#allocation18 + $0x138] sm:$0xff]
          %v5031 = vld [vmem:[#allocation18 + $0x140] sm:$0xff]
          %v5032 = vld [vmem:[#allocation18 + $0x148] sm:$0xff]
          %v5033 = vld [vmem:[#allocation18 + $0x150] sm:$0xff]
          %v5034 = vld [vmem:[#allocation18 + $0x158] sm:$0xff]
          %v5035 = vld [vmem:[#allocation18 + $0x160] sm:$0xff]
          %v5036 = vld [vmem:[#allocation18 + $0x168] sm:$0xff]
          %v5037 = vld [vmem:[#allocation18 + $0x170] sm:$0xff]
          %v5038 = vld [vmem:[#allocation18 + $0x178] sm:$0xff]
          %v5039 = vld [vmem:[#allocation18 + $0x180] sm:$0xff]
          %v5040 = vld [vmem:[#allocation18 + $0x188] sm:$0xff]
          %v5041 = vld [vmem:[#allocation18 + $0x190] sm:$0xff]
          %v5042 = vld [vmem:[#allocation18 + $0x198] sm:$0xff]
          %v5043 = vld [vmem:[#allocation18 + $0x1a0] sm:$0xff]
          %v5044 = vld [vmem:[#allocation18 + $0x1a8] sm:$0xff]
          %v5045 = vld [vmem:[#allocation18 + $0x1b0] sm:$0xff]
          %v5046 = vld [vmem:[#allocation18 + $0x1b8] sm:$0xff]
          %v5047 = vld [vmem:[#allocation18 + $0x1c0] sm:$0xff]
          %v5048 = vld [vmem:[#allocation18 + $0x1c8] sm:$0xff]
          %v5049 = vld [vmem:[#allocation18 + $0x1d0] sm:$0xff]
          %v5050 = vld [vmem:[#allocation18 + $0x1d8] sm:$0xff]
          %v5051 = vld [vmem:[#allocation18 + $0x1e0] sm:$0xff]
          %v5052 = vld [vmem:[#allocation18 + $0x1e8] sm:$0xff]
          %v5053 = vld [vmem:[#allocation18 + $0x1f0] sm:$0xff]
          %v5054 = vld [vmem:[#allocation18 + $0x1f8] sm:$0xff]
          %v5055 = vld [vmem:[#allocation18 + $0x200] sm:$0xff]
          %v5056 = vld [vmem:[#allocation18 + $0x208] sm:$0xff]
          %v5057 = vld [vmem:[#allocation18 + $0x210] sm:$0xff]
          %v5058 = vld [vmem:[#allocation18 + $0x218] sm:$0xff]
          %v5059 = vld [vmem:[#allocation18 + $0x220] sm:$0xff]
          %v5060 = vld [vmem:[#allocation18 + $0x228] sm:$0xff]
          %v5061 = vld [vmem:[#allocation18 + $0x230] sm:$0xff]
          %v5062 = vld [vmem:[#allocation18 + $0x238] sm:$0xff]
          %v5063 = vld [vmem:[#allocation18 + $0x240] sm:$0xff]
          %v5064 = vld [vmem:[#allocation18 + $0x248] sm:$0xff]
          %v5065 = vld [vmem:[#allocation18 + $0x250] sm:$0xff]
          %v5066 = vld [vmem:[#allocation18 + $0x258] sm:$0xff]
          %v5067 = vld [vmem:[#allocation18 + $0x260] sm:$0xff]
          %v5068 = vld [vmem:[#allocation18 + $0x268] sm:$0xff]
          %v5069 = vld [vmem:[#allocation18 + $0x270] sm:$0xff]
          %v5070 = vld [vmem:[#allocation18 + $0x278] sm:$0xff]
          %v5071 = vld [vmem:[#allocation18 + $0x280] sm:$0xff]
          %v5072 = vld [vmem:[#allocation18 + $0x288] sm:$0xff]
          %v5073 = vld [vmem:[#allocation18 + $0x290] sm:$0xff]
          %v5074 = vld [vmem:[#allocation18 + $0x298] sm:$0xff]
          %v5075 = vld [vmem:[#allocation18 + $0x2a0] sm:$0xff]
          %v5076 = vld [vmem:[#allocation18 + $0x2a8] sm:$0xff]
          %v5077 = vld [vmem:[#allocation18 + $0x2b0] sm:$0xff]
          %v5078 = vld [vmem:[#allocation18 + $0x2b8] sm:$0xff]
          %v5079 = vld [vmem:[#allocation18 + $0x2c0] sm:$0xff]
          %v5080 = vld [vmem:[#allocation18 + $0x2c8] sm:$0xff]
          %v5081 = vld [vmem:[#allocation18 + $0x2d0] sm:$0xff]
          %v5082 = vld [vmem:[#allocation18 + $0x2d8] sm:$0xff]
          %v5083 = vld [vmem:[#allocation18 + $0x2e0] sm:$0xff]
          %v5084 = vld [vmem:[#allocation18 + $0x2e8] sm:$0xff]
          %v5085 = vld [vmem:[#allocation18 + $0x2f0] sm:$0xff]
          %v5086 = vld [vmem:[#allocation18 + $0x2f8] sm:$0xff]
          %v5087 = vld [vmem:[#allocation18 + $0x300] sm:$0xff]
          %v5088 = vld [vmem:[#allocation18 + $0x308] sm:$0xff]
          %v5089 = vld [vmem:[#allocation18 + $0x310] sm:$0xff]
          %v5090 = vld [vmem:[#allocation18 + $0x318] sm:$0xff]
          %v5091 = vld [vmem:[#allocation18 + $0x320] sm:$0xff]
          %v5092 = vld [vmem:[#allocation18 + $0x328] sm:$0xff]
          %v5093 = vld [vmem:[#allocation18 + $0x330] sm:$0xff]
          %v5094 = vld [vmem:[#allocation18 + $0x338] sm:$0xff]
          %v5095 = vld [vmem:[#allocation18 + $0x340] sm:$0xff]
          %v5096 = vld [vmem:[#allocation18 + $0x348] sm:$0xff]
          %v5097 = vld [vmem:[#allocation18 + $0x350] sm:$0xff]
          %v5098 = vld [vmem:[#allocation18 + $0x358] sm:$0xff]
          %v5099 = vld [vmem:[#allocation18 + $0x360] sm:$0xff]
          %v5100 = vld [vmem:[#allocation18 + $0x368] sm:$0xff]
          %v5101 = vld [vmem:[#allocation18 + $0x370] sm:$0xff]
          %v5102 = vld [vmem:[#allocation18 + $0x378] sm:$0xff]
          %v5103 = vld [vmem:[#allocation18 + $0x380] sm:$0xff]
          %v5104 = vld [vmem:[#allocation18 + $0x388] sm:$0xff]
          %v5105 = vld [vmem:[#allocation18 + $0x390] sm:$0xff]
          %v5106 = vld [vmem:[#allocation18 + $0x398] sm:$0xff]
          %v5107 = vld [vmem:[#allocation18 + $0x3a0] sm:$0xff]
          %v5108 = vld [vmem:[#allocation18 + $0x3a8] sm:$0xff]
          %v5109 = vld [vmem:[#allocation18 + $0x3b0] sm:$0xff]
          %v5110 = vld [vmem:[#allocation18 + $0x3b8] sm:$0xff]
          %v5111 = vld [vmem:[#allocation18 + $0x3c0] sm:$0xff]
          %v5112 = vld [vmem:[#allocation18 + $0x3c8] sm:$0xff]
          %v5113 = vld [vmem:[#allocation18 + $0x3d0] sm:$0xff]
          %v5114 = vld [vmem:[#allocation18 + $0x3d8] sm:$0xff]
          %v5115 = vld [vmem:[#allocation18 + $0x3e0] sm:$0xff]
          %v5116 = vld [vmem:[#allocation18 + $0x3e8] sm:$0xff]
          %v5117 = vld [vmem:[#allocation18 + $0x3f0] sm:$0xff]
          %v5118 = vld [vmem:[#allocation18 + $0x3f8] sm:$0xff]
          %v5119 = vunpack.c.l.bf16 %v4991
          %v5120 = vunpack.c.h.bf16 %v4991
          %v5121 = vunpack.c.l.bf16 %v4992
          %v5122 = vunpack.c.h.bf16 %v4992
          %v5123 = vunpack.c.l.bf16 %v4993
          %v5124 = vunpack.c.h.bf16 %v4993
          %v5125 = vunpack.c.l.bf16 %v4994
          %v5126 = vunpack.c.h.bf16 %v4994
          %v5127 = vunpack.c.l.bf16 %v4995
          %v5128 = vunpack.c.h.bf16 %v4995
          %v5129 = vunpack.c.l.bf16 %v4996
          %v5130 = vunpack.c.h.bf16 %v4996
          %v5131 = vunpack.c.l.bf16 %v4997
          %v5132 = vunpack.c.h.bf16 %v4997
          %v5133 = vunpack.c.l.bf16 %v4998
          %v5134 = vunpack.c.h.bf16 %v4998
          %v5135 = vunpack.c.l.bf16 %v4999
          %v5136 = vunpack.c.h.bf16 %v4999
          %v5137 = vunpack.c.l.bf16 %v5000
          %v5138 = vunpack.c.h.bf16 %v5000
          %v5139 = vunpack.c.l.bf16 %v5001
          %v5140 = vunpack.c.h.bf16 %v5001
          %v5141 = vunpack.c.l.bf16 %v5002
          %v5142 = vunpack.c.h.bf16 %v5002
          %v5143 = vunpack.c.l.bf16 %v5003
          %v5144 = vunpack.c.h.bf16 %v5003
          %v5145 = vunpack.c.l.bf16 %v5004
          %v5146 = vunpack.c.h.bf16 %v5004
          %v5147 = vunpack.c.l.bf16 %v5005
          %v5148 = vunpack.c.h.bf16 %v5005
          %v5149 = vunpack.c.l.bf16 %v5006
          %v5150 = vunpack.c.h.bf16 %v5006
          %v5151 = vunpack.c.l.bf16 %v5007
          %v5152 = vunpack.c.h.bf16 %v5007
          %v5153 = vunpack.c.l.bf16 %v5008
          %v5154 = vunpack.c.h.bf16 %v5008
          %v5155 = vunpack.c.l.bf16 %v5009
          %v5156 = vunpack.c.h.bf16 %v5009
          %v5157 = vunpack.c.l.bf16 %v5010
          %v5158 = vunpack.c.h.bf16 %v5010
          %v5159 = vunpack.c.l.bf16 %v5011
          %v5160 = vunpack.c.h.bf16 %v5011
          %v5161 = vunpack.c.l.bf16 %v5012
          %v5162 = vunpack.c.h.bf16 %v5012
          %v5163 = vunpack.c.l.bf16 %v5013
          %v5164 = vunpack.c.h.bf16 %v5013
          %v5165 = vunpack.c.l.bf16 %v5014
          %v5166 = vunpack.c.h.bf16 %v5014
          %v5167 = vunpack.c.l.bf16 %v5015
          %v5168 = vunpack.c.h.bf16 %v5015
          %v5169 = vunpack.c.l.bf16 %v5016
          %v5170 = vunpack.c.h.bf16 %v5016
          %v5171 = vunpack.c.l.bf16 %v5017
          %v5172 = vunpack.c.h.bf16 %v5017
          %v5173 = vunpack.c.l.bf16 %v5018
          %v5174 = vunpack.c.h.bf16 %v5018
          %v5175 = vunpack.c.l.bf16 %v5019
          %v5176 = vunpack.c.h.bf16 %v5019
          %v5177 = vunpack.c.l.bf16 %v5020
          %v5178 = vunpack.c.h.bf16 %v5020
          %v5179 = vunpack.c.l.bf16 %v5021
          %v5180 = vunpack.c.h.bf16 %v5021
          %v5181 = vunpack.c.l.bf16 %v5022
          %v5182 = vunpack.c.h.bf16 %v5022
          %v5183 = vunpack.c.l.bf16 %v5023
          %v5184 = vunpack.c.h.bf16 %v5023
          %v5185 = vunpack.c.l.bf16 %v5024
          %v5186 = vunpack.c.h.bf16 %v5024
          %v5187 = vunpack.c.l.bf16 %v5025
          %v5188 = vunpack.c.h.bf16 %v5025
          %v5189 = vunpack.c.l.bf16 %v5026
          %v5190 = vunpack.c.h.bf16 %v5026
          %v5191 = vunpack.c.l.bf16 %v5027
          %v5192 = vunpack.c.h.bf16 %v5027
          %v5193 = vunpack.c.l.bf16 %v5028
          %v5194 = vunpack.c.h.bf16 %v5028
          %v5195 = vunpack.c.l.bf16 %v5029
          %v5196 = vunpack.c.h.bf16 %v5029
          %v5197 = vunpack.c.l.bf16 %v5030
          %v5198 = vunpack.c.h.bf16 %v5030
          %v5199 = vunpack.c.l.bf16 %v5031
          %v5200 = vunpack.c.h.bf16 %v5031
          %v5201 = vunpack.c.l.bf16 %v5032
          %v5202 = vunpack.c.h.bf16 %v5032
          %v5203 = vunpack.c.l.bf16 %v5033
          %v5204 = vunpack.c.h.bf16 %v5033
          %v5205 = vunpack.c.l.bf16 %v5034
          %v5206 = vunpack.c.h.bf16 %v5034
          %v5207 = vunpack.c.l.bf16 %v5035
          %v5208 = vunpack.c.h.bf16 %v5035
          %v5209 = vunpack.c.l.bf16 %v5036
          %v5210 = vunpack.c.h.bf16 %v5036
          %v5211 = vunpack.c.l.bf16 %v5037
          %v5212 = vunpack.c.h.bf16 %v5037
          %v5213 = vunpack.c.l.bf16 %v5038
          %v5214 = vunpack.c.h.bf16 %v5038
          %v5215 = vunpack.c.l.bf16 %v5039
          %v5216 = vunpack.c.h.bf16 %v5039
          %v5217 = vunpack.c.l.bf16 %v5040
          %v5218 = vunpack.c.h.bf16 %v5040
          %v5219 = vunpack.c.l.bf16 %v5041
          %v5220 = vunpack.c.h.bf16 %v5041
          %v5221 = vunpack.c.l.bf16 %v5042
          %v5222 = vunpack.c.h.bf16 %v5042
          %v5223 = vunpack.c.l.bf16 %v5043
          %v5224 = vunpack.c.h.bf16 %v5043
          %v5225 = vunpack.c.l.bf16 %v5044
          %v5226 = vunpack.c.h.bf16 %v5044
          %v5227 = vunpack.c.l.bf16 %v5045
          %v5228 = vunpack.c.h.bf16 %v5045
          %v5229 = vunpack.c.l.bf16 %v5046
          %v5230 = vunpack.c.h.bf16 %v5046
          %v5231 = vunpack.c.l.bf16 %v5047
          %v5232 = vunpack.c.h.bf16 %v5047
          %v5233 = vunpack.c.l.bf16 %v5048
          %v5234 = vunpack.c.h.bf16 %v5048
          %v5235 = vunpack.c.l.bf16 %v5049
          %v5236 = vunpack.c.h.bf16 %v5049
          %v5237 = vunpack.c.l.bf16 %v5050
          %v5238 = vunpack.c.h.bf16 %v5050
          %v5239 = vunpack.c.l.bf16 %v5051
          %v5240 = vunpack.c.h.bf16 %v5051
          %v5241 = vunpack.c.l.bf16 %v5052
          %v5242 = vunpack.c.h.bf16 %v5052
          %v5243 = vunpack.c.l.bf16 %v5053
          %v5244 = vunpack.c.h.bf16 %v5053
          %v5245 = vunpack.c.l.bf16 %v5054
          %v5246 = vunpack.c.h.bf16 %v5054
          %v5247 = vunpack.c.l.bf16 %v5055
          %v5248 = vunpack.c.h.bf16 %v5055
          %v5249 = vunpack.c.l.bf16 %v5056
          %v5250 = vunpack.c.h.bf16 %v5056
          %v5251 = vunpack.c.l.bf16 %v5057
          %v5252 = vunpack.c.h.bf16 %v5057
          %v5253 = vunpack.c.l.bf16 %v5058
          %v5254 = vunpack.c.h.bf16 %v5058
          %v5255 = vunpack.c.l.bf16 %v5059
          %v5256 = vunpack.c.h.bf16 %v5059
          %v5257 = vunpack.c.l.bf16 %v5060
          %v5258 = vunpack.c.h.bf16 %v5060
          %v5259 = vunpack.c.l.bf16 %v5061
          %v5260 = vunpack.c.h.bf16 %v5061
          %v5261 = vunpack.c.l.bf16 %v5062
          %v5262 = vunpack.c.h.bf16 %v5062
          %v5263 = vunpack.c.l.bf16 %v5063
          %v5264 = vunpack.c.h.bf16 %v5063
          %v5265 = vunpack.c.l.bf16 %v5064
          %v5266 = vunpack.c.h.bf16 %v5064
          %v5267 = vunpack.c.l.bf16 %v5065
          %v5268 = vunpack.c.h.bf16 %v5065
          %v5269 = vunpack.c.l.bf16 %v5066
          %v5270 = vunpack.c.h.bf16 %v5066
          %v5271 = vunpack.c.l.bf16 %v5067
          %v5272 = vunpack.c.h.bf16 %v5067
          %v5273 = vunpack.c.l.bf16 %v5068
          %v5274 = vunpack.c.h.bf16 %v5068
          %v5275 = vunpack.c.l.bf16 %v5069
          %v5276 = vunpack.c.h.bf16 %v5069
          %v5277 = vunpack.c.l.bf16 %v5070
          %v5278 = vunpack.c.h.bf16 %v5070
          %v5279 = vunpack.c.l.bf16 %v5071
          %v5280 = vunpack.c.h.bf16 %v5071
          %v5281 = vunpack.c.l.bf16 %v5072
          %v5282 = vunpack.c.h.bf16 %v5072
          %v5283 = vunpack.c.l.bf16 %v5073
          %v5284 = vunpack.c.h.bf16 %v5073
          %v5285 = vunpack.c.l.bf16 %v5074
          %v5286 = vunpack.c.h.bf16 %v5074
          %v5287 = vunpack.c.l.bf16 %v5075
          %v5288 = vunpack.c.h.bf16 %v5075
          %v5289 = vunpack.c.l.bf16 %v5076
          %v5290 = vunpack.c.h.bf16 %v5076
          %v5291 = vunpack.c.l.bf16 %v5077
          %v5292 = vunpack.c.h.bf16 %v5077
          %v5293 = vunpack.c.l.bf16 %v5078
          %v5294 = vunpack.c.h.bf16 %v5078
          %v5295 = vunpack.c.l.bf16 %v5079
          %v5296 = vunpack.c.h.bf16 %v5079
          %v5297 = vunpack.c.l.bf16 %v5080
          %v5298 = vunpack.c.h.bf16 %v5080
          %v5299 = vunpack.c.l.bf16 %v5081
          %v5300 = vunpack.c.h.bf16 %v5081
          %v5301 = vunpack.c.l.bf16 %v5082
          %v5302 = vunpack.c.h.bf16 %v5082
          %v5303 = vunpack.c.l.bf16 %v5083
          %v5304 = vunpack.c.h.bf16 %v5083
          %v5305 = vunpack.c.l.bf16 %v5084
          %v5306 = vunpack.c.h.bf16 %v5084
          %v5307 = vunpack.c.l.bf16 %v5085
          %v5308 = vunpack.c.h.bf16 %v5085
          %v5309 = vunpack.c.l.bf16 %v5086
          %v5310 = vunpack.c.h.bf16 %v5086
          %v5311 = vunpack.c.l.bf16 %v5087
          %v5312 = vunpack.c.h.bf16 %v5087
          %v5313 = vunpack.c.l.bf16 %v5088
          %v5314 = vunpack.c.h.bf16 %v5088
          %v5315 = vunpack.c.l.bf16 %v5089
          %v5316 = vunpack.c.h.bf16 %v5089
          %v5317 = vunpack.c.l.bf16 %v5090
          %v5318 = vunpack.c.h.bf16 %v5090
          %v5319 = vunpack.c.l.bf16 %v5091
          %v5320 = vunpack.c.h.bf16 %v5091
          %v5321 = vunpack.c.l.bf16 %v5092
          %v5322 = vunpack.c.h.bf16 %v5092
          %v5323 = vunpack.c.l.bf16 %v5093
          %v5324 = vunpack.c.h.bf16 %v5093
          %v5325 = vunpack.c.l.bf16 %v5094
          %v5326 = vunpack.c.h.bf16 %v5094
          %v5327 = vunpack.c.l.bf16 %v5095
          %v5328 = vunpack.c.h.bf16 %v5095
          %v5329 = vunpack.c.l.bf16 %v5096
          %v5330 = vunpack.c.h.bf16 %v5096
          %v5331 = vunpack.c.l.bf16 %v5097
          %v5332 = vunpack.c.h.bf16 %v5097
          %v5333 = vunpack.c.l.bf16 %v5098
          %v5334 = vunpack.c.h.bf16 %v5098
          %v5335 = vunpack.c.l.bf16 %v5099
          %v5336 = vunpack.c.h.bf16 %v5099
          %v5337 = vunpack.c.l.bf16 %v5100
          %v5338 = vunpack.c.h.bf16 %v5100
          %v5339 = vunpack.c.l.bf16 %v5101
          %v5340 = vunpack.c.h.bf16 %v5101
          %v5341 = vunpack.c.l.bf16 %v5102
          %v5342 = vunpack.c.h.bf16 %v5102
          %v5343 = vunpack.c.l.bf16 %v5103
          %v5344 = vunpack.c.h.bf16 %v5103
          %v5345 = vunpack.c.l.bf16 %v5104
          %v5346 = vunpack.c.h.bf16 %v5104
          %v5347 = vunpack.c.l.bf16 %v5105
          %v5348 = vunpack.c.h.bf16 %v5105
          %v5349 = vunpack.c.l.bf16 %v5106
          %v5350 = vunpack.c.h.bf16 %v5106
          %v5351 = vunpack.c.l.bf16 %v5107
          %v5352 = vunpack.c.h.bf16 %v5107
          %v5353 = vunpack.c.l.bf16 %v5108
          %v5354 = vunpack.c.h.bf16 %v5108
          %v5355 = vunpack.c.l.bf16 %v5109
          %v5356 = vunpack.c.h.bf16 %v5109
          %v5357 = vunpack.c.l.bf16 %v5110
          %v5358 = vunpack.c.h.bf16 %v5110
          %v5359 = vunpack.c.l.bf16 %v5111
          %v5360 = vunpack.c.h.bf16 %v5111
          %v5361 = vunpack.c.l.bf16 %v5112
          %v5362 = vunpack.c.h.bf16 %v5112
          %v5363 = vunpack.c.l.bf16 %v5113
          %v5364 = vunpack.c.h.bf16 %v5113
          %v5365 = vunpack.c.l.bf16 %v5114
          %v5366 = vunpack.c.h.bf16 %v5114
          %v5367 = vunpack.c.l.bf16 %v5115
          %v5368 = vunpack.c.h.bf16 %v5115
          %v5369 = vunpack.c.l.bf16 %v5116
          %v5370 = vunpack.c.h.bf16 %v5116
          %v5371 = vunpack.c.l.bf16 %v5117
          %v5372 = vunpack.c.h.bf16 %v5117
          %v5373 = vunpack.c.l.bf16 %v5118
          %v5374 = vunpack.c.h.bf16 %v5118
          %v5376 = vcombine.high %v4894, %v4894
          %v5378 = vunpack.c.l.s4 1983009808
          %v5379 = vunpack.c.0.s8 %v5378
          %v5380 = vlaneseq
          %v5381 = vshrl.u32 %v5380, 7
          %v5382 = vsub.s32 %v5379, %v5381
          %v5383 = vrot.slane %v4894, %v5382
          %v5385 = vunpack.c.l.s4 1983009808
          %v5386 = vunpack.c.0.s8 %v5385
          %v5387 = vlaneseq
          %v5388 = vshrl.u32 %v5387, 7
          %v5389 = vsub.s32 %v5386, %v5388
          %v5390 = vrot.slane %v5376, %v5389
          %v5391 = vcombine.high %v5383, %v5383
          %v5392 = vcombine.high %v5390, %v5390
          %5397 = vmatprep.subr.mxu0 %v5120
          %5398 = vmatpush1.msra.mxu0 %v5119
          %5399 = vmatprep.subr.mxu0 %v5124
          %5400 = vmatpush1.msra.mxu0 %v5123
          %5401 = vmatprep.subr.mxu0 %v5128
          %5402 = vmatpush1.msra.mxu0 %v5127
          %5403 = vmatprep.subr.mxu0 %v5132
          %5404 = vmatpush1.msra.mxu0 %v5131
          %5405 = vmatprep.subr.mxu0 %v5136
          %5406 = vmatpush1.msra.mxu0 %v5135
          %5407 = vmatprep.subr.mxu0 %v5140
          %5408 = vmatpush1.msra.mxu0 %v5139
          %5409 = vmatprep.subr.mxu0 %v5144
          %5410 = vmatpush1.msra.mxu0 %v5143
          %5411 = vmatprep.subr.mxu0 %v5148
          %5412 = vmatpush1.msra.mxu0 %v5147
          %5413 = vmatprep.subr.mxu0 %v5152
          %5414 = vmatpush1.msra.mxu0 %v5151
          %5415 = vmatprep.subr.mxu0 %v5156
          %5416 = vmatpush1.msra.mxu0 %v5155
          %5417 = vmatprep.subr.mxu0 %v5160
          %5418 = vmatpush1.msra.mxu0 %v5159
          %5419 = vmatprep.subr.mxu0 %v5164
          %5420 = vmatpush1.msra.mxu0 %v5163
          %5421 = vmatprep.subr.mxu0 %v5168
          %5422 = vmatpush1.msra.mxu0 %v5167
          %5423 = vmatprep.subr.mxu0 %v5172
          %5424 = vmatpush1.msra.mxu0 %v5171
          %5425 = vmatprep.subr.mxu0 %v5176
          %5426 = vmatpush1.msra.mxu0 %v5175
          %5427 = vmatprep.subr.mxu0 %v5180
          %5428 = vmatpush1.msra.mxu0 %v5179
          %5429 = vmatprep.subr.mxu0 %v5184
          %5430 = vmatpush1.msra.mxu0 %v5183
          %5431 = vmatprep.subr.mxu0 %v5188
          %5432 = vmatpush1.msra.mxu0 %v5187
          %5433 = vmatprep.subr.mxu0 %v5192
          %5434 = vmatpush1.msra.mxu0 %v5191
          %5435 = vmatprep.subr.mxu0 %v5196
          %5436 = vmatpush1.msra.mxu0 %v5195
          %5437 = vmatprep.subr.mxu0 %v5200
          %5438 = vmatpush1.msra.mxu0 %v5199
          %5439 = vmatprep.subr.mxu0 %v5204
          %5440 = vmatpush1.msra.mxu0 %v5203
          %5441 = vmatprep.subr.mxu0 %v5208
          %5442 = vmatpush1.msra.mxu0 %v5207
          %5443 = vmatprep.subr.mxu0 %v5212
          %5444 = vmatpush1.msra.mxu0 %v5211
          %5445 = vmatprep.subr.mxu0 %v5216
          %5446 = vmatpush1.msra.mxu0 %v5215
          %5447 = vmatprep.subr.mxu0 %v5220
          %5448 = vmatpush1.msra.mxu0 %v5219
          %5449 = vmatprep.subr.mxu0 %v5224
          %5450 = vmatpush1.msra.mxu0 %v5223
          %5451 = vmatprep.subr.mxu0 %v5228
          %5452 = vmatpush1.msra.mxu0 %v5227
          %5453 = vmatprep.subr.mxu0 %v5232
          %5454 = vmatpush1.msra.mxu0 %v5231
          %5455 = vmatprep.subr.mxu0 %v5236
          %5456 = vmatpush1.msra.mxu0 %v5235
          %5457 = vmatprep.subr.mxu0 %v5240
          %5458 = vmatpush1.msra.mxu0 %v5239
          %5459 = vmatprep.subr.mxu0 %v5244
          %5460 = vmatpush1.msra.mxu0 %v5243
          %5461 = vmatprep.mubr.f32.mxu0 %v5391
          %5462 = vmatmul.mubr.f32.gmra.mrb[0].mxu0 %v5383
          %v5463 = vpop.f32.mrb[0].mxu0
          %v5464 = vadd.f32 0.0, %v5463
          %v5465 = vpop.f32.mrb[0].mxu0
          %v5466 = vadd.f32 0.0, %v5465
          %5467 = vdwg.mxu0
          %5468 = vmatprep.subr.mxu0 %v5248
          %5469 = vmatpush1.msra.mxu0 %v5247
          %5470 = vmatprep.subr.mxu0 %v5252
          %5471 = vmatpush1.msra.mxu0 %v5251
          %5472 = vmatprep.subr.mxu0 %v5256
          %5473 = vmatpush1.msra.mxu0 %v5255
          %5474 = vmatprep.subr.mxu0 %v5260
          %5475 = vmatpush1.msra.mxu0 %v5259
          %5476 = vmatprep.subr.mxu0 %v5264
          %5477 = vmatpush1.msra.mxu0 %v5263
          %5478 = vmatprep.subr.mxu0 %v5268
          %5479 = vmatpush1.msra.mxu0 %v5267
          %5480 = vmatprep.subr.mxu0 %v5272
          %5481 = vmatpush1.msra.mxu0 %v5271
          %5482 = vmatprep.subr.mxu0 %v5276
          %5483 = vmatpush1.msra.mxu0 %v5275
          %5484 = vmatprep.subr.mxu0 %v5280
          %5485 = vmatpush1.msra.mxu0 %v5279
          %5486 = vmatprep.subr.mxu0 %v5284
          %5487 = vmatpush1.msra.mxu0 %v5283
          %5488 = vmatprep.subr.mxu0 %v5288
          %5489 = vmatpush1.msra.mxu0 %v5287
          %5490 = vmatprep.subr.mxu0 %v5292
          %5491 = vmatpush1.msra.mxu0 %v5291
          %5492 = vmatprep.subr.mxu0 %v5296
          %5493 = vmatpush1.msra.mxu0 %v5295
          %5494 = vmatprep.subr.mxu0 %v5300
          %5495 = vmatpush1.msra.mxu0 %v5299
          %5496 = vmatprep.subr.mxu0 %v5304
          %5497 = vmatpush1.msra.mxu0 %v5303
          %5498 = vmatprep.subr.mxu0 %v5308
          %5499 = vmatpush1.msra.mxu0 %v5307
          %5500 = vmatprep.subr.mxu0 %v5312
          %5501 = vmatpush1.msra.mxu0 %v5311
          %5502 = vmatprep.subr.mxu0 %v5316
          %5503 = vmatpush1.msra.mxu0 %v5315
          %5504 = vmatprep.subr.mxu0 %v5320
          %5505 = vmatpush1.msra.mxu0 %v5319
          %5506 = vmatprep.subr.mxu0 %v5324
          %5507 = vmatpush1.msra.mxu0 %v5323
          %5508 = vmatprep.subr.mxu0 %v5328
          %5509 = vmatpush1.msra.mxu0 %v5327
          %5510 = vmatprep.subr.mxu0 %v5332
          %5511 = vmatpush1.msra.mxu0 %v5331
          %5512 = vmatprep.subr.mxu0 %v5336
          %5513 = vmatpush1.msra.mxu0 %v5335
          %5514 = vmatprep.subr.mxu0 %v5340
          %5515 = vmatpush1.msra.mxu0 %v5339
          %5516 = vmatprep.subr.mxu0 %v5344
          %5517 = vmatpush1.msra.mxu0 %v5343
          %5518 = vmatprep.subr.mxu0 %v5348
          %5519 = vmatpush1.msra.mxu0 %v5347
          %5520 = vmatprep.subr.mxu0 %v5352
          %5521 = vmatpush1.msra.mxu0 %v5351
          %5522 = vmatprep.subr.mxu0 %v5356
          %5523 = vmatpush1.msra.mxu0 %v5355
          %5524 = vmatprep.subr.mxu0 %v5360
          %5525 = vmatpush1.msra.mxu0 %v5359
          %5526 = vmatprep.subr.mxu0 %v5364
          %5527 = vmatpush1.msra.mxu0 %v5363
          %5528 = vmatprep.subr.mxu0 %v5368
          %5529 = vmatpush1.msra.mxu0 %v5367
          %5530 = vmatprep.subr.mxu0 %v5372
          %5531 = vmatpush1.msra.mxu0 %v5371
          %5532 = vmatprep.mubr.f32.mxu0 %v5392
          %5533 = vmatmul.mubr.f32.gmra.mrb[0].mxu0 %v5390
          %v5534 = vpop.f32.mrb[0].mxu0
          %v5535 = vadd.f32 %v5464, %v5534
          %v5536 = vpop.f32.mrb[0].mxu0
          %v5537 = vadd.f32 %v5466, %v5536
          %5538 = vdwg.mxu0
          %5539 = vmatprep.subr.mxu0 %v5122
          %5540 = vmatpush1.msra.mxu0 %v5121
          %5541 = vmatprep.subr.mxu0 %v5126
          %5542 = vmatpush1.msra.mxu0 %v5125
          %5543 = vmatprep.subr.mxu0 %v5130
          %5544 = vmatpush1.msra.mxu0 %v5129
          %5545 = vmatprep.subr.mxu0 %v5134
          %5546 = vmatpush1.msra.mxu0 %v5133
          %5547 = vmatprep.subr.mxu0 %v5138
          %5548 = vmatpush1.msra.mxu0 %v5137
          %5549 = vmatprep.subr.mxu0 %v5142
          %5550 = vmatpush1.msra.mxu0 %v5141
          %5551 = vmatprep.subr.mxu0 %v5146
          %5552 = vmatpush1.msra.mxu0 %v5145
          %5553 = vmatprep.subr.mxu0 %v5150
          %5554 = vmatpush1.msra.mxu0 %v5149
          %5555 = vmatprep.subr.mxu0 %v5154
          %5556 = vmatpush1.msra.mxu0 %v5153
          %5557 = vmatprep.subr.mxu0 %v5158
          %5558 = vmatpush1.msra.mxu0 %v5157
          %5559 = vmatprep.subr.mxu0 %v5162
          %5560 = vmatpush1.msra.mxu0 %v5161
          %5561 = vmatprep.subr.mxu0 %v5166
          %5562 = vmatpush1.msra.mxu0 %v5165
          %5563 = vmatprep.subr.mxu0 %v5170
          %5564 = vmatpush1.msra.mxu0 %v5169
          %5565 = vmatprep.subr.mxu0 %v5174
          %5566 = vmatpush1.msra.mxu0 %v5173
          %5567 = vmatprep.subr.mxu0 %v5178
          %5568 = vmatpush1.msra.mxu0 %v5177
          %5569 = vmatprep.subr.mxu0 %v5182
          %5570 = vmatpush1.msra.mxu0 %v5181
          %5571 = vmatprep.subr.mxu0 %v5186
          %5572 = vmatpush1.msra.mxu0 %v5185
          %5573 = vmatprep.subr.mxu0 %v5190
          %5574 = vmatpush1.msra.mxu0 %v5189
          %5575 = vmatprep.subr.mxu0 %v5194
          %5576 = vmatpush1.msra.mxu0 %v5193
          %5577 = vmatprep.subr.mxu0 %v5198
          %5578 = vmatpush1.msra.mxu0 %v5197
          %5579 = vmatprep.subr.mxu0 %v5202
          %5580 = vmatpush1.msra.mxu0 %v5201
          %5581 = vmatprep.subr.mxu0 %v5206
          %5582 = vmatpush1.msra.mxu0 %v5205
          %5583 = vmatprep.subr.mxu0 %v5210
          %5584 = vmatpush1.msra.mxu0 %v5209
          %5585 = vmatprep.subr.mxu0 %v5214
          %5586 = vmatpush1.msra.mxu0 %v5213
          %5587 = vmatprep.subr.mxu0 %v5218
          %5588 = vmatpush1.msra.mxu0 %v5217
          %5589 = vmatprep.subr.mxu0 %v5222
          %5590 = vmatpush1.msra.mxu0 %v5221
          %5591 = vmatprep.subr.mxu0 %v5226
          %5592 = vmatpush1.msra.mxu0 %v5225
          %5593 = vmatprep.subr.mxu0 %v5230
          %5594 = vmatpush1.msra.mxu0 %v5229
          %5595 = vmatprep.subr.mxu0 %v5234
          %5596 = vmatpush1.msra.mxu0 %v5233
          %5597 = vmatprep.subr.mxu0 %v5238
          %5598 = vmatpush1.msra.mxu0 %v5237
          %5599 = vmatprep.subr.mxu0 %v5242
          %5600 = vmatpush1.msra.mxu0 %v5241
          %5601 = vmatprep.subr.mxu0 %v5246
          %5602 = vmatpush1.msra.mxu0 %v5245
          %5603 = vmatprep.mubr.f32.mxu0 %v5391
          %5604 = vmatmul.mubr.f32.gmra.mrb[0].mxu0 %v5383
          %v5605 = vpop.f32.mrb[0].mxu0
          %v5606 = vadd.f32 0.0, %v5605
          %v5607 = vpop.f32.mrb[0].mxu0
          %v5608 = vadd.f32 0.0, %v5607
          %5609 = vdwg.mxu0
          %5610 = vmatprep.subr.mxu0 %v5250
          %5611 = vmatpush1.msra.mxu0 %v5249
          %5612 = vmatprep.subr.mxu0 %v5254
          %5613 = vmatpush1.msra.mxu0 %v5253
          %5614 = vmatprep.subr.mxu0 %v5258
          %5615 = vmatpush1.msra.mxu0 %v5257
          %5616 = vmatprep.subr.mxu0 %v5262
          %5617 = vmatpush1.msra.mxu0 %v5261
          %5618 = vmatprep.subr.mxu0 %v5266
          %5619 = vmatpush1.msra.mxu0 %v5265
          %5620 = vmatprep.subr.mxu0 %v5270
          %5621 = vmatpush1.msra.mxu0 %v5269
          %5622 = vmatprep.subr.mxu0 %v5274
          %5623 = vmatpush1.msra.mxu0 %v5273
          %5624 = vmatprep.subr.mxu0 %v5278
          %5625 = vmatpush1.msra.mxu0 %v5277
          %5626 = vmatprep.subr.mxu0 %v5282
          %5627 = vmatpush1.msra.mxu0 %v5281
          %5628 = vmatprep.subr.mxu0 %v5286
          %5629 = vmatpush1.msra.mxu0 %v5285
          %5630 = vmatprep.subr.mxu0 %v5290
          %5631 = vmatpush1.msra.mxu0 %v5289
          %5632 = vmatprep.subr.mxu0 %v5294
          %5633 = vmatpush1.msra.mxu0 %v5293
          %5634 = vmatprep.subr.mxu0 %v5298
          %5635 = vmatpush1.msra.mxu0 %v5297
          %5636 = vmatprep.subr.mxu0 %v5302
          %5637 = vmatpush1.msra.mxu0 %v5301
          %5638 = vmatprep.subr.mxu0 %v5306
          %5639 = vmatpush1.msra.mxu0 %v5305
          %5640 = vmatprep.subr.mxu0 %v5310
          %5641 = vmatpush1.msra.mxu0 %v5309
          %5642 = vmatprep.subr.mxu0 %v5314
          %5643 = vmatpush1.msra.mxu0 %v5313
          %5644 = vmatprep.subr.mxu0 %v5318
          %5645 = vmatpush1.msra.mxu0 %v5317
          %5646 = vmatprep.subr.mxu0 %v5322
          %5647 = vmatpush1.msra.mxu0 %v5321
          %5648 = vmatprep.subr.mxu0 %v5326
          %5649 = vmatpush1.msra.mxu0 %v5325
          %5650 = vmatprep.subr.mxu0 %v5330
          %5651 = vmatpush1.msra.mxu0 %v5329
          %5652 = vmatprep.subr.mxu0 %v5334
          %5653 = vmatpush1.msra.mxu0 %v5333
          %5654 = vmatprep.subr.mxu0 %v5338
          %5655 = vmatpush1.msra.mxu0 %v5337
          %5656 = vmatprep.subr.mxu0 %v5342
          %5657 = vmatpush1.msra.mxu0 %v5341
          %5658 = vmatprep.subr.mxu0 %v5346
          %5659 = vmatpush1.msra.mxu0 %v5345
          %5660 = vmatprep.subr.mxu0 %v5350
          %5661 = vmatpush1.msra.mxu0 %v5349
          %5662 = vmatprep.subr.mxu0 %v5354
          %5663 = vmatpush1.msra.mxu0 %v5353
          %5664 = vmatprep.subr.mxu0 %v5358
          %5665 = vmatpush1.msra.mxu0 %v5357
          %5666 = vmatprep.subr.mxu0 %v5362
          %5667 = vmatpush1.msra.mxu0 %v5361
          %5668 = vmatprep.subr.mxu0 %v5366
          %5669 = vmatpush1.msra.mxu0 %v5365
          %5670 = vmatprep.subr.mxu0 %v5370
          %5671 = vmatpush1.msra.mxu0 %v5369
          %5672 = vmatprep.subr.mxu0 %v5374
          %5673 = vmatpush1.msra.mxu0 %v5373
          %5674 = vmatprep.mubr.f32.mxu0 %v5392
          %5675 = vmatmul.mubr.f32.gmra.mrb[0].mxu0 %v5390
          %v5676 = vpop.f32.mrb[0].mxu0
          %v5677 = vadd.f32 %v5606, %v5676
          %v5678 = vpop.f32.mrb[0].mxu0
          %v5679 = vadd.f32 %v5608, %v5678
          %5680 = vdwg.mxu0
          %5681 = vmatprep.subr.mxu0 %v4928
          %5682 = vmatpush1.msra.mxu0 %v4927
          %5683 = vmatprep.subr.mxu0 %v4932
          %5684 = vmatpush1.msra.mxu0 %v4931
          %5685 = vmatprep.subr.mxu0 %v4936
          %5686 = vmatpush1.msra.mxu0 %v4935
          %5687 = vmatprep.subr.mxu0 %v4940
          %5688 = vmatpush1.msra.mxu0 %v4939
          %5689 = vmatprep.subr.mxu0 %v4944
          %5690 = vmatpush1.msra.mxu0 %v4943
          %5691 = vmatprep.subr.mxu0 %v4948
          %5692 = vmatpush1.msra.mxu0 %v4947
          %5693 = vmatprep.subr.mxu0 %v4952
          %5694 = vmatpush1.msra.mxu0 %v4951
          %5695 = vmatprep.subr.mxu0 %v4956
          %5696 = vmatpush1.msra.mxu0 %v4955
          %5697 = vmatprep.subr.mxu0 %v4960
          %5698 = vmatpush1.msra.mxu0 %v4959
          %5699 = vmatprep.subr.mxu0 %v4964
          %5700 = vmatpush1.msra.mxu0 %v4963
          %5701 = vmatprep.subr.mxu0 %v4968
          %5702 = vmatpush1.msra.mxu0 %v4967
          %5703 = vmatprep.subr.mxu0 %v4972
          %5704 = vmatpush1.msra.mxu0 %v4971
          %5705 = vmatprep.subr.mxu0 %v4976
          %5706 = vmatpush1.msra.mxu0 %v4975
          %5707 = vmatprep.subr.mxu0 %v4980
          %5708 = vmatpush1.msra.mxu0 %v4979
          %5709 = vmatprep.subr.mxu0 %v4984
          %5710 = vmatpush1.msra.mxu0 %v4983
          %5711 = vmatprep.subr.mxu0 %v4988
          %5712 = vmatpush1.msra.mxu0 %v4987
          %5713 = vmatprep.subr.mxu0 0.0
          %5714 = vmatpush1.msra.mxu0 0.0
          %5715 = vmatprep.subr.mxu0 0.0
          %5716 = vmatpush1.msra.mxu0 0.0
          %5717 = vmatprep.subr.mxu0 0.0
          %5718 = vmatpush1.msra.mxu0 0.0
          %5719 = vmatprep.subr.mxu0 0.0
          %5720 = vmatpush1.msra.mxu0 0.0
          %5721 = vmatprep.subr.mxu0 0.0
          %5722 = vmatpush1.msra.mxu0 0.0
          %5723 = vmatprep.subr.mxu0 0.0
          %5724 = vmatpush1.msra.mxu0 0.0
          %5725 = vmatprep.subr.mxu0 0.0
          %5726 = vmatpush1.msra.mxu0 0.0
          %5727 = vmatprep.subr.mxu0 0.0
          %5728 = vmatpush1.msra.mxu0 0.0
          %5729 = vmatprep.subr.mxu0 0.0
          %5730 = vmatpush1.msra.mxu0 0.0
          %5731 = vmatprep.subr.mxu0 0.0
          %5732 = vmatpush1.msra.mxu0 0.0
          %5733 = vmatprep.subr.mxu0 0.0
          %5734 = vmatpush1.msra.mxu0 0.0
          %5735 = vmatprep.subr.mxu0 0.0
          %5736 = vmatpush1.msra.mxu0 0.0
          %5737 = vmatprep.subr.mxu0 0.0
          %5738 = vmatpush1.msra.mxu0 0.0
          %5739 = vmatprep.subr.mxu0 0.0
          %5740 = vmatpush1.msra.mxu0 0.0
          %5741 = vmatprep.subr.mxu0 0.0
          %5742 = vmatpush1.msra.mxu0 0.0
          %5743 = vmatprep.subr.mxu0 0.0
          %5744 = vmatpush1.msra.mxu0 0.0
          %5745 = vmatprep.mubr.f32.mxu0 0.0
          %5746 = vmatmul.mubr.f32.gmra.mrb[0].mxu0 %v4891
          %v5747 = vpop.f32.mrb[0].mxu0
          %v5748 = vadd.f32 %v5535, %v5747
          %v5749 = vpop.f32.mrb[0].mxu0
          %v5750 = vadd.f32 %v5537, %v5749
          %5751 = vdwg.mxu0
          %5752 = vmatprep.subr.mxu0 %v4930
          %5753 = vmatpush1.msra.mxu0 %v4929
          %5754 = vmatprep.subr.mxu0 %v4934
          %5755 = vmatpush1.msra.mxu0 %v4933
          %5756 = vmatprep.subr.mxu0 %v4938
          %5757 = vmatpush1.msra.mxu0 %v4937
          %5758 = vmatprep.subr.mxu0 %v4942
          %5759 = vmatpush1.msra.mxu0 %v4941
          %5760 = vmatprep.subr.mxu0 %v4946
          %5761 = vmatpush1.msra.mxu0 %v4945
          %5762 = vmatprep.subr.mxu0 %v4950
          %5763 = vmatpush1.msra.mxu0 %v4949
          %5764 = vmatprep.subr.mxu0 %v4954
          %5765 = vmatpush1.msra.mxu0 %v4953
          %5766 = vmatprep.subr.mxu0 %v4958
          %5767 = vmatpush1.msra.mxu0 %v4957
          %5768 = vmatprep.subr.mxu0 %v4962
          %5769 = vmatpush1.msra.mxu0 %v4961
          %5770 = vmatprep.subr.mxu0 %v4966
          %5771 = vmatpush1.msra.mxu0 %v4965
          %5772 = vmatprep.subr.mxu0 %v4970
          %5773 = vmatpush1.msra.mxu0 %v4969
          %5774 = vmatprep.subr.mxu0 %v4974
          %5775 = vmatpush1.msra.mxu0 %v4973
          %5776 = vmatprep.subr.mxu0 %v4978
          %5777 = vmatpush1.msra.mxu0 %v4977
          %5778 = vmatprep.subr.mxu0 %v4982
          %5779 = vmatpush1.msra.mxu0 %v4981
          %5780 = vmatprep.subr.mxu0 %v4986
          %5781 = vmatpush1.msra.mxu0 %v4985
          %5782 = vmatprep.subr.mxu0 %v4990
          %5783 = vmatpush1.msra.mxu0 %v4989
          %5784 = vmatprep.subr.mxu0 0.0
          %5785 = vmatpush1.msra.mxu0 0.0
          %5786 = vmatprep.subr.mxu0 0.0
          %5787 = vmatpush1.msra.mxu0 0.0
          %5788 = vmatprep.subr.mxu0 0.0
          %5789 = vmatpush1.msra.mxu0 0.0
          %5790 = vmatprep.subr.mxu0 0.0
          %5791 = vmatpush1.msra.mxu0 0.0
          %5792 = vmatprep.subr.mxu0 0.0
          %5793 = vmatpush1.msra.mxu0 0.0
          %5794 = vmatprep.subr.mxu0 0.0
          %5795 = vmatpush1.msra.mxu0 0.0
          %5796 = vmatprep.subr.mxu0 0.0
          %5797 = vmatpush1.msra.mxu0 0.0
          %5798 = vmatprep.subr.mxu0 0.0
          %5799 = vmatpush1.msra.mxu0 0.0
          %5800 = vmatprep.subr.mxu0 0.0
          %5801 = vmatpush1.msra.mxu0 0.0
          %5802 = vmatprep.subr.mxu0 0.0
          %5803 = vmatpush1.msra.mxu0 0.0
          %5804 = vmatprep.subr.mxu0 0.0
          %5805 = vmatpush1.msra.mxu0 0.0
          %5806 = vmatprep.subr.mxu0 0.0
          %5807 = vmatpush1.msra.mxu0 0.0
          %5808 = vmatprep.subr.mxu0 0.0
          %5809 = vmatpush1.msra.mxu0 0.0
          %5810 = vmatprep.subr.mxu0 0.0
          %5811 = vmatpush1.msra.mxu0 0.0
          %5812 = vmatprep.subr.mxu0 0.0
          %5813 = vmatpush1.msra.mxu0 0.0
          %5814 = vmatprep.subr.mxu0 0.0
          %5815 = vmatpush1.msra.mxu0 0.0
          %5816 = vmatprep.mubr.f32.mxu0 0.0
          %5817 = vmatmul.mubr.f32.gmra.mrb[0].mxu0 %v4891
          %v5818 = vpop.f32.mrb[0].mxu0
          %v5819 = vadd.f32 %v5677, %v5818
          %v5820 = vpop.f32.mrb[0].mxu0
          %v5821 = vadd.f32 %v5679, %v5820
          %5822 = vdwg.mxu0
          %v5823 = vld [vmem:[#allocation20] sm:$0xf]
          %v5825 = vlaneseq
          %v5826 = vshrl.u32 %v5825, 7
          %v5827 = vsub.s32 0, %v5826
          %v5828 = vrot.slane %v5823, %v5827
          %v5829 = vlaneseq
          %v5830 = vshrl.u32 %v5829, 7
          %v5831 = vsub.s32 1, %v5830
          %v5832 = vrot.slane %v5823, %v5831
          %v5833 = vlaneseq
          %v5834 = vshrl.u32 %v5833, 7
          %v5835 = vsub.s32 2, %v5834
          %v5836 = vrot.slane %v5823, %v5835
          %v5837 = vlaneseq
          %v5838 = vshrl.u32 %v5837, 7
          %v5839 = vsub.s32 3, %v5838
          %v5840 = vrot.slane %v5823, %v5839
          %v5845 = vadd.f32 %v5748, %v5828
          %v5846 = vadd.f32 %v5750, %v5832
          %v5847 = vadd.f32 %v5819, %v5836
          %v5848 = vadd.f32 %v5821, %v5840
          %v5849 = vmax.f32 %v5845, 0.0
          %v5850 = vmax.f32 %v5846, 0.0
          %v5851 = vmax.f32 %v5847, 0.0
          %v5852 = vmax.f32 %v5848, 0.0
          %v5853 = vld [vmem:[#allocation21] sm:$0xf]
          %v5854 = vld [vmem:[#allocation21 + $0x4] sm:$0xf]
          %v5855 = vld [vmem:[#allocation21 + $0x8] sm:$0xf]
          %v5856 = vld [vmem:[#allocation21 + $0xc] sm:$0xf]
          %v5857 = vld [vmem:[#allocation21 + $0x10] sm:$0xf]
          %v5858 = vld [vmem:[#allocation21 + $0x14] sm:$0xf]
          %v5859 = vld [vmem:[#allocation21 + $0x18] sm:$0xf]
          %v5860 = vld [vmem:[#allocation21 + $0x1c] sm:$0xf]
          %v5861 = vld [vmem:[#allocation21 + $0x20] sm:$0xf]
          %v5862 = vld [vmem:[#allocation21 + $0x24] sm:$0xf]
          %v5863 = vld [vmem:[#allocation21 + $0x28] sm:$0xf]
          %v5864 = vld [vmem:[#allocation21 + $0x2c] sm:$0xf]
          %v5865 = vld [vmem:[#allocation21 + $0x30] sm:$0xf]
          %v5866 = vld [vmem:[#allocation21 + $0x34] sm:$0xf]
          %v5867 = vld [vmem:[#allocation21 + $0x38] sm:$0xf]
          %v5868 = vld [vmem:[#allocation21 + $0x3c] sm:$0xf]
          %v5869 = vld [vmem:[#allocation21 + $0x40] sm:$0xf]
          %v5870 = vld [vmem:[#allocation21 + $0x44] sm:$0xf]
          %v5871 = vld [vmem:[#allocation21 + $0x48] sm:$0xf]
          %v5872 = vld [vmem:[#allocation21 + $0x4c] sm:$0xf]
          %v5873 = vld [vmem:[#allocation21 + $0x50] sm:$0xf]
          %v5874 = vld [vmem:[#allocation21 + $0x54] sm:$0xf]
          %v5875 = vld [vmem:[#allocation21 + $0x58] sm:$0xf]
          %v5876 = vld [vmem:[#allocation21 + $0x5c] sm:$0xf]
          %v5877 = vld [vmem:[#allocation21 + $0x60] sm:$0xf]
          %v5878 = vld [vmem:[#allocation21 + $0x64] sm:$0xf]
          %v5879 = vld [vmem:[#allocation21 + $0x68] sm:$0xf]
          %v5880 = vld [vmem:[#allocation21 + $0x6c] sm:$0xf]
          %v5881 = vld [vmem:[#allocation21 + $0x70] sm:$0xf]
          %v5882 = vld [vmem:[#allocation21 + $0x74] sm:$0xf]
          %v5883 = vld [vmem:[#allocation21 + $0x78] sm:$0xf]
          %v5884 = vld [vmem:[#allocation21 + $0x7c] sm:$0xf]
          %v5885 = vld [vmem:[#allocation21 + $0x80] sm:$0xf]
          %v5886 = vld [vmem:[#allocation21 + $0x84] sm:$0xf]
          %v5887 = vld [vmem:[#allocation21 + $0x88] sm:$0xf]
          %v5888 = vld [vmem:[#allocation21 + $0x8c] sm:$0xf]
          %v5889 = vld [vmem:[#allocation21 + $0x90] sm:$0xf]
          %v5890 = vld [vmem:[#allocation21 + $0x94] sm:$0xf]
          %v5891 = vld [vmem:[#allocation21 + $0x98] sm:$0xf]
          %v5892 = vld [vmem:[#allocation21 + $0x9c] sm:$0xf]
          %v5893 = vld [vmem:[#allocation21 + $0xa0] sm:$0xf]
          %v5894 = vld [vmem:[#allocation21 + $0xa4] sm:$0xf]
          %v5895 = vld [vmem:[#allocation21 + $0xa8] sm:$0xf]
          %v5896 = vld [vmem:[#allocation21 + $0xac] sm:$0xf]
          %v5897 = vld [vmem:[#allocation21 + $0xb0] sm:$0xf]
          %v5898 = vld [vmem:[#allocation21 + $0xb4] sm:$0xf]
          %v5899 = vld [vmem:[#allocation21 + $0xb8] sm:$0xf]
          %v5900 = vld [vmem:[#allocation21 + $0xbc] sm:$0xf]
          %v5901 = vld [vmem:[#allocation21 + $0xc0] sm:$0xf]
          %v5902 = vld [vmem:[#allocation21 + $0xc4] sm:$0xf]
          %v5903 = vld [vmem:[#allocation21 + $0xc8] sm:$0xf]
          %v5904 = vld [vmem:[#allocation21 + $0xcc] sm:$0xf]
          %v5905 = vld [vmem:[#allocation21 + $0xd0] sm:$0xf]
          %v5906 = vld [vmem:[#allocation21 + $0xd4] sm:$0xf]
          %v5907 = vld [vmem:[#allocation21 + $0xd8] sm:$0xf]
          %v5908 = vld [vmem:[#allocation21 + $0xdc] sm:$0xf]
          %v5909 = vld [vmem:[#allocation21 + $0xe0] sm:$0xf]
          %v5910 = vld [vmem:[#allocation21 + $0xe4] sm:$0xf]
          %v5911 = vld [vmem:[#allocation21 + $0xe8] sm:$0xf]
          %v5912 = vld [vmem:[#allocation21 + $0xec] sm:$0xf]
          %v5913 = vld [vmem:[#allocation21 + $0xf0] sm:$0xf]
          %v5914 = vld [vmem:[#allocation21 + $0xf4] sm:$0xf]
          %v5915 = vld [vmem:[#allocation21 + $0xf8] sm:$0xf]
          %v5916 = vld [vmem:[#allocation21 + $0xfc] sm:$0xf]
          %v5917 = vunpack.c.l.bf16 %v5853
          %v5918 = vunpack.c.l.bf16 %v5854
          %v5919 = vunpack.c.l.bf16 %v5855
          %v5920 = vunpack.c.l.bf16 %v5856
          %v5921 = vunpack.c.l.bf16 %v5857
          %v5922 = vunpack.c.l.bf16 %v5858
          %v5923 = vunpack.c.l.bf16 %v5859
          %v5924 = vunpack.c.l.bf16 %v5860
          %v5925 = vunpack.c.l.bf16 %v5861
          %v5926 = vunpack.c.l.bf16 %v5862
          %v5927 = vunpack.c.l.bf16 %v5863
          %v5928 = vunpack.c.l.bf16 %v5864
          %v5929 = vunpack.c.l.bf16 %v5865
          %v5930 = vunpack.c.l.bf16 %v5866
          %v5931 = vunpack.c.l.bf16 %v5867
          %v5932 = vunpack.c.l.bf16 %v5868
          %v5933 = vunpack.c.l.bf16 %v5869
          %v5934 = vunpack.c.l.bf16 %v5870
          %v5935 = vunpack.c.l.bf16 %v5871
          %v5936 = vunpack.c.l.bf16 %v5872
          %v5937 = vunpack.c.l.bf16 %v5873
          %v5938 = vunpack.c.l.bf16 %v5874
          %v5939 = vunpack.c.l.bf16 %v5875
          %v5940 = vunpack.c.l.bf16 %v5876
          %v5941 = vunpack.c.l.bf16 %v5877
          %v5942 = vunpack.c.l.bf16 %v5878
          %v5943 = vunpack.c.l.bf16 %v5879
          %v5944 = vunpack.c.l.bf16 %v5880
          %v5945 = vunpack.c.l.bf16 %v5881
          %v5946 = vunpack.c.l.bf16 %v5882
          %v5947 = vunpack.c.l.bf16 %v5883
          %v5948 = vunpack.c.l.bf16 %v5884
          %v5949 = vunpack.c.l.bf16 %v5885
          %v5950 = vunpack.c.l.bf16 %v5886
          %v5951 = vunpack.c.l.bf16 %v5887
          %v5952 = vunpack.c.l.bf16 %v5888
          %v5953 = vunpack.c.l.bf16 %v5889
          %v5954 = vunpack.c.l.bf16 %v5890
          %v5955 = vunpack.c.l.bf16 %v5891
          %v5956 = vunpack.c.l.bf16 %v5892
          %v5957 = vunpack.c.l.bf16 %v5893
          %v5958 = vunpack.c.l.bf16 %v5894
          %v5959 = vunpack.c.l.bf16 %v5895
          %v5960 = vunpack.c.l.bf16 %v5896
          %v5961 = vunpack.c.l.bf16 %v5897
          %v5962 = vunpack.c.l.bf16 %v5898
          %v5963 = vunpack.c.l.bf16 %v5899
          %v5964 = vunpack.c.l.bf16 %v5900
          %v5965 = vunpack.c.l.bf16 %v5901
          %v5966 = vunpack.c.l.bf16 %v5902
          %v5967 = vunpack.c.l.bf16 %v5903
          %v5968 = vunpack.c.l.bf16 %v5904
          %v5969 = vunpack.c.l.bf16 %v5905
          %v5970 = vunpack.c.l.bf16 %v5906
          %v5971 = vunpack.c.l.bf16 %v5907
          %v5972 = vunpack.c.l.bf16 %v5908
          %v5973 = vunpack.c.l.bf16 %v5909
          %v5974 = vunpack.c.l.bf16 %v5910
          %v5975 = vunpack.c.l.bf16 %v5911
          %v5976 = vunpack.c.l.bf16 %v5912
          %v5977 = vunpack.c.l.bf16 %v5913
          %v5978 = vunpack.c.l.bf16 %v5914
          %v5979 = vunpack.c.l.bf16 %v5915
          %v5980 = vunpack.c.l.bf16 %v5916
          %v5981 = vld [vmem:[#allocation23] sm:$0x1]
          %v5983 = vlaneseq
          %v5984 = vshrl.u32 %v5983, 7
          %v5985 = vsub.s32 0, %v5984
          %v5986 = vrot.slane %v5981, %v5985
          %5988 = vmatprep.subr.mxu0 0.0
          %5989 = vmatpush1.msra.mxu0 %v5917
          %5990 = vmatprep.subr.mxu0 0.0
          %5991 = vmatpush1.msra.mxu0 %v5918
          %5992 = vmatprep.subr.mxu0 0.0
          %5993 = vmatpush1.msra.mxu0 %v5919
          %5994 = vmatprep.subr.mxu0 0.0
          %5995 = vmatpush1.msra.mxu0 %v5920
          %5996 = vmatprep.subr.mxu0 0.0
          %5997 = vmatpush1.msra.mxu0 %v5921
          %5998 = vmatprep.subr.mxu0 0.0
          %5999 = vmatpush1.msra.mxu0 %v5922
          %6000 = vmatprep.subr.mxu0 0.0
          %6001 = vmatpush1.msra.mxu0 %v5923
          %6002 = vmatprep.subr.mxu0 0.0
          %6003 = vmatpush1.msra.mxu0 %v5924
          %6004 = vmatprep.subr.mxu0 0.0
          %6005 = vmatpush1.msra.mxu0 %v5925
          %6006 = vmatprep.subr.mxu0 0.0
          %6007 = vmatpush1.msra.mxu0 %v5926
          %6008 = vmatprep.subr.mxu0 0.0
          %6009 = vmatpush1.msra.mxu0 %v5927
          %6010 = vmatprep.subr.mxu0 0.0
          %6011 = vmatpush1.msra.mxu0 %v5928
          %6012 = vmatprep.subr.mxu0 0.0
          %6013 = vmatpush1.msra.mxu0 %v5929
          %6014 = vmatprep.subr.mxu0 0.0
          %6015 = vmatpush1.msra.mxu0 %v5930
          %6016 = vmatprep.subr.mxu0 0.0
          %6017 = vmatpush1.msra.mxu0 %v5931
          %6018 = vmatprep.subr.mxu0 0.0
          %6019 = vmatpush1.msra.mxu0 %v5932
          %6020 = vmatprep.subr.mxu0 0.0
          %6021 = vmatpush1.msra.mxu0 %v5933
          %6022 = vmatprep.subr.mxu0 0.0
          %6023 = vmatpush1.msra.mxu0 %v5934
          %6024 = vmatprep.subr.mxu0 0.0
          %6025 = vmatpush1.msra.mxu0 %v5935
          %6026 = vmatprep.subr.mxu0 0.0
          %6027 = vmatpush1.msra.mxu0 %v5936
          %6028 = vmatprep.subr.mxu0 0.0
          %6029 = vmatpush1.msra.mxu0 %v5937
          %6030 = vmatprep.subr.mxu0 0.0
          %6031 = vmatpush1.msra.mxu0 %v5938
          %6032 = vmatprep.subr.mxu0 0.0
          %6033 = vmatpush1.msra.mxu0 %v5939
          %6034 = vmatprep.subr.mxu0 0.0
          %6035 = vmatpush1.msra.mxu0 %v5940
          %6036 = vmatprep.subr.mxu0 0.0
          %6037 = vmatpush1.msra.mxu0 %v5941
          %6038 = vmatprep.subr.mxu0 0.0
          %6039 = vmatpush1.msra.mxu0 %v5942
          %6040 = vmatprep.subr.mxu0 0.0
          %6041 = vmatpush1.msra.mxu0 %v5943
          %6042 = vmatprep.subr.mxu0 0.0
          %6043 = vmatpush1.msra.mxu0 %v5944
          %6044 = vmatprep.subr.mxu0 0.0
          %6045 = vmatpush1.msra.mxu0 %v5945
          %6046 = vmatprep.subr.mxu0 0.0
          %6047 = vmatpush1.msra.mxu0 %v5946
          %6048 = vmatprep.subr.mxu0 0.0
          %6049 = vmatpush1.msra.mxu0 %v5947
          %6050 = vmatprep.subr.mxu0 0.0
          %6051 = vmatpush1.msra.mxu0 %v5948
          %6052 = vmatprep.mubr.f32.mxu0 %v5850
          %6053 = vmatmul.mubr.f32.gmra.mrb[0].mxu0 %v5849
          %v6054 = vpop.f32.mrb[0].mxu0
          %v6055 = vadd.f32 %v5986, %v6054
          %v6056 = vpop.f32.mrb[0].mxu0
          %6057 = vdwg.mxu0
          %6058 = vmatprep.subr.mxu0 0.0
          %6059 = vmatpush1.msra.mxu0 %v5949
          %6060 = vmatprep.subr.mxu0 0.0
          %6061 = vmatpush1.msra.mxu0 %v5950
          %6062 = vmatprep.subr.mxu0 0.0
          %6063 = vmatpush1.msra.mxu0 %v5951
          %6064 = vmatprep.subr.mxu0 0.0
          %6065 = vmatpush1.msra.mxu0 %v5952
          %6066 = vmatprep.subr.mxu0 0.0
          %6067 = vmatpush1.msra.mxu0 %v5953
          %6068 = vmatprep.subr.mxu0 0.0
          %6069 = vmatpush1.msra.mxu0 %v5954
          %6070 = vmatprep.subr.mxu0 0.0
          %6071 = vmatpush1.msra.mxu0 %v5955
          %6072 = vmatprep.subr.mxu0 0.0
          %6073 = vmatpush1.msra.mxu0 %v5956
          %6074 = vmatprep.subr.mxu0 0.0
          %6075 = vmatpush1.msra.mxu0 %v5957
          %6076 = vmatprep.subr.mxu0 0.0
          %6077 = vmatpush1.msra.mxu0 %v5958
          %6078 = vmatprep.subr.mxu0 0.0
          %6079 = vmatpush1.msra.mxu0 %v5959
          %6080 = vmatprep.subr.mxu0 0.0
          %6081 = vmatpush1.msra.mxu0 %v5960
          %6082 = vmatprep.subr.mxu0 0.0
          %6083 = vmatpush1.msra.mxu0 %v5961
          %6084 = vmatprep.subr.mxu0 0.0
          %6085 = vmatpush1.msra.mxu0 %v5962
          %6086 = vmatprep.subr.mxu0 0.0
          %6087 = vmatpush1.msra.mxu0 %v5963
          %6088 = vmatprep.subr.mxu0 0.0
          %6089 = vmatpush1.msra.mxu0 %v5964
          %6090 = vmatprep.subr.mxu0 0.0
          %6091 = vmatpush1.msra.mxu0 %v5965
          %6092 = vmatprep.subr.mxu0 0.0
          %6093 = vmatpush1.msra.mxu0 %v5966
          %6094 = vmatprep.subr.mxu0 0.0
          %6095 = vmatpush1.msra.mxu0 %v5967
          %6096 = vmatprep.subr.mxu0 0.0
          %6097 = vmatpush1.msra.mxu0 %v5968
          %6098 = vmatprep.subr.mxu0 0.0
          %6099 = vmatpush1.msra.mxu0 %v5969
          %6100 = vmatprep.subr.mxu0 0.0
          %6101 = vmatpush1.msra.mxu0 %v5970
          %6102 = vmatprep.subr.mxu0 0.0
          %6103 = vmatpush1.msra.mxu0 %v5971
          %6104 = vmatprep.subr.mxu0 0.0
          %6105 = vmatpush1.msra.mxu0 %v5972
          %6106 = vmatprep.subr.mxu0 0.0
          %6107 = vmatpush1.msra.mxu0 %v5973
          %6108 = vmatprep.subr.mxu0 0.0
          %6109 = vmatpush1.msra.mxu0 %v5974
          %6110 = vmatprep.subr.mxu0 0.0
          %6111 = vmatpush1.msra.mxu0 %v5975
          %6112 = vmatprep.subr.mxu0 0.0
          %6113 = vmatpush1.msra.mxu0 %v5976
          %6114 = vmatprep.subr.mxu0 0.0
          %6115 = vmatpush1.msra.mxu0 %v5977
          %6116 = vmatprep.subr.mxu0 0.0
          %6117 = vmatpush1.msra.mxu0 %v5978
          %6118 = vmatprep.subr.mxu0 0.0
          %6119 = vmatpush1.msra.mxu0 %v5979
          %6120 = vmatprep.subr.mxu0 0.0
          %6121 = vmatpush1.msra.mxu0 %v5980
          %6122 = vmatprep.mubr.f32.mxu0 %v5852
          %6123 = vmatmul.mubr.f32.gmra.mrb[0].mxu0 %v5851
          %v6124 = vpop.f32.mrb[0].mxu0
          %v6125 = vadd.f32 %v6055, %v6124
          %v6126 = vpop.f32.mrb[0].mxu0
          %6127 = vdwg.mxu0
          %6128 = vst [vmem:[%s14] sm:$0x3] %v6125
        $region136: #{nn_model_nlp_head.1} parent=75 // pred_fallthru
          _
        // Predicated region
        $region137: #{nn_model_nlp_head.1} parent=75 // pred_check
          %p6129 = pneg %p351
        $region138: #{nn_model_nlp_head.1} parent=75 // pred_check_branch
          %6131 = sbr.rel (%p6129) target = $region140
        $region139: #{nn_model_nlp_head.1} parent=75 // pred_region
          _
        $region140: #{nn_model_nlp_head.1} parent=75 // pred_fallthru
          _
        // Predicated region
        $region141: #{nn_model_nlp_head.1} parent=75 // pred_check
          %p6132 = pneg %p351
        $region142: #{nn_model_nlp_head.1} parent=75 // pred_check_branch
          %6134 = sbr.rel (%p6132) target = $region144
        $region143: #{nn_model_nlp_head.1} parent=75 // pred_region
          _
        $region144: #{nn_model_nlp_head.1} parent=75 // pred_fallthru
          _
      $region76: #{nn_model_nlp_head.1} parent=5 // pred_fallthru
        _
      %p6135 = scmp.le.s32.totalorder 2, %s29
      // Predicated region
      $region145: #{nn_model_nlp_head.1} parent=5 // pred_check
        %p6136 = pneg %p6135
      $region146: #{nn_model_nlp_head.1} parent=5 // pred_check_branch
        %6138 = sbr.rel (%p6136) target = $region148
      $region147: #{nn_model_nlp_head.1} parent=5 // pred_region
        %s6139 = ssub.s32 %s29, 2
      $region148: #{nn_model_nlp_head.1} parent=5 // pred_fallthru
        _
    $region6: #{nn_model_nlp_head.1} parent=1 // loop_footer
      %s33 = sadd.s32 1, %s29
    $region7: #{nn_model_nlp_head.1} parent=1 // loop_footer_branch
      %28 = sbr.rel target = $region3
    $region8: #{nn_model_nlp_head.1} parent=1 // loop_exit
      _
    %6140 = vsyncpa [#allocation5], 1
    %s6141 = scalar_lea.sflag [#allocation5], 1
    %6142 = vsyncpa %s6141, 1
    %6143 = vsyncpa [#allocation7], 1
    %s6144 = scalar_lea.sflag [#allocation7], 1
    %6145 = vsyncpa %s6144, 1
    %6146 = vsyncpa [#allocation10], 1
    %6147 = vsyncpa [#allocation13], 1
    %6148 = vsyncpa [#allocation16], 1
    %6149 = vsyncpa [#allocation19], 1
    %6150 = vsyncpa [#allocation22], 1

</llo_original>
